<compile_context>
chip_gen: v7x
topology: tpu7x:2x2x1
jax: 0.10.0
libtpu: 0.0.40
codegen_flags: <defaults>
</compile_context>

<pallas_src>
import math

import jax
import jax.numpy as jnp
from jax import lax
from jax.experimental import pallas as pl
from jax.experimental.pallas import tpu as pltpu

EPS = 1e-6          # module's self.eps
NORM_EPS = 1e-12    # torch.nn.functional.normalize default eps


def _pick_t_chunk(output_size: int, hidden_size: int) -> int:
    """Largest divisor of output_size with bounded unroll (prefers t_chunk*H
    reaching a lane-dense 128-multiple for the chunk store)."""
    cap = max(1, 256 // hidden_size)
    best = 1
    for d in range(1, output_size + 1):
        if output_size % d == 0 and d <= cap:
            best = d
    return best


def _make_kernel(num_heads: int, hidden_size: int, input_size: int, t_chunk: int):
    H, D = hidden_size, input_size
    G = 4 * H                                   # LSTM gate width

    def kernel(x_ref, xsq_ref, h0_ref, c0_ref,
               wh_ref, bh_ref,                  # fused [W_hh^T | densa^T]: (H, G+heads*D), (1, G+heads*D)
               swt_ref, sb_ref,                 # sumary: (heads*D, D), (1, D)
               wih_ref,                         # LSTMCell input weights: (D, G)
               out_ref,                         # (B, t_chunk*H) lane-dense block of (B, T*H)
               h_s, c_s):                       # VMEM scratch carrying recurrent state across chunks
        @pl.when(pl.program_id(0) == 0)
        def _():
            h_s[...] = h0_ref[...]
            c_s[...] = c0_ref[...]

        mm_dtype = x_ref.dtype                  # matmul operand dtype (f32 or bf16)
        B = x_ref.shape[0]

        # Loop-invariant loads, hoisted out of the time loop.
        x = x_ref[...]                          # (B, S, D)       mm_dtype
        xs_eps = xsq_ref[...] + EPS             # (B, 1, S)       f32
        w_h = wh_ref[...]                       # (H, G+heads*D)  mm_dtype
        b_h = bh_ref[...]                       # (1, G+heads*D)  f32
        swt = swt_ref[...]                      # (heads*D, D)    mm_dtype
        sb = sb_ref[...]                        # (1, D)          f32
        wih = wih_ref[...]                      # (D, G)          mm_dtype

        h = h_s[...]                            # (B, H) f32
        c = c_s[...]                            # (B, H) f32

        hs = []
        for _ in range(t_chunk):                # bounded unroll inside one grid step
            # Single fused MXU matmul for everything that depends on h:
            # [h @ W_hh^T | h @ densa^T]  ->  gate h-contribution + all head keys.
            hz = jnp.dot(h.astype(mm_dtype), w_h,
                         preferred_element_type=jnp.float32) + b_h       # (B, G+heads*D)
            h_part = hz[:, :G]                                           # (B, 4H)
            keys = hz[:, G:].reshape(B, num_heads, D)                    # (B, heads, D)

            # inner[b,hd,s] = sum_d key[b,hd,d] * x[b,s,d]   (one batched MXU op)
            inner = lax.dot_general(keys.astype(mm_dtype), x,
                                    (((2,), (2,)), ((0,), (0,))),
                                    preferred_element_type=jnp.float32)  # (B, heads, S)
            k_sq = jnp.sqrt(jnp.sum(keys * keys, axis=2, keepdims=True)) # (B, heads, 1)
            w = inner / (k_sq + xs_eps)                                  # (B, heads, S)
            # F.normalize(w, dim=1):  w * rsqrt(max(||w||^2, eps^2))  -> EUP slot
            ssq = jnp.sum(w * w, axis=2, keepdims=True)
            w = w * lax.rsqrt(jnp.maximum(ssq, NORM_EPS * NORM_EPS))

            # val[b,hd,d] = sum_s w[b,hd,s] * x[b,s,d]   (one batched MXU op)
            val = lax.dot_general(w.astype(mm_dtype), x,
                                  (((2,), (1,)), ((0,), (0,))),
                                  preferred_element_type=jnp.float32)    # (B, heads, D)
            # sumary Linear over the concatenated heads as one matmul.
            v = jnp.tanh(
                jnp.dot(val.reshape(B, num_heads * D).astype(mm_dtype), swt,
                        preferred_element_type=jnp.float32) + sb)        # (B, D)

            # --- LSTMCell (h-part of the gates already computed above) ---
            gates = jnp.dot(v.astype(mm_dtype), wih,
                            preferred_element_type=jnp.float32) + h_part # (B, 4H)
            i_g = jax.nn.sigmoid(gates[:, 0 * H:1 * H])
            f_g = jax.nn.sigmoid(gates[:, 1 * H:2 * H])
            g_g = jnp.tanh(gates[:, 2 * H:3 * H])
            o_g = jax.nn.sigmoid(gates[:, 3 * H:4 * H])
            c = f_g * c + i_g * g_g
            h = o_g * jnp.tanh(c)
            hs.append(h)

        # Single lane-dense store of the whole chunk (no per-step masked stores).
        out_ref[...] = jnp.concatenate(hs, axis=1) if t_chunk > 1 else hs[0]

        h_s[...] = h
        c_s[...] = c

    return kernel


def att_rnn_blk(x, h0, c0, params, *, num_heads: int, output_size: int,
                t_chunk=None, matmul_dtype=jnp.float32):
    """Pallas implementation of AttRnnBlk.forward. Returns (B, output_size, H)."""
    B, S, D = x.shape
    H = h0.shape[1]
    G = 4 * H
    if t_chunk is None:
        t_chunk = _pick_t_chunk(output_size, H)
    assert output_size % t_chunk == 0
    num_chunks = output_size // t_chunk

    # Loop-invariant prep done once, outside the kernel.
    x_sqrt = jnp.sqrt(jnp.sum(x * x, axis=2))[:, None, :]                    # (B, 1, S)
    dwt = jnp.transpose(params["densa_w"], (2, 0, 1)).reshape(H, num_heads * D)
    db = params["densa_b"].reshape(1, num_heads * D)
    whh_t = params["w_hh"].T                                                 # (H, 4H)
    bias = params["b_ih"] + params["b_hh"]                                   # (1, 4H)
    # Fused h-weight: [W_hh^T | densa^T], gate slice first so it is 128-aligned.
    w_h = jnp.concatenate([whh_t, dwt], axis=1)                              # (H, G+heads*D)
    b_h = jnp.concatenate([bias, db], axis=1)                                # (1, G+heads*D)
    sum_wt = params["sum_w"].T                                               # (heads*D, D)
    sb = params["sum_b"]                                                     # (1, D)
    wih_t = params["w_ih"].T                                                 # (D, 4H)

    # Matmul operands optionally in bf16 (state / biases / elementwise stay f32).
    x_mm = x.astype(matmul_dtype)
    w_h_mm = w_h.astype(matmul_dtype)
    sum_wt_mm = sum_wt.astype(matmul_dtype)
    wih_mm = wih_t.astype(matmul_dtype)

    kernel = _make_kernel(num_heads, H, D, t_chunk)

    itemsize = jnp.dtype(matmul_dtype).itemsize
    flops_per_step = 2 * B * (H * (G + num_heads * D)     # fused h matmul
                              + 2 * num_heads * S * D     # inner + val
                              + num_heads * D * D         # sumary
                              + D * G)                    # v @ w_ih
    cost = pl.CostEstimate(
        flops=output_size * flops_per_step,
        transcendentals=output_size * B * (D + 6 * H + num_heads * (S + 1)),
        bytes_accessed=((B * S * D + H * (G + num_heads * D)
                         + num_heads * D * D + D * G) * itemsize
                        + (B * S + 2 * B * H + G + num_heads * D + D) * 4
                        + B * output_size * H * 4),
    )

    grid_spec = pltpu.PrefetchScalarGridSpec(
        num_scalar_prefetch=0,
        grid=(num_chunks,),
        in_specs=[
            pl.BlockSpec((B, S, D), lambda c: (0, 0, 0)),
            pl.BlockSpec((B, 1, S), lambda c: (0, 0, 0)),
            pl.BlockSpec((B, H), lambda c: (0, 0)),
            pl.BlockSpec((B, H), lambda c: (0, 0)),
            pl.BlockSpec((H, G + num_heads * D), lambda c: (0, 0)),
            pl.BlockSpec((1, G + num_heads * D), lambda c: (0, 0)),
            pl.BlockSpec((num_heads * D, D), lambda c: (0, 0)),
            pl.BlockSpec((1, D), lambda c: (0, 0)),
            pl.BlockSpec((D, G), lambda c: (0, 0)),
        ],
        out_specs=pl.BlockSpec((B, t_chunk * H), lambda c: (0, c)),
        scratch_shapes=[pltpu.VMEM((B, H), jnp.float32),
                        pltpu.VMEM((B, H), jnp.float32)],
    )

    out_flat = pl.pallas_call(
        kernel,
        out_shape=jax.ShapeDtypeStruct((B, output_size * H), jnp.float32),
        grid_spec=grid_spec,
        compiler_params=pltpu.CompilerParams(
            dimension_semantics=("arbitrary",)),   # sequential recurrence over chunks
        cost_estimate=cost,
    )(x_mm, x_sqrt, h0, c0, w_h_mm, b_h, sum_wt_mm, sb, wih_mm)

    # Free layout change: (B, T*H) -> (B, T, H) (same memory layout, no transpose).
    return out_flat.reshape(B, output_size, H)


def att_rnn_blk_ref(x, h0, c0, params, *, num_heads, output_size):
    """Pure-JAX f32 reference mirroring the PyTorch forward."""
    B, S, D = x.shape
    H = h0.shape[1]
    h_i, c_i = h0, c0
    x_sqrt = jnp.sqrt(jnp.sum(x ** 2, axis=2))
    outs = []
    for _ in range(output_size):
        vals = []
        for hd in range(num_heads):
            key = h_i @ params["densa_w"][hd].T + params["densa_b"][hd][0]   # (B, D)
            inner = jnp.einsum('bd,bsd->bs', key, x)
            k_sq = jnp.sqrt(jnp.sum(key ** 2, axis=1, keepdims=True)) + x_sqrt
            w = inner / (k_sq + EPS)
            w = w / jnp.maximum(jnp.sqrt(jnp.sum(w ** 2, axis=1, keepdims=True)), NORM_EPS)
            vals.append(jnp.einsum('bs,bsd->bd', w, x))
        v = jnp.concatenate(vals, axis=-1)
        v = jnp.tanh(v @ params["sum_w"].T + params["sum_b"][0])
        gates = v @ params["w_ih"].T + h_i @ params["w_hh"].T + params["b_ih"][0] + params["b_hh"][0]
        i_g = jax.nn.sigmoid(gates[:, 0 * H:1 * H])
        f_g = jax.nn.sigmoid(gates[:, 1 * H:2 * H])
        g_g = jnp.tanh(gates[:, 2 * H:3 * H])
        o_g = jax.nn.sigmoid(gates[:, 3 * H:4 * H])
        c_i = f_g * c_i + i_g * g_g
        h_i = o_g * jnp.tanh(c_i)
        outs.append(h_i[:, None, :])
    return jnp.concatenate(outs, axis=1)


if __name__ == "__main__":
    # B=8 fills f32 sublanes (perf feedback: batch is the only free parallel axis
    # for this serial recurrence); shapes otherwise stay small.
    B, S, D, H = 8, 8, 16, 32          # batch, seq, input_size, hidden_size
    OUTP, NUM_HEADS = 4, 2             # output_size, num_heads

    key = jax.random.PRNGKey(0)
    ks = jax.random.split(key, 10)

    lb = 1.0 / math.sqrt(H)
    sb_ = 1.0 / math.sqrt(D * NUM_HEADS)
    params = {
        # densa heads: Linear(H, D); init_weights -> uniform(-1,1) weights, zero bias
        "densa_w": jax.random.uniform(ks[0], (NUM_HEADS, D, H), jnp.float32, -1.0, 1.0),
        "densa_b": jnp.zeros((NUM_HEADS, 1, D), jnp.float32),
        # sumary: Linear(D*heads, D)
        "sum_w": jax.random.uniform(ks[1], (D, D * NUM_HEADS), jnp.float32, -sb_, sb_),
        "sum_b": jax.random.uniform(ks[2], (1, D), jnp.float32, -sb_, sb_),
        # LSTMCell(D, H): gate order i, f, g, o
        "w_ih": jax.random.uniform(ks[3], (4 * H, D), jnp.float32, -lb, lb),
        "w_hh": jax.random.uniform(ks[4], (4 * H, H), jnp.float32, -lb, lb),
        "b_ih": jax.random.uniform(ks[5], (1, 4 * H), jnp.float32, -lb, lb),
        "b_hh": jax.random.uniform(ks[6], (1, 4 * H), jnp.float32, -lb, lb),
    }

    x = jax.random.normal(ks[7], (B, S, D), jnp.float32)
    h0 = 0.1 * jax.random.normal(ks[8], (B, H), jnp.float32)
    c0 = 0.1 * jax.random.normal(ks[9], (B, H), jnp.float32)

    ref = att_rnn_blk_ref(x, h0, c0, params, num_heads=NUM_HEADS, output_size=OUTP)

    # f32 matmul operands: tight agreement with the f32 reference.
    out = att_rnn_blk(x, h0, c0, params, num_heads=NUM_HEADS, output_size=OUTP)
    out = jax.block_until_ready(out)
    assert out.shape == (B, OUTP, H), out.shape
    assert jnp.allclose(out, ref, atol=1e-5, rtol=1e-5), float(jnp.max(jnp.abs(out - ref)))

    # bf16 matmul operands (MXU-native fast path): loose agreement only.
    out_bf16 = att_rnn_blk(x, h0, c0, params, num_heads=NUM_HEADS, output_size=OUTP,
                           matmul_dtype=jnp.bfloat16)
    out_bf16 = jax.block_until_ready(out_bf16)
    assert jnp.allclose(out_bf16, ref, atol=1e-1, rtol=1e-1), \
        float(jnp.max(jnp.abs(out_bf16 - ref)))

    print("KERNEL_OK")
</pallas_src>

<mosaic_0001>
module attributes {stable_mosaic.version = 11 : i64} {
  func.func @kernel(%arg0: i32, %arg1: memref<8x8x16xf32, #tpu.memory_space<vmem>>, %arg2: memref<8x1x8xf32, #tpu.memory_space<vmem>>, %arg3: memref<8x32xf32, #tpu.memory_space<vmem>>, %arg4: memref<8x32xf32, #tpu.memory_space<vmem>>, %arg5: memref<32x160xf32, #tpu.memory_space<vmem>>, %arg6: memref<1x160xf32, #tpu.memory_space<vmem>>, %arg7: memref<32x16xf32, #tpu.memory_space<vmem>>, %arg8: memref<1x16xf32, #tpu.memory_space<vmem>>, %arg9: memref<16x128xf32, #tpu.memory_space<vmem>>, %arg10: memref<8x128xf32, #tpu.memory_space<vmem>>, %arg11: memref<8x32xf32, #tpu.memory_space<vmem>>, %arg12: memref<8x32xf32, #tpu.memory_space<vmem>>) attributes {dimension_semantics = [#tpu.dimension_semantics<arbitrary>], iteration_bounds = array<i64: 1>, scalar_prefetch = 0 : i64, scratch_operands = 2 : i64, tpu.core_type = #tpu.core_type<tc>, window_params = [{pipeline_mode = #tpu.pipeline_mode<synchronous>, transform_indices = @transform_0, window_bounds = array<i64: 8, 8, 16>}, {pipeline_mode = #tpu.pipeline_mode<synchronous>, transform_indices = @transform_1, window_bounds = array<i64: 8, 1, 8>}, {pipeline_mode = #tpu.pipeline_mode<synchronous>, transform_indices = @transform_2, window_bounds = array<i64: 8, 32>}, {pipeline_mode = #tpu.pipeline_mode<synchronous>, transform_indices = @transform_3, window_bounds = array<i64: 8, 32>}, {pipeline_mode = #tpu.pipeline_mode<synchronous>, transform_indices = @transform_4, window_bounds = array<i64: 32, 160>}, {pipeline_mode = #tpu.pipeline_mode<synchronous>, transform_indices = @transform_5, window_bounds = array<i64: 1, 160>}, {pipeline_mode = #tpu.pipeline_mode<synchronous>, transform_indices = @transform_6, window_bounds = array<i64: 32, 16>}, {pipeline_mode = #tpu.pipeline_mode<synchronous>, transform_indices = @transform_7, window_bounds = array<i64: 1, 16>}, {pipeline_mode = #tpu.pipeline_mode<synchronous>, transform_indices = @transform_8, window_bounds = array<i64: 16, 128>}, {transform_indices = @transform_9, window_bounds = array<i64: 8, 128>}]} {
    %c0_i32 = arith.constant 0 : i32
    %0 = arith.cmpi eq, %arg0, %c0_i32 : i32
    %1 = arith.extui %0 : i1 to i32
    %c0_i32_0 = arith.constant 0 : i32
    %2 = arith.cmpi ne, %1, %c0_i32_0 : i32
    scf.if %2 {
      %c0_70 = arith.constant 0 : index
      %c0_71 = arith.constant 0 : index
      %242 = vector.load %arg3[%c0_70, %c0_71] : memref<8x32xf32, #tpu.memory_space<vmem>>, vector<8x32xf32>
      %c0_72 = arith.constant 0 : index
      %c0_73 = arith.constant 0 : index
      %243 = vector.load %arg11[%c0_72, %c0_73] : memref<8x32xf32, #tpu.memory_space<vmem>>, vector<8x32xf32>
      tpu.vector_store %arg11[%c0_72, %c0_73], %242 {strides = array<i32>} : memref<8x32xf32, #tpu.memory_space<vmem>>, vector<8x32xf32>,
      %c0_74 = arith.constant 0 : index
      %c0_75 = arith.constant 0 : index
      %244 = vector.load %arg4[%c0_74, %c0_75] : memref<8x32xf32, #tpu.memory_space<vmem>>, vector<8x32xf32>
      %c0_76 = arith.constant 0 : index
      %c0_77 = arith.constant 0 : index
      %245 = vector.load %arg12[%c0_76, %c0_77] : memref<8x32xf32, #tpu.memory_space<vmem>>, vector<8x32xf32>
      tpu.vector_store %arg12[%c0_76, %c0_77], %244 {strides = array<i32>} : memref<8x32xf32, #tpu.memory_space<vmem>>, vector<8x32xf32>,
    } else {
    }
    %c0 = arith.constant 0 : index
    %c0_1 = arith.constant 0 : index
    %c0_2 = arith.constant 0 : index
    %3 = vector.load %arg1[%c0, %c0_1, %c0_2] : memref<8x8x16xf32, #tpu.memory_space<vmem>>, vector<8x8x16xf32>
    %c0_3 = arith.constant 0 : index
    %c0_4 = arith.constant 0 : index
    %c0_5 = arith.constant 0 : index
    %4 = vector.load %arg2[%c0_3, %c0_4, %c0_5] : memref<8x1x8xf32, #tpu.memory_space<vmem>>, vector<8x1x8xf32>
    %cst = arith.constant 9.99999997E-7 : f32
    %5 = vector.broadcast %cst : f32 to vector<8x1x8xf32>
    %6 = arith.addf %4, %5 : vector<8x1x8xf32>
    %c0_6 = arith.constant 0 : index
    %c0_7 = arith.constant 0 : index
    %7 = vector.load %arg5[%c0_6, %c0_7] : memref<32x160xf32, #tpu.memory_space<vmem>>, vector<32x160xf32>
    %c0_8 = arith.constant 0 : index
    %c0_9 = arith.constant 0 : index
    %8 = vector.load %arg6[%c0_8, %c0_9] : memref<1x160xf32, #tpu.memory_space<vmem>>, vector<1x160xf32>
    %c0_10 = arith.constant 0 : index
    %c0_11 = arith.constant 0 : index
    %9 = vector.load %arg7[%c0_10, %c0_11] : memref<32x16xf32, #tpu.memory_space<vmem>>, vector<32x16xf32>
    %c0_12 = arith.constant 0 : index
    %c0_13 = arith.constant 0 : index
    %10 = vector.load %arg8[%c0_12, %c0_13] : memref<1x16xf32, #tpu.memory_space<vmem>>, vector<1x16xf32>
    %c0_14 = arith.constant 0 : index
    %c0_15 = arith.constant 0 : index
    %11 = vector.load %arg9[%c0_14, %c0_15] : memref<16x128xf32, #tpu.memory_space<vmem>>, vector<16x128xf32>
    %c0_16 = arith.constant 0 : index
    %c0_17 = arith.constant 0 : index
    %12 = vector.load %arg11[%c0_16, %c0_17] : memref<8x32xf32, #tpu.memory_space<vmem>>, vector<8x32xf32>
    %c0_18 = arith.constant 0 : index
    %c0_19 = arith.constant 0 : index
    %13 = vector.load %arg12[%c0_18, %c0_19] : memref<8x32xf32, #tpu.memory_space<vmem>>, vector<8x32xf32>
    %cst_20 = arith.constant dense<0.000000e+00> : vector<8x160xf32>
    %14 = tpu.matmul %12, %7, %cst_20 {dimension_numbers = #tpu.dot_dimension_numbers<[1], [0], [0], [1], [0, 0, 1, 1], [], []>} : vector<8x32xf32>, vector<32x160xf32>, vector<8x160xf32> -> vector<8x160xf32>
    %15 = vector.broadcast %8 : vector<1x160xf32> to vector<8x160xf32>
    %16 = arith.addf %14, %15 : vector<8x160xf32>
    %17 = vector.extract_strided_slice %16 {offsets = [0, 0], sizes = [8, 128], strides = [1, 1]} : vector<8x160xf32> to vector<8x128xf32>
    %18 = vector.extract_strided_slice %16 {offsets = [0, 128], sizes = [8, 32], strides = [1, 1]} : vector<8x160xf32> to vector<8x32xf32>
    %19 = vector.shape_cast %18 : vector<8x32xf32> to vector<8x2x16xf32>
    %cst_21 = arith.constant dense<0.000000e+00> : vector<8x2x8xf32>
    %20 = tpu.matmul %19, %3, %cst_21 {dimension_numbers = #tpu.dot_dimension_numbers<[2], [2], [1], [1], [0, 0, 0, 1, 1, 1], [0], [0]>} : vector<8x2x16xf32>, vector<8x8x16xf32>, vector<8x2x8xf32> -> vector<8x2x8xf32>
    %21 = arith.mulf %19, %19 : vector<8x2x16xf32>
    %cst_22 = arith.constant dense<0.000000e+00> : vector<8x2xf32>
    %22 = vector.multi_reduction <add>, %21, %cst_22 [2] : vector<8x2x16xf32> to vector<8x2xf32>
    %23 = vector.shape_cast %22 : vector<8x2xf32> to vector<8x2x1xf32>
    %24 = math.sqrt %23 : vector<8x2x1xf32>
    %25 = vector.broadcast %24 : vector<8x2x1xf32> to vector<8x2x8xf32>
    %26 = vector.broadcast %6 : vector<8x1x8xf32> to vector<8x2x8xf32>
    %27 = arith.addf %25, %26 : vector<8x2x8xf32>
    %28 = arith.divf %20, %27 : vector<8x2x8xf32>
    %29 = arith.mulf %28, %28 : vector<8x2x8xf32>
    %cst_23 = arith.constant dense<0.000000e+00> : vector<8x2xf32>
    %30 = vector.multi_reduction <add>, %29, %cst_23 [2] : vector<8x2x8xf32> to vector<8x2xf32>
    %31 = vector.shape_cast %30 : vector<8x2xf32> to vector<8x2x1xf32>
    %cst_24 = arith.constant 1.000000e-24 : f32
    %32 = vector.broadcast %cst_24 : f32 to vector<8x2x1xf32>
    %33 = arith.maximumf %31, %32 : vector<8x2x1xf32>
    %34 = math.rsqrt %33 : vector<8x2x1xf32>
    %35 = vector.broadcast %34 : vector<8x2x1xf32> to vector<8x2x8xf32>
    %36 = arith.mulf %28, %35 : vector<8x2x8xf32>
    %cst_25 = arith.constant dense<0.000000e+00> : vector<8x2x16xf32>
    %37 = tpu.matmul %36, %3, %cst_25 {dimension_numbers = #tpu.dot_dimension_numbers<[2], [1], [1], [2], [0, 0, 0, 1, 1, 2], [0], [0]>} : vector<8x2x8xf32>, vector<8x8x16xf32>, vector<8x2x16xf32> -> vector<8x2x16xf32>
    %38 = vector.shape_cast %37 : vector<8x2x16xf32> to vector<8x32xf32>
    %cst_26 = arith.constant dense<0.000000e+00> : vector<8x16xf32>
    %39 = tpu.matmul %38, %9, %cst_26 {dimension_numbers = #tpu.dot_dimension_numbers<[1], [0], [0], [1], [0, 0, 1, 1], [], []>} : vector<8x32xf32>, vector<32x16xf32>, vector<8x16xf32> -> vector<8x16xf32>
    %40 = vector.broadcast %10 : vector<1x16xf32> to vector<8x16xf32>
    %41 = arith.addf %39, %40 : vector<8x16xf32>
    %42 = math.tanh %41 : vector<8x16xf32>
    %cst_27 = arith.constant dense<0.000000e+00> : vector<8x128xf32>
    %43 = tpu.matmul %42, %11, %cst_27 {dimension_numbers = #tpu.dot_dimension_numbers<[1], [0], [0], [1], [0, 0, 1, 1], [], []>} : vector<8x16xf32>, vector<16x128xf32>, vector<8x128xf32> -> vector<8x128xf32>
    %44 = arith.addf %43, %17 : vector<8x128xf32>
    %45 = vector.extract_strided_slice %44 {offsets = [0, 0], sizes = [8, 32], strides = [1, 1]} : vector<8x128xf32> to vector<8x32xf32>
    %46 = arith.negf %45 : vector<8x32xf32>
    %47 = math.exp %46 : vector<8x32xf32>
    %cst_28 = arith.constant 1.000000e+00 : f32
    %48 = vector.broadcast %cst_28 : f32 to vector<8x32xf32>
    %49 = arith.addf %48, %47 : vector<8x32xf32>
    %50 = arith.divf %48, %49 : vector<8x32xf32>
    %51 = vector.extract_strided_slice %44 {offsets = [0, 32], sizes = [8, 32], strides = [1, 1]} : vector<8x128xf32> to vector<8x32xf32>
    %52 = arith.negf %51 : vector<8x32xf32>
    %53 = math.exp %52 : vector<8x32xf32>
    %cst_29 = arith.constant 1.000000e+00 : f32
    %54 = vector.broadcast %cst_29 : f32 to vector<8x32xf32>
    %55 = arith.addf %54, %53 : vector<8x32xf32>
    %56 = arith.divf %54, %55 : vector<8x32xf32>
    %57 = vector.extract_strided_slice %44 {offsets = [0, 64], sizes = [8, 32], strides = [1, 1]} : vector<8x128xf32> to vector<8x32xf32>
    %58 = math.tanh %57 : vector<8x32xf32>
    %59 = vector.extract_strided_slice %44 {offsets = [0, 96], sizes = [8, 32], strides = [1, 1]} : vector<8x128xf32> to vector<8x32xf32>
    %60 = arith.negf %59 : vector<8x32xf32>
    %61 = math.exp %60 : vector<8x32xf32>
    %cst_30 = arith.constant 1.000000e+00 : f32
    %62 = vector.broadcast %cst_30 : f32 to vector<8x32xf32>
    %63 = arith.addf %62, %61 : vector<8x32xf32>
    %64 = arith.divf %62, %63 : vector<8x32xf32>
    %65 = arith.mulf %56, %13 : vector<8x32xf32>
    %66 = arith.mulf %50, %58 : vector<8x32xf32>
    %67 = arith.addf %65, %66 : vector<8x32xf32>
    %68 = math.tanh %67 : vector<8x32xf32>
    %69 = arith.mulf %64, %68 : vector<8x32xf32>
    %cst_31 = arith.constant dense<0.000000e+00> : vector<8x160xf32>
    %70 = tpu.matmul %69, %7, %cst_31 {dimension_numbers = #tpu.dot_dimension_numbers<[1], [0], [0], [1], [0, 0, 1, 1], [], []>} : vector<8x32xf32>, vector<32x160xf32>, vector<8x160xf32> -> vector<8x160xf32>
    %71 = vector.broadcast %8 : vector<1x160xf32> to vector<8x160xf32>
    %72 = arith.addf %70, %71 : vector<8x160xf32>
    %73 = vector.extract_strided_slice %72 {offsets = [0, 0], sizes = [8, 128], strides = [1, 1]} : vector<8x160xf32> to vector<8x128xf32>
    %74 = vector.extract_strided_slice %72 {offsets = [0, 128], sizes = [8, 32], strides = [1, 1]} : vector<8x160xf32> to vector<8x32xf32>
    %75 = vector.shape_cast %74 : vector<8x32xf32> to vector<8x2x16xf32>
    %cst_32 = arith.constant dense<0.000000e+00> : vector<8x2x8xf32>
    %76 = tpu.matmul %75, %3, %cst_32 {dimension_numbers = #tpu.dot_dimension_numbers<[2], [2], [1], [1], [0, 0, 0, 1, 1, 1], [0], [0]>} : vector<8x2x16xf32>, vector<8x8x16xf32>, vector<8x2x8xf32> -> vector<8x2x8xf32>
    %77 = arith.mulf %75, %75 : vector<8x2x16xf32>
    %cst_33 = arith.constant dense<0.000000e+00> : vector<8x2xf32>
    %78 = vector.multi_reduction <add>, %77, %cst_33 [2] : vector<8x2x16xf32> to vector<8x2xf32>
    %79 = vector.shape_cast %78 : vector<8x2xf32> to vector<8x2x1xf32>
    %80 = math.sqrt %79 : vector<8x2x1xf32>
    %81 = vector.broadcast %80 : vector<8x2x1xf32> to vector<8x2x8xf32>
    %82 = vector.broadcast %6 : vector<8x1x8xf32> to vector<8x2x8xf32>
    %83 = arith.addf %81, %82 : vector<8x2x8xf32>
    %84 = arith.divf %76, %83 : vector<8x2x8xf32>
    %85 = arith.mulf %84, %84 : vector<8x2x8xf32>
    %cst_34 = arith.constant dense<0.000000e+00> : vector<8x2xf32>
    %86 = vector.multi_reduction <add>, %85, %cst_34 [2] : vector<8x2x8xf32> to vector<8x2xf32>
    %87 = vector.shape_cast %86 : vector<8x2xf32> to vector<8x2x1xf32>
    %cst_35 = arith.constant 1.000000e-24 : f32
    %88 = vector.broadcast %cst_35 : f32 to vector<8x2x1xf32>
    %89 = arith.maximumf %87, %88 : vector<8x2x1xf32>
    %90 = math.rsqrt %89 : vector<8x2x1xf32>
    %91 = vector.broadcast %90 : vector<8x2x1xf32> to vector<8x2x8xf32>
    %92 = arith.mulf %84, %91 : vector<8x2x8xf32>
    %cst_36 = arith.constant dense<0.000000e+00> : vector<8x2x16xf32>
    %93 = tpu.matmul %92, %3, %cst_36 {dimension_numbers = #tpu.dot_dimension_numbers<[2], [1], [1], [2], [0, 0, 0, 1, 1, 2], [0], [0]>} : vector<8x2x8xf32>, vector<8x8x16xf32>, vector<8x2x16xf32> -> vector<8x2x16xf32>
    %94 = vector.shape_cast %93 : vector<8x2x16xf32> to vector<8x32xf32>
    %cst_37 = arith.constant dense<0.000000e+00> : vector<8x16xf32>
    %95 = tpu.matmul %94, %9, %cst_37 {dimension_numbers = #tpu.dot_dimension_numbers<[1], [0], [0], [1], [0, 0, 1, 1], [], []>} : vector<8x32xf32>, vector<32x16xf32>, vector<8x16xf32> -> vector<8x16xf32>
    %96 = vector.broadcast %10 : vector<1x16xf32> to vector<8x16xf32>
    %97 = arith.addf %95, %96 : vector<8x16xf32>
    %98 = math.tanh %97 : vector<8x16xf32>
    %cst_38 = arith.constant dense<0.000000e+00> : vector<8x128xf32>
    %99 = tpu.matmul %98, %11, %cst_38 {dimension_numbers = #tpu.dot_dimension_numbers<[1], [0], [0], [1], [0, 0, 1, 1], [], []>} : vector<8x16xf32>, vector<16x128xf32>, vector<8x128xf32> -> vector<8x128xf32>
    %100 = arith.addf %99, %73 : vector<8x128xf32>
    %101 = vector.extract_strided_slice %100 {offsets = [0, 0], sizes = [8, 32], strides = [1, 1]} : vector<8x128xf32> to vector<8x32xf32>
    %102 = arith.negf %101 : vector<8x32xf32>
    %103 = math.exp %102 : vector<8x32xf32>
    %cst_39 = arith.constant 1.000000e+00 : f32
    %104 = vector.broadcast %cst_39 : f32 to vector<8x32xf32>
    %105 = arith.addf %104, %103 : vector<8x32xf32>
    %106 = arith.divf %104, %105 : vector<8x32xf32>
    %107 = vector.extract_strided_slice %100 {offsets = [0, 32], sizes = [8, 32], strides = [1, 1]} : vector<8x128xf32> to vector<8x32xf32>
    %108 = arith.negf %107 : vector<8x32xf32>
    %109 = math.exp %108 : vector<8x32xf32>
    %cst_40 = arith.constant 1.000000e+00 : f32
    %110 = vector.broadcast %cst_40 : f32 to vector<8x32xf32>
    %111 = arith.addf %110, %109 : vector<8x32xf32>
    %112 = arith.divf %110, %111 : vector<8x32xf32>
    %113 = vector.extract_strided_slice %100 {offsets = [0, 64], sizes = [8, 32], strides = [1, 1]} : vector<8x128xf32> to vector<8x32xf32>
    %114 = math.tanh %113 : vector<8x32xf32>
    %115 = vector.extract_strided_slice %100 {offsets = [0, 96], sizes = [8, 32], strides = [1, 1]} : vector<8x128xf32> to vector<8x32xf32>
    %116 = arith.negf %115 : vector<8x32xf32>
    %117 = math.exp %116 : vector<8x32xf32>
    %cst_41 = arith.constant 1.000000e+00 : f32
    %118 = vector.broadcast %cst_41 : f32 to vector<8x32xf32>
    %119 = arith.addf %118, %117 : vector<8x32xf32>
    %120 = arith.divf %118, %119 : vector<8x32xf32>
    %121 = arith.mulf %112, %67 : vector<8x32xf32>
    %122 = arith.mulf %106, %114 : vector<8x32xf32>
    %123 = arith.addf %121, %122 : vector<8x32xf32>
    %124 = math.tanh %123 : vector<8x32xf32>
    %125 = arith.mulf %120, %124 : vector<8x32xf32>
    %cst_42 = arith.constant dense<0.000000e+00> : vector<8x160xf32>
    %126 = tpu.matmul %125, %7, %cst_42 {dimension_numbers = #tpu.dot_dimension_numbers<[1], [0], [0], [1], [0, 0, 1, 1], [], []>} : vector<8x32xf32>, vector<32x160xf32>, vector<8x160xf32> -> vector<8x160xf32>
    %127 = vector.broadcast %8 : vector<1x160xf32> to vector<8x160xf32>
    %128 = arith.addf %126, %127 : vector<8x160xf32>
    %129 = vector.extract_strided_slice %128 {offsets = [0, 0], sizes = [8, 128], strides = [1, 1]} : vector<8x160xf32> to vector<8x128xf32>
    %130 = vector.extract_strided_slice %128 {offsets = [0, 128], sizes = [8, 32], strides = [1, 1]} : vector<8x160xf32> to vector<8x32xf32>
    %131 = vector.shape_cast %130 : vector<8x32xf32> to vector<8x2x16xf32>
    %cst_43 = arith.constant dense<0.000000e+00> : vector<8x2x8xf32>
    %132 = tpu.matmul %131, %3, %cst_43 {dimension_numbers = #tpu.dot_dimension_numbers<[2], [2], [1], [1], [0, 0, 0, 1, 1, 1], [0], [0]>} : vector<8x2x16xf32>, vector<8x8x16xf32>, vector<8x2x8xf32> -> vector<8x2x8xf32>
    %133 = arith.mulf %131, %131 : vector<8x2x16xf32>
    %cst_44 = arith.constant dense<0.000000e+00> : vector<8x2xf32>
    %134 = vector.multi_reduction <add>, %133, %cst_44 [2] : vector<8x2x16xf32> to vector<8x2xf32>
    %135 = vector.shape_cast %134 : vector<8x2xf32> to vector<8x2x1xf32>
    %136 = math.sqrt %135 : vector<8x2x1xf32>
    %137 = vector.broadcast %136 : vector<8x2x1xf32> to vector<8x2x8xf32>
    %138 = vector.broadcast %6 : vector<8x1x8xf32> to vector<8x2x8xf32>
    %139 = arith.addf %137, %138 : vector<8x2x8xf32>
    %140 = arith.divf %132, %139 : vector<8x2x8xf32>
    %141 = arith.mulf %140, %140 : vector<8x2x8xf32>
    %cst_45 = arith.constant dense<0.000000e+00> : vector<8x2xf32>
    %142 = vector.multi_reduction <add>, %141, %cst_45 [2] : vector<8x2x8xf32> to vector<8x2xf32>
    %143 = vector.shape_cast %142 : vector<8x2xf32> to vector<8x2x1xf32>
    %cst_46 = arith.constant 1.000000e-24 : f32
    %144 = vector.broadcast %cst_46 : f32 to vector<8x2x1xf32>
    %145 = arith.maximumf %143, %144 : vector<8x2x1xf32>
    %146 = math.rsqrt %145 : vector<8x2x1xf32>
    %147 = vector.broadcast %146 : vector<8x2x1xf32> to vector<8x2x8xf32>
    %148 = arith.mulf %140, %147 : vector<8x2x8xf32>
    %cst_47 = arith.constant dense<0.000000e+00> : vector<8x2x16xf32>
    %149 = tpu.matmul %148, %3, %cst_47 {dimension_numbers = #tpu.dot_dimension_numbers<[2], [1], [1], [2], [0, 0, 0, 1, 1, 2], [0], [0]>} : vector<8x2x8xf32>, vector<8x8x16xf32>, vector<8x2x16xf32> -> vector<8x2x16xf32>
    %150 = vector.shape_cast %149 : vector<8x2x16xf32> to vector<8x32xf32>
    %cst_48 = arith.constant dense<0.000000e+00> : vector<8x16xf32>
    %151 = tpu.matmul %150, %9, %cst_48 {dimension_numbers = #tpu.dot_dimension_numbers<[1], [0], [0], [1], [0, 0, 1, 1], [], []>} : vector<8x32xf32>, vector<32x16xf32>, vector<8x16xf32> -> vector<8x16xf32>
    %152 = vector.broadcast %10 : vector<1x16xf32> to vector<8x16xf32>
    %153 = arith.addf %151, %152 : vector<8x16xf32>
    %154 = math.tanh %153 : vector<8x16xf32>
    %cst_49 = arith.constant dense<0.000000e+00> : vector<8x128xf32>
    %155 = tpu.matmul %154, %11, %cst_49 {dimension_numbers = #tpu.dot_dimension_numbers<[1], [0], [0], [1], [0, 0, 1, 1], [], []>} : vector<8x16xf32>, vector<16x128xf32>, vector<8x128xf32> -> vector<8x128xf32>
    %156 = arith.addf %155, %129 : vector<8x128xf32>
    %157 = vector.extract_strided_slice %156 {offsets = [0, 0], sizes = [8, 32], strides = [1, 1]} : vector<8x128xf32> to vector<8x32xf32>
    %158 = arith.negf %157 : vector<8x32xf32>
    %159 = math.exp %158 : vector<8x32xf32>
    %cst_50 = arith.constant 1.000000e+00 : f32
    %160 = vector.broadcast %cst_50 : f32 to vector<8x32xf32>
    %161 = arith.addf %160, %159 : vector<8x32xf32>
    %162 = arith.divf %160, %161 : vector<8x32xf32>
    %163 = vector.extract_strided_slice %156 {offsets = [0, 32], sizes = [8, 32], strides = [1, 1]} : vector<8x128xf32> to vector<8x32xf32>
    %164 = arith.negf %163 : vector<8x32xf32>
    %165 = math.exp %164 : vector<8x32xf32>
    %cst_51 = arith.constant 1.000000e+00 : f32
    %166 = vector.broadcast %cst_51 : f32 to vector<8x32xf32>
    %167 = arith.addf %166, %165 : vector<8x32xf32>
    %168 = arith.divf %166, %167 : vector<8x32xf32>
    %169 = vector.extract_strided_slice %156 {offsets = [0, 64], sizes = [8, 32], strides = [1, 1]} : vector<8x128xf32> to vector<8x32xf32>
    %170 = math.tanh %169 : vector<8x32xf32>
    %171 = vector.extract_strided_slice %156 {offsets = [0, 96], sizes = [8, 32], strides = [1, 1]} : vector<8x128xf32> to vector<8x32xf32>
    %172 = arith.negf %171 : vector<8x32xf32>
    %173 = math.exp %172 : vector<8x32xf32>
    %cst_52 = arith.constant 1.000000e+00 : f32
    %174 = vector.broadcast %cst_52 : f32 to vector<8x32xf32>
    %175 = arith.addf %174, %173 : vector<8x32xf32>
    %176 = arith.divf %174, %175 : vector<8x32xf32>
    %177 = arith.mulf %168, %123 : vector<8x32xf32>
    %178 = arith.mulf %162, %170 : vector<8x32xf32>
    %179 = arith.addf %177, %178 : vector<8x32xf32>
    %180 = math.tanh %179 : vector<8x32xf32>
    %181 = arith.mulf %176, %180 : vector<8x32xf32>
    %cst_53 = arith.constant dense<0.000000e+00> : vector<8x160xf32>
    %182 = tpu.matmul %181, %7, %cst_53 {dimension_numbers = #tpu.dot_dimension_numbers<[1], [0], [0], [1], [0, 0, 1, 1], [], []>} : vector<8x32xf32>, vector<32x160xf32>, vector<8x160xf32> -> vector<8x160xf32>
    %183 = vector.broadcast %8 : vector<1x160xf32> to vector<8x160xf32>
    %184 = arith.addf %182, %183 : vector<8x160xf32>
    %185 = vector.extract_strided_slice %184 {offsets = [0, 0], sizes = [8, 128], strides = [1, 1]} : vector<8x160xf32> to vector<8x128xf32>
    %186 = vector.extract_strided_slice %184 {offsets = [0, 128], sizes = [8, 32], strides = [1, 1]} : vector<8x160xf32> to vector<8x32xf32>
    %187 = vector.shape_cast %186 : vector<8x32xf32> to vector<8x2x16xf32>
    %cst_54 = arith.constant dense<0.000000e+00> : vector<8x2x8xf32>
    %188 = tpu.matmul %187, %3, %cst_54 {dimension_numbers = #tpu.dot_dimension_numbers<[2], [2], [1], [1], [0, 0, 0, 1, 1, 1], [0], [0]>} : vector<8x2x16xf32>, vector<8x8x16xf32>, vector<8x2x8xf32> -> vector<8x2x8xf32>
    %189 = arith.mulf %187, %187 : vector<8x2x16xf32>
    %cst_55 = arith.constant dense<0.000000e+00> : vector<8x2xf32>
    %190 = vector.multi_reduction <add>, %189, %cst_55 [2] : vector<8x2x16xf32> to vector<8x2xf32>
    %191 = vector.shape_cast %190 : vector<8x2xf32> to vector<8x2x1xf32>
    %192 = math.sqrt %191 : vector<8x2x1xf32>
    %193 = vector.broadcast %192 : vector<8x2x1xf32> to vector<8x2x8xf32>
    %194 = vector.broadcast %6 : vector<8x1x8xf32> to vector<8x2x8xf32>
    %195 = arith.addf %193, %194 : vector<8x2x8xf32>
    %196 = arith.divf %188, %195 : vector<8x2x8xf32>
    %197 = arith.mulf %196, %196 : vector<8x2x8xf32>
    %cst_56 = arith.constant dense<0.000000e+00> : vector<8x2xf32>
    %198 = vector.multi_reduction <add>, %197, %cst_56 [2] : vector<8x2x8xf32> to vector<8x2xf32>
    %199 = vector.shape_cast %198 : vector<8x2xf32> to vector<8x2x1xf32>
    %cst_57 = arith.constant 1.000000e-24 : f32
    %200 = vector.broadcast %cst_57 : f32 to vector<8x2x1xf32>
    %201 = arith.maximumf %199, %200 : vector<8x2x1xf32>
    %202 = math.rsqrt %201 : vector<8x2x1xf32>
    %203 = vector.broadcast %202 : vector<8x2x1xf32> to vector<8x2x8xf32>
    %204 = arith.mulf %196, %203 : vector<8x2x8xf32>
    %cst_58 = arith.constant dense<0.000000e+00> : vector<8x2x16xf32>
    %205 = tpu.matmul %204, %3, %cst_58 {dimension_numbers = #tpu.dot_dimension_numbers<[2], [1], [1], [2], [0, 0, 0, 1, 1, 2], [0], [0]>} : vector<8x2x8xf32>, vector<8x8x16xf32>, vector<8x2x16xf32> -> vector<8x2x16xf32>
    %206 = vector.shape_cast %205 : vector<8x2x16xf32> to vector<8x32xf32>
    %cst_59 = arith.constant dense<0.000000e+00> : vector<8x16xf32>
    %207 = tpu.matmul %206, %9, %cst_59 {dimension_numbers = #tpu.dot_dimension_numbers<[1], [0], [0], [1], [0, 0, 1, 1], [], []>} : vector<8x32xf32>, vector<32x16xf32>, vector<8x16xf32> -> vector<8x16xf32>
    %208 = vector.broadcast %10 : vector<1x16xf32> to vector<8x16xf32>
    %209 = arith.addf %207, %208 : vector<8x16xf32>
    %210 = math.tanh %209 : vector<8x16xf32>
    %cst_60 = arith.constant dense<0.000000e+00> : vector<8x128xf32>
    %211 = tpu.matmul %210, %11, %cst_60 {dimension_numbers = #tpu.dot_dimension_numbers<[1], [0], [0], [1], [0, 0, 1, 1], [], []>} : vector<8x16xf32>, vector<16x128xf32>, vector<8x128xf32> -> vector<8x128xf32>
    %212 = arith.addf %211, %185 : vector<8x128xf32>
    %213 = vector.extract_strided_slice %212 {offsets = [0, 0], sizes = [8, 32], strides = [1, 1]} : vector<8x128xf32> to vector<8x32xf32>
    %214 = arith.negf %213 : vector<8x32xf32>
    %215 = math.exp %214 : vector<8x32xf32>
    %cst_61 = arith.constant 1.000000e+00 : f32
    %216 = vector.broadcast %cst_61 : f32 to vector<8x32xf32>
    %217 = arith.addf %216, %215 : vector<8x32xf32>
    %218 = arith.divf %216, %217 : vector<8x32xf32>
    %219 = vector.extract_strided_slice %212 {offsets = [0, 32], sizes = [8, 32], strides = [1, 1]} : vector<8x128xf32> to vector<8x32xf32>
    %220 = arith.negf %219 : vector<8x32xf32>
    %221 = math.exp %220 : vector<8x32xf32>
    %cst_62 = arith.constant 1.000000e+00 : f32
    %222 = vector.broadcast %cst_62 : f32 to vector<8x32xf32>
    %223 = arith.addf %222, %221 : vector<8x32xf32>
    %224 = arith.divf %222, %223 : vector<8x32xf32>
    %225 = vector.extract_strided_slice %212 {offsets = [0, 64], sizes = [8, 32], strides = [1, 1]} : vector<8x128xf32> to vector<8x32xf32>
    %226 = math.tanh %225 : vector<8x32xf32>
    %227 = vector.extract_strided_slice %212 {offsets = [0, 96], sizes = [8, 32], strides = [1, 1]} : vector<8x128xf32> to vector<8x32xf32>
    %228 = arith.negf %227 : vector<8x32xf32>
    %229 = math.exp %228 : vector<8x32xf32>
    %cst_63 = arith.constant 1.000000e+00 : f32
    %230 = vector.broadcast %cst_63 : f32 to vector<8x32xf32>
    %231 = arith.addf %230, %229 : vector<8x32xf32>
    %232 = arith.divf %230, %231 : vector<8x32xf32>
    %233 = arith.mulf %224, %179 : vector<8x32xf32>
    %234 = arith.mulf %218, %226 : vector<8x32xf32>
    %235 = arith.addf %233, %234 : vector<8x32xf32>
    %236 = math.tanh %235 : vector<8x32xf32>
    %237 = arith.mulf %232, %236 : vector<8x32xf32>
    %238 = tpu.concatenate %69, %125, %181, %237 in 1 : vector<8x32xf32>, vector<8x32xf32>, vector<8x32xf32>, vector<8x32xf32> -> vector<8x128xf32>
    %c0_64 = arith.constant 0 : index
    %c0_65 = arith.constant 0 : index
    %239 = vector.load %arg10[%c0_64, %c0_65] : memref<8x128xf32, #tpu.memory_space<vmem>>, vector<8x128xf32>
    tpu.vector_store %arg10[%c0_64, %c0_65], %238 {strides = array<i32>} : memref<8x128xf32, #tpu.memory_space<vmem>>, vector<8x128xf32>,
    %c0_66 = arith.constant 0 : index
    %c0_67 = arith.constant 0 : index
    %240 = vector.load %arg11[%c0_66, %c0_67] : memref<8x32xf32, #tpu.memory_space<vmem>>, vector<8x32xf32>
    tpu.vector_store %arg11[%c0_66, %c0_67], %237 {strides = array<i32>} : memref<8x32xf32, #tpu.memory_space<vmem>>, vector<8x32xf32>,
    %c0_68 = arith.constant 0 : index
    %c0_69 = arith.constant 0 : index
    %241 = vector.load %arg12[%c0_68, %c0_69] : memref<8x32xf32, #tpu.memory_space<vmem>>, vector<8x32xf32>
    tpu.vector_store %arg12[%c0_68, %c0_69], %235 {strides = array<i32>} : memref<8x32xf32, #tpu.memory_space<vmem>>, vector<8x32xf32>,
    return
  }
  func.func @transform_0(%arg0: i32) -> (i32, i32, i32) {
    %c0_i32 = arith.constant 0 : i32
    %c0_i32_0 = arith.constant 0 : i32
    %c0_i32_1 = arith.constant 0 : i32
    %c0_i32_2 = arith.constant 0 : i32
    return %c0_i32, %c0_i32_0, %c0_i32_1 : i32, i32, i32
  }
  func.func @transform_1(%arg0: i32) -> (i32, i32, i32) {
    %c0_i32 = arith.constant 0 : i32
    %c0_i32_0 = arith.constant 0 : i32
    %c0_i32_1 = arith.constant 0 : i32
    %c0_i32_2 = arith.constant 0 : i32
    return %c0_i32, %c0_i32_0, %c0_i32_1 : i32, i32, i32
  }
  func.func @transform_2(%arg0: i32) -> (i32, i32) {
    %c0_i32 = arith.constant 0 : i32
    %c0_i32_0 = arith.constant 0 : i32
    %c0_i32_1 = arith.constant 0 : i32
    return %c0_i32, %c0_i32_0 : i32, i32
  }
  func.func @transform_3(%arg0: i32) -> (i32, i32) {
    %c0_i32 = arith.constant 0 : i32
    %c0_i32_0 = arith.constant 0 : i32
    %c0_i32_1 = arith.constant 0 : i32
    return %c0_i32, %c0_i32_0 : i32, i32
  }
  func.func @transform_4(%arg0: i32) -> (i32, i32) {
    %c0_i32 = arith.constant 0 : i32
    %c0_i32_0 = arith.constant 0 : i32
    %c0_i32_1 = arith.constant 0 : i32
    return %c0_i32, %c0_i32_0 : i32, i32
  }
  func.func @transform_5(%arg0: i32) -> (i32, i32) {
    %c0_i32 = arith.constant 0 : i32
    %c0_i32_0 = arith.constant 0 : i32
    %c0_i32_1 = arith.constant 0 : i32
    return %c0_i32, %c0_i32_0 : i32, i32
  }
  func.func @transform_6(%arg0: i32) -> (i32, i32) {
    %c0_i32 = arith.constant 0 : i32
    %c0_i32_0 = arith.constant 0 : i32
    %c0_i32_1 = arith.constant 0 : i32
    return %c0_i32, %c0_i32_0 : i32, i32
  }
  func.func @transform_7(%arg0: i32) -> (i32, i32) {
    %c0_i32 = arith.constant 0 : i32
    %c0_i32_0 = arith.constant 0 : i32
    %c0_i32_1 = arith.constant 0 : i32
    return %c0_i32, %c0_i32_0 : i32, i32
  }
  func.func @transform_8(%arg0: i32) -> (i32, i32) {
    %c0_i32 = arith.constant 0 : i32
    %c0_i32_0 = arith.constant 0 : i32
    %c0_i32_1 = arith.constant 0 : i32
    return %c0_i32, %c0_i32_0 : i32, i32
  }
  func.func @transform_9(%arg0: i32) -> (i32, i32) {
    %c0_i32 = arith.constant 0 : i32
    %c0_i32_0 = arith.constant 0 : i32
    return %c0_i32, %arg0 : i32, i32
  }
}

</mosaic_0001>

<llo_original>
// kernel: tpu_custom_call.1
$region0: #{tpu_custom_call.1}
  #allocation0 [shape = 'u32[]', space=smem, size = 0x4, offset = 0x4, fixed_abs, tag = 'smem constant byte address 0x4 - core index']
  #allocation1 [shape = 'u32[144,128]{1,0:T(1,128)}', space=vmem, size = 0x12000, scoped, tag = 'internal scratch']
  #allocation2 [shape = 'f32[8,32]{1,0:T(8,128)}', space=vmem, size = 0x1000, scoped, tag = 'scratch operand']
  #allocation3 [shape = 'f32[8,32]{1,0:T(8,128)}', space=vmem, size = 0x1000, scoped, tag = 'scratch operand']
  %s0 = inlined_call_operand.hbm [shape: f32[8,8,16], index: 0, kind: input, shape index: {}]
  %s1 = inlined_call_operand.vmem [shape: f32[8,1,8], index: 1, kind: input, shape index: {}]
  %s2 = inlined_call_operand.vmem [shape: f32[8,32], index: 2, kind: input, shape index: {}]
  %s3 = inlined_call_operand.vmem [shape: f32[8,32], index: 3, kind: input, shape index: {}]
  %s4 = inlined_call_operand.hbm [shape: f32[32,160], index: 4, kind: input, shape index: {}]
  %s5 = inlined_call_operand.vmem [shape: f32[1,160], index: 5, kind: input, shape index: {}]
  %s6 = inlined_call_operand.vmem [shape: f32[32,16], index: 6, kind: input, shape index: {}]
  %s7 = inlined_call_operand.vmem [shape: f32[1,16], index: 7, kind: input, shape index: {}]
  %s8 = inlined_call_operand.vmem [shape: f32[16,128], index: 8, kind: input, shape index: {}]
  %s9 = inlined_call_operand.hbm [shape: f32[8,128], index: 9, kind: output, shape index: {}]
  %s10 = sld [smem:[#allocation0]]
  $region58: #{tpu_custom_call.1} parent=0
    _
  %s12 = ssub.s32 1, %s10
  %s13 = scalar_select 0, %s12, %s10
  $region1: #{tpu_custom_call.1} parent=0
    #allocation4 [shape = 'u8[32768]{0}', space=vmem, size = 0x8000, scoped, tag = 'input window, operand 0, single buffered']
    #allocation5 [shape = 's32[1]{0}', space=sflag, size = 0x4, scoped, tag = 'scoped memory for tpu_custom_call.1']
    #allocation6 [shape = 's32[1]{0}', space=sflag, size = 0x4, scoped, tag = 'scoped memory for tpu_custom_call.1']
    #allocation7 [shape = 'u8[32768]{0}', space=vmem, size = 0x8000, scoped, tag = 'input window, operand 4, single buffered']
    #allocation8 [shape = 's32[1]{0}', space=sflag, size = 0x4, scoped, tag = 'scoped memory for tpu_custom_call.1']
    #allocation9 [shape = 'u8[4096]{0}', space=vmem, size = 0x1000, scoped, tag = 'output window, operand 0, single buffered']
    %14 = vsyncpa [#allocation5], 0
    %15 = vsyncpa [#allocation8], 0
    %16 = vsyncpa [#allocation6], 0
    // Predicated region
    $region2: #{tpu_custom_call.1} parent=1 // pred_check
      _
    $region3: #{tpu_custom_call.1} parent=1 // pred_check_branch
      %18 = sbr.rel (0) target = $region5
    $region4: #{tpu_custom_call.1} parent=1 // pred_region
      %s20 = ssub.s32 1024, 1024
      %21 = vsyncadd [#allocation5], %s20
      %s22 = sshll.u32 [#allocation4], 4
      %s23 = int_to_ptr.vmem [resolvable:$true] %s22
      %28 = dma.hbm_to_vmem [thread:$0]  %s0, 1024, %s23, [#allocation5], 128, 128, 8
    $region5: #{tpu_custom_call.1} parent=1 // pred_fallthru
      _
    // Predicated region
    $region6: #{tpu_custom_call.1} parent=1 // pred_check
      _
    $region7: #{tpu_custom_call.1} parent=1 // pred_check_branch
      %30 = sbr.rel (0) target = $region9
    $region8: #{tpu_custom_call.1} parent=1 // pred_region
      _
    $region9: #{tpu_custom_call.1} parent=1 // pred_fallthru
      _
    // Predicated region
    $region10: #{tpu_custom_call.1} parent=1 // pred_check
      _
    $region11: #{tpu_custom_call.1} parent=1 // pred_check_branch
      %32 = sbr.rel (0) target = $region13
    $region12: #{tpu_custom_call.1} parent=1 // pred_region
      _
    $region13: #{tpu_custom_call.1} parent=1 // pred_fallthru
      _
    // Predicated region
    $region14: #{tpu_custom_call.1} parent=1 // pred_check
      _
    $region15: #{tpu_custom_call.1} parent=1 // pred_check_branch
      %34 = sbr.rel (0) target = $region17
    $region16: #{tpu_custom_call.1} parent=1 // pred_region
      _
    $region17: #{tpu_custom_call.1} parent=1 // pred_fallthru
      _
    // Predicated region
    $region18: #{tpu_custom_call.1} parent=1 // pred_check
      _
    $region19: #{tpu_custom_call.1} parent=1 // pred_check_branch
      %36 = sbr.rel (0) target = $region21
    $region20: #{tpu_custom_call.1} parent=1 // pred_region
      %s38 = ssub.s32 1024, 1024
      %39 = vsyncadd [#allocation8], %s38
      %s40 = sshll.u32 [#allocation7], 4
      %s41 = int_to_ptr.vmem [resolvable:$true] %s40
      %46 = dma.hbm_to_vmem [thread:$0]  %s4, 1024, %s41, [#allocation8], 256, 256, 16
    $region21: #{tpu_custom_call.1} parent=1 // pred_fallthru
      _
    // Predicated region
    $region22: #{tpu_custom_call.1} parent=1 // pred_check
      _
    $region23: #{tpu_custom_call.1} parent=1 // pred_check_branch
      %48 = sbr.rel (0) target = $region25
    $region24: #{tpu_custom_call.1} parent=1 // pred_region
      _
    $region25: #{tpu_custom_call.1} parent=1 // pred_fallthru
      _
    // Predicated region
    $region26: #{tpu_custom_call.1} parent=1 // pred_check
      _
    $region27: #{tpu_custom_call.1} parent=1 // pred_check_branch
      %50 = sbr.rel (0) target = $region29
    $region28: #{tpu_custom_call.1} parent=1 // pred_region
      _
    $region29: #{tpu_custom_call.1} parent=1 // pred_fallthru
      _
    // Predicated region
    $region30: #{tpu_custom_call.1} parent=1 // pred_check
      _
    $region31: #{tpu_custom_call.1} parent=1 // pred_check_branch
      %52 = sbr.rel (0) target = $region33
    $region32: #{tpu_custom_call.1} parent=1 // pred_region
      _
    $region33: #{tpu_custom_call.1} parent=1 // pred_fallthru
      _
    // Predicated region
    $region34: #{tpu_custom_call.1} parent=1 // pred_check
      _
    $region35: #{tpu_custom_call.1} parent=1 // pred_check_branch
      %54 = sbr.rel (0) target = $region37
    $region36: #{tpu_custom_call.1} parent=1 // pred_region
      _
    $region37: #{tpu_custom_call.1} parent=1 // pred_fallthru
      _
    // Predicated region
    $region38: #{tpu_custom_call.1} parent=1 // pred_check
      _
    $region39: #{tpu_custom_call.1} parent=1 // pred_check_branch
      %56 = sbr.rel (0) target = $region41
    $region40: #{tpu_custom_call.1} parent=1 // pred_region
      %57 = dma.done [#allocation5], 1024
    $region41: #{tpu_custom_call.1} parent=1 // pred_fallthru
      _
    // Predicated region
    $region42: #{tpu_custom_call.1} parent=1 // pred_check
      _
    $region43: #{tpu_custom_call.1} parent=1 // pred_check_branch
      %59 = sbr.rel (0) target = $region45
    $region44: #{tpu_custom_call.1} parent=1 // pred_region
      %60 = dma.done [#allocation8], 1024
    $region45: #{tpu_custom_call.1} parent=1 // pred_fallthru
      _
    %p61 = scmp.eq.s32.totalorder 0, 0
    // Predicated region
    $region46: #{tpu_custom_call.1} parent=1 // pred_check
      %p62 = pneg %p61
    $region47: #{tpu_custom_call.1} parent=1 // pred_check_branch
      %64 = sbr.rel (%p62) target = $region49
    $region48: #{tpu_custom_call.1} parent=1 // pred_region
      %v65 = vld [vmem:[%s2] sm:$0xff]
      %vm66 = vcmask 261120
      %67 = vst.msk [vmem:[#allocation2] sm:$0xff] %vm66, %v65
      %v68 = vld [vmem:[%s3] sm:$0xff]
      %69 = vst.msk [vmem:[#allocation3] sm:$0xff] %vm66, %v68
    $region49: #{tpu_custom_call.1} parent=1 // pred_fallthru
      _
    %v70 = vld [vmem:[#allocation4] sm:$0xff]
    %v71 = vld [vmem:[#allocation4 + $0x8] sm:$0xff]
    %v72 = vld [vmem:[#allocation4 + $0x10] sm:$0xff]
    %v73 = vld [vmem:[#allocation4 + $0x18] sm:$0xff]
    %v74 = vld [vmem:[#allocation4 + $0x20] sm:$0xff]
    %v75 = vld [vmem:[#allocation4 + $0x28] sm:$0xff]
    %v76 = vld [vmem:[#allocation4 + $0x30] sm:$0xff]
    %v77 = vld [vmem:[#allocation4 + $0x38] sm:$0xff]
    %v78 = vld [vmem:[%s1] sm:$0x1]
    %v79 = vld [vmem:[%s1 + $0x1] sm:$0x1]
    %v80 = vld [vmem:[%s1 + $0x2] sm:$0x1]
    %v81 = vld [vmem:[%s1 + $0x3] sm:$0x1]
    %v82 = vld [vmem:[%s1 + $0x4] sm:$0x1]
    %v83 = vld [vmem:[%s1 + $0x5] sm:$0x1]
    %v84 = vld [vmem:[%s1 + $0x6] sm:$0x1]
    %v85 = vld [vmem:[%s1 + $0x7] sm:$0x1]
    %v86 = vadd.f32 %v78, 1e-06
    %v87 = vadd.f32 %v79, 1e-06
    %v88 = vadd.f32 %v80, 1e-06
    %v89 = vadd.f32 %v81, 1e-06
    %v90 = vadd.f32 %v82, 1e-06
    %v91 = vadd.f32 %v83, 1e-06
    %v92 = vadd.f32 %v84, 1e-06
    %v93 = vadd.f32 %v85, 1e-06
    %v94 = vld [vmem:[#allocation7] sm:$0xff]
    %v95 = vld [vmem:[#allocation7 + $0x8] sm:$0xff]
    %v96 = vld [vmem:[#allocation7 + $0x10] sm:$0xff]
    %v97 = vld [vmem:[#allocation7 + $0x18] sm:$0xff]
    %v98 = vld [vmem:[#allocation7 + $0x20] sm:$0xff]
    %v99 = vld [vmem:[#allocation7 + $0x28] sm:$0xff]
    %v100 = vld [vmem:[#allocation7 + $0x30] sm:$0xff]
    %v101 = vld [vmem:[#allocation7 + $0x38] sm:$0xff]
    %v102 = vld [vmem:[%s5] sm:$0x3]
    %v103 = vld [vmem:[%s6] sm:$0xff]
    %v104 = vld [vmem:[%s6 + $0x8] sm:$0xff]
    %v105 = vld [vmem:[%s6 + $0x10] sm:$0xff]
    %v106 = vld [vmem:[%s6 + $0x18] sm:$0xff]
    %v107 = vld [vmem:[%s7] sm:$0x1]
    %v108 = vld [vmem:[%s8] sm:$0xff]
    %v109 = vld [vmem:[%s8 + $0x8] sm:$0xff]
    %v110 = vld [vmem:[#allocation2] sm:$0xff]
    %v111 = vld [vmem:[#allocation3] sm:$0xff]
    %v113 = vlaneseq
    %v114 = vshrl.u32 %v113, 7
    %v115 = vsub.s32 0, %v114
    %v116 = vrot.slane %v102, %v115
    %v117 = vlaneseq
    %v118 = vshrl.u32 %v117, 7
    %v119 = vsub.s32 1, %v118
    %v120 = vrot.slane %v102, %v119
    %vm123 = vcmask 261120
    %v125 = vsel %vm123, %v110, 0
    %127 = vmatprep.subr.mxu0 %v95
    %128 = vmatpush1.msra.mxu0 %v94
    %129 = vmatprep.subr.mxu0 %v97
    %130 = vmatpush1.msra.mxu0 %v96
    %131 = vmatprep.subr.mxu0 %v99
    %132 = vmatpush1.msra.mxu0 %v98
    %133 = vmatprep.subr.mxu0 %v101
    %134 = vmatpush1.msra.mxu0 %v100
    %135 = vmatprep.subr.mxu0 0.0
    %136 = vmatpush1.msra.mxu0 0.0
    %137 = vmatprep.subr.mxu0 0.0
    %138 = vmatpush1.msra.mxu0 0.0
    %139 = vmatprep.subr.mxu0 0.0
    %140 = vmatpush1.msra.mxu0 0.0
    %141 = vmatprep.subr.mxu0 0.0
    %142 = vmatpush1.msra.mxu0 0.0
    %143 = vmatprep.subr.mxu0 0.0
    %144 = vmatpush1.msra.mxu0 0.0
    %145 = vmatprep.subr.mxu0 0.0
    %146 = vmatpush1.msra.mxu0 0.0
    %147 = vmatprep.subr.mxu0 0.0
    %148 = vmatpush1.msra.mxu0 0.0
    %149 = vmatprep.subr.mxu0 0.0
    %150 = vmatpush1.msra.mxu0 0.0
    %151 = vmatprep.subr.mxu0 0.0
    %152 = vmatpush1.msra.mxu0 0.0
    %153 = vmatprep.subr.mxu0 0.0
    %154 = vmatpush1.msra.mxu0 0.0
    %155 = vmatprep.subr.mxu0 0.0
    %156 = vmatpush1.msra.mxu0 0.0
    %157 = vmatprep.subr.mxu0 0.0
    %158 = vmatpush1.msra.mxu0 0.0
    %159 = vmatprep.subr.mxu0 0.0
    %160 = vmatpush1.msra.mxu0 0.0
    %161 = vmatprep.subr.mxu0 0.0
    %162 = vmatpush1.msra.mxu0 0.0
    %163 = vmatprep.subr.mxu0 0.0
    %164 = vmatpush1.msra.mxu0 0.0
    %165 = vmatprep.subr.mxu0 0.0
    %166 = vmatpush1.msra.mxu0 0.0
    %167 = vmatprep.subr.mxu0 0.0
    %168 = vmatpush1.msra.mxu0 0.0
    %169 = vmatprep.subr.mxu0 0.0
    %170 = vmatpush1.msra.mxu0 0.0
    %171 = vmatprep.subr.mxu0 0.0
    %172 = vmatpush1.msra.mxu0 0.0
    %173 = vmatprep.subr.mxu0 0.0
    %174 = vmatpush1.msra.mxu0 0.0
    %175 = vmatprep.subr.mxu0 0.0
    %176 = vmatpush1.msra.mxu0 0.0
    %177 = vmatprep.subr.mxu0 0.0
    %178 = vmatpush1.msra.mxu0 0.0
    %179 = vmatprep.subr.mxu0 0.0
    %180 = vmatpush1.msra.mxu0 0.0
    %181 = vmatprep.subr.mxu0 0.0
    %182 = vmatpush1.msra.mxu0 0.0
    %183 = vmatprep.subr.mxu0 0.0
    %184 = vmatpush1.msra.mxu0 0.0
    %185 = vmatprep.subr.mxu0 0.0
    %186 = vmatpush1.msra.mxu0 0.0
    %187 = vmatprep.subr.mxu0 0.0
    %188 = vmatpush1.msra.mxu0 0.0
    %189 = vmatprep.subr.mxu0 0.0
    %190 = vmatpush1.msra.mxu0 0.0
    %191 = vmatprep.mubr.f32.mxu0 0.0
    %192 = vmatmul.mubr.f32.gmra.mrb[0].mxu0 %v125
    %v193 = vpop.f32.mrb[0].mxu0
    %v194 = vadd.f32 %v116, %v193
    %v195 = vpop.f32.mrb[0].mxu0
    %v196 = vadd.f32 %v120, %v195
    %197 = vdwg.mxu0
    %199 = vrot.lane.b32.xlu0 %v196, 112
    %v200 = vpop.permute.xlu0 %199
    %v202 = vcombine.high %v196, 0.0
    %v204 = vunpack.c.l.s4 1983009808
    %v205 = vunpack.c.0.s8 %v204
    %v206 = vlaneseq
    %v207 = vshrl.u32 %v206, 7
    %v208 = vsub.s32 %v205, %v207
    %v209 = vrot.slane %v196, %v208
    %v211 = vunpack.c.l.s4 1983009808
    %v212 = vunpack.c.0.s8 %v211
    %v213 = vlaneseq
    %v214 = vshrl.u32 %v213, 7
    %v215 = vsub.s32 %v212, %v214
    %v216 = vrot.slane %v202, %v215
    %v217 = vcombine.high %v200, 0.0
    %v219 = vunpack.c.l.s4 1983009808
    %v220 = vunpack.c.0.s8 %v219
    %v221 = vlaneseq
    %v222 = vshrl.u32 %v221, 7
    %v223 = vsub.s32 %v220, %v222
    %v224 = vrot.slane %v200, %v223
    %v226 = vunpack.c.l.s4 1983009808
    %v227 = vunpack.c.0.s8 %v226
    %v228 = vlaneseq
    %v229 = vshrl.u32 %v228, 7
    %v230 = vsub.s32 %v227, %v229
    %v231 = vrot.slane %v217, %v230
    %v232 = vcombine.low %v209, %v224
    %v233 = vcombine.high %v209, %v224
    %v235 = vunpack.c.l.s4 1934713408
    %v236 = vunpack.c.0.s8 %v235
    %v237 = vlaneseq
    %v238 = vshrl.u32 %v237, 7
    %v239 = vsub.s32 %v236, %v238
    %v240 = vrot.slane %v232, %v239
    %v242 = vunpack.c.l.s4 1934713408
    %v243 = vunpack.c.0.s8 %v242
    %v244 = vlaneseq
    %v245 = vshrl.u32 %v244, 7
    %v246 = vsub.s32 %v243, %v245
    %v247 = vrot.slane %v233, %v246
    %v248 = vcombine.low %v216, %v231
    %v249 = vcombine.high %v216, %v231
    %v251 = vunpack.c.l.s4 1934713408
    %v252 = vunpack.c.0.s8 %v251
    %v253 = vlaneseq
    %v254 = vshrl.u32 %v253, 7
    %v255 = vsub.s32 %v252, %v254
    %v256 = vrot.slane %v248, %v255
    %v258 = vunpack.c.l.s4 1934713408
    %v259 = vunpack.c.0.s8 %v258
    %v260 = vlaneseq
    %v261 = vshrl.u32 %v260, 7
    %v262 = vsub.s32 %v259, %v261
    %v263 = vrot.slane %v249, %v262
    %v264 = vcombine.high %v240, 0.0
    %v265 = vcombine.high %v247, 0.0
    %v266 = vcombine.high %v256, 0.0
    %v267 = vcombine.high %v263, 0.0
    %vm268 = vcmask 130048
    %v270 = vsel %vm268, %v240, 0
    %v273 = vsel %vm268, %v70, 0
    %275 = vmatprep.subr.mxu0 0.0
    %276 = vmatpush1.xpose.msra.mxu0 %v273
    %277 = vmatprep.subr.mxu0 0.0
    %278 = vmatpush1.xpose.msra.mxu0 0.0
    %279 = vmatprep.subr.mxu0 0.0
    %280 = vmatpush1.xpose.msra.mxu0 0.0
    %281 = vmatprep.subr.mxu0 0.0
    %282 = vmatpush1.xpose.msra.mxu0 0.0
    %283 = vmatprep.subr.mxu0 0.0
    %284 = vmatpush1.xpose.msra.mxu0 0.0
    %285 = vmatprep.subr.mxu0 0.0
    %286 = vmatpush1.xpose.msra.mxu0 0.0
    %287 = vmatprep.subr.mxu0 0.0
    %288 = vmatpush1.xpose.msra.mxu0 0.0
    %289 = vmatprep.subr.mxu0 0.0
    %290 = vmatpush1.xpose.msra.mxu0 0.0
    %291 = vmatprep.subr.mxu0 0.0
    %292 = vmatpush1.xpose.msra.mxu0 0.0
    %293 = vmatprep.subr.mxu0 0.0
    %294 = vmatpush1.xpose.msra.mxu0 0.0
    %295 = vmatprep.subr.mxu0 0.0
    %296 = vmatpush1.xpose.msra.mxu0 0.0
    %297 = vmatprep.subr.mxu0 0.0
    %298 = vmatpush1.xpose.msra.mxu0 0.0
    %299 = vmatprep.subr.mxu0 0.0
    %300 = vmatpush1.xpose.msra.mxu0 0.0
    %301 = vmatprep.subr.mxu0 0.0
    %302 = vmatpush1.xpose.msra.mxu0 0.0
    %303 = vmatprep.subr.mxu0 0.0
    %304 = vmatpush1.xpose.msra.mxu0 0.0
    %305 = vmatprep.subr.mxu0 0.0
    %306 = vmatpush1.xpose.msra.mxu0 0.0
    %307 = vmatprep.subr.mxu0 0.0
    %308 = vmatpush1.xpose.msra.mxu0 0.0
    %309 = vmatprep.subr.mxu0 0.0
    %310 = vmatpush1.xpose.msra.mxu0 0.0
    %311 = vmatprep.subr.mxu0 0.0
    %312 = vmatpush1.xpose.msra.mxu0 0.0
    %313 = vmatprep.subr.mxu0 0.0
    %314 = vmatpush1.xpose.msra.mxu0 0.0
    %315 = vmatprep.subr.mxu0 0.0
    %316 = vmatpush1.xpose.msra.mxu0 0.0
    %317 = vmatprep.subr.mxu0 0.0
    %318 = vmatpush1.xpose.msra.mxu0 0.0
    %319 = vmatprep.subr.mxu0 0.0
    %320 = vmatpush1.xpose.msra.mxu0 0.0
    %321 = vmatprep.subr.mxu0 0.0
    %322 = vmatpush1.xpose.msra.mxu0 0.0
    %323 = vmatprep.subr.mxu0 0.0
    %324 = vmatpush1.xpose.msra.mxu0 0.0
    %325 = vmatprep.subr.mxu0 0.0
    %326 = vmatpush1.xpose.msra.mxu0 0.0
    %327 = vmatprep.subr.mxu0 0.0
    %328 = vmatpush1.xpose.msra.mxu0 0.0
    %329 = vmatprep.subr.mxu0 0.0
    %330 = vmatpush1.xpose.msra.mxu0 0.0
    %331 = vmatprep.subr.mxu0 0.0
    %332 = vmatpush1.xpose.msra.mxu0 0.0
    %333 = vmatprep.subr.mxu0 0.0
    %334 = vmatpush1.xpose.msra.mxu0 0.0
    %335 = vmatprep.subr.mxu0 0.0
    %336 = vmatpush1.xpose.msra.mxu0 0.0
    %337 = vmatprep.subr.mxu0 0.0
    %338 = vmatpush1.xpose.msra.mxu0 0.0
    %339 = vmatprep.mubr.f32.mxu0 0.0
    %340 = vmatmul.mubr.f32.gmra.mrb[0].mxu0 %v270
    %v341 = vpop.f32.mrb[0].mxu0
    %v342 = vadd.f32 0.0, %v341
    %v343 = vpop.f32.mrb[0].mxu0
    %344 = vdwg.mxu0
    %v346 = vsel %vm268, %v264, 0
    %v349 = vsel %vm268, %v71, 0
    %351 = vmatprep.subr.mxu0 0.0
    %352 = vmatpush1.xpose.msra.mxu0 %v349
    %353 = vmatprep.subr.mxu0 0.0
    %354 = vmatpush1.xpose.msra.mxu0 0.0
    %355 = vmatprep.subr.mxu0 0.0
    %356 = vmatpush1.xpose.msra.mxu0 0.0
    %357 = vmatprep.subr.mxu0 0.0
    %358 = vmatpush1.xpose.msra.mxu0 0.0
    %359 = vmatprep.subr.mxu0 0.0
    %360 = vmatpush1.xpose.msra.mxu0 0.0
    %361 = vmatprep.subr.mxu0 0.0
    %362 = vmatpush1.xpose.msra.mxu0 0.0
    %363 = vmatprep.subr.mxu0 0.0
    %364 = vmatpush1.xpose.msra.mxu0 0.0
    %365 = vmatprep.subr.mxu0 0.0
    %366 = vmatpush1.xpose.msra.mxu0 0.0
    %367 = vmatprep.subr.mxu0 0.0
    %368 = vmatpush1.xpose.msra.mxu0 0.0
    %369 = vmatprep.subr.mxu0 0.0
    %370 = vmatpush1.xpose.msra.mxu0 0.0
    %371 = vmatprep.subr.mxu0 0.0
    %372 = vmatpush1.xpose.msra.mxu0 0.0
    %373 = vmatprep.subr.mxu0 0.0
    %374 = vmatpush1.xpose.msra.mxu0 0.0
    %375 = vmatprep.subr.mxu0 0.0
    %376 = vmatpush1.xpose.msra.mxu0 0.0
    %377 = vmatprep.subr.mxu0 0.0
    %378 = vmatpush1.xpose.msra.mxu0 0.0
    %379 = vmatprep.subr.mxu0 0.0
    %380 = vmatpush1.xpose.msra.mxu0 0.0
    %381 = vmatprep.subr.mxu0 0.0
    %382 = vmatpush1.xpose.msra.mxu0 0.0
    %383 = vmatprep.subr.mxu0 0.0
    %384 = vmatpush1.xpose.msra.mxu0 0.0
    %385 = vmatprep.subr.mxu0 0.0
    %386 = vmatpush1.xpose.msra.mxu0 0.0
    %387 = vmatprep.subr.mxu0 0.0
    %388 = vmatpush1.xpose.msra.mxu0 0.0
    %389 = vmatprep.subr.mxu0 0.0
    %390 = vmatpush1.xpose.msra.mxu0 0.0
    %391 = vmatprep.subr.mxu0 0.0
    %392 = vmatpush1.xpose.msra.mxu0 0.0
    %393 = vmatprep.subr.mxu0 0.0
    %394 = vmatpush1.xpose.msra.mxu0 0.0
    %395 = vmatprep.subr.mxu0 0.0
    %396 = vmatpush1.xpose.msra.mxu0 0.0
    %397 = vmatprep.subr.mxu0 0.0
    %398 = vmatpush1.xpose.msra.mxu0 0.0
    %399 = vmatprep.subr.mxu0 0.0
    %400 = vmatpush1.xpose.msra.mxu0 0.0
    %401 = vmatprep.subr.mxu0 0.0
    %402 = vmatpush1.xpose.msra.mxu0 0.0
    %403 = vmatprep.subr.mxu0 0.0
    %404 = vmatpush1.xpose.msra.mxu0 0.0
    %405 = vmatprep.subr.mxu0 0.0
    %406 = vmatpush1.xpose.msra.mxu0 0.0
    %407 = vmatprep.subr.mxu0 0.0
    %408 = vmatpush1.xpose.msra.mxu0 0.0
    %409 = vmatprep.subr.mxu0 0.0
    %410 = vmatpush1.xpose.msra.mxu0 0.0
    %411 = vmatprep.subr.mxu0 0.0
    %412 = vmatpush1.xpose.msra.mxu0 0.0
    %413 = vmatprep.subr.mxu0 0.0
    %414 = vmatpush1.xpose.msra.mxu0 0.0
    %415 = vmatprep.mubr.f32.mxu0 0.0
    %416 = vmatmul.mubr.f32.gmra.mrb[0].mxu0 %v346
    %v417 = vpop.f32.mrb[0].mxu0
    %v418 = vadd.f32 0.0, %v417
    %v419 = vpop.f32.mrb[0].mxu0
    %420 = vdwg.mxu0
    %v422 = vsel %vm268, %v247, 0
    %v425 = vsel %vm268, %v72, 0
    %427 = vmatprep.subr.mxu0 0.0
    %428 = vmatpush1.xpose.msra.mxu0 %v425
    %429 = vmatprep.subr.mxu0 0.0
    %430 = vmatpush1.xpose.msra.mxu0 0.0
    %431 = vmatprep.subr.mxu0 0.0
    %432 = vmatpush1.xpose.msra.mxu0 0.0
    %433 = vmatprep.subr.mxu0 0.0
    %434 = vmatpush1.xpose.msra.mxu0 0.0
    %435 = vmatprep.subr.mxu0 0.0
    %436 = vmatpush1.xpose.msra.mxu0 0.0
    %437 = vmatprep.subr.mxu0 0.0
    %438 = vmatpush1.xpose.msra.mxu0 0.0
    %439 = vmatprep.subr.mxu0 0.0
    %440 = vmatpush1.xpose.msra.mxu0 0.0
    %441 = vmatprep.subr.mxu0 0.0
    %442 = vmatpush1.xpose.msra.mxu0 0.0
    %443 = vmatprep.subr.mxu0 0.0
    %444 = vmatpush1.xpose.msra.mxu0 0.0
    %445 = vmatprep.subr.mxu0 0.0
    %446 = vmatpush1.xpose.msra.mxu0 0.0
    %447 = vmatprep.subr.mxu0 0.0
    %448 = vmatpush1.xpose.msra.mxu0 0.0
    %449 = vmatprep.subr.mxu0 0.0
    %450 = vmatpush1.xpose.msra.mxu0 0.0
    %451 = vmatprep.subr.mxu0 0.0
    %452 = vmatpush1.xpose.msra.mxu0 0.0
    %453 = vmatprep.subr.mxu0 0.0
    %454 = vmatpush1.xpose.msra.mxu0 0.0
    %455 = vmatprep.subr.mxu0 0.0
    %456 = vmatpush1.xpose.msra.mxu0 0.0
    %457 = vmatprep.subr.mxu0 0.0
    %458 = vmatpush1.xpose.msra.mxu0 0.0
    %459 = vmatprep.subr.mxu0 0.0
    %460 = vmatpush1.xpose.msra.mxu0 0.0
    %461 = vmatprep.subr.mxu0 0.0
    %462 = vmatpush1.xpose.msra.mxu0 0.0
    %463 = vmatprep.subr.mxu0 0.0
    %464 = vmatpush1.xpose.msra.mxu0 0.0
    %465 = vmatprep.subr.mxu0 0.0
    %466 = vmatpush1.xpose.msra.mxu0 0.0
    %467 = vmatprep.subr.mxu0 0.0
    %468 = vmatpush1.xpose.msra.mxu0 0.0
    %469 = vmatprep.subr.mxu0 0.0
    %470 = vmatpush1.xpose.msra.mxu0 0.0
    %471 = vmatprep.subr.mxu0 0.0
    %472 = vmatpush1.xpose.msra.mxu0 0.0
    %473 = vmatprep.subr.mxu0 0.0
    %474 = vmatpush1.xpose.msra.mxu0 0.0
    %475 = vmatprep.subr.mxu0 0.0
    %476 = vmatpush1.xpose.msra.mxu0 0.0
    %477 = vmatprep.subr.mxu0 0.0
    %478 = vmatpush1.xpose.msra.mxu0 0.0
    %479 = vmatprep.subr.mxu0 0.0
    %480 = vmatpush1.xpose.msra.mxu0 0.0
    %481 = vmatprep.subr.mxu0 0.0
    %482 = vmatpush1.xpose.msra.mxu0 0.0
    %483 = vmatprep.subr.mxu0 0.0
    %484 = vmatpush1.xpose.msra.mxu0 0.0
    %485 = vmatprep.subr.mxu0 0.0
    %486 = vmatpush1.xpose.msra.mxu0 0.0
    %487 = vmatprep.subr.mxu0 0.0
    %488 = vmatpush1.xpose.msra.mxu0 0.0
    %489 = vmatprep.subr.mxu0 0.0
    %490 = vmatpush1.xpose.msra.mxu0 0.0
    %491 = vmatprep.mubr.f32.mxu0 0.0
    %492 = vmatmul.mubr.f32.gmra.mrb[0].mxu0 %v422
    %v493 = vpop.f32.mrb[0].mxu0
    %v494 = vadd.f32 0.0, %v493
    %v495 = vpop.f32.mrb[0].mxu0
    %496 = vdwg.mxu0
    %v498 = vsel %vm268, %v265, 0
    %v501 = vsel %vm268, %v73, 0
    %503 = vmatprep.subr.mxu0 0.0
    %504 = vmatpush1.xpose.msra.mxu0 %v501
    %505 = vmatprep.subr.mxu0 0.0
    %506 = vmatpush1.xpose.msra.mxu0 0.0
    %507 = vmatprep.subr.mxu0 0.0
    %508 = vmatpush1.xpose.msra.mxu0 0.0
    %509 = vmatprep.subr.mxu0 0.0
    %510 = vmatpush1.xpose.msra.mxu0 0.0
    %511 = vmatprep.subr.mxu0 0.0
    %512 = vmatpush1.xpose.msra.mxu0 0.0
    %513 = vmatprep.subr.mxu0 0.0
    %514 = vmatpush1.xpose.msra.mxu0 0.0
    %515 = vmatprep.subr.mxu0 0.0
    %516 = vmatpush1.xpose.msra.mxu0 0.0
    %517 = vmatprep.subr.mxu0 0.0
    %518 = vmatpush1.xpose.msra.mxu0 0.0
    %519 = vmatprep.subr.mxu0 0.0
    %520 = vmatpush1.xpose.msra.mxu0 0.0
    %521 = vmatprep.subr.mxu0 0.0
    %522 = vmatpush1.xpose.msra.mxu0 0.0
    %523 = vmatprep.subr.mxu0 0.0
    %524 = vmatpush1.xpose.msra.mxu0 0.0
    %525 = vmatprep.subr.mxu0 0.0
    %526 = vmatpush1.xpose.msra.mxu0 0.0
    %527 = vmatprep.subr.mxu0 0.0
    %528 = vmatpush1.xpose.msra.mxu0 0.0
    %529 = vmatprep.subr.mxu0 0.0
    %530 = vmatpush1.xpose.msra.mxu0 0.0
    %531 = vmatprep.subr.mxu0 0.0
    %532 = vmatpush1.xpose.msra.mxu0 0.0
    %533 = vmatprep.subr.mxu0 0.0
    %534 = vmatpush1.xpose.msra.mxu0 0.0
    %535 = vmatprep.subr.mxu0 0.0
    %536 = vmatpush1.xpose.msra.mxu0 0.0
    %537 = vmatprep.subr.mxu0 0.0
    %538 = vmatpush1.xpose.msra.mxu0 0.0
    %539 = vmatprep.subr.mxu0 0.0
    %540 = vmatpush1.xpose.msra.mxu0 0.0
    %541 = vmatprep.subr.mxu0 0.0
    %542 = vmatpush1.xpose.msra.mxu0 0.0
    %543 = vmatprep.subr.mxu0 0.0
    %544 = vmatpush1.xpose.msra.mxu0 0.0
    %545 = vmatprep.subr.mxu0 0.0
    %546 = vmatpush1.xpose.msra.mxu0 0.0
    %547 = vmatprep.subr.mxu0 0.0
    %548 = vmatpush1.xpose.msra.mxu0 0.0
    %549 = vmatprep.subr.mxu0 0.0
    %550 = vmatpush1.xpose.msra.mxu0 0.0
    %551 = vmatprep.subr.mxu0 0.0
    %552 = vmatpush1.xpose.msra.mxu0 0.0
    %553 = vmatprep.subr.mxu0 0.0
    %554 = vmatpush1.xpose.msra.mxu0 0.0
    %555 = vmatprep.subr.mxu0 0.0
    %556 = vmatpush1.xpose.msra.mxu0 0.0
    %557 = vmatprep.subr.mxu0 0.0
    %558 = vmatpush1.xpose.msra.mxu0 0.0
    %559 = vmatprep.subr.mxu0 0.0
    %560 = vmatpush1.xpose.msra.mxu0 0.0
    %561 = vmatprep.subr.mxu0 0.0
    %562 = vmatpush1.xpose.msra.mxu0 0.0
    %563 = vmatprep.subr.mxu0 0.0
    %564 = vmatpush1.xpose.msra.mxu0 0.0
    %565 = vmatprep.subr.mxu0 0.0
    %566 = vmatpush1.xpose.msra.mxu0 0.0
    %567 = vmatprep.mubr.f32.mxu0 0.0
    %568 = vmatmul.mubr.f32.gmra.mrb[0].mxu0 %v498
    %v569 = vpop.f32.mrb[0].mxu0
    %v570 = vadd.f32 0.0, %v569
    %v571 = vpop.f32.mrb[0].mxu0
    %572 = vdwg.mxu0
    %v574 = vsel %vm268, %v256, 0
    %v577 = vsel %vm268, %v74, 0
    %579 = vmatprep.subr.mxu0 0.0
    %580 = vmatpush1.xpose.msra.mxu0 %v577
    %581 = vmatprep.subr.mxu0 0.0
    %582 = vmatpush1.xpose.msra.mxu0 0.0
    %583 = vmatprep.subr.mxu0 0.0
    %584 = vmatpush1.xpose.msra.mxu0 0.0
    %585 = vmatprep.subr.mxu0 0.0
    %586 = vmatpush1.xpose.msra.mxu0 0.0
    %587 = vmatprep.subr.mxu0 0.0
    %588 = vmatpush1.xpose.msra.mxu0 0.0
    %589 = vmatprep.subr.mxu0 0.0
    %590 = vmatpush1.xpose.msra.mxu0 0.0
    %591 = vmatprep.subr.mxu0 0.0
    %592 = vmatpush1.xpose.msra.mxu0 0.0
    %593 = vmatprep.subr.mxu0 0.0
    %594 = vmatpush1.xpose.msra.mxu0 0.0
    %595 = vmatprep.subr.mxu0 0.0
    %596 = vmatpush1.xpose.msra.mxu0 0.0
    %597 = vmatprep.subr.mxu0 0.0
    %598 = vmatpush1.xpose.msra.mxu0 0.0
    %599 = vmatprep.subr.mxu0 0.0
    %600 = vmatpush1.xpose.msra.mxu0 0.0
    %601 = vmatprep.subr.mxu0 0.0
    %602 = vmatpush1.xpose.msra.mxu0 0.0
    %603 = vmatprep.subr.mxu0 0.0
    %604 = vmatpush1.xpose.msra.mxu0 0.0
    %605 = vmatprep.subr.mxu0 0.0
    %606 = vmatpush1.xpose.msra.mxu0 0.0
    %607 = vmatprep.subr.mxu0 0.0
    %608 = vmatpush1.xpose.msra.mxu0 0.0
    %609 = vmatprep.subr.mxu0 0.0
    %610 = vmatpush1.xpose.msra.mxu0 0.0
    %611 = vmatprep.subr.mxu0 0.0
    %612 = vmatpush1.xpose.msra.mxu0 0.0
    %613 = vmatprep.subr.mxu0 0.0
    %614 = vmatpush1.xpose.msra.mxu0 0.0
    %615 = vmatprep.subr.mxu0 0.0
    %616 = vmatpush1.xpose.msra.mxu0 0.0
    %617 = vmatprep.subr.mxu0 0.0
    %618 = vmatpush1.xpose.msra.mxu0 0.0
    %619 = vmatprep.subr.mxu0 0.0
    %620 = vmatpush1.xpose.msra.mxu0 0.0
    %621 = vmatprep.subr.mxu0 0.0
    %622 = vmatpush1.xpose.msra.mxu0 0.0
    %623 = vmatprep.subr.mxu0 0.0
    %624 = vmatpush1.xpose.msra.mxu0 0.0
    %625 = vmatprep.subr.mxu0 0.0
    %626 = vmatpush1.xpose.msra.mxu0 0.0
    %627 = vmatprep.subr.mxu0 0.0
    %628 = vmatpush1.xpose.msra.mxu0 0.0
    %629 = vmatprep.subr.mxu0 0.0
    %630 = vmatpush1.xpose.msra.mxu0 0.0
    %631 = vmatprep.subr.mxu0 0.0
    %632 = vmatpush1.xpose.msra.mxu0 0.0
    %633 = vmatprep.subr.mxu0 0.0
    %634 = vmatpush1.xpose.msra.mxu0 0.0
    %635 = vmatprep.subr.mxu0 0.0
    %636 = vmatpush1.xpose.msra.mxu0 0.0
    %637 = vmatprep.subr.mxu0 0.0
    %638 = vmatpush1.xpose.msra.mxu0 0.0
    %639 = vmatprep.subr.mxu0 0.0
    %640 = vmatpush1.xpose.msra.mxu0 0.0
    %641 = vmatprep.subr.mxu0 0.0
    %642 = vmatpush1.xpose.msra.mxu0 0.0
    %643 = vmatprep.mubr.f32.mxu0 0.0
    %644 = vmatmul.mubr.f32.gmra.mrb[0].mxu0 %v574
    %v645 = vpop.f32.mrb[0].mxu0
    %v646 = vadd.f32 0.0, %v645
    %v647 = vpop.f32.mrb[0].mxu0
    %648 = vdwg.mxu0
    %v650 = vsel %vm268, %v266, 0
    %v653 = vsel %vm268, %v75, 0
    %655 = vmatprep.subr.mxu0 0.0
    %656 = vmatpush1.xpose.msra.mxu0 %v653
    %657 = vmatprep.subr.mxu0 0.0
    %658 = vmatpush1.xpose.msra.mxu0 0.0
    %659 = vmatprep.subr.mxu0 0.0
    %660 = vmatpush1.xpose.msra.mxu0 0.0
    %661 = vmatprep.subr.mxu0 0.0
    %662 = vmatpush1.xpose.msra.mxu0 0.0
    %663 = vmatprep.subr.mxu0 0.0
    %664 = vmatpush1.xpose.msra.mxu0 0.0
    %665 = vmatprep.subr.mxu0 0.0
    %666 = vmatpush1.xpose.msra.mxu0 0.0
    %667 = vmatprep.subr.mxu0 0.0
    %668 = vmatpush1.xpose.msra.mxu0 0.0
    %669 = vmatprep.subr.mxu0 0.0
    %670 = vmatpush1.xpose.msra.mxu0 0.0
    %671 = vmatprep.subr.mxu0 0.0
    %672 = vmatpush1.xpose.msra.mxu0 0.0
    %673 = vmatprep.subr.mxu0 0.0
    %674 = vmatpush1.xpose.msra.mxu0 0.0
    %675 = vmatprep.subr.mxu0 0.0
    %676 = vmatpush1.xpose.msra.mxu0 0.0
    %677 = vmatprep.subr.mxu0 0.0
    %678 = vmatpush1.xpose.msra.mxu0 0.0
    %679 = vmatprep.subr.mxu0 0.0
    %680 = vmatpush1.xpose.msra.mxu0 0.0
    %681 = vmatprep.subr.mxu0 0.0
    %682 = vmatpush1.xpose.msra.mxu0 0.0
    %683 = vmatprep.subr.mxu0 0.0
    %684 = vmatpush1.xpose.msra.mxu0 0.0
    %685 = vmatprep.subr.mxu0 0.0
    %686 = vmatpush1.xpose.msra.mxu0 0.0
    %687 = vmatprep.subr.mxu0 0.0
    %688 = vmatpush1.xpose.msra.mxu0 0.0
    %689 = vmatprep.subr.mxu0 0.0
    %690 = vmatpush1.xpose.msra.mxu0 0.0
    %691 = vmatprep.subr.mxu0 0.0
    %692 = vmatpush1.xpose.msra.mxu0 0.0
    %693 = vmatprep.subr.mxu0 0.0
    %694 = vmatpush1.xpose.msra.mxu0 0.0
    %695 = vmatprep.subr.mxu0 0.0
    %696 = vmatpush1.xpose.msra.mxu0 0.0
    %697 = vmatprep.subr.mxu0 0.0
    %698 = vmatpush1.xpose.msra.mxu0 0.0
    %699 = vmatprep.subr.mxu0 0.0
    %700 = vmatpush1.xpose.msra.mxu0 0.0
    %701 = vmatprep.subr.mxu0 0.0
    %702 = vmatpush1.xpose.msra.mxu0 0.0
    %703 = vmatprep.subr.mxu0 0.0
    %704 = vmatpush1.xpose.msra.mxu0 0.0
    %705 = vmatprep.subr.mxu0 0.0
    %706 = vmatpush1.xpose.msra.mxu0 0.0
    %707 = vmatprep.subr.mxu0 0.0
    %708 = vmatpush1.xpose.msra.mxu0 0.0
    %709 = vmatprep.subr.mxu0 0.0
    %710 = vmatpush1.xpose.msra.mxu0 0.0
    %711 = vmatprep.subr.mxu0 0.0
    %712 = vmatpush1.xpose.msra.mxu0 0.0
    %713 = vmatprep.subr.mxu0 0.0
    %714 = vmatpush1.xpose.msra.mxu0 0.0
    %715 = vmatprep.subr.mxu0 0.0
    %716 = vmatpush1.xpose.msra.mxu0 0.0
    %717 = vmatprep.subr.mxu0 0.0
    %718 = vmatpush1.xpose.msra.mxu0 0.0
    %719 = vmatprep.mubr.f32.mxu0 0.0
    %720 = vmatmul.mubr.f32.gmra.mrb[0].mxu0 %v650
    %v721 = vpop.f32.mrb[0].mxu0
    %v722 = vadd.f32 0.0, %v721
    %v723 = vpop.f32.mrb[0].mxu0
    %724 = vdwg.mxu0
    %v726 = vsel %vm268, %v263, 0
    %v729 = vsel %vm268, %v76, 0
    %731 = vmatprep.subr.mxu0 0.0
    %732 = vmatpush1.xpose.msra.mxu0 %v729
    %733 = vmatprep.subr.mxu0 0.0
    %734 = vmatpush1.xpose.msra.mxu0 0.0
    %735 = vmatprep.subr.mxu0 0.0
    %736 = vmatpush1.xpose.msra.mxu0 0.0
    %737 = vmatprep.subr.mxu0 0.0
    %738 = vmatpush1.xpose.msra.mxu0 0.0
    %739 = vmatprep.subr.mxu0 0.0
    %740 = vmatpush1.xpose.msra.mxu0 0.0
    %741 = vmatprep.subr.mxu0 0.0
    %742 = vmatpush1.xpose.msra.mxu0 0.0
    %743 = vmatprep.subr.mxu0 0.0
    %744 = vmatpush1.xpose.msra.mxu0 0.0
    %745 = vmatprep.subr.mxu0 0.0
    %746 = vmatpush1.xpose.msra.mxu0 0.0
    %747 = vmatprep.subr.mxu0 0.0
    %748 = vmatpush1.xpose.msra.mxu0 0.0
    %749 = vmatprep.subr.mxu0 0.0
    %750 = vmatpush1.xpose.msra.mxu0 0.0
    %751 = vmatprep.subr.mxu0 0.0
    %752 = vmatpush1.xpose.msra.mxu0 0.0
    %753 = vmatprep.subr.mxu0 0.0
    %754 = vmatpush1.xpose.msra.mxu0 0.0
    %755 = vmatprep.subr.mxu0 0.0
    %756 = vmatpush1.xpose.msra.mxu0 0.0
    %757 = vmatprep.subr.mxu0 0.0
    %758 = vmatpush1.xpose.msra.mxu0 0.0
    %759 = vmatprep.subr.mxu0 0.0
    %760 = vmatpush1.xpose.msra.mxu0 0.0
    %761 = vmatprep.subr.mxu0 0.0
    %762 = vmatpush1.xpose.msra.mxu0 0.0
    %763 = vmatprep.subr.mxu0 0.0
    %764 = vmatpush1.xpose.msra.mxu0 0.0
    %765 = vmatprep.subr.mxu0 0.0
    %766 = vmatpush1.xpose.msra.mxu0 0.0
    %767 = vmatprep.subr.mxu0 0.0
    %768 = vmatpush1.xpose.msra.mxu0 0.0
    %769 = vmatprep.subr.mxu0 0.0
    %770 = vmatpush1.xpose.msra.mxu0 0.0
    %771 = vmatprep.subr.mxu0 0.0
    %772 = vmatpush1.xpose.msra.mxu0 0.0
    %773 = vmatprep.subr.mxu0 0.0
    %774 = vmatpush1.xpose.msra.mxu0 0.0
    %775 = vmatprep.subr.mxu0 0.0
    %776 = vmatpush1.xpose.msra.mxu0 0.0
    %777 = vmatprep.subr.mxu0 0.0
    %778 = vmatpush1.xpose.msra.mxu0 0.0
    %779 = vmatprep.subr.mxu0 0.0
    %780 = vmatpush1.xpose.msra.mxu0 0.0
    %781 = vmatprep.subr.mxu0 0.0
    %782 = vmatpush1.xpose.msra.mxu0 0.0
    %783 = vmatprep.subr.mxu0 0.0
    %784 = vmatpush1.xpose.msra.mxu0 0.0
    %785 = vmatprep.subr.mxu0 0.0
    %786 = vmatpush1.xpose.msra.mxu0 0.0
    %787 = vmatprep.subr.mxu0 0.0
    %788 = vmatpush1.xpose.msra.mxu0 0.0
    %789 = vmatprep.subr.mxu0 0.0
    %790 = vmatpush1.xpose.msra.mxu0 0.0
    %791 = vmatprep.subr.mxu0 0.0
    %792 = vmatpush1.xpose.msra.mxu0 0.0
    %793 = vmatprep.subr.mxu0 0.0
    %794 = vmatpush1.xpose.msra.mxu0 0.0
    %795 = vmatprep.mubr.f32.mxu0 0.0
    %796 = vmatmul.mubr.f32.gmra.mrb[0].mxu0 %v726
    %v797 = vpop.f32.mrb[0].mxu0
    %v798 = vadd.f32 0.0, %v797
    %v799 = vpop.f32.mrb[0].mxu0
    %800 = vdwg.mxu0
    %v802 = vsel %vm268, %v267, 0
    %v805 = vsel %vm268, %v77, 0
    %807 = vmatprep.subr.mxu0 0.0
    %808 = vmatpush1.xpose.msra.mxu0 %v805
    %809 = vmatprep.subr.mxu0 0.0
    %810 = vmatpush1.xpose.msra.mxu0 0.0
    %811 = vmatprep.subr.mxu0 0.0
    %812 = vmatpush1.xpose.msra.mxu0 0.0
    %813 = vmatprep.subr.mxu0 0.0
    %814 = vmatpush1.xpose.msra.mxu0 0.0
    %815 = vmatprep.subr.mxu0 0.0
    %816 = vmatpush1.xpose.msra.mxu0 0.0
    %817 = vmatprep.subr.mxu0 0.0
    %818 = vmatpush1.xpose.msra.mxu0 0.0
    %819 = vmatprep.subr.mxu0 0.0
    %820 = vmatpush1.xpose.msra.mxu0 0.0
    %821 = vmatprep.subr.mxu0 0.0
    %822 = vmatpush1.xpose.msra.mxu0 0.0
    %823 = vmatprep.subr.mxu0 0.0
    %824 = vmatpush1.xpose.msra.mxu0 0.0
    %825 = vmatprep.subr.mxu0 0.0
    %826 = vmatpush1.xpose.msra.mxu0 0.0
    %827 = vmatprep.subr.mxu0 0.0
    %828 = vmatpush1.xpose.msra.mxu0 0.0
    %829 = vmatprep.subr.mxu0 0.0
    %830 = vmatpush1.xpose.msra.mxu0 0.0
    %831 = vmatprep.subr.mxu0 0.0
    %832 = vmatpush1.xpose.msra.mxu0 0.0
    %833 = vmatprep.subr.mxu0 0.0
    %834 = vmatpush1.xpose.msra.mxu0 0.0
    %835 = vmatprep.subr.mxu0 0.0
    %836 = vmatpush1.xpose.msra.mxu0 0.0
    %837 = vmatprep.subr.mxu0 0.0
    %838 = vmatpush1.xpose.msra.mxu0 0.0
    %839 = vmatprep.subr.mxu0 0.0
    %840 = vmatpush1.xpose.msra.mxu0 0.0
    %841 = vmatprep.subr.mxu0 0.0
    %842 = vmatpush1.xpose.msra.mxu0 0.0
    %843 = vmatprep.subr.mxu0 0.0
    %844 = vmatpush1.xpose.msra.mxu0 0.0
    %845 = vmatprep.subr.mxu0 0.0
    %846 = vmatpush1.xpose.msra.mxu0 0.0
    %847 = vmatprep.subr.mxu0 0.0
    %848 = vmatpush1.xpose.msra.mxu0 0.0
    %849 = vmatprep.subr.mxu0 0.0
    %850 = vmatpush1.xpose.msra.mxu0 0.0
    %851 = vmatprep.subr.mxu0 0.0
    %852 = vmatpush1.xpose.msra.mxu0 0.0
    %853 = vmatprep.subr.mxu0 0.0
    %854 = vmatpush1.xpose.msra.mxu0 0.0
    %855 = vmatprep.subr.mxu0 0.0
    %856 = vmatpush1.xpose.msra.mxu0 0.0
    %857 = vmatprep.subr.mxu0 0.0
    %858 = vmatpush1.xpose.msra.mxu0 0.0
    %859 = vmatprep.subr.mxu0 0.0
    %860 = vmatpush1.xpose.msra.mxu0 0.0
    %861 = vmatprep.subr.mxu0 0.0
    %862 = vmatpush1.xpose.msra.mxu0 0.0
    %863 = vmatprep.subr.mxu0 0.0
    %864 = vmatpush1.xpose.msra.mxu0 0.0
    %865 = vmatprep.subr.mxu0 0.0
    %866 = vmatpush1.xpose.msra.mxu0 0.0
    %867 = vmatprep.subr.mxu0 0.0
    %868 = vmatpush1.xpose.msra.mxu0 0.0
    %869 = vmatprep.subr.mxu0 0.0
    %870 = vmatpush1.xpose.msra.mxu0 0.0
    %871 = vmatprep.mubr.f32.mxu0 0.0
    %872 = vmatmul.mubr.f32.gmra.mrb[0].mxu0 %v802
    %v873 = vpop.f32.mrb[0].mxu0
    %v874 = vadd.f32 0.0, %v873
    %v875 = vpop.f32.mrb[0].mxu0
    %876 = vdwg.mxu0
    %v877 = vmul.f32 %v240, %v240
    %v878 = vmul.f32 %v264, %v264
    %v879 = vmul.f32 %v247, %v247
    %v880 = vmul.f32 %v265, %v265
    %v881 = vmul.f32 %v256, %v256
    %v882 = vmul.f32 %v266, %v266
    %v883 = vmul.f32 %v263, %v263
    %v884 = vmul.f32 %v267, %v267
    %vm885 = vcmask 123904
    %v886 = vsel %vm885, %v877, 0.0
    %887 = vadd.xlane.f32.xlu0 %v886
    %v888 = vpop.xlane.xlu0 %887
    %v889 = vsel %vm885, %v878, 0.0
    %890 = vadd.xlane.f32.xlu0 %v889
    %v891 = vpop.xlane.xlu0 %890
    %v892 = vsel %vm885, %v879, 0.0
    %893 = vadd.xlane.f32.xlu0 %v892
    %v894 = vpop.xlane.xlu0 %893
    %v895 = vsel %vm885, %v880, 0.0
    %896 = vadd.xlane.f32.xlu0 %v895
    %v897 = vpop.xlane.xlu0 %896
    %v898 = vsel %vm885, %v881, 0.0
    %899 = vadd.xlane.f32.xlu0 %v898
    %v900 = vpop.xlane.xlu0 %899
    %v901 = vsel %vm885, %v882, 0.0
    %902 = vadd.xlane.f32.xlu0 %v901
    %v903 = vpop.xlane.xlu0 %902
    %v904 = vsel %vm885, %v883, 0.0
    %905 = vadd.xlane.f32.xlu0 %v904
    %v906 = vpop.xlane.xlu0 %905
    %v907 = vsel %vm885, %v884, 0.0
    %908 = vadd.xlane.f32.xlu0 %v907
    %v909 = vpop.xlane.xlu0 %908
    %v910 = vrsqrt.pop %v888
    %v911 = vmul.f32 %v888, %v910
    %vm912 = vcmp.eq.f32.partialorder %v888, inf
    %v913 = vsel %vm912, %v888, %v911
    %vm914 = vcmp.eq.f32.partialorder %v888, 0.0
    %v915 = vand.u32 %v888, 2147483648
    %v916 = vsel %vm914, %v915, %v913
    %v917 = vrsqrt.pop %v891
    %v918 = vmul.f32 %v891, %v917
    %vm919 = vcmp.eq.f32.partialorder %v891, inf
    %v920 = vsel %vm919, %v891, %v918
    %vm921 = vcmp.eq.f32.partialorder %v891, 0.0
    %v922 = vand.u32 %v891, 2147483648
    %v923 = vsel %vm921, %v922, %v920
    %v924 = vrsqrt.pop %v894
    %v925 = vmul.f32 %v894, %v924
    %vm926 = vcmp.eq.f32.partialorder %v894, inf
    %v927 = vsel %vm926, %v894, %v925
    %vm928 = vcmp.eq.f32.partialorder %v894, 0.0
    %v929 = vand.u32 %v894, 2147483648
    %v930 = vsel %vm928, %v929, %v927
    %v931 = vrsqrt.pop %v897
    %v932 = vmul.f32 %v897, %v931
    %vm933 = vcmp.eq.f32.partialorder %v897, inf
    %v934 = vsel %vm933, %v897, %v932
    %vm935 = vcmp.eq.f32.partialorder %v897, 0.0
    %v936 = vand.u32 %v897, 2147483648
    %v937 = vsel %vm935, %v936, %v934
    %v938 = vrsqrt.pop %v900
    %v939 = vmul.f32 %v900, %v938
    %vm940 = vcmp.eq.f32.partialorder %v900, inf
    %v941 = vsel %vm940, %v900, %v939
    %vm942 = vcmp.eq.f32.partialorder %v900, 0.0
    %v943 = vand.u32 %v900, 2147483648
    %v944 = vsel %vm942, %v943, %v941
    %v945 = vrsqrt.pop %v903
    %v946 = vmul.f32 %v903, %v945
    %vm947 = vcmp.eq.f32.partialorder %v903, inf
    %v948 = vsel %vm947, %v903, %v946
    %vm949 = vcmp.eq.f32.partialorder %v903, 0.0
    %v950 = vand.u32 %v903, 2147483648
    %v951 = vsel %vm949, %v950, %v948
    %v952 = vrsqrt.pop %v906
    %v953 = vmul.f32 %v906, %v952
    %vm954 = vcmp.eq.f32.partialorder %v906, inf
    %v955 = vsel %vm954, %v906, %v953
    %vm956 = vcmp.eq.f32.partialorder %v906, 0.0
    %v957 = vand.u32 %v906, 2147483648
    %v958 = vsel %vm956, %v957, %v955
    %v959 = vrsqrt.pop %v909
    %v960 = vmul.f32 %v909, %v959
    %vm961 = vcmp.eq.f32.partialorder %v909, inf
    %v962 = vsel %vm961, %v909, %v960
    %vm963 = vcmp.eq.f32.partialorder %v909, 0.0
    %v964 = vand.u32 %v909, 2147483648
    %v965 = vsel %vm963, %v964, %v962
    %v974 = vlaneseq
    %v975 = vshrl.u32 %v974, 7
    %v976 = vsub.s32 0, %v975
    %v977 = vrot.slane %v86, %v976
    %v978 = vlaneseq
    %v979 = vshrl.u32 %v978, 7
    %v980 = vsub.s32 0, %v979
    %v981 = vrot.slane %v87, %v980
    %v982 = vlaneseq
    %v983 = vshrl.u32 %v982, 7
    %v984 = vsub.s32 0, %v983
    %v985 = vrot.slane %v88, %v984
    %v986 = vlaneseq
    %v987 = vshrl.u32 %v986, 7
    %v988 = vsub.s32 0, %v987
    %v989 = vrot.slane %v89, %v988
    %v990 = vlaneseq
    %v991 = vshrl.u32 %v990, 7
    %v992 = vsub.s32 0, %v991
    %v993 = vrot.slane %v90, %v992
    %v994 = vlaneseq
    %v995 = vshrl.u32 %v994, 7
    %v996 = vsub.s32 0, %v995
    %v997 = vrot.slane %v91, %v996
    %v998 = vlaneseq
    %v999 = vshrl.u32 %v998, 7
    %v1000 = vsub.s32 0, %v999
    %v1001 = vrot.slane %v92, %v1000
    %v1002 = vlaneseq
    %v1003 = vshrl.u32 %v1002, 7
    %v1004 = vsub.s32 0, %v1003
    %v1005 = vrot.slane %v93, %v1004
    %v1014 = vadd.f32 %v916, %v977
    %v1015 = vadd.f32 %v923, %v981
    %v1016 = vadd.f32 %v930, %v985
    %v1017 = vadd.f32 %v937, %v989
    %v1018 = vadd.f32 %v944, %v993
    %v1019 = vadd.f32 %v951, %v997
    %v1020 = vadd.f32 %v958, %v1001
    %v1021 = vadd.f32 %v965, %v1005
    %v1022 = vrcp.pop %v1014
    %v1023 = vmul.f32 %v342, %v1022
    %v1024 = vrcp.pop %v1015
    %v1025 = vmul.f32 %v418, %v1024
    %v1026 = vrcp.pop %v1016
    %v1027 = vmul.f32 %v494, %v1026
    %v1028 = vrcp.pop %v1017
    %v1029 = vmul.f32 %v570, %v1028
    %v1030 = vrcp.pop %v1018
    %v1031 = vmul.f32 %v646, %v1030
    %v1032 = vrcp.pop %v1019
    %v1033 = vmul.f32 %v722, %v1032
    %v1034 = vrcp.pop %v1020
    %v1035 = vmul.f32 %v798, %v1034
    %v1036 = vrcp.pop %v1021
    %v1037 = vmul.f32 %v874, %v1036
    %v1038 = vmul.f32 %v1023, %v1023
    %v1039 = vmul.f32 %v1025, %v1025
    %v1040 = vmul.f32 %v1027, %v1027
    %v1041 = vmul.f32 %v1029, %v1029
    %v1042 = vmul.f32 %v1031, %v1031
    %v1043 = vmul.f32 %v1033, %v1033
    %v1044 = vmul.f32 %v1035, %v1035
    %v1045 = vmul.f32 %v1037, %v1037
    %vm1046 = vcmask 58368
    %v1047 = vsel %vm1046, %v1038, 0.0
    %1048 = vadd.xlane.f32.xlu0 %v1047
    %v1049 = vpop.xlane.xlu0 %1048
    %v1050 = vsel %vm1046, %v1039, 0.0
    %1051 = vadd.xlane.f32.xlu0 %v1050
    %v1052 = vpop.xlane.xlu0 %1051
    %v1053 = vsel %vm1046, %v1040, 0.0
    %1054 = vadd.xlane.f32.xlu0 %v1053
    %v1055 = vpop.xlane.xlu0 %1054
    %v1056 = vsel %vm1046, %v1041, 0.0
    %1057 = vadd.xlane.f32.xlu0 %v1056
    %v1058 = vpop.xlane.xlu0 %1057
    %v1059 = vsel %vm1046, %v1042, 0.0
    %1060 = vadd.xlane.f32.xlu0 %v1059
    %v1061 = vpop.xlane.xlu0 %1060
    %v1062 = vsel %vm1046, %v1043, 0.0
    %1063 = vadd.xlane.f32.xlu0 %v1062
    %v1064 = vpop.xlane.xlu0 %1063
    %v1065 = vsel %vm1046, %v1044, 0.0
    %1066 = vadd.xlane.f32.xlu0 %v1065
    %v1067 = vpop.xlane.xlu0 %1066
    %v1068 = vsel %vm1046, %v1045, 0.0
    %1069 = vadd.xlane.f32.xlu0 %v1068
    %v1070 = vpop.xlane.xlu0 %1069
    %v1071 = vmax.f32 %v1049, 1e-24
    %v1072 = vmax.f32 %v1052, 1e-24
    %v1073 = vmax.f32 %v1055, 1e-24
    %v1074 = vmax.f32 %v1058, 1e-24
    %v1075 = vmax.f32 %v1061, 1e-24
    %v1076 = vmax.f32 %v1064, 1e-24
    %v1077 = vmax.f32 %v1067, 1e-24
    %v1078 = vmax.f32 %v1070, 1e-24
    %v1079 = vrsqrt.pop %v1071
    %v1080 = vrsqrt.pop %v1072
    %v1081 = vrsqrt.pop %v1073
    %v1082 = vrsqrt.pop %v1074
    %v1083 = vrsqrt.pop %v1075
    %v1084 = vrsqrt.pop %v1076
    %v1085 = vrsqrt.pop %v1077
    %v1086 = vrsqrt.pop %v1078
    %v1087 = vmul.f32 %v1023, %v1079
    %v1088 = vmul.f32 %v1025, %v1080
    %v1089 = vmul.f32 %v1027, %v1081
    %v1090 = vmul.f32 %v1029, %v1082
    %v1091 = vmul.f32 %v1031, %v1083
    %v1092 = vmul.f32 %v1033, %v1084
    %v1093 = vmul.f32 %v1035, %v1085
    %v1094 = vmul.f32 %v1037, %v1086
    %vm1095 = vcmask 64512
    %v1097 = vsel %vm1095, %v1087, 0
    %1099 = vmatprep.subr.mxu0 0.0
    %1100 = vmatpush1.msra.mxu0 %v70
    %1101 = vmatprep.subr.mxu0 0.0
    %1102 = vmatpush1.msra.mxu0 0.0
    %1103 = vmatprep.subr.mxu0 0.0
    %1104 = vmatpush1.msra.mxu0 0.0
    %1105 = vmatprep.subr.mxu0 0.0
    %1106 = vmatpush1.msra.mxu0 0.0
    %1107 = vmatprep.subr.mxu0 0.0
    %1108 = vmatpush1.msra.mxu0 0.0
    %1109 = vmatprep.subr.mxu0 0.0
    %1110 = vmatpush1.msra.mxu0 0.0
    %1111 = vmatprep.subr.mxu0 0.0
    %1112 = vmatpush1.msra.mxu0 0.0
    %1113 = vmatprep.subr.mxu0 0.0
    %1114 = vmatpush1.msra.mxu0 0.0
    %1115 = vmatprep.subr.mxu0 0.0
    %1116 = vmatpush1.msra.mxu0 0.0
    %1117 = vmatprep.subr.mxu0 0.0
    %1118 = vmatpush1.msra.mxu0 0.0
    %1119 = vmatprep.subr.mxu0 0.0
    %1120 = vmatpush1.msra.mxu0 0.0
    %1121 = vmatprep.subr.mxu0 0.0
    %1122 = vmatpush1.msra.mxu0 0.0
    %1123 = vmatprep.subr.mxu0 0.0
    %1124 = vmatpush1.msra.mxu0 0.0
    %1125 = vmatprep.subr.mxu0 0.0
    %1126 = vmatpush1.msra.mxu0 0.0
    %1127 = vmatprep.subr.mxu0 0.0
    %1128 = vmatpush1.msra.mxu0 0.0
    %1129 = vmatprep.subr.mxu0 0.0
    %1130 = vmatpush1.msra.mxu0 0.0
    %1131 = vmatprep.subr.mxu0 0.0
    %1132 = vmatpush1.msra.mxu0 0.0
    %1133 = vmatprep.subr.mxu0 0.0
    %1134 = vmatpush1.msra.mxu0 0.0
    %1135 = vmatprep.subr.mxu0 0.0
    %1136 = vmatpush1.msra.mxu0 0.0
    %1137 = vmatprep.subr.mxu0 0.0
    %1138 = vmatpush1.msra.mxu0 0.0
    %1139 = vmatprep.subr.mxu0 0.0
    %1140 = vmatpush1.msra.mxu0 0.0
    %1141 = vmatprep.subr.mxu0 0.0
    %1142 = vmatpush1.msra.mxu0 0.0
    %1143 = vmatprep.subr.mxu0 0.0
    %1144 = vmatpush1.msra.mxu0 0.0
    %1145 = vmatprep.subr.mxu0 0.0
    %1146 = vmatpush1.msra.mxu0 0.0
    %1147 = vmatprep.subr.mxu0 0.0
    %1148 = vmatpush1.msra.mxu0 0.0
    %1149 = vmatprep.subr.mxu0 0.0
    %1150 = vmatpush1.msra.mxu0 0.0
    %1151 = vmatprep.subr.mxu0 0.0
    %1152 = vmatpush1.msra.mxu0 0.0
    %1153 = vmatprep.subr.mxu0 0.0
    %1154 = vmatpush1.msra.mxu0 0.0
    %1155 = vmatprep.subr.mxu0 0.0
    %1156 = vmatpush1.msra.mxu0 0.0
    %1157 = vmatprep.subr.mxu0 0.0
    %1158 = vmatpush1.msra.mxu0 0.0
    %1159 = vmatprep.subr.mxu0 0.0
    %1160 = vmatpush1.msra.mxu0 0.0
    %1161 = vmatprep.subr.mxu0 0.0
    %1162 = vmatpush1.msra.mxu0 0.0
    %1163 = vmatprep.mubr.f32.mxu0 0.0
    %1164 = vmatmul.mubr.f32.gmra.mrb[0].mxu0 %v1097
    %v1165 = vpop.f32.mrb[0].mxu0
    %v1166 = vadd.f32 0.0, %v1165
    %v1167 = vpop.f32.mrb[0].mxu0
    %1168 = vdwg.mxu0
    %v1170 = vsel %vm1095, %v1088, 0
    %1172 = vmatprep.subr.mxu0 0.0
    %1173 = vmatpush1.msra.mxu0 %v71
    %1174 = vmatprep.subr.mxu0 0.0
    %1175 = vmatpush1.msra.mxu0 0.0
    %1176 = vmatprep.subr.mxu0 0.0
    %1177 = vmatpush1.msra.mxu0 0.0
    %1178 = vmatprep.subr.mxu0 0.0
    %1179 = vmatpush1.msra.mxu0 0.0
    %1180 = vmatprep.subr.mxu0 0.0
    %1181 = vmatpush1.msra.mxu0 0.0
    %1182 = vmatprep.subr.mxu0 0.0
    %1183 = vmatpush1.msra.mxu0 0.0
    %1184 = vmatprep.subr.mxu0 0.0
    %1185 = vmatpush1.msra.mxu0 0.0
    %1186 = vmatprep.subr.mxu0 0.0
    %1187 = vmatpush1.msra.mxu0 0.0
    %1188 = vmatprep.subr.mxu0 0.0
    %1189 = vmatpush1.msra.mxu0 0.0
    %1190 = vmatprep.subr.mxu0 0.0
    %1191 = vmatpush1.msra.mxu0 0.0
    %1192 = vmatprep.subr.mxu0 0.0
    %1193 = vmatpush1.msra.mxu0 0.0
    %1194 = vmatprep.subr.mxu0 0.0
    %1195 = vmatpush1.msra.mxu0 0.0
    %1196 = vmatprep.subr.mxu0 0.0
    %1197 = vmatpush1.msra.mxu0 0.0
    %1198 = vmatprep.subr.mxu0 0.0
    %1199 = vmatpush1.msra.mxu0 0.0
    %1200 = vmatprep.subr.mxu0 0.0
    %1201 = vmatpush1.msra.mxu0 0.0
    %1202 = vmatprep.subr.mxu0 0.0
    %1203 = vmatpush1.msra.mxu0 0.0
    %1204 = vmatprep.subr.mxu0 0.0
    %1205 = vmatpush1.msra.mxu0 0.0
    %1206 = vmatprep.subr.mxu0 0.0
    %1207 = vmatpush1.msra.mxu0 0.0
    %1208 = vmatprep.subr.mxu0 0.0
    %1209 = vmatpush1.msra.mxu0 0.0
    %1210 = vmatprep.subr.mxu0 0.0
    %1211 = vmatpush1.msra.mxu0 0.0
    %1212 = vmatprep.subr.mxu0 0.0
    %1213 = vmatpush1.msra.mxu0 0.0
    %1214 = vmatprep.subr.mxu0 0.0
    %1215 = vmatpush1.msra.mxu0 0.0
    %1216 = vmatprep.subr.mxu0 0.0
    %1217 = vmatpush1.msra.mxu0 0.0
    %1218 = vmatprep.subr.mxu0 0.0
    %1219 = vmatpush1.msra.mxu0 0.0
    %1220 = vmatprep.subr.mxu0 0.0
    %1221 = vmatpush1.msra.mxu0 0.0
    %1222 = vmatprep.subr.mxu0 0.0
    %1223 = vmatpush1.msra.mxu0 0.0
    %1224 = vmatprep.subr.mxu0 0.0
    %1225 = vmatpush1.msra.mxu0 0.0
    %1226 = vmatprep.subr.mxu0 0.0
    %1227 = vmatpush1.msra.mxu0 0.0
    %1228 = vmatprep.subr.mxu0 0.0
    %1229 = vmatpush1.msra.mxu0 0.0
    %1230 = vmatprep.subr.mxu0 0.0
    %1231 = vmatpush1.msra.mxu0 0.0
    %1232 = vmatprep.subr.mxu0 0.0
    %1233 = vmatpush1.msra.mxu0 0.0
    %1234 = vmatprep.subr.mxu0 0.0
    %1235 = vmatpush1.msra.mxu0 0.0
    %1236 = vmatprep.mubr.f32.mxu0 0.0
    %1237 = vmatmul.mubr.f32.gmra.mrb[0].mxu0 %v1170
    %v1238 = vpop.f32.mrb[0].mxu0
    %v1239 = vadd.f32 0.0, %v1238
    %v1240 = vpop.f32.mrb[0].mxu0
    %1241 = vdwg.mxu0
    %v1243 = vsel %vm1095, %v1089, 0
    %1245 = vmatprep.subr.mxu0 0.0
    %1246 = vmatpush1.msra.mxu0 %v72
    %1247 = vmatprep.subr.mxu0 0.0
    %1248 = vmatpush1.msra.mxu0 0.0
    %1249 = vmatprep.subr.mxu0 0.0
    %1250 = vmatpush1.msra.mxu0 0.0
    %1251 = vmatprep.subr.mxu0 0.0
    %1252 = vmatpush1.msra.mxu0 0.0
    %1253 = vmatprep.subr.mxu0 0.0
    %1254 = vmatpush1.msra.mxu0 0.0
    %1255 = vmatprep.subr.mxu0 0.0
    %1256 = vmatpush1.msra.mxu0 0.0
    %1257 = vmatprep.subr.mxu0 0.0
    %1258 = vmatpush1.msra.mxu0 0.0
    %1259 = vmatprep.subr.mxu0 0.0
    %1260 = vmatpush1.msra.mxu0 0.0
    %1261 = vmatprep.subr.mxu0 0.0
    %1262 = vmatpush1.msra.mxu0 0.0
    %1263 = vmatprep.subr.mxu0 0.0
    %1264 = vmatpush1.msra.mxu0 0.0
    %1265 = vmatprep.subr.mxu0 0.0
    %1266 = vmatpush1.msra.mxu0 0.0
    %1267 = vmatprep.subr.mxu0 0.0
    %1268 = vmatpush1.msra.mxu0 0.0
    %1269 = vmatprep.subr.mxu0 0.0
    %1270 = vmatpush1.msra.mxu0 0.0
    %1271 = vmatprep.subr.mxu0 0.0
    %1272 = vmatpush1.msra.mxu0 0.0
    %1273 = vmatprep.subr.mxu0 0.0
    %1274 = vmatpush1.msra.mxu0 0.0
    %1275 = vmatprep.subr.mxu0 0.0
    %1276 = vmatpush1.msra.mxu0 0.0
    %1277 = vmatprep.subr.mxu0 0.0
    %1278 = vmatpush1.msra.mxu0 0.0
    %1279 = vmatprep.subr.mxu0 0.0
    %1280 = vmatpush1.msra.mxu0 0.0
    %1281 = vmatprep.subr.mxu0 0.0
    %1282 = vmatpush1.msra.mxu0 0.0
    %1283 = vmatprep.subr.mxu0 0.0
    %1284 = vmatpush1.msra.mxu0 0.0
    %1285 = vmatprep.subr.mxu0 0.0
    %1286 = vmatpush1.msra.mxu0 0.0
    %1287 = vmatprep.subr.mxu0 0.0
    %1288 = vmatpush1.msra.mxu0 0.0
    %1289 = vmatprep.subr.mxu0 0.0
    %1290 = vmatpush1.msra.mxu0 0.0
    %1291 = vmatprep.subr.mxu0 0.0
    %1292 = vmatpush1.msra.mxu0 0.0
    %1293 = vmatprep.subr.mxu0 0.0
    %1294 = vmatpush1.msra.mxu0 0.0
    %1295 = vmatprep.subr.mxu0 0.0
    %1296 = vmatpush1.msra.mxu0 0.0
    %1297 = vmatprep.subr.mxu0 0.0
    %1298 = vmatpush1.msra.mxu0 0.0
    %1299 = vmatprep.subr.mxu0 0.0
    %1300 = vmatpush1.msra.mxu0 0.0
    %1301 = vmatprep.subr.mxu0 0.0
    %1302 = vmatpush1.msra.mxu0 0.0
    %1303 = vmatprep.subr.mxu0 0.0
    %1304 = vmatpush1.msra.mxu0 0.0
    %1305 = vmatprep.subr.mxu0 0.0
    %1306 = vmatpush1.msra.mxu0 0.0
    %1307 = vmatprep.subr.mxu0 0.0
    %1308 = vmatpush1.msra.mxu0 0.0
    %1309 = vmatprep.mubr.f32.mxu0 0.0
    %1310 = vmatmul.mubr.f32.gmra.mrb[0].mxu0 %v1243
    %v1311 = vpop.f32.mrb[0].mxu0
    %v1312 = vadd.f32 0.0, %v1311
    %v1313 = vpop.f32.mrb[0].mxu0
    %1314 = vdwg.mxu0
    %v1316 = vsel %vm1095, %v1090, 0
    %1318 = vmatprep.subr.mxu0 0.0
    %1319 = vmatpush1.msra.mxu0 %v73
    %1320 = vmatprep.subr.mxu0 0.0
    %1321 = vmatpush1.msra.mxu0 0.0
    %1322 = vmatprep.subr.mxu0 0.0
    %1323 = vmatpush1.msra.mxu0 0.0
    %1324 = vmatprep.subr.mxu0 0.0
    %1325 = vmatpush1.msra.mxu0 0.0
    %1326 = vmatprep.subr.mxu0 0.0
    %1327 = vmatpush1.msra.mxu0 0.0
    %1328 = vmatprep.subr.mxu0 0.0
    %1329 = vmatpush1.msra.mxu0 0.0
    %1330 = vmatprep.subr.mxu0 0.0
    %1331 = vmatpush1.msra.mxu0 0.0
    %1332 = vmatprep.subr.mxu0 0.0
    %1333 = vmatpush1.msra.mxu0 0.0
    %1334 = vmatprep.subr.mxu0 0.0
    %1335 = vmatpush1.msra.mxu0 0.0
    %1336 = vmatprep.subr.mxu0 0.0
    %1337 = vmatpush1.msra.mxu0 0.0
    %1338 = vmatprep.subr.mxu0 0.0
    %1339 = vmatpush1.msra.mxu0 0.0
    %1340 = vmatprep.subr.mxu0 0.0
    %1341 = vmatpush1.msra.mxu0 0.0
    %1342 = vmatprep.subr.mxu0 0.0
    %1343 = vmatpush1.msra.mxu0 0.0
    %1344 = vmatprep.subr.mxu0 0.0
    %1345 = vmatpush1.msra.mxu0 0.0
    %1346 = vmatprep.subr.mxu0 0.0
    %1347 = vmatpush1.msra.mxu0 0.0
    %1348 = vmatprep.subr.mxu0 0.0
    %1349 = vmatpush1.msra.mxu0 0.0
    %1350 = vmatprep.subr.mxu0 0.0
    %1351 = vmatpush1.msra.mxu0 0.0
    %1352 = vmatprep.subr.mxu0 0.0
    %1353 = vmatpush1.msra.mxu0 0.0
    %1354 = vmatprep.subr.mxu0 0.0
    %1355 = vmatpush1.msra.mxu0 0.0
    %1356 = vmatprep.subr.mxu0 0.0
    %1357 = vmatpush1.msra.mxu0 0.0
    %1358 = vmatprep.subr.mxu0 0.0
    %1359 = vmatpush1.msra.mxu0 0.0
    %1360 = vmatprep.subr.mxu0 0.0
    %1361 = vmatpush1.msra.mxu0 0.0
    %1362 = vmatprep.subr.mxu0 0.0
    %1363 = vmatpush1.msra.mxu0 0.0
    %1364 = vmatprep.subr.mxu0 0.0
    %1365 = vmatpush1.msra.mxu0 0.0
    %1366 = vmatprep.subr.mxu0 0.0
    %1367 = vmatpush1.msra.mxu0 0.0
    %1368 = vmatprep.subr.mxu0 0.0
    %1369 = vmatpush1.msra.mxu0 0.0
    %1370 = vmatprep.subr.mxu0 0.0
    %1371 = vmatpush1.msra.mxu0 0.0
    %1372 = vmatprep.subr.mxu0 0.0
    %1373 = vmatpush1.msra.mxu0 0.0
    %1374 = vmatprep.subr.mxu0 0.0
    %1375 = vmatpush1.msra.mxu0 0.0
    %1376 = vmatprep.subr.mxu0 0.0
    %1377 = vmatpush1.msra.mxu0 0.0
    %1378 = vmatprep.subr.mxu0 0.0
    %1379 = vmatpush1.msra.mxu0 0.0
    %1380 = vmatprep.subr.mxu0 0.0
    %1381 = vmatpush1.msra.mxu0 0.0
    %1382 = vmatprep.mubr.f32.mxu0 0.0
    %1383 = vmatmul.mubr.f32.gmra.mrb[0].mxu0 %v1316
    %v1384 = vpop.f32.mrb[0].mxu0
    %v1385 = vadd.f32 0.0, %v1384
    %v1386 = vpop.f32.mrb[0].mxu0
    %1387 = vdwg.mxu0
    %v1389 = vsel %vm1095, %v1091, 0
    %1391 = vmatprep.subr.mxu0 0.0
    %1392 = vmatpush1.msra.mxu0 %v74
    %1393 = vmatprep.subr.mxu0 0.0
    %1394 = vmatpush1.msra.mxu0 0.0
    %1395 = vmatprep.subr.mxu0 0.0
    %1396 = vmatpush1.msra.mxu0 0.0
    %1397 = vmatprep.subr.mxu0 0.0
    %1398 = vmatpush1.msra.mxu0 0.0
    %1399 = vmatprep.subr.mxu0 0.0
    %1400 = vmatpush1.msra.mxu0 0.0
    %1401 = vmatprep.subr.mxu0 0.0
    %1402 = vmatpush1.msra.mxu0 0.0
    %1403 = vmatprep.subr.mxu0 0.0
    %1404 = vmatpush1.msra.mxu0 0.0
    %1405 = vmatprep.subr.mxu0 0.0
    %1406 = vmatpush1.msra.mxu0 0.0
    %1407 = vmatprep.subr.mxu0 0.0
    %1408 = vmatpush1.msra.mxu0 0.0
    %1409 = vmatprep.subr.mxu0 0.0
    %1410 = vmatpush1.msra.mxu0 0.0
    %1411 = vmatprep.subr.mxu0 0.0
    %1412 = vmatpush1.msra.mxu0 0.0
    %1413 = vmatprep.subr.mxu0 0.0
    %1414 = vmatpush1.msra.mxu0 0.0
    %1415 = vmatprep.subr.mxu0 0.0
    %1416 = vmatpush1.msra.mxu0 0.0
    %1417 = vmatprep.subr.mxu0 0.0
    %1418 = vmatpush1.msra.mxu0 0.0
    %1419 = vmatprep.subr.mxu0 0.0
    %1420 = vmatpush1.msra.mxu0 0.0
    %1421 = vmatprep.subr.mxu0 0.0
    %1422 = vmatpush1.msra.mxu0 0.0
    %1423 = vmatprep.subr.mxu0 0.0
    %1424 = vmatpush1.msra.mxu0 0.0
    %1425 = vmatprep.subr.mxu0 0.0
    %1426 = vmatpush1.msra.mxu0 0.0
    %1427 = vmatprep.subr.mxu0 0.0
    %1428 = vmatpush1.msra.mxu0 0.0
    %1429 = vmatprep.subr.mxu0 0.0
    %1430 = vmatpush1.msra.mxu0 0.0
    %1431 = vmatprep.subr.mxu0 0.0
    %1432 = vmatpush1.msra.mxu0 0.0
    %1433 = vmatprep.subr.mxu0 0.0
    %1434 = vmatpush1.msra.mxu0 0.0
    %1435 = vmatprep.subr.mxu0 0.0
    %1436 = vmatpush1.msra.mxu0 0.0
    %1437 = vmatprep.subr.mxu0 0.0
    %1438 = vmatpush1.msra.mxu0 0.0
    %1439 = vmatprep.subr.mxu0 0.0
    %1440 = vmatpush1.msra.mxu0 0.0
    %1441 = vmatprep.subr.mxu0 0.0
    %1442 = vmatpush1.msra.mxu0 0.0
    %1443 = vmatprep.subr.mxu0 0.0
    %1444 = vmatpush1.msra.mxu0 0.0
    %1445 = vmatprep.subr.mxu0 0.0
    %1446 = vmatpush1.msra.mxu0 0.0
    %1447 = vmatprep.subr.mxu0 0.0
    %1448 = vmatpush1.msra.mxu0 0.0
    %1449 = vmatprep.subr.mxu0 0.0
    %1450 = vmatpush1.msra.mxu0 0.0
    %1451 = vmatprep.subr.mxu0 0.0
    %1452 = vmatpush1.msra.mxu0 0.0
    %1453 = vmatprep.subr.mxu0 0.0
    %1454 = vmatpush1.msra.mxu0 0.0
    %1455 = vmatprep.mubr.f32.mxu0 0.0
    %1456 = vmatmul.mubr.f32.gmra.mrb[0].mxu0 %v1389
    %v1457 = vpop.f32.mrb[0].mxu0
    %v1458 = vadd.f32 0.0, %v1457
    %v1459 = vpop.f32.mrb[0].mxu0
    %1460 = vdwg.mxu0
    %v1462 = vsel %vm1095, %v1092, 0
    %1464 = vmatprep.subr.mxu0 0.0
    %1465 = vmatpush1.msra.mxu0 %v75
    %1466 = vmatprep.subr.mxu0 0.0
    %1467 = vmatpush1.msra.mxu0 0.0
    %1468 = vmatprep.subr.mxu0 0.0
    %1469 = vmatpush1.msra.mxu0 0.0
    %1470 = vmatprep.subr.mxu0 0.0
    %1471 = vmatpush1.msra.mxu0 0.0
    %1472 = vmatprep.subr.mxu0 0.0
    %1473 = vmatpush1.msra.mxu0 0.0
    %1474 = vmatprep.subr.mxu0 0.0
    %1475 = vmatpush1.msra.mxu0 0.0
    %1476 = vmatprep.subr.mxu0 0.0
    %1477 = vmatpush1.msra.mxu0 0.0
    %1478 = vmatprep.subr.mxu0 0.0
    %1479 = vmatpush1.msra.mxu0 0.0
    %1480 = vmatprep.subr.mxu0 0.0
    %1481 = vmatpush1.msra.mxu0 0.0
    %1482 = vmatprep.subr.mxu0 0.0
    %1483 = vmatpush1.msra.mxu0 0.0
    %1484 = vmatprep.subr.mxu0 0.0
    %1485 = vmatpush1.msra.mxu0 0.0
    %1486 = vmatprep.subr.mxu0 0.0
    %1487 = vmatpush1.msra.mxu0 0.0
    %1488 = vmatprep.subr.mxu0 0.0
    %1489 = vmatpush1.msra.mxu0 0.0
    %1490 = vmatprep.subr.mxu0 0.0
    %1491 = vmatpush1.msra.mxu0 0.0
    %1492 = vmatprep.subr.mxu0 0.0
    %1493 = vmatpush1.msra.mxu0 0.0
    %1494 = vmatprep.subr.mxu0 0.0
    %1495 = vmatpush1.msra.mxu0 0.0
    %1496 = vmatprep.subr.mxu0 0.0
    %1497 = vmatpush1.msra.mxu0 0.0
    %1498 = vmatprep.subr.mxu0 0.0
    %1499 = vmatpush1.msra.mxu0 0.0
    %1500 = vmatprep.subr.mxu0 0.0
    %1501 = vmatpush1.msra.mxu0 0.0
    %1502 = vmatprep.subr.mxu0 0.0
    %1503 = vmatpush1.msra.mxu0 0.0
    %1504 = vmatprep.subr.mxu0 0.0
    %1505 = vmatpush1.msra.mxu0 0.0
    %1506 = vmatprep.subr.mxu0 0.0
    %1507 = vmatpush1.msra.mxu0 0.0
    %1508 = vmatprep.subr.mxu0 0.0
    %1509 = vmatpush1.msra.mxu0 0.0
    %1510 = vmatprep.subr.mxu0 0.0
    %1511 = vmatpush1.msra.mxu0 0.0
    %1512 = vmatprep.subr.mxu0 0.0
    %1513 = vmatpush1.msra.mxu0 0.0
    %1514 = vmatprep.subr.mxu0 0.0
    %1515 = vmatpush1.msra.mxu0 0.0
    %1516 = vmatprep.subr.mxu0 0.0
    %1517 = vmatpush1.msra.mxu0 0.0
    %1518 = vmatprep.subr.mxu0 0.0
    %1519 = vmatpush1.msra.mxu0 0.0
    %1520 = vmatprep.subr.mxu0 0.0
    %1521 = vmatpush1.msra.mxu0 0.0
    %1522 = vmatprep.subr.mxu0 0.0
    %1523 = vmatpush1.msra.mxu0 0.0
    %1524 = vmatprep.subr.mxu0 0.0
    %1525 = vmatpush1.msra.mxu0 0.0
    %1526 = vmatprep.subr.mxu0 0.0
    %1527 = vmatpush1.msra.mxu0 0.0
    %1528 = vmatprep.mubr.f32.mxu0 0.0
    %1529 = vmatmul.mubr.f32.gmra.mrb[0].mxu0 %v1462
    %v1530 = vpop.f32.mrb[0].mxu0
    %v1531 = vadd.f32 0.0, %v1530
    %v1532 = vpop.f32.mrb[0].mxu0
    %1533 = vdwg.mxu0
    %v1535 = vsel %vm1095, %v1093, 0
    %1537 = vmatprep.subr.mxu0 0.0
    %1538 = vmatpush1.msra.mxu0 %v76
    %1539 = vmatprep.subr.mxu0 0.0
    %1540 = vmatpush1.msra.mxu0 0.0
    %1541 = vmatprep.subr.mxu0 0.0
    %1542 = vmatpush1.msra.mxu0 0.0
    %1543 = vmatprep.subr.mxu0 0.0
    %1544 = vmatpush1.msra.mxu0 0.0
    %1545 = vmatprep.subr.mxu0 0.0
    %1546 = vmatpush1.msra.mxu0 0.0
    %1547 = vmatprep.subr.mxu0 0.0
    %1548 = vmatpush1.msra.mxu0 0.0
    %1549 = vmatprep.subr.mxu0 0.0
    %1550 = vmatpush1.msra.mxu0 0.0
    %1551 = vmatprep.subr.mxu0 0.0
    %1552 = vmatpush1.msra.mxu0 0.0
    %1553 = vmatprep.subr.mxu0 0.0
    %1554 = vmatpush1.msra.mxu0 0.0
    %1555 = vmatprep.subr.mxu0 0.0
    %1556 = vmatpush1.msra.mxu0 0.0
    %1557 = vmatprep.subr.mxu0 0.0
    %1558 = vmatpush1.msra.mxu0 0.0
    %1559 = vmatprep.subr.mxu0 0.0
    %1560 = vmatpush1.msra.mxu0 0.0
    %1561 = vmatprep.subr.mxu0 0.0
    %1562 = vmatpush1.msra.mxu0 0.0
    %1563 = vmatprep.subr.mxu0 0.0
    %1564 = vmatpush1.msra.mxu0 0.0
    %1565 = vmatprep.subr.mxu0 0.0
    %1566 = vmatpush1.msra.mxu0 0.0
    %1567 = vmatprep.subr.mxu0 0.0
    %1568 = vmatpush1.msra.mxu0 0.0
    %1569 = vmatprep.subr.mxu0 0.0
    %1570 = vmatpush1.msra.mxu0 0.0
    %1571 = vmatprep.subr.mxu0 0.0
    %1572 = vmatpush1.msra.mxu0 0.0
    %1573 = vmatprep.subr.mxu0 0.0
    %1574 = vmatpush1.msra.mxu0 0.0
    %1575 = vmatprep.subr.mxu0 0.0
    %1576 = vmatpush1.msra.mxu0 0.0
    %1577 = vmatprep.subr.mxu0 0.0
    %1578 = vmatpush1.msra.mxu0 0.0
    %1579 = vmatprep.subr.mxu0 0.0
    %1580 = vmatpush1.msra.mxu0 0.0
    %1581 = vmatprep.subr.mxu0 0.0
    %1582 = vmatpush1.msra.mxu0 0.0
    %1583 = vmatprep.subr.mxu0 0.0
    %1584 = vmatpush1.msra.mxu0 0.0
    %1585 = vmatprep.subr.mxu0 0.0
    %1586 = vmatpush1.msra.mxu0 0.0
    %1587 = vmatprep.subr.mxu0 0.0
    %1588 = vmatpush1.msra.mxu0 0.0
    %1589 = vmatprep.subr.mxu0 0.0
    %1590 = vmatpush1.msra.mxu0 0.0
    %1591 = vmatprep.subr.mxu0 0.0
    %1592 = vmatpush1.msra.mxu0 0.0
    %1593 = vmatprep.subr.mxu0 0.0
    %1594 = vmatpush1.msra.mxu0 0.0
    %1595 = vmatprep.subr.mxu0 0.0
    %1596 = vmatpush1.msra.mxu0 0.0
    %1597 = vmatprep.subr.mxu0 0.0
    %1598 = vmatpush1.msra.mxu0 0.0
    %1599 = vmatprep.subr.mxu0 0.0
    %1600 = vmatpush1.msra.mxu0 0.0
    %1601 = vmatprep.mubr.f32.mxu0 0.0
    %1602 = vmatmul.mubr.f32.gmra.mrb[0].mxu0 %v1535
    %v1603 = vpop.f32.mrb[0].mxu0
    %v1604 = vadd.f32 0.0, %v1603
    %v1605 = vpop.f32.mrb[0].mxu0
    %1606 = vdwg.mxu0
    %v1608 = vsel %vm1095, %v1094, 0
    %1610 = vmatprep.subr.mxu0 0.0
    %1611 = vmatpush1.msra.mxu0 %v77
    %1612 = vmatprep.subr.mxu0 0.0
    %1613 = vmatpush1.msra.mxu0 0.0
    %1614 = vmatprep.subr.mxu0 0.0
    %1615 = vmatpush1.msra.mxu0 0.0
    %1616 = vmatprep.subr.mxu0 0.0
    %1617 = vmatpush1.msra.mxu0 0.0
    %1618 = vmatprep.subr.mxu0 0.0
    %1619 = vmatpush1.msra.mxu0 0.0
    %1620 = vmatprep.subr.mxu0 0.0
    %1621 = vmatpush1.msra.mxu0 0.0
    %1622 = vmatprep.subr.mxu0 0.0
    %1623 = vmatpush1.msra.mxu0 0.0
    %1624 = vmatprep.subr.mxu0 0.0
    %1625 = vmatpush1.msra.mxu0 0.0
    %1626 = vmatprep.subr.mxu0 0.0
    %1627 = vmatpush1.msra.mxu0 0.0
    %1628 = vmatprep.subr.mxu0 0.0
    %1629 = vmatpush1.msra.mxu0 0.0
    %1630 = vmatprep.subr.mxu0 0.0
    %1631 = vmatpush1.msra.mxu0 0.0
    %1632 = vmatprep.subr.mxu0 0.0
    %1633 = vmatpush1.msra.mxu0 0.0
    %1634 = vmatprep.subr.mxu0 0.0
    %1635 = vmatpush1.msra.mxu0 0.0
    %1636 = vmatprep.subr.mxu0 0.0
    %1637 = vmatpush1.msra.mxu0 0.0
    %1638 = vmatprep.subr.mxu0 0.0
    %1639 = vmatpush1.msra.mxu0 0.0
    %1640 = vmatprep.subr.mxu0 0.0
    %1641 = vmatpush1.msra.mxu0 0.0
    %1642 = vmatprep.subr.mxu0 0.0
    %1643 = vmatpush1.msra.mxu0 0.0
    %1644 = vmatprep.subr.mxu0 0.0
    %1645 = vmatpush1.msra.mxu0 0.0
    %1646 = vmatprep.subr.mxu0 0.0
    %1647 = vmatpush1.msra.mxu0 0.0
    %1648 = vmatprep.subr.mxu0 0.0
    %1649 = vmatpush1.msra.mxu0 0.0
    %1650 = vmatprep.subr.mxu0 0.0
    %1651 = vmatpush1.msra.mxu0 0.0
    %1652 = vmatprep.subr.mxu0 0.0
    %1653 = vmatpush1.msra.mxu0 0.0
    %1654 = vmatprep.subr.mxu0 0.0
    %1655 = vmatpush1.msra.mxu0 0.0
    %1656 = vmatprep.subr.mxu0 0.0
    %1657 = vmatpush1.msra.mxu0 0.0
    %1658 = vmatprep.subr.mxu0 0.0
    %1659 = vmatpush1.msra.mxu0 0.0
    %1660 = vmatprep.subr.mxu0 0.0
    %1661 = vmatpush1.msra.mxu0 0.0
    %1662 = vmatprep.subr.mxu0 0.0
    %1663 = vmatpush1.msra.mxu0 0.0
    %1664 = vmatprep.subr.mxu0 0.0
    %1665 = vmatpush1.msra.mxu0 0.0
    %1666 = vmatprep.subr.mxu0 0.0
    %1667 = vmatpush1.msra.mxu0 0.0
    %1668 = vmatprep.subr.mxu0 0.0
    %1669 = vmatpush1.msra.mxu0 0.0
    %1670 = vmatprep.subr.mxu0 0.0
    %1671 = vmatpush1.msra.mxu0 0.0
    %1672 = vmatprep.subr.mxu0 0.0
    %1673 = vmatpush1.msra.mxu0 0.0
    %1674 = vmatprep.mubr.f32.mxu0 0.0
    %1675 = vmatmul.mubr.f32.gmra.mrb[0].mxu0 %v1608
    %v1676 = vpop.f32.mrb[0].mxu0
    %v1677 = vadd.f32 0.0, %v1676
    %v1678 = vpop.f32.mrb[0].mxu0
    %1679 = vdwg.mxu0
    %v1680 = vcombine.low %v1166, %v1312
    %v1682 = vunpack.c.l.s4 1983009808
    %v1683 = vunpack.c.0.s8 %v1682
    %v1684 = vlaneseq
    %v1685 = vshrl.u32 %v1684, 7
    %v1686 = vsub.s32 %v1683, %v1685
    %v1687 = vrot.slane %v1680, %v1686
    %v1688 = vcombine.low %v1239, %v1385
    %v1690 = vunpack.c.l.s4 1983009808
    %v1691 = vunpack.c.0.s8 %v1690
    %v1692 = vlaneseq
    %v1693 = vshrl.u32 %v1692, 7
    %v1694 = vsub.s32 %v1691, %v1693
    %v1695 = vrot.slane %v1688, %v1694
    %v1696 = vcombine.low %v1458, %v1604
    %v1698 = vunpack.c.l.s4 1983009808
    %v1699 = vunpack.c.0.s8 %v1698
    %v1700 = vlaneseq
    %v1701 = vshrl.u32 %v1700, 7
    %v1702 = vsub.s32 %v1699, %v1701
    %v1703 = vrot.slane %v1696, %v1702
    %v1704 = vcombine.low %v1531, %v1677
    %v1706 = vunpack.c.l.s4 1983009808
    %v1707 = vunpack.c.0.s8 %v1706
    %v1708 = vlaneseq
    %v1709 = vshrl.u32 %v1708, 7
    %v1710 = vsub.s32 %v1707, %v1709
    %v1711 = vrot.slane %v1704, %v1710
    %v1712 = vcombine.low %v1687, %v1695
    %v1714 = vunpack.c.l.s4 1934713408
    %v1715 = vunpack.c.0.s8 %v1714
    %v1716 = vlaneseq
    %v1717 = vshrl.u32 %v1716, 7
    %v1718 = vsub.s32 %v1715, %v1717
    %v1719 = vrot.slane %v1712, %v1718
    %v1720 = vcombine.low %v1703, %v1711
    %v1722 = vunpack.c.l.s4 1934713408
    %v1723 = vunpack.c.0.s8 %v1722
    %v1724 = vlaneseq
    %v1725 = vshrl.u32 %v1724, 7
    %v1726 = vsub.s32 %v1723, %v1725
    %v1727 = vrot.slane %v1720, %v1726
    %v1728 = vcombine.low %v1719, %v1727
    %v1729 = vcombine.high %v1719, %v1727
    %1731 = vrot.lane.b32.xlu0 %v1729, 16
    %v1732 = vpop.permute.xlu0 %1731
    %v1734 = vsel %vm268, %v1728, %v1732
    %v1736 = vlaneseq
    %v1737 = vshrl.u32 %v1736, 7
    %v1738 = vsub.s32 0, %v1737
    %v1739 = vrot.slane %v107, %v1738
    %v1742 = vsel %vm123, %v1734, 0
    %1744 = vmatprep.subr.mxu0 0.0
    %1745 = vmatpush1.msra.mxu0 %v103
    %1746 = vmatprep.subr.mxu0 0.0
    %1747 = vmatpush1.msra.mxu0 %v104
    %1748 = vmatprep.subr.mxu0 0.0
    %1749 = vmatpush1.msra.mxu0 %v105
    %1750 = vmatprep.subr.mxu0 0.0
    %1751 = vmatpush1.msra.mxu0 %v106
    %1752 = vmatprep.subr.mxu0 0.0
    %1753 = vmatpush1.msra.mxu0 0.0
    %1754 = vmatprep.subr.mxu0 0.0
    %1755 = vmatpush1.msra.mxu0 0.0
    %1756 = vmatprep.subr.mxu0 0.0
    %1757 = vmatpush1.msra.mxu0 0.0
    %1758 = vmatprep.subr.mxu0 0.0
    %1759 = vmatpush1.msra.mxu0 0.0
    %1760 = vmatprep.subr.mxu0 0.0
    %1761 = vmatpush1.msra.mxu0 0.0
    %1762 = vmatprep.subr.mxu0 0.0
    %1763 = vmatpush1.msra.mxu0 0.0
    %1764 = vmatprep.subr.mxu0 0.0
    %1765 = vmatpush1.msra.mxu0 0.0
    %1766 = vmatprep.subr.mxu0 0.0
    %1767 = vmatpush1.msra.mxu0 0.0
    %1768 = vmatprep.subr.mxu0 0.0
    %1769 = vmatpush1.msra.mxu0 0.0
    %1770 = vmatprep.subr.mxu0 0.0
    %1771 = vmatpush1.msra.mxu0 0.0
    %1772 = vmatprep.subr.mxu0 0.0
    %1773 = vmatpush1.msra.mxu0 0.0
    %1774 = vmatprep.subr.mxu0 0.0
    %1775 = vmatpush1.msra.mxu0 0.0
    %1776 = vmatprep.subr.mxu0 0.0
    %1777 = vmatpush1.msra.mxu0 0.0
    %1778 = vmatprep.subr.mxu0 0.0
    %1779 = vmatpush1.msra.mxu0 0.0
    %1780 = vmatprep.subr.mxu0 0.0
    %1781 = vmatpush1.msra.mxu0 0.0
    %1782 = vmatprep.subr.mxu0 0.0
    %1783 = vmatpush1.msra.mxu0 0.0
    %1784 = vmatprep.subr.mxu0 0.0
    %1785 = vmatpush1.msra.mxu0 0.0
    %1786 = vmatprep.subr.mxu0 0.0
    %1787 = vmatpush1.msra.mxu0 0.0
    %1788 = vmatprep.subr.mxu0 0.0
    %1789 = vmatpush1.msra.mxu0 0.0
    %1790 = vmatprep.subr.mxu0 0.0
    %1791 = vmatpush1.msra.mxu0 0.0
    %1792 = vmatprep.subr.mxu0 0.0
    %1793 = vmatpush1.msra.mxu0 0.0
    %1794 = vmatprep.subr.mxu0 0.0
    %1795 = vmatpush1.msra.mxu0 0.0
    %1796 = vmatprep.subr.mxu0 0.0
    %1797 = vmatpush1.msra.mxu0 0.0
    %1798 = vmatprep.subr.mxu0 0.0
    %1799 = vmatpush1.msra.mxu0 0.0
    %1800 = vmatprep.subr.mxu0 0.0
    %1801 = vmatpush1.msra.mxu0 0.0
    %1802 = vmatprep.subr.mxu0 0.0
    %1803 = vmatpush1.msra.mxu0 0.0
    %1804 = vmatprep.subr.mxu0 0.0
    %1805 = vmatpush1.msra.mxu0 0.0
    %1806 = vmatprep.subr.mxu0 0.0
    %1807 = vmatpush1.msra.mxu0 0.0
    %1808 = vmatprep.mubr.f32.mxu0 0.0
    %1809 = vmatmul.mubr.f32.gmra.mrb[0].mxu0 %v1742
    %v1810 = vpop.f32.mrb[0].mxu0
    %v1811 = vadd.f32 %v1739, %v1810
    %v1812 = vpop.f32.mrb[0].mxu0
    %1813 = vdwg.mxu0
    %v1814 = vtanh.pop %v1811
    %v1816 = vsel %vm268, %v1814, 0
    %1818 = vmatprep.subr.mxu0 0.0
    %1819 = vmatpush1.msra.mxu0 %v108
    %1820 = vmatprep.subr.mxu0 0.0
    %1821 = vmatpush1.msra.mxu0 %v109
    %1822 = vmatprep.subr.mxu0 0.0
    %1823 = vmatpush1.msra.mxu0 0.0
    %1824 = vmatprep.subr.mxu0 0.0
    %1825 = vmatpush1.msra.mxu0 0.0
    %1826 = vmatprep.subr.mxu0 0.0
    %1827 = vmatpush1.msra.mxu0 0.0
    %1828 = vmatprep.subr.mxu0 0.0
    %1829 = vmatpush1.msra.mxu0 0.0
    %1830 = vmatprep.subr.mxu0 0.0
    %1831 = vmatpush1.msra.mxu0 0.0
    %1832 = vmatprep.subr.mxu0 0.0
    %1833 = vmatpush1.msra.mxu0 0.0
    %1834 = vmatprep.subr.mxu0 0.0
    %1835 = vmatpush1.msra.mxu0 0.0
    %1836 = vmatprep.subr.mxu0 0.0
    %1837 = vmatpush1.msra.mxu0 0.0
    %1838 = vmatprep.subr.mxu0 0.0
    %1839 = vmatpush1.msra.mxu0 0.0
    %1840 = vmatprep.subr.mxu0 0.0
    %1841 = vmatpush1.msra.mxu0 0.0
    %1842 = vmatprep.subr.mxu0 0.0
    %1843 = vmatpush1.msra.mxu0 0.0
    %1844 = vmatprep.subr.mxu0 0.0
    %1845 = vmatpush1.msra.mxu0 0.0
    %1846 = vmatprep.subr.mxu0 0.0
    %1847 = vmatpush1.msra.mxu0 0.0
    %1848 = vmatprep.subr.mxu0 0.0
    %1849 = vmatpush1.msra.mxu0 0.0
    %1850 = vmatprep.subr.mxu0 0.0
    %1851 = vmatpush1.msra.mxu0 0.0
    %1852 = vmatprep.subr.mxu0 0.0
    %1853 = vmatpush1.msra.mxu0 0.0
    %1854 = vmatprep.subr.mxu0 0.0
    %1855 = vmatpush1.msra.mxu0 0.0
    %1856 = vmatprep.subr.mxu0 0.0
    %1857 = vmatpush1.msra.mxu0 0.0
    %1858 = vmatprep.subr.mxu0 0.0
    %1859 = vmatpush1.msra.mxu0 0.0
    %1860 = vmatprep.subr.mxu0 0.0
    %1861 = vmatpush1.msra.mxu0 0.0
    %1862 = vmatprep.subr.mxu0 0.0
    %1863 = vmatpush1.msra.mxu0 0.0
    %1864 = vmatprep.subr.mxu0 0.0
    %1865 = vmatpush1.msra.mxu0 0.0
    %1866 = vmatprep.subr.mxu0 0.0
    %1867 = vmatpush1.msra.mxu0 0.0
    %1868 = vmatprep.subr.mxu0 0.0
    %1869 = vmatpush1.msra.mxu0 0.0
    %1870 = vmatprep.subr.mxu0 0.0
    %1871 = vmatpush1.msra.mxu0 0.0
    %1872 = vmatprep.subr.mxu0 0.0
    %1873 = vmatpush1.msra.mxu0 0.0
    %1874 = vmatprep.subr.mxu0 0.0
    %1875 = vmatpush1.msra.mxu0 0.0
    %1876 = vmatprep.subr.mxu0 0.0
    %1877 = vmatpush1.msra.mxu0 0.0
    %1878 = vmatprep.subr.mxu0 0.0
    %1879 = vmatpush1.msra.mxu0 0.0
    %1880 = vmatprep.subr.mxu0 0.0
    %1881 = vmatpush1.msra.mxu0 0.0
    %1882 = vmatprep.mubr.f32.mxu0 0.0
    %1883 = vmatmul.mubr.f32.gmra.mrb[0].mxu0 %v1816
    %v1884 = vpop.f32.mrb[0].mxu0
    %v1885 = vadd.f32 %v194, %v1884
    %v1886 = vpop.f32.mrb[0].mxu0
    %1887 = vdwg.mxu0
    %v1888 = vxor.u32 %v1885, 2147483648
    %v1889 = vmul.f32 %v1888, 1.442695
    %v1890 = vpow.pop %v1889
    %v1891 = vadd.f32 %v1890, 1.0
    %v1892 = vrcp.pop %v1891
    %v1893 = vmul.f32 1.0, %v1892
    %v1894 = vtanh.pop %v1885
    %1896 = vrot.lane.b32.xlu0 %v111, 32
    %v1897 = vpop.permute.xlu0 %1896
    %v1899 = vmul.f32 %v1893, %v1897
    %1901 = vrot.lane.b32.xlu0 %v1894, 64
    %v1902 = vpop.permute.xlu0 %1901
    %v1904 = vmul.f32 %v1893, %v1902
    %1906 = vrot.lane.b32.xlu0 %v1904, 32
    %v1907 = vpop.permute.xlu0 %1906
    %v1909 = vadd.f32 %v1899, %v1907
    %v1910 = vtanh.pop %v1909
    %1912 = vrot.lane.b32.xlu0 %v1910, 64
    %v1913 = vpop.permute.xlu0 %1912
    %v1915 = vmul.f32 %v1893, %v1913
    %1917 = vrot.lane.b32.xlu0 %v1915, 32
    %v1918 = vpop.permute.xlu0 %1917
    %v1919 = vsel %vm123, %v1918, 0
    %1921 = vmatprep.subr.mxu0 %v95
    %1922 = vmatpush1.msra.mxu0 %v94
    %1923 = vmatprep.subr.mxu0 %v97
    %1924 = vmatpush1.msra.mxu0 %v96
    %1925 = vmatprep.subr.mxu0 %v99
    %1926 = vmatpush1.msra.mxu0 %v98
    %1927 = vmatprep.subr.mxu0 %v101
    %1928 = vmatpush1.msra.mxu0 %v100
    %1929 = vmatprep.subr.mxu0 0.0
    %1930 = vmatpush1.msra.mxu0 0.0
    %1931 = vmatprep.subr.mxu0 0.0
    %1932 = vmatpush1.msra.mxu0 0.0
    %1933 = vmatprep.subr.mxu0 0.0
    %1934 = vmatpush1.msra.mxu0 0.0
    %1935 = vmatprep.subr.mxu0 0.0
    %1936 = vmatpush1.msra.mxu0 0.0
    %1937 = vmatprep.subr.mxu0 0.0
    %1938 = vmatpush1.msra.mxu0 0.0
    %1939 = vmatprep.subr.mxu0 0.0
    %1940 = vmatpush1.msra.mxu0 0.0
    %1941 = vmatprep.subr.mxu0 0.0
    %1942 = vmatpush1.msra.mxu0 0.0
    %1943 = vmatprep.subr.mxu0 0.0
    %1944 = vmatpush1.msra.mxu0 0.0
    %1945 = vmatprep.subr.mxu0 0.0
    %1946 = vmatpush1.msra.mxu0 0.0
    %1947 = vmatprep.subr.mxu0 0.0
    %1948 = vmatpush1.msra.mxu0 0.0
    %1949 = vmatprep.subr.mxu0 0.0
    %1950 = vmatpush1.msra.mxu0 0.0
    %1951 = vmatprep.subr.mxu0 0.0
    %1952 = vmatpush1.msra.mxu0 0.0
    %1953 = vmatprep.subr.mxu0 0.0
    %1954 = vmatpush1.msra.mxu0 0.0
    %1955 = vmatprep.subr.mxu0 0.0
    %1956 = vmatpush1.msra.mxu0 0.0
    %1957 = vmatprep.subr.mxu0 0.0
    %1958 = vmatpush1.msra.mxu0 0.0
    %1959 = vmatprep.subr.mxu0 0.0
    %1960 = vmatpush1.msra.mxu0 0.0
    %1961 = vmatprep.subr.mxu0 0.0
    %1962 = vmatpush1.msra.mxu0 0.0
    %1963 = vmatprep.subr.mxu0 0.0
    %1964 = vmatpush1.msra.mxu0 0.0
    %1965 = vmatprep.subr.mxu0 0.0
    %1966 = vmatpush1.msra.mxu0 0.0
    %1967 = vmatprep.subr.mxu0 0.0
    %1968 = vmatpush1.msra.mxu0 0.0
    %1969 = vmatprep.subr.mxu0 0.0
    %1970 = vmatpush1.msra.mxu0 0.0
    %1971 = vmatprep.subr.mxu0 0.0
    %1972 = vmatpush1.msra.mxu0 0.0
    %1973 = vmatprep.subr.mxu0 0.0
    %1974 = vmatpush1.msra.mxu0 0.0
    %1975 = vmatprep.subr.mxu0 0.0
    %1976 = vmatpush1.msra.mxu0 0.0
    %1977 = vmatprep.subr.mxu0 0.0
    %1978 = vmatpush1.msra.mxu0 0.0
    %1979 = vmatprep.subr.mxu0 0.0
    %1980 = vmatpush1.msra.mxu0 0.0
    %1981 = vmatprep.subr.mxu0 0.0
    %1982 = vmatpush1.msra.mxu0 0.0
    %1983 = vmatprep.subr.mxu0 0.0
    %1984 = vmatpush1.msra.mxu0 0.0
    %1985 = vmatprep.mubr.f32.mxu0 0.0
    %1986 = vmatmul.mubr.f32.gmra.mrb[0].mxu0 %v1919
    %v1987 = vpop.f32.mrb[0].mxu0
    %v1988 = vadd.f32 %v116, %v1987
    %v1989 = vpop.f32.mrb[0].mxu0
    %v1990 = vadd.f32 %v120, %v1989
    %1991 = vdwg.mxu0
    %1993 = vrot.lane.b32.xlu0 %v1990, 112
    %v1994 = vpop.permute.xlu0 %1993
    %v1996 = vcombine.high %v1990, 0.0
    %v1998 = vunpack.c.l.s4 1983009808
    %v1999 = vunpack.c.0.s8 %v1998
    %v2000 = vlaneseq
    %v2001 = vshrl.u32 %v2000, 7
    %v2002 = vsub.s32 %v1999, %v2001
    %v2003 = vrot.slane %v1990, %v2002
    %v2005 = vunpack.c.l.s4 1983009808
    %v2006 = vunpack.c.0.s8 %v2005
    %v2007 = vlaneseq
    %v2008 = vshrl.u32 %v2007, 7
    %v2009 = vsub.s32 %v2006, %v2008
    %v2010 = vrot.slane %v1996, %v2009
    %v2011 = vcombine.high %v1994, 0.0
    %v2013 = vunpack.c.l.s4 1983009808
    %v2014 = vunpack.c.0.s8 %v2013
    %v2015 = vlaneseq
    %v2016 = vshrl.u32 %v2015, 7
    %v2017 = vsub.s32 %v2014, %v2016
    %v2018 = vrot.slane %v1994, %v2017
    %v2020 = vunpack.c.l.s4 1983009808
    %v2021 = vunpack.c.0.s8 %v2020
    %v2022 = vlaneseq
    %v2023 = vshrl.u32 %v2022, 7
    %v2024 = vsub.s32 %v2021, %v2023
    %v2025 = vrot.slane %v2011, %v2024
    %v2026 = vcombine.low %v2003, %v2018
    %v2027 = vcombine.high %v2003, %v2018
    %v2029 = vunpack.c.l.s4 1934713408
    %v2030 = vunpack.c.0.s8 %v2029
    %v2031 = vlaneseq
    %v2032 = vshrl.u32 %v2031, 7
    %v2033 = vsub.s32 %v2030, %v2032
    %v2034 = vrot.slane %v2026, %v2033
    %v2036 = vunpack.c.l.s4 1934713408
    %v2037 = vunpack.c.0.s8 %v2036
    %v2038 = vlaneseq
    %v2039 = vshrl.u32 %v2038, 7
    %v2040 = vsub.s32 %v2037, %v2039
    %v2041 = vrot.slane %v2027, %v2040
    %v2042 = vcombine.low %v2010, %v2025
    %v2043 = vcombine.high %v2010, %v2025
    %v2045 = vunpack.c.l.s4 1934713408
    %v2046 = vunpack.c.0.s8 %v2045
    %v2047 = vlaneseq
    %v2048 = vshrl.u32 %v2047, 7
    %v2049 = vsub.s32 %v2046, %v2048
    %v2050 = vrot.slane %v2042, %v2049
    %v2052 = vunpack.c.l.s4 1934713408
    %v2053 = vunpack.c.0.s8 %v2052
    %v2054 = vlaneseq
    %v2055 = vshrl.u32 %v2054, 7
    %v2056 = vsub.s32 %v2053, %v2055
    %v2057 = vrot.slane %v2043, %v2056
    %v2058 = vcombine.high %v2034, 0.0
    %v2059 = vcombine.high %v2041, 0.0
    %v2060 = vcombine.high %v2050, 0.0
    %v2061 = vcombine.high %v2057, 0.0
    %v2063 = vsel %vm268, %v2034, 0
    %2065 = vmatprep.subr.mxu0 0.0
    %2066 = vmatpush1.xpose.msra.mxu0 %v273
    %2067 = vmatprep.subr.mxu0 0.0
    %2068 = vmatpush1.xpose.msra.mxu0 0.0
    %2069 = vmatprep.subr.mxu0 0.0
    %2070 = vmatpush1.xpose.msra.mxu0 0.0
    %2071 = vmatprep.subr.mxu0 0.0
    %2072 = vmatpush1.xpose.msra.mxu0 0.0
    %2073 = vmatprep.subr.mxu0 0.0
    %2074 = vmatpush1.xpose.msra.mxu0 0.0
    %2075 = vmatprep.subr.mxu0 0.0
    %2076 = vmatpush1.xpose.msra.mxu0 0.0
    %2077 = vmatprep.subr.mxu0 0.0
    %2078 = vmatpush1.xpose.msra.mxu0 0.0
    %2079 = vmatprep.subr.mxu0 0.0
    %2080 = vmatpush1.xpose.msra.mxu0 0.0
    %2081 = vmatprep.subr.mxu0 0.0
    %2082 = vmatpush1.xpose.msra.mxu0 0.0
    %2083 = vmatprep.subr.mxu0 0.0
    %2084 = vmatpush1.xpose.msra.mxu0 0.0
    %2085 = vmatprep.subr.mxu0 0.0
    %2086 = vmatpush1.xpose.msra.mxu0 0.0
    %2087 = vmatprep.subr.mxu0 0.0
    %2088 = vmatpush1.xpose.msra.mxu0 0.0
    %2089 = vmatprep.subr.mxu0 0.0
    %2090 = vmatpush1.xpose.msra.mxu0 0.0
    %2091 = vmatprep.subr.mxu0 0.0
    %2092 = vmatpush1.xpose.msra.mxu0 0.0
    %2093 = vmatprep.subr.mxu0 0.0
    %2094 = vmatpush1.xpose.msra.mxu0 0.0
    %2095 = vmatprep.subr.mxu0 0.0
    %2096 = vmatpush1.xpose.msra.mxu0 0.0
    %2097 = vmatprep.subr.mxu0 0.0
    %2098 = vmatpush1.xpose.msra.mxu0 0.0
    %2099 = vmatprep.subr.mxu0 0.0
    %2100 = vmatpush1.xpose.msra.mxu0 0.0
    %2101 = vmatprep.subr.mxu0 0.0
    %2102 = vmatpush1.xpose.msra.mxu0 0.0
    %2103 = vmatprep.subr.mxu0 0.0
    %2104 = vmatpush1.xpose.msra.mxu0 0.0
    %2105 = vmatprep.subr.mxu0 0.0
    %2106 = vmatpush1.xpose.msra.mxu0 0.0
    %2107 = vmatprep.subr.mxu0 0.0
    %2108 = vmatpush1.xpose.msra.mxu0 0.0
    %2109 = vmatprep.subr.mxu0 0.0
    %2110 = vmatpush1.xpose.msra.mxu0 0.0
    %2111 = vmatprep.subr.mxu0 0.0
    %2112 = vmatpush1.xpose.msra.mxu0 0.0
    %2113 = vmatprep.subr.mxu0 0.0
    %2114 = vmatpush1.xpose.msra.mxu0 0.0
    %2115 = vmatprep.subr.mxu0 0.0
    %2116 = vmatpush1.xpose.msra.mxu0 0.0
    %2117 = vmatprep.subr.mxu0 0.0
    %2118 = vmatpush1.xpose.msra.mxu0 0.0
    %2119 = vmatprep.subr.mxu0 0.0
    %2120 = vmatpush1.xpose.msra.mxu0 0.0
    %2121 = vmatprep.subr.mxu0 0.0
    %2122 = vmatpush1.xpose.msra.mxu0 0.0
    %2123 = vmatprep.subr.mxu0 0.0
    %2124 = vmatpush1.xpose.msra.mxu0 0.0
    %2125 = vmatprep.subr.mxu0 0.0
    %2126 = vmatpush1.xpose.msra.mxu0 0.0
    %2127 = vmatprep.subr.mxu0 0.0
    %2128 = vmatpush1.xpose.msra.mxu0 0.0
    %2129 = vmatprep.mubr.f32.mxu0 0.0
    %2130 = vmatmul.mubr.f32.gmra.mrb[0].mxu0 %v2063
    %v2131 = vpop.f32.mrb[0].mxu0
    %v2132 = vadd.f32 0.0, %v2131
    %v2133 = vpop.f32.mrb[0].mxu0
    %2134 = vdwg.mxu0
    %v2136 = vsel %vm268, %v2058, 0
    %2138 = vmatprep.subr.mxu0 0.0
    %2139 = vmatpush1.xpose.msra.mxu0 %v349
    %2140 = vmatprep.subr.mxu0 0.0
    %2141 = vmatpush1.xpose.msra.mxu0 0.0
    %2142 = vmatprep.subr.mxu0 0.0
    %2143 = vmatpush1.xpose.msra.mxu0 0.0
    %2144 = vmatprep.subr.mxu0 0.0
    %2145 = vmatpush1.xpose.msra.mxu0 0.0
    %2146 = vmatprep.subr.mxu0 0.0
    %2147 = vmatpush1.xpose.msra.mxu0 0.0
    %2148 = vmatprep.subr.mxu0 0.0
    %2149 = vmatpush1.xpose.msra.mxu0 0.0
    %2150 = vmatprep.subr.mxu0 0.0
    %2151 = vmatpush1.xpose.msra.mxu0 0.0
    %2152 = vmatprep.subr.mxu0 0.0
    %2153 = vmatpush1.xpose.msra.mxu0 0.0
    %2154 = vmatprep.subr.mxu0 0.0
    %2155 = vmatpush1.xpose.msra.mxu0 0.0
    %2156 = vmatprep.subr.mxu0 0.0
    %2157 = vmatpush1.xpose.msra.mxu0 0.0
    %2158 = vmatprep.subr.mxu0 0.0
    %2159 = vmatpush1.xpose.msra.mxu0 0.0
    %2160 = vmatprep.subr.mxu0 0.0
    %2161 = vmatpush1.xpose.msra.mxu0 0.0
    %2162 = vmatprep.subr.mxu0 0.0
    %2163 = vmatpush1.xpose.msra.mxu0 0.0
    %2164 = vmatprep.subr.mxu0 0.0
    %2165 = vmatpush1.xpose.msra.mxu0 0.0
    %2166 = vmatprep.subr.mxu0 0.0
    %2167 = vmatpush1.xpose.msra.mxu0 0.0
    %2168 = vmatprep.subr.mxu0 0.0
    %2169 = vmatpush1.xpose.msra.mxu0 0.0
    %2170 = vmatprep.subr.mxu0 0.0
    %2171 = vmatpush1.xpose.msra.mxu0 0.0
    %2172 = vmatprep.subr.mxu0 0.0
    %2173 = vmatpush1.xpose.msra.mxu0 0.0
    %2174 = vmatprep.subr.mxu0 0.0
    %2175 = vmatpush1.xpose.msra.mxu0 0.0
    %2176 = vmatprep.subr.mxu0 0.0
    %2177 = vmatpush1.xpose.msra.mxu0 0.0
    %2178 = vmatprep.subr.mxu0 0.0
    %2179 = vmatpush1.xpose.msra.mxu0 0.0
    %2180 = vmatprep.subr.mxu0 0.0
    %2181 = vmatpush1.xpose.msra.mxu0 0.0
    %2182 = vmatprep.subr.mxu0 0.0
    %2183 = vmatpush1.xpose.msra.mxu0 0.0
    %2184 = vmatprep.subr.mxu0 0.0
    %2185 = vmatpush1.xpose.msra.mxu0 0.0
    %2186 = vmatprep.subr.mxu0 0.0
    %2187 = vmatpush1.xpose.msra.mxu0 0.0
    %2188 = vmatprep.subr.mxu0 0.0
    %2189 = vmatpush1.xpose.msra.mxu0 0.0
    %2190 = vmatprep.subr.mxu0 0.0
    %2191 = vmatpush1.xpose.msra.mxu0 0.0
    %2192 = vmatprep.subr.mxu0 0.0
    %2193 = vmatpush1.xpose.msra.mxu0 0.0
    %2194 = vmatprep.subr.mxu0 0.0
    %2195 = vmatpush1.xpose.msra.mxu0 0.0
    %2196 = vmatprep.subr.mxu0 0.0
    %2197 = vmatpush1.xpose.msra.mxu0 0.0
    %2198 = vmatprep.subr.mxu0 0.0
    %2199 = vmatpush1.xpose.msra.mxu0 0.0
    %2200 = vmatprep.subr.mxu0 0.0
    %2201 = vmatpush1.xpose.msra.mxu0 0.0
    %2202 = vmatprep.mubr.f32.mxu0 0.0
    %2203 = vmatmul.mubr.f32.gmra.mrb[0].mxu0 %v2136
    %v2204 = vpop.f32.mrb[0].mxu0
    %v2205 = vadd.f32 0.0, %v2204
    %v2206 = vpop.f32.mrb[0].mxu0
    %2207 = vdwg.mxu0
    %v2209 = vsel %vm268, %v2041, 0
    %2211 = vmatprep.subr.mxu0 0.0
    %2212 = vmatpush1.xpose.msra.mxu0 %v425
    %2213 = vmatprep.subr.mxu0 0.0
    %2214 = vmatpush1.xpose.msra.mxu0 0.0
    %2215 = vmatprep.subr.mxu0 0.0
    %2216 = vmatpush1.xpose.msra.mxu0 0.0
    %2217 = vmatprep.subr.mxu0 0.0
    %2218 = vmatpush1.xpose.msra.mxu0 0.0
    %2219 = vmatprep.subr.mxu0 0.0
    %2220 = vmatpush1.xpose.msra.mxu0 0.0
    %2221 = vmatprep.subr.mxu0 0.0
    %2222 = vmatpush1.xpose.msra.mxu0 0.0
    %2223 = vmatprep.subr.mxu0 0.0
    %2224 = vmatpush1.xpose.msra.mxu0 0.0
    %2225 = vmatprep.subr.mxu0 0.0
    %2226 = vmatpush1.xpose.msra.mxu0 0.0
    %2227 = vmatprep.subr.mxu0 0.0
    %2228 = vmatpush1.xpose.msra.mxu0 0.0
    %2229 = vmatprep.subr.mxu0 0.0
    %2230 = vmatpush1.xpose.msra.mxu0 0.0
    %2231 = vmatprep.subr.mxu0 0.0
    %2232 = vmatpush1.xpose.msra.mxu0 0.0
    %2233 = vmatprep.subr.mxu0 0.0
    %2234 = vmatpush1.xpose.msra.mxu0 0.0
    %2235 = vmatprep.subr.mxu0 0.0
    %2236 = vmatpush1.xpose.msra.mxu0 0.0
    %2237 = vmatprep.subr.mxu0 0.0
    %2238 = vmatpush1.xpose.msra.mxu0 0.0
    %2239 = vmatprep.subr.mxu0 0.0
    %2240 = vmatpush1.xpose.msra.mxu0 0.0
    %2241 = vmatprep.subr.mxu0 0.0
    %2242 = vmatpush1.xpose.msra.mxu0 0.0
    %2243 = vmatprep.subr.mxu0 0.0
    %2244 = vmatpush1.xpose.msra.mxu0 0.0
    %2245 = vmatprep.subr.mxu0 0.0
    %2246 = vmatpush1.xpose.msra.mxu0 0.0
    %2247 = vmatprep.subr.mxu0 0.0
    %2248 = vmatpush1.xpose.msra.mxu0 0.0
    %2249 = vmatprep.subr.mxu0 0.0
    %2250 = vmatpush1.xpose.msra.mxu0 0.0
    %2251 = vmatprep.subr.mxu0 0.0
    %2252 = vmatpush1.xpose.msra.mxu0 0.0
    %2253 = vmatprep.subr.mxu0 0.0
    %2254 = vmatpush1.xpose.msra.mxu0 0.0
    %2255 = vmatprep.subr.mxu0 0.0
    %2256 = vmatpush1.xpose.msra.mxu0 0.0
    %2257 = vmatprep.subr.mxu0 0.0
    %2258 = vmatpush1.xpose.msra.mxu0 0.0
    %2259 = vmatprep.subr.mxu0 0.0
    %2260 = vmatpush1.xpose.msra.mxu0 0.0
    %2261 = vmatprep.subr.mxu0 0.0
    %2262 = vmatpush1.xpose.msra.mxu0 0.0
    %2263 = vmatprep.subr.mxu0 0.0
    %2264 = vmatpush1.xpose.msra.mxu0 0.0
    %2265 = vmatprep.subr.mxu0 0.0
    %2266 = vmatpush1.xpose.msra.mxu0 0.0
    %2267 = vmatprep.subr.mxu0 0.0
    %2268 = vmatpush1.xpose.msra.mxu0 0.0
    %2269 = vmatprep.subr.mxu0 0.0
    %2270 = vmatpush1.xpose.msra.mxu0 0.0
    %2271 = vmatprep.subr.mxu0 0.0
    %2272 = vmatpush1.xpose.msra.mxu0 0.0
    %2273 = vmatprep.subr.mxu0 0.0
    %2274 = vmatpush1.xpose.msra.mxu0 0.0
    %2275 = vmatprep.mubr.f32.mxu0 0.0
    %2276 = vmatmul.mubr.f32.gmra.mrb[0].mxu0 %v2209
    %v2277 = vpop.f32.mrb[0].mxu0
    %v2278 = vadd.f32 0.0, %v2277
    %v2279 = vpop.f32.mrb[0].mxu0
    %2280 = vdwg.mxu0
    %v2282 = vsel %vm268, %v2059, 0
    %2284 = vmatprep.subr.mxu0 0.0
    %2285 = vmatpush1.xpose.msra.mxu0 %v501
    %2286 = vmatprep.subr.mxu0 0.0
    %2287 = vmatpush1.xpose.msra.mxu0 0.0
    %2288 = vmatprep.subr.mxu0 0.0
    %2289 = vmatpush1.xpose.msra.mxu0 0.0
    %2290 = vmatprep.subr.mxu0 0.0
    %2291 = vmatpush1.xpose.msra.mxu0 0.0
    %2292 = vmatprep.subr.mxu0 0.0
    %2293 = vmatpush1.xpose.msra.mxu0 0.0
    %2294 = vmatprep.subr.mxu0 0.0
    %2295 = vmatpush1.xpose.msra.mxu0 0.0
    %2296 = vmatprep.subr.mxu0 0.0
    %2297 = vmatpush1.xpose.msra.mxu0 0.0
    %2298 = vmatprep.subr.mxu0 0.0
    %2299 = vmatpush1.xpose.msra.mxu0 0.0
    %2300 = vmatprep.subr.mxu0 0.0
    %2301 = vmatpush1.xpose.msra.mxu0 0.0
    %2302 = vmatprep.subr.mxu0 0.0
    %2303 = vmatpush1.xpose.msra.mxu0 0.0
    %2304 = vmatprep.subr.mxu0 0.0
    %2305 = vmatpush1.xpose.msra.mxu0 0.0
    %2306 = vmatprep.subr.mxu0 0.0
    %2307 = vmatpush1.xpose.msra.mxu0 0.0
    %2308 = vmatprep.subr.mxu0 0.0
    %2309 = vmatpush1.xpose.msra.mxu0 0.0
    %2310 = vmatprep.subr.mxu0 0.0
    %2311 = vmatpush1.xpose.msra.mxu0 0.0
    %2312 = vmatprep.subr.mxu0 0.0
    %2313 = vmatpush1.xpose.msra.mxu0 0.0
    %2314 = vmatprep.subr.mxu0 0.0
    %2315 = vmatpush1.xpose.msra.mxu0 0.0
    %2316 = vmatprep.subr.mxu0 0.0
    %2317 = vmatpush1.xpose.msra.mxu0 0.0
    %2318 = vmatprep.subr.mxu0 0.0
    %2319 = vmatpush1.xpose.msra.mxu0 0.0
    %2320 = vmatprep.subr.mxu0 0.0
    %2321 = vmatpush1.xpose.msra.mxu0 0.0
    %2322 = vmatprep.subr.mxu0 0.0
    %2323 = vmatpush1.xpose.msra.mxu0 0.0
    %2324 = vmatprep.subr.mxu0 0.0
    %2325 = vmatpush1.xpose.msra.mxu0 0.0
    %2326 = vmatprep.subr.mxu0 0.0
    %2327 = vmatpush1.xpose.msra.mxu0 0.0
    %2328 = vmatprep.subr.mxu0 0.0
    %2329 = vmatpush1.xpose.msra.mxu0 0.0
    %2330 = vmatprep.subr.mxu0 0.0
    %2331 = vmatpush1.xpose.msra.mxu0 0.0
    %2332 = vmatprep.subr.mxu0 0.0
    %2333 = vmatpush1.xpose.msra.mxu0 0.0
    %2334 = vmatprep.subr.mxu0 0.0
    %2335 = vmatpush1.xpose.msra.mxu0 0.0
    %2336 = vmatprep.subr.mxu0 0.0
    %2337 = vmatpush1.xpose.msra.mxu0 0.0
    %2338 = vmatprep.subr.mxu0 0.0
    %2339 = vmatpush1.xpose.msra.mxu0 0.0
    %2340 = vmatprep.subr.mxu0 0.0
    %2341 = vmatpush1.xpose.msra.mxu0 0.0
    %2342 = vmatprep.subr.mxu0 0.0
    %2343 = vmatpush1.xpose.msra.mxu0 0.0
    %2344 = vmatprep.subr.mxu0 0.0
    %2345 = vmatpush1.xpose.msra.mxu0 0.0
    %2346 = vmatprep.subr.mxu0 0.0
    %2347 = vmatpush1.xpose.msra.mxu0 0.0
    %2348 = vmatprep.mubr.f32.mxu0 0.0
    %2349 = vmatmul.mubr.f32.gmra.mrb[0].mxu0 %v2282
    %v2350 = vpop.f32.mrb[0].mxu0
    %v2351 = vadd.f32 0.0, %v2350
    %v2352 = vpop.f32.mrb[0].mxu0
    %2353 = vdwg.mxu0
    %v2355 = vsel %vm268, %v2050, 0
    %2357 = vmatprep.subr.mxu0 0.0
    %2358 = vmatpush1.xpose.msra.mxu0 %v577
    %2359 = vmatprep.subr.mxu0 0.0
    %2360 = vmatpush1.xpose.msra.mxu0 0.0
    %2361 = vmatprep.subr.mxu0 0.0
    %2362 = vmatpush1.xpose.msra.mxu0 0.0
    %2363 = vmatprep.subr.mxu0 0.0
    %2364 = vmatpush1.xpose.msra.mxu0 0.0
    %2365 = vmatprep.subr.mxu0 0.0
    %2366 = vmatpush1.xpose.msra.mxu0 0.0
    %2367 = vmatprep.subr.mxu0 0.0
    %2368 = vmatpush1.xpose.msra.mxu0 0.0
    %2369 = vmatprep.subr.mxu0 0.0
    %2370 = vmatpush1.xpose.msra.mxu0 0.0
    %2371 = vmatprep.subr.mxu0 0.0
    %2372 = vmatpush1.xpose.msra.mxu0 0.0
    %2373 = vmatprep.subr.mxu0 0.0
    %2374 = vmatpush1.xpose.msra.mxu0 0.0
    %2375 = vmatprep.subr.mxu0 0.0
    %2376 = vmatpush1.xpose.msra.mxu0 0.0
    %2377 = vmatprep.subr.mxu0 0.0
    %2378 = vmatpush1.xpose.msra.mxu0 0.0
    %2379 = vmatprep.subr.mxu0 0.0
    %2380 = vmatpush1.xpose.msra.mxu0 0.0
    %2381 = vmatprep.subr.mxu0 0.0
    %2382 = vmatpush1.xpose.msra.mxu0 0.0
    %2383 = vmatprep.subr.mxu0 0.0
    %2384 = vmatpush1.xpose.msra.mxu0 0.0
    %2385 = vmatprep.subr.mxu0 0.0
    %2386 = vmatpush1.xpose.msra.mxu0 0.0
    %2387 = vmatprep.subr.mxu0 0.0
    %2388 = vmatpush1.xpose.msra.mxu0 0.0
    %2389 = vmatprep.subr.mxu0 0.0
    %2390 = vmatpush1.xpose.msra.mxu0 0.0
    %2391 = vmatprep.subr.mxu0 0.0
    %2392 = vmatpush1.xpose.msra.mxu0 0.0
    %2393 = vmatprep.subr.mxu0 0.0
    %2394 = vmatpush1.xpose.msra.mxu0 0.0
    %2395 = vmatprep.subr.mxu0 0.0
    %2396 = vmatpush1.xpose.msra.mxu0 0.0
    %2397 = vmatprep.subr.mxu0 0.0
    %2398 = vmatpush1.xpose.msra.mxu0 0.0
    %2399 = vmatprep.subr.mxu0 0.0
    %2400 = vmatpush1.xpose.msra.mxu0 0.0
    %2401 = vmatprep.subr.mxu0 0.0
    %2402 = vmatpush1.xpose.msra.mxu0 0.0
    %2403 = vmatprep.subr.mxu0 0.0
    %2404 = vmatpush1.xpose.msra.mxu0 0.0
    %2405 = vmatprep.subr.mxu0 0.0
    %2406 = vmatpush1.xpose.msra.mxu0 0.0
    %2407 = vmatprep.subr.mxu0 0.0
    %2408 = vmatpush1.xpose.msra.mxu0 0.0
    %2409 = vmatprep.subr.mxu0 0.0
    %2410 = vmatpush1.xpose.msra.mxu0 0.0
    %2411 = vmatprep.subr.mxu0 0.0
    %2412 = vmatpush1.xpose.msra.mxu0 0.0
    %2413 = vmatprep.subr.mxu0 0.0
    %2414 = vmatpush1.xpose.msra.mxu0 0.0
    %2415 = vmatprep.subr.mxu0 0.0
    %2416 = vmatpush1.xpose.msra.mxu0 0.0
    %2417 = vmatprep.subr.mxu0 0.0
    %2418 = vmatpush1.xpose.msra.mxu0 0.0
    %2419 = vmatprep.subr.mxu0 0.0
    %2420 = vmatpush1.xpose.msra.mxu0 0.0
    %2421 = vmatprep.mubr.f32.mxu0 0.0
    %2422 = vmatmul.mubr.f32.gmra.mrb[0].mxu0 %v2355
    %v2423 = vpop.f32.mrb[0].mxu0
    %v2424 = vadd.f32 0.0, %v2423
    %v2425 = vpop.f32.mrb[0].mxu0
    %2426 = vdwg.mxu0
    %v2428 = vsel %vm268, %v2060, 0
    %2430 = vmatprep.subr.mxu0 0.0
    %2431 = vmatpush1.xpose.msra.mxu0 %v653
    %2432 = vmatprep.subr.mxu0 0.0
    %2433 = vmatpush1.xpose.msra.mxu0 0.0
    %2434 = vmatprep.subr.mxu0 0.0
    %2435 = vmatpush1.xpose.msra.mxu0 0.0
    %2436 = vmatprep.subr.mxu0 0.0
    %2437 = vmatpush1.xpose.msra.mxu0 0.0
    %2438 = vmatprep.subr.mxu0 0.0
    %2439 = vmatpush1.xpose.msra.mxu0 0.0
    %2440 = vmatprep.subr.mxu0 0.0
    %2441 = vmatpush1.xpose.msra.mxu0 0.0
    %2442 = vmatprep.subr.mxu0 0.0
    %2443 = vmatpush1.xpose.msra.mxu0 0.0
    %2444 = vmatprep.subr.mxu0 0.0
    %2445 = vmatpush1.xpose.msra.mxu0 0.0
    %2446 = vmatprep.subr.mxu0 0.0
    %2447 = vmatpush1.xpose.msra.mxu0 0.0
    %2448 = vmatprep.subr.mxu0 0.0
    %2449 = vmatpush1.xpose.msra.mxu0 0.0
    %2450 = vmatprep.subr.mxu0 0.0
    %2451 = vmatpush1.xpose.msra.mxu0 0.0
    %2452 = vmatprep.subr.mxu0 0.0
    %2453 = vmatpush1.xpose.msra.mxu0 0.0
    %2454 = vmatprep.subr.mxu0 0.0
    %2455 = vmatpush1.xpose.msra.mxu0 0.0
    %2456 = vmatprep.subr.mxu0 0.0
    %2457 = vmatpush1.xpose.msra.mxu0 0.0
    %2458 = vmatprep.subr.mxu0 0.0
    %2459 = vmatpush1.xpose.msra.mxu0 0.0
    %2460 = vmatprep.subr.mxu0 0.0
    %2461 = vmatpush1.xpose.msra.mxu0 0.0
    %2462 = vmatprep.subr.mxu0 0.0
    %2463 = vmatpush1.xpose.msra.mxu0 0.0
    %2464 = vmatprep.subr.mxu0 0.0
    %2465 = vmatpush1.xpose.msra.mxu0 0.0
    %2466 = vmatprep.subr.mxu0 0.0
    %2467 = vmatpush1.xpose.msra.mxu0 0.0
    %2468 = vmatprep.subr.mxu0 0.0
    %2469 = vmatpush1.xpose.msra.mxu0 0.0
    %2470 = vmatprep.subr.mxu0 0.0
    %2471 = vmatpush1.xpose.msra.mxu0 0.0
    %2472 = vmatprep.subr.mxu0 0.0
    %2473 = vmatpush1.xpose.msra.mxu0 0.0
    %2474 = vmatprep.subr.mxu0 0.0
    %2475 = vmatpush1.xpose.msra.mxu0 0.0
    %2476 = vmatprep.subr.mxu0 0.0
    %2477 = vmatpush1.xpose.msra.mxu0 0.0
    %2478 = vmatprep.subr.mxu0 0.0
    %2479 = vmatpush1.xpose.msra.mxu0 0.0
    %2480 = vmatprep.subr.mxu0 0.0
    %2481 = vmatpush1.xpose.msra.mxu0 0.0
    %2482 = vmatprep.subr.mxu0 0.0
    %2483 = vmatpush1.xpose.msra.mxu0 0.0
    %2484 = vmatprep.subr.mxu0 0.0
    %2485 = vmatpush1.xpose.msra.mxu0 0.0
    %2486 = vmatprep.subr.mxu0 0.0
    %2487 = vmatpush1.xpose.msra.mxu0 0.0
    %2488 = vmatprep.subr.mxu0 0.0
    %2489 = vmatpush1.xpose.msra.mxu0 0.0
    %2490 = vmatprep.subr.mxu0 0.0
    %2491 = vmatpush1.xpose.msra.mxu0 0.0
    %2492 = vmatprep.subr.mxu0 0.0
    %2493 = vmatpush1.xpose.msra.mxu0 0.0
    %2494 = vmatprep.mubr.f32.mxu0 0.0
    %2495 = vmatmul.mubr.f32.gmra.mrb[0].mxu0 %v2428
    %v2496 = vpop.f32.mrb[0].mxu0
    %v2497 = vadd.f32 0.0, %v2496
    %v2498 = vpop.f32.mrb[0].mxu0
    %2499 = vdwg.mxu0
    %v2501 = vsel %vm268, %v2057, 0
    %2503 = vmatprep.subr.mxu0 0.0
    %2504 = vmatpush1.xpose.msra.mxu0 %v729
    %2505 = vmatprep.subr.mxu0 0.0
    %2506 = vmatpush1.xpose.msra.mxu0 0.0
    %2507 = vmatprep.subr.mxu0 0.0
    %2508 = vmatpush1.xpose.msra.mxu0 0.0
    %2509 = vmatprep.subr.mxu0 0.0
    %2510 = vmatpush1.xpose.msra.mxu0 0.0
    %2511 = vmatprep.subr.mxu0 0.0
    %2512 = vmatpush1.xpose.msra.mxu0 0.0
    %2513 = vmatprep.subr.mxu0 0.0
    %2514 = vmatpush1.xpose.msra.mxu0 0.0
    %2515 = vmatprep.subr.mxu0 0.0
    %2516 = vmatpush1.xpose.msra.mxu0 0.0
    %2517 = vmatprep.subr.mxu0 0.0
    %2518 = vmatpush1.xpose.msra.mxu0 0.0
    %2519 = vmatprep.subr.mxu0 0.0
    %2520 = vmatpush1.xpose.msra.mxu0 0.0
    %2521 = vmatprep.subr.mxu0 0.0
    %2522 = vmatpush1.xpose.msra.mxu0 0.0
    %2523 = vmatprep.subr.mxu0 0.0
    %2524 = vmatpush1.xpose.msra.mxu0 0.0
    %2525 = vmatprep.subr.mxu0 0.0
    %2526 = vmatpush1.xpose.msra.mxu0 0.0
    %2527 = vmatprep.subr.mxu0 0.0
    %2528 = vmatpush1.xpose.msra.mxu0 0.0
    %2529 = vmatprep.subr.mxu0 0.0
    %2530 = vmatpush1.xpose.msra.mxu0 0.0
    %2531 = vmatprep.subr.mxu0 0.0
    %2532 = vmatpush1.xpose.msra.mxu0 0.0
    %2533 = vmatprep.subr.mxu0 0.0
    %2534 = vmatpush1.xpose.msra.mxu0 0.0
    %2535 = vmatprep.subr.mxu0 0.0
    %2536 = vmatpush1.xpose.msra.mxu0 0.0
    %2537 = vmatprep.subr.mxu0 0.0
    %2538 = vmatpush1.xpose.msra.mxu0 0.0
    %2539 = vmatprep.subr.mxu0 0.0
    %2540 = vmatpush1.xpose.msra.mxu0 0.0
    %2541 = vmatprep.subr.mxu0 0.0
    %2542 = vmatpush1.xpose.msra.mxu0 0.0
    %2543 = vmatprep.subr.mxu0 0.0
    %2544 = vmatpush1.xpose.msra.mxu0 0.0
    %2545 = vmatprep.subr.mxu0 0.0
    %2546 = vmatpush1.xpose.msra.mxu0 0.0
    %2547 = vmatprep.subr.mxu0 0.0
    %2548 = vmatpush1.xpose.msra.mxu0 0.0
    %2549 = vmatprep.subr.mxu0 0.0
    %2550 = vmatpush1.xpose.msra.mxu0 0.0
    %2551 = vmatprep.subr.mxu0 0.0
    %2552 = vmatpush1.xpose.msra.mxu0 0.0
    %2553 = vmatprep.subr.mxu0 0.0
    %2554 = vmatpush1.xpose.msra.mxu0 0.0
    %2555 = vmatprep.subr.mxu0 0.0
    %2556 = vmatpush1.xpose.msra.mxu0 0.0
    %2557 = vmatprep.subr.mxu0 0.0
    %2558 = vmatpush1.xpose.msra.mxu0 0.0
    %2559 = vmatprep.subr.mxu0 0.0
    %2560 = vmatpush1.xpose.msra.mxu0 0.0
    %2561 = vmatprep.subr.mxu0 0.0
    %2562 = vmatpush1.xpose.msra.mxu0 0.0
    %2563 = vmatprep.subr.mxu0 0.0
    %2564 = vmatpush1.xpose.msra.mxu0 0.0
    %2565 = vmatprep.subr.mxu0 0.0
    %2566 = vmatpush1.xpose.msra.mxu0 0.0
    %2567 = vmatprep.mubr.f32.mxu0 0.0
    %2568 = vmatmul.mubr.f32.gmra.mrb[0].mxu0 %v2501
    %v2569 = vpop.f32.mrb[0].mxu0
    %v2570 = vadd.f32 0.0, %v2569
    %v2571 = vpop.f32.mrb[0].mxu0
    %2572 = vdwg.mxu0
    %v2574 = vsel %vm268, %v2061, 0
    %2576 = vmatprep.subr.mxu0 0.0
    %2577 = vmatpush1.xpose.msra.mxu0 %v805
    %2578 = vmatprep.subr.mxu0 0.0
    %2579 = vmatpush1.xpose.msra.mxu0 0.0
    %2580 = vmatprep.subr.mxu0 0.0
    %2581 = vmatpush1.xpose.msra.mxu0 0.0
    %2582 = vmatprep.subr.mxu0 0.0
    %2583 = vmatpush1.xpose.msra.mxu0 0.0
    %2584 = vmatprep.subr.mxu0 0.0
    %2585 = vmatpush1.xpose.msra.mxu0 0.0
    %2586 = vmatprep.subr.mxu0 0.0
    %2587 = vmatpush1.xpose.msra.mxu0 0.0
    %2588 = vmatprep.subr.mxu0 0.0
    %2589 = vmatpush1.xpose.msra.mxu0 0.0
    %2590 = vmatprep.subr.mxu0 0.0
    %2591 = vmatpush1.xpose.msra.mxu0 0.0
    %2592 = vmatprep.subr.mxu0 0.0
    %2593 = vmatpush1.xpose.msra.mxu0 0.0
    %2594 = vmatprep.subr.mxu0 0.0
    %2595 = vmatpush1.xpose.msra.mxu0 0.0
    %2596 = vmatprep.subr.mxu0 0.0
    %2597 = vmatpush1.xpose.msra.mxu0 0.0
    %2598 = vmatprep.subr.mxu0 0.0
    %2599 = vmatpush1.xpose.msra.mxu0 0.0
    %2600 = vmatprep.subr.mxu0 0.0
    %2601 = vmatpush1.xpose.msra.mxu0 0.0
    %2602 = vmatprep.subr.mxu0 0.0
    %2603 = vmatpush1.xpose.msra.mxu0 0.0
    %2604 = vmatprep.subr.mxu0 0.0
    %2605 = vmatpush1.xpose.msra.mxu0 0.0
    %2606 = vmatprep.subr.mxu0 0.0
    %2607 = vmatpush1.xpose.msra.mxu0 0.0
    %2608 = vmatprep.subr.mxu0 0.0
    %2609 = vmatpush1.xpose.msra.mxu0 0.0
    %2610 = vmatprep.subr.mxu0 0.0
    %2611 = vmatpush1.xpose.msra.mxu0 0.0
    %2612 = vmatprep.subr.mxu0 0.0
    %2613 = vmatpush1.xpose.msra.mxu0 0.0
    %2614 = vmatprep.subr.mxu0 0.0
    %2615 = vmatpush1.xpose.msra.mxu0 0.0
    %2616 = vmatprep.subr.mxu0 0.0
    %2617 = vmatpush1.xpose.msra.mxu0 0.0
    %2618 = vmatprep.subr.mxu0 0.0
    %2619 = vmatpush1.xpose.msra.mxu0 0.0
    %2620 = vmatprep.subr.mxu0 0.0
    %2621 = vmatpush1.xpose.msra.mxu0 0.0
    %2622 = vmatprep.subr.mxu0 0.0
    %2623 = vmatpush1.xpose.msra.mxu0 0.0
    %2624 = vmatprep.subr.mxu0 0.0
    %2625 = vmatpush1.xpose.msra.mxu0 0.0
    %2626 = vmatprep.subr.mxu0 0.0
    %2627 = vmatpush1.xpose.msra.mxu0 0.0
    %2628 = vmatprep.subr.mxu0 0.0
    %2629 = vmatpush1.xpose.msra.mxu0 0.0
    %2630 = vmatprep.subr.mxu0 0.0
    %2631 = vmatpush1.xpose.msra.mxu0 0.0
    %2632 = vmatprep.subr.mxu0 0.0
    %2633 = vmatpush1.xpose.msra.mxu0 0.0
    %2634 = vmatprep.subr.mxu0 0.0
    %2635 = vmatpush1.xpose.msra.mxu0 0.0
    %2636 = vmatprep.subr.mxu0 0.0
    %2637 = vmatpush1.xpose.msra.mxu0 0.0
    %2638 = vmatprep.subr.mxu0 0.0
    %2639 = vmatpush1.xpose.msra.mxu0 0.0
    %2640 = vmatprep.mubr.f32.mxu0 0.0
    %2641 = vmatmul.mubr.f32.gmra.mrb[0].mxu0 %v2574
    %v2642 = vpop.f32.mrb[0].mxu0
    %v2643 = vadd.f32 0.0, %v2642
    %v2644 = vpop.f32.mrb[0].mxu0
    %2645 = vdwg.mxu0
    %v2646 = vmul.f32 %v2034, %v2034
    %v2647 = vmul.f32 %v2058, %v2058
    %v2648 = vmul.f32 %v2041, %v2041
    %v2649 = vmul.f32 %v2059, %v2059
    %v2650 = vmul.f32 %v2050, %v2050
    %v2651 = vmul.f32 %v2060, %v2060
    %v2652 = vmul.f32 %v2057, %v2057
    %v2653 = vmul.f32 %v2061, %v2061
    %v2654 = vsel %vm885, %v2646, 0.0
    %2655 = vadd.xlane.f32.xlu0 %v2654
    %v2656 = vpop.xlane.xlu0 %2655
    %v2657 = vsel %vm885, %v2647, 0.0
    %2658 = vadd.xlane.f32.xlu0 %v2657
    %v2659 = vpop.xlane.xlu0 %2658
    %v2660 = vsel %vm885, %v2648, 0.0
    %2661 = vadd.xlane.f32.xlu0 %v2660
    %v2662 = vpop.xlane.xlu0 %2661
    %v2663 = vsel %vm885, %v2649, 0.0
    %2664 = vadd.xlane.f32.xlu0 %v2663
    %v2665 = vpop.xlane.xlu0 %2664
    %v2666 = vsel %vm885, %v2650, 0.0
    %2667 = vadd.xlane.f32.xlu0 %v2666
    %v2668 = vpop.xlane.xlu0 %2667
    %v2669 = vsel %vm885, %v2651, 0.0
    %2670 = vadd.xlane.f32.xlu0 %v2669
    %v2671 = vpop.xlane.xlu0 %2670
    %v2672 = vsel %vm885, %v2652, 0.0
    %2673 = vadd.xlane.f32.xlu0 %v2672
    %v2674 = vpop.xlane.xlu0 %2673
    %v2675 = vsel %vm885, %v2653, 0.0
    %2676 = vadd.xlane.f32.xlu0 %v2675
    %v2677 = vpop.xlane.xlu0 %2676
    %v2678 = vrsqrt.pop %v2656
    %v2679 = vmul.f32 %v2656, %v2678
    %vm2680 = vcmp.eq.f32.partialorder %v2656, inf
    %v2681 = vsel %vm2680, %v2656, %v2679
    %vm2682 = vcmp.eq.f32.partialorder %v2656, 0.0
    %v2683 = vand.u32 %v2656, 2147483648
    %v2684 = vsel %vm2682, %v2683, %v2681
    %v2685 = vrsqrt.pop %v2659
    %v2686 = vmul.f32 %v2659, %v2685
    %vm2687 = vcmp.eq.f32.partialorder %v2659, inf
    %v2688 = vsel %vm2687, %v2659, %v2686
    %vm2689 = vcmp.eq.f32.partialorder %v2659, 0.0
    %v2690 = vand.u32 %v2659, 2147483648
    %v2691 = vsel %vm2689, %v2690, %v2688
    %v2692 = vrsqrt.pop %v2662
    %v2693 = vmul.f32 %v2662, %v2692
    %vm2694 = vcmp.eq.f32.partialorder %v2662, inf
    %v2695 = vsel %vm2694, %v2662, %v2693
    %vm2696 = vcmp.eq.f32.partialorder %v2662, 0.0
    %v2697 = vand.u32 %v2662, 2147483648
    %v2698 = vsel %vm2696, %v2697, %v2695
    %v2699 = vrsqrt.pop %v2665
    %v2700 = vmul.f32 %v2665, %v2699
    %vm2701 = vcmp.eq.f32.partialorder %v2665, inf
    %v2702 = vsel %vm2701, %v2665, %v2700
    %vm2703 = vcmp.eq.f32.partialorder %v2665, 0.0
    %v2704 = vand.u32 %v2665, 2147483648
    %v2705 = vsel %vm2703, %v2704, %v2702
    %v2706 = vrsqrt.pop %v2668
    %v2707 = vmul.f32 %v2668, %v2706
    %vm2708 = vcmp.eq.f32.partialorder %v2668, inf
    %v2709 = vsel %vm2708, %v2668, %v2707
    %vm2710 = vcmp.eq.f32.partialorder %v2668, 0.0
    %v2711 = vand.u32 %v2668, 2147483648
    %v2712 = vsel %vm2710, %v2711, %v2709
    %v2713 = vrsqrt.pop %v2671
    %v2714 = vmul.f32 %v2671, %v2713
    %vm2715 = vcmp.eq.f32.partialorder %v2671, inf
    %v2716 = vsel %vm2715, %v2671, %v2714
    %vm2717 = vcmp.eq.f32.partialorder %v2671, 0.0
    %v2718 = vand.u32 %v2671, 2147483648
    %v2719 = vsel %vm2717, %v2718, %v2716
    %v2720 = vrsqrt.pop %v2674
    %v2721 = vmul.f32 %v2674, %v2720
    %vm2722 = vcmp.eq.f32.partialorder %v2674, inf
    %v2723 = vsel %vm2722, %v2674, %v2721
    %vm2724 = vcmp.eq.f32.partialorder %v2674, 0.0
    %v2725 = vand.u32 %v2674, 2147483648
    %v2726 = vsel %vm2724, %v2725, %v2723
    %v2727 = vrsqrt.pop %v2677
    %v2728 = vmul.f32 %v2677, %v2727
    %vm2729 = vcmp.eq.f32.partialorder %v2677, inf
    %v2730 = vsel %vm2729, %v2677, %v2728
    %vm2731 = vcmp.eq.f32.partialorder %v2677, 0.0
    %v2732 = vand.u32 %v2677, 2147483648
    %v2733 = vsel %vm2731, %v2732, %v2730
    %v2734 = vadd.f32 %v2684, %v977
    %v2735 = vadd.f32 %v2691, %v981
    %v2736 = vadd.f32 %v2698, %v985
    %v2737 = vadd.f32 %v2705, %v989
    %v2738 = vadd.f32 %v2712, %v993
    %v2739 = vadd.f32 %v2719, %v997
    %v2740 = vadd.f32 %v2726, %v1001
    %v2741 = vadd.f32 %v2733, %v1005
    %v2742 = vrcp.pop %v2734
    %v2743 = vmul.f32 %v2132, %v2742
    %v2744 = vrcp.pop %v2735
    %v2745 = vmul.f32 %v2205, %v2744
    %v2746 = vrcp.pop %v2736
    %v2747 = vmul.f32 %v2278, %v2746
    %v2748 = vrcp.pop %v2737
    %v2749 = vmul.f32 %v2351, %v2748
    %v2750 = vrcp.pop %v2738
    %v2751 = vmul.f32 %v2424, %v2750
    %v2752 = vrcp.pop %v2739
    %v2753 = vmul.f32 %v2497, %v2752
    %v2754 = vrcp.pop %v2740
    %v2755 = vmul.f32 %v2570, %v2754
    %v2756 = vrcp.pop %v2741
    %v2757 = vmul.f32 %v2643, %v2756
    %v2758 = vmul.f32 %v2743, %v2743
    %v2759 = vmul.f32 %v2745, %v2745
    %v2760 = vmul.f32 %v2747, %v2747
    %v2761 = vmul.f32 %v2749, %v2749
    %v2762 = vmul.f32 %v2751, %v2751
    %v2763 = vmul.f32 %v2753, %v2753
    %v2764 = vmul.f32 %v2755, %v2755
    %v2765 = vmul.f32 %v2757, %v2757
    %v2766 = vsel %vm1046, %v2758, 0.0
    %2767 = vadd.xlane.f32.xlu0 %v2766
    %v2768 = vpop.xlane.xlu0 %2767
    %v2769 = vsel %vm1046, %v2759, 0.0
    %2770 = vadd.xlane.f32.xlu0 %v2769
    %v2771 = vpop.xlane.xlu0 %2770
    %v2772 = vsel %vm1046, %v2760, 0.0
    %2773 = vadd.xlane.f32.xlu0 %v2772
    %v2774 = vpop.xlane.xlu0 %2773
    %v2775 = vsel %vm1046, %v2761, 0.0
    %2776 = vadd.xlane.f32.xlu0 %v2775
    %v2777 = vpop.xlane.xlu0 %2776
    %v2778 = vsel %vm1046, %v2762, 0.0
    %2779 = vadd.xlane.f32.xlu0 %v2778
    %v2780 = vpop.xlane.xlu0 %2779
    %v2781 = vsel %vm1046, %v2763, 0.0
    %2782 = vadd.xlane.f32.xlu0 %v2781
    %v2783 = vpop.xlane.xlu0 %2782
    %v2784 = vsel %vm1046, %v2764, 0.0
    %2785 = vadd.xlane.f32.xlu0 %v2784
    %v2786 = vpop.xlane.xlu0 %2785
    %v2787 = vsel %vm1046, %v2765, 0.0
    %2788 = vadd.xlane.f32.xlu0 %v2787
    %v2789 = vpop.xlane.xlu0 %2788
    %v2790 = vmax.f32 %v2768, 1e-24
    %v2791 = vmax.f32 %v2771, 1e-24
    %v2792 = vmax.f32 %v2774, 1e-24
    %v2793 = vmax.f32 %v2777, 1e-24
    %v2794 = vmax.f32 %v2780, 1e-24
    %v2795 = vmax.f32 %v2783, 1e-24
    %v2796 = vmax.f32 %v2786, 1e-24
    %v2797 = vmax.f32 %v2789, 1e-24
    %v2798 = vrsqrt.pop %v2790
    %v2799 = vrsqrt.pop %v2791
    %v2800 = vrsqrt.pop %v2792
    %v2801 = vrsqrt.pop %v2793
    %v2802 = vrsqrt.pop %v2794
    %v2803 = vrsqrt.pop %v2795
    %v2804 = vrsqrt.pop %v2796
    %v2805 = vrsqrt.pop %v2797
    %v2806 = vmul.f32 %v2743, %v2798
    %v2807 = vmul.f32 %v2745, %v2799
    %v2808 = vmul.f32 %v2747, %v2800
    %v2809 = vmul.f32 %v2749, %v2801
    %v2810 = vmul.f32 %v2751, %v2802
    %v2811 = vmul.f32 %v2753, %v2803
    %v2812 = vmul.f32 %v2755, %v2804
    %v2813 = vmul.f32 %v2757, %v2805
    %v2815 = vsel %vm1095, %v2806, 0
    %2817 = vmatprep.subr.mxu0 0.0
    %2818 = vmatpush1.msra.mxu0 %v70
    %2819 = vmatprep.subr.mxu0 0.0
    %2820 = vmatpush1.msra.mxu0 0.0
    %2821 = vmatprep.subr.mxu0 0.0
    %2822 = vmatpush1.msra.mxu0 0.0
    %2823 = vmatprep.subr.mxu0 0.0
    %2824 = vmatpush1.msra.mxu0 0.0
    %2825 = vmatprep.subr.mxu0 0.0
    %2826 = vmatpush1.msra.mxu0 0.0
    %2827 = vmatprep.subr.mxu0 0.0
    %2828 = vmatpush1.msra.mxu0 0.0
    %2829 = vmatprep.subr.mxu0 0.0
    %2830 = vmatpush1.msra.mxu0 0.0
    %2831 = vmatprep.subr.mxu0 0.0
    %2832 = vmatpush1.msra.mxu0 0.0
    %2833 = vmatprep.subr.mxu0 0.0
    %2834 = vmatpush1.msra.mxu0 0.0
    %2835 = vmatprep.subr.mxu0 0.0
    %2836 = vmatpush1.msra.mxu0 0.0
    %2837 = vmatprep.subr.mxu0 0.0
    %2838 = vmatpush1.msra.mxu0 0.0
    %2839 = vmatprep.subr.mxu0 0.0
    %2840 = vmatpush1.msra.mxu0 0.0
    %2841 = vmatprep.subr.mxu0 0.0
    %2842 = vmatpush1.msra.mxu0 0.0
    %2843 = vmatprep.subr.mxu0 0.0
    %2844 = vmatpush1.msra.mxu0 0.0
    %2845 = vmatprep.subr.mxu0 0.0
    %2846 = vmatpush1.msra.mxu0 0.0
    %2847 = vmatprep.subr.mxu0 0.0
    %2848 = vmatpush1.msra.mxu0 0.0
    %2849 = vmatprep.subr.mxu0 0.0
    %2850 = vmatpush1.msra.mxu0 0.0
    %2851 = vmatprep.subr.mxu0 0.0
    %2852 = vmatpush1.msra.mxu0 0.0
    %2853 = vmatprep.subr.mxu0 0.0
    %2854 = vmatpush1.msra.mxu0 0.0
    %2855 = vmatprep.subr.mxu0 0.0
    %2856 = vmatpush1.msra.mxu0 0.0
    %2857 = vmatprep.subr.mxu0 0.0
    %2858 = vmatpush1.msra.mxu0 0.0
    %2859 = vmatprep.subr.mxu0 0.0
    %2860 = vmatpush1.msra.mxu0 0.0
    %2861 = vmatprep.subr.mxu0 0.0
    %2862 = vmatpush1.msra.mxu0 0.0
    %2863 = vmatprep.subr.mxu0 0.0
    %2864 = vmatpush1.msra.mxu0 0.0
    %2865 = vmatprep.subr.mxu0 0.0
    %2866 = vmatpush1.msra.mxu0 0.0
    %2867 = vmatprep.subr.mxu0 0.0
    %2868 = vmatpush1.msra.mxu0 0.0
    %2869 = vmatprep.subr.mxu0 0.0
    %2870 = vmatpush1.msra.mxu0 0.0
    %2871 = vmatprep.subr.mxu0 0.0
    %2872 = vmatpush1.msra.mxu0 0.0
    %2873 = vmatprep.subr.mxu0 0.0
    %2874 = vmatpush1.msra.mxu0 0.0
    %2875 = vmatprep.subr.mxu0 0.0
    %2876 = vmatpush1.msra.mxu0 0.0
    %2877 = vmatprep.subr.mxu0 0.0
    %2878 = vmatpush1.msra.mxu0 0.0
    %2879 = vmatprep.subr.mxu0 0.0
    %2880 = vmatpush1.msra.mxu0 0.0
    %2881 = vmatprep.mubr.f32.mxu0 0.0
    %2882 = vmatmul.mubr.f32.gmra.mrb[0].mxu0 %v2815
    %v2883 = vpop.f32.mrb[0].mxu0
    %v2884 = vadd.f32 0.0, %v2883
    %v2885 = vpop.f32.mrb[0].mxu0
    %2886 = vdwg.mxu0
    %v2888 = vsel %vm1095, %v2807, 0
    %2890 = vmatprep.subr.mxu0 0.0
    %2891 = vmatpush1.msra.mxu0 %v71
    %2892 = vmatprep.subr.mxu0 0.0
    %2893 = vmatpush1.msra.mxu0 0.0
    %2894 = vmatprep.subr.mxu0 0.0
    %2895 = vmatpush1.msra.mxu0 0.0
    %2896 = vmatprep.subr.mxu0 0.0
    %2897 = vmatpush1.msra.mxu0 0.0
    %2898 = vmatprep.subr.mxu0 0.0
    %2899 = vmatpush1.msra.mxu0 0.0
    %2900 = vmatprep.subr.mxu0 0.0
    %2901 = vmatpush1.msra.mxu0 0.0
    %2902 = vmatprep.subr.mxu0 0.0
    %2903 = vmatpush1.msra.mxu0 0.0
    %2904 = vmatprep.subr.mxu0 0.0
    %2905 = vmatpush1.msra.mxu0 0.0
    %2906 = vmatprep.subr.mxu0 0.0
    %2907 = vmatpush1.msra.mxu0 0.0
    %2908 = vmatprep.subr.mxu0 0.0
    %2909 = vmatpush1.msra.mxu0 0.0
    %2910 = vmatprep.subr.mxu0 0.0
    %2911 = vmatpush1.msra.mxu0 0.0
    %2912 = vmatprep.subr.mxu0 0.0
    %2913 = vmatpush1.msra.mxu0 0.0
    %2914 = vmatprep.subr.mxu0 0.0
    %2915 = vmatpush1.msra.mxu0 0.0
    %2916 = vmatprep.subr.mxu0 0.0
    %2917 = vmatpush1.msra.mxu0 0.0
    %2918 = vmatprep.subr.mxu0 0.0
    %2919 = vmatpush1.msra.mxu0 0.0
    %2920 = vmatprep.subr.mxu0 0.0
    %2921 = vmatpush1.msra.mxu0 0.0
    %2922 = vmatprep.subr.mxu0 0.0
    %2923 = vmatpush1.msra.mxu0 0.0
    %2924 = vmatprep.subr.mxu0 0.0
    %2925 = vmatpush1.msra.mxu0 0.0
    %2926 = vmatprep.subr.mxu0 0.0
    %2927 = vmatpush1.msra.mxu0 0.0
    %2928 = vmatprep.subr.mxu0 0.0
    %2929 = vmatpush1.msra.mxu0 0.0
    %2930 = vmatprep.subr.mxu0 0.0
    %2931 = vmatpush1.msra.mxu0 0.0
    %2932 = vmatprep.subr.mxu0 0.0
    %2933 = vmatpush1.msra.mxu0 0.0
    %2934 = vmatprep.subr.mxu0 0.0
    %2935 = vmatpush1.msra.mxu0 0.0
    %2936 = vmatprep.subr.mxu0 0.0
    %2937 = vmatpush1.msra.mxu0 0.0
    %2938 = vmatprep.subr.mxu0 0.0
    %2939 = vmatpush1.msra.mxu0 0.0
    %2940 = vmatprep.subr.mxu0 0.0
    %2941 = vmatpush1.msra.mxu0 0.0
    %2942 = vmatprep.subr.mxu0 0.0
    %2943 = vmatpush1.msra.mxu0 0.0
    %2944 = vmatprep.subr.mxu0 0.0
    %2945 = vmatpush1.msra.mxu0 0.0
    %2946 = vmatprep.subr.mxu0 0.0
    %2947 = vmatpush1.msra.mxu0 0.0
    %2948 = vmatprep.subr.mxu0 0.0
    %2949 = vmatpush1.msra.mxu0 0.0
    %2950 = vmatprep.subr.mxu0 0.0
    %2951 = vmatpush1.msra.mxu0 0.0
    %2952 = vmatprep.subr.mxu0 0.0
    %2953 = vmatpush1.msra.mxu0 0.0
    %2954 = vmatprep.mubr.f32.mxu0 0.0
    %2955 = vmatmul.mubr.f32.gmra.mrb[0].mxu0 %v2888
    %v2956 = vpop.f32.mrb[0].mxu0
    %v2957 = vadd.f32 0.0, %v2956
    %v2958 = vpop.f32.mrb[0].mxu0
    %2959 = vdwg.mxu0
    %v2961 = vsel %vm1095, %v2808, 0
    %2963 = vmatprep.subr.mxu0 0.0
    %2964 = vmatpush1.msra.mxu0 %v72
    %2965 = vmatprep.subr.mxu0 0.0
    %2966 = vmatpush1.msra.mxu0 0.0
    %2967 = vmatprep.subr.mxu0 0.0
    %2968 = vmatpush1.msra.mxu0 0.0
    %2969 = vmatprep.subr.mxu0 0.0
    %2970 = vmatpush1.msra.mxu0 0.0
    %2971 = vmatprep.subr.mxu0 0.0
    %2972 = vmatpush1.msra.mxu0 0.0
    %2973 = vmatprep.subr.mxu0 0.0
    %2974 = vmatpush1.msra.mxu0 0.0
    %2975 = vmatprep.subr.mxu0 0.0
    %2976 = vmatpush1.msra.mxu0 0.0
    %2977 = vmatprep.subr.mxu0 0.0
    %2978 = vmatpush1.msra.mxu0 0.0
    %2979 = vmatprep.subr.mxu0 0.0
    %2980 = vmatpush1.msra.mxu0 0.0
    %2981 = vmatprep.subr.mxu0 0.0
    %2982 = vmatpush1.msra.mxu0 0.0
    %2983 = vmatprep.subr.mxu0 0.0
    %2984 = vmatpush1.msra.mxu0 0.0
    %2985 = vmatprep.subr.mxu0 0.0
    %2986 = vmatpush1.msra.mxu0 0.0
    %2987 = vmatprep.subr.mxu0 0.0
    %2988 = vmatpush1.msra.mxu0 0.0
    %2989 = vmatprep.subr.mxu0 0.0
    %2990 = vmatpush1.msra.mxu0 0.0
    %2991 = vmatprep.subr.mxu0 0.0
    %2992 = vmatpush1.msra.mxu0 0.0
    %2993 = vmatprep.subr.mxu0 0.0
    %2994 = vmatpush1.msra.mxu0 0.0
    %2995 = vmatprep.subr.mxu0 0.0
    %2996 = vmatpush1.msra.mxu0 0.0
    %2997 = vmatprep.subr.mxu0 0.0
    %2998 = vmatpush1.msra.mxu0 0.0
    %2999 = vmatprep.subr.mxu0 0.0
    %3000 = vmatpush1.msra.mxu0 0.0
    %3001 = vmatprep.subr.mxu0 0.0
    %3002 = vmatpush1.msra.mxu0 0.0
    %3003 = vmatprep.subr.mxu0 0.0
    %3004 = vmatpush1.msra.mxu0 0.0
    %3005 = vmatprep.subr.mxu0 0.0
    %3006 = vmatpush1.msra.mxu0 0.0
    %3007 = vmatprep.subr.mxu0 0.0
    %3008 = vmatpush1.msra.mxu0 0.0
    %3009 = vmatprep.subr.mxu0 0.0
    %3010 = vmatpush1.msra.mxu0 0.0
    %3011 = vmatprep.subr.mxu0 0.0
    %3012 = vmatpush1.msra.mxu0 0.0
    %3013 = vmatprep.subr.mxu0 0.0
    %3014 = vmatpush1.msra.mxu0 0.0
    %3015 = vmatprep.subr.mxu0 0.0
    %3016 = vmatpush1.msra.mxu0 0.0
    %3017 = vmatprep.subr.mxu0 0.0
    %3018 = vmatpush1.msra.mxu0 0.0
    %3019 = vmatprep.subr.mxu0 0.0
    %3020 = vmatpush1.msra.mxu0 0.0
    %3021 = vmatprep.subr.mxu0 0.0
    %3022 = vmatpush1.msra.mxu0 0.0
    %3023 = vmatprep.subr.mxu0 0.0
    %3024 = vmatpush1.msra.mxu0 0.0
    %3025 = vmatprep.subr.mxu0 0.0
    %3026 = vmatpush1.msra.mxu0 0.0
    %3027 = vmatprep.mubr.f32.mxu0 0.0
    %3028 = vmatmul.mubr.f32.gmra.mrb[0].mxu0 %v2961
    %v3029 = vpop.f32.mrb[0].mxu0
    %v3030 = vadd.f32 0.0, %v3029
    %v3031 = vpop.f32.mrb[0].mxu0
    %3032 = vdwg.mxu0
    %v3034 = vsel %vm1095, %v2809, 0
    %3036 = vmatprep.subr.mxu0 0.0
    %3037 = vmatpush1.msra.mxu0 %v73
    %3038 = vmatprep.subr.mxu0 0.0
    %3039 = vmatpush1.msra.mxu0 0.0
    %3040 = vmatprep.subr.mxu0 0.0
    %3041 = vmatpush1.msra.mxu0 0.0
    %3042 = vmatprep.subr.mxu0 0.0
    %3043 = vmatpush1.msra.mxu0 0.0
    %3044 = vmatprep.subr.mxu0 0.0
    %3045 = vmatpush1.msra.mxu0 0.0
    %3046 = vmatprep.subr.mxu0 0.0
    %3047 = vmatpush1.msra.mxu0 0.0
    %3048 = vmatprep.subr.mxu0 0.0
    %3049 = vmatpush1.msra.mxu0 0.0
    %3050 = vmatprep.subr.mxu0 0.0
    %3051 = vmatpush1.msra.mxu0 0.0
    %3052 = vmatprep.subr.mxu0 0.0
    %3053 = vmatpush1.msra.mxu0 0.0
    %3054 = vmatprep.subr.mxu0 0.0
    %3055 = vmatpush1.msra.mxu0 0.0
    %3056 = vmatprep.subr.mxu0 0.0
    %3057 = vmatpush1.msra.mxu0 0.0
    %3058 = vmatprep.subr.mxu0 0.0
    %3059 = vmatpush1.msra.mxu0 0.0
    %3060 = vmatprep.subr.mxu0 0.0
    %3061 = vmatpush1.msra.mxu0 0.0
    %3062 = vmatprep.subr.mxu0 0.0
    %3063 = vmatpush1.msra.mxu0 0.0
    %3064 = vmatprep.subr.mxu0 0.0
    %3065 = vmatpush1.msra.mxu0 0.0
    %3066 = vmatprep.subr.mxu0 0.0
    %3067 = vmatpush1.msra.mxu0 0.0
    %3068 = vmatprep.subr.mxu0 0.0
    %3069 = vmatpush1.msra.mxu0 0.0
    %3070 = vmatprep.subr.mxu0 0.0
    %3071 = vmatpush1.msra.mxu0 0.0
    %3072 = vmatprep.subr.mxu0 0.0
    %3073 = vmatpush1.msra.mxu0 0.0
    %3074 = vmatprep.subr.mxu0 0.0
    %3075 = vmatpush1.msra.mxu0 0.0
    %3076 = vmatprep.subr.mxu0 0.0
    %3077 = vmatpush1.msra.mxu0 0.0
    %3078 = vmatprep.subr.mxu0 0.0
    %3079 = vmatpush1.msra.mxu0 0.0
    %3080 = vmatprep.subr.mxu0 0.0
    %3081 = vmatpush1.msra.mxu0 0.0
    %3082 = vmatprep.subr.mxu0 0.0
    %3083 = vmatpush1.msra.mxu0 0.0
    %3084 = vmatprep.subr.mxu0 0.0
    %3085 = vmatpush1.msra.mxu0 0.0
    %3086 = vmatprep.subr.mxu0 0.0
    %3087 = vmatpush1.msra.mxu0 0.0
    %3088 = vmatprep.subr.mxu0 0.0
    %3089 = vmatpush1.msra.mxu0 0.0
    %3090 = vmatprep.subr.mxu0 0.0
    %3091 = vmatpush1.msra.mxu0 0.0
    %3092 = vmatprep.subr.mxu0 0.0
    %3093 = vmatpush1.msra.mxu0 0.0
    %3094 = vmatprep.subr.mxu0 0.0
    %3095 = vmatpush1.msra.mxu0 0.0
    %3096 = vmatprep.subr.mxu0 0.0
    %3097 = vmatpush1.msra.mxu0 0.0
    %3098 = vmatprep.subr.mxu0 0.0
    %3099 = vmatpush1.msra.mxu0 0.0
    %3100 = vmatprep.mubr.f32.mxu0 0.0
    %3101 = vmatmul.mubr.f32.gmra.mrb[0].mxu0 %v3034
    %v3102 = vpop.f32.mrb[0].mxu0
    %v3103 = vadd.f32 0.0, %v3102
    %v3104 = vpop.f32.mrb[0].mxu0
    %3105 = vdwg.mxu0
    %v3107 = vsel %vm1095, %v2810, 0
    %3109 = vmatprep.subr.mxu0 0.0
    %3110 = vmatpush1.msra.mxu0 %v74
    %3111 = vmatprep.subr.mxu0 0.0
    %3112 = vmatpush1.msra.mxu0 0.0
    %3113 = vmatprep.subr.mxu0 0.0
    %3114 = vmatpush1.msra.mxu0 0.0
    %3115 = vmatprep.subr.mxu0 0.0
    %3116 = vmatpush1.msra.mxu0 0.0
    %3117 = vmatprep.subr.mxu0 0.0
    %3118 = vmatpush1.msra.mxu0 0.0
    %3119 = vmatprep.subr.mxu0 0.0
    %3120 = vmatpush1.msra.mxu0 0.0
    %3121 = vmatprep.subr.mxu0 0.0
    %3122 = vmatpush1.msra.mxu0 0.0
    %3123 = vmatprep.subr.mxu0 0.0
    %3124 = vmatpush1.msra.mxu0 0.0
    %3125 = vmatprep.subr.mxu0 0.0
    %3126 = vmatpush1.msra.mxu0 0.0
    %3127 = vmatprep.subr.mxu0 0.0
    %3128 = vmatpush1.msra.mxu0 0.0
    %3129 = vmatprep.subr.mxu0 0.0
    %3130 = vmatpush1.msra.mxu0 0.0
    %3131 = vmatprep.subr.mxu0 0.0
    %3132 = vmatpush1.msra.mxu0 0.0
    %3133 = vmatprep.subr.mxu0 0.0
    %3134 = vmatpush1.msra.mxu0 0.0
    %3135 = vmatprep.subr.mxu0 0.0
    %3136 = vmatpush1.msra.mxu0 0.0
    %3137 = vmatprep.subr.mxu0 0.0
    %3138 = vmatpush1.msra.mxu0 0.0
    %3139 = vmatprep.subr.mxu0 0.0
    %3140 = vmatpush1.msra.mxu0 0.0
    %3141 = vmatprep.subr.mxu0 0.0
    %3142 = vmatpush1.msra.mxu0 0.0
    %3143 = vmatprep.subr.mxu0 0.0
    %3144 = vmatpush1.msra.mxu0 0.0
    %3145 = vmatprep.subr.mxu0 0.0
    %3146 = vmatpush1.msra.mxu0 0.0
    %3147 = vmatprep.subr.mxu0 0.0
    %3148 = vmatpush1.msra.mxu0 0.0
    %3149 = vmatprep.subr.mxu0 0.0
    %3150 = vmatpush1.msra.mxu0 0.0
    %3151 = vmatprep.subr.mxu0 0.0
    %3152 = vmatpush1.msra.mxu0 0.0
    %3153 = vmatprep.subr.mxu0 0.0
    %3154 = vmatpush1.msra.mxu0 0.0
    %3155 = vmatprep.subr.mxu0 0.0
    %3156 = vmatpush1.msra.mxu0 0.0
    %3157 = vmatprep.subr.mxu0 0.0
    %3158 = vmatpush1.msra.mxu0 0.0
    %3159 = vmatprep.subr.mxu0 0.0
    %3160 = vmatpush1.msra.mxu0 0.0
    %3161 = vmatprep.subr.mxu0 0.0
    %3162 = vmatpush1.msra.mxu0 0.0
    %3163 = vmatprep.subr.mxu0 0.0
    %3164 = vmatpush1.msra.mxu0 0.0
    %3165 = vmatprep.subr.mxu0 0.0
    %3166 = vmatpush1.msra.mxu0 0.0
    %3167 = vmatprep.subr.mxu0 0.0
    %3168 = vmatpush1.msra.mxu0 0.0
    %3169 = vmatprep.subr.mxu0 0.0
    %3170 = vmatpush1.msra.mxu0 0.0
    %3171 = vmatprep.subr.mxu0 0.0
    %3172 = vmatpush1.msra.mxu0 0.0
    %3173 = vmatprep.mubr.f32.mxu0 0.0
    %3174 = vmatmul.mubr.f32.gmra.mrb[0].mxu0 %v3107
    %v3175 = vpop.f32.mrb[0].mxu0
    %v3176 = vadd.f32 0.0, %v3175
    %v3177 = vpop.f32.mrb[0].mxu0
    %3178 = vdwg.mxu0
    %v3180 = vsel %vm1095, %v2811, 0
    %3182 = vmatprep.subr.mxu0 0.0
    %3183 = vmatpush1.msra.mxu0 %v75
    %3184 = vmatprep.subr.mxu0 0.0
    %3185 = vmatpush1.msra.mxu0 0.0
    %3186 = vmatprep.subr.mxu0 0.0
    %3187 = vmatpush1.msra.mxu0 0.0
    %3188 = vmatprep.subr.mxu0 0.0
    %3189 = vmatpush1.msra.mxu0 0.0
    %3190 = vmatprep.subr.mxu0 0.0
    %3191 = vmatpush1.msra.mxu0 0.0
    %3192 = vmatprep.subr.mxu0 0.0
    %3193 = vmatpush1.msra.mxu0 0.0
    %3194 = vmatprep.subr.mxu0 0.0
    %3195 = vmatpush1.msra.mxu0 0.0
    %3196 = vmatprep.subr.mxu0 0.0
    %3197 = vmatpush1.msra.mxu0 0.0
    %3198 = vmatprep.subr.mxu0 0.0
    %3199 = vmatpush1.msra.mxu0 0.0
    %3200 = vmatprep.subr.mxu0 0.0
    %3201 = vmatpush1.msra.mxu0 0.0
    %3202 = vmatprep.subr.mxu0 0.0
    %3203 = vmatpush1.msra.mxu0 0.0
    %3204 = vmatprep.subr.mxu0 0.0
    %3205 = vmatpush1.msra.mxu0 0.0
    %3206 = vmatprep.subr.mxu0 0.0
    %3207 = vmatpush1.msra.mxu0 0.0
    %3208 = vmatprep.subr.mxu0 0.0
    %3209 = vmatpush1.msra.mxu0 0.0
    %3210 = vmatprep.subr.mxu0 0.0
    %3211 = vmatpush1.msra.mxu0 0.0
    %3212 = vmatprep.subr.mxu0 0.0
    %3213 = vmatpush1.msra.mxu0 0.0
    %3214 = vmatprep.subr.mxu0 0.0
    %3215 = vmatpush1.msra.mxu0 0.0
    %3216 = vmatprep.subr.mxu0 0.0
    %3217 = vmatpush1.msra.mxu0 0.0
    %3218 = vmatprep.subr.mxu0 0.0
    %3219 = vmatpush1.msra.mxu0 0.0
    %3220 = vmatprep.subr.mxu0 0.0
    %3221 = vmatpush1.msra.mxu0 0.0
    %3222 = vmatprep.subr.mxu0 0.0
    %3223 = vmatpush1.msra.mxu0 0.0
    %3224 = vmatprep.subr.mxu0 0.0
    %3225 = vmatpush1.msra.mxu0 0.0
    %3226 = vmatprep.subr.mxu0 0.0
    %3227 = vmatpush1.msra.mxu0 0.0
    %3228 = vmatprep.subr.mxu0 0.0
    %3229 = vmatpush1.msra.mxu0 0.0
    %3230 = vmatprep.subr.mxu0 0.0
    %3231 = vmatpush1.msra.mxu0 0.0
    %3232 = vmatprep.subr.mxu0 0.0
    %3233 = vmatpush1.msra.mxu0 0.0
    %3234 = vmatprep.subr.mxu0 0.0
    %3235 = vmatpush1.msra.mxu0 0.0
    %3236 = vmatprep.subr.mxu0 0.0
    %3237 = vmatpush1.msra.mxu0 0.0
    %3238 = vmatprep.subr.mxu0 0.0
    %3239 = vmatpush1.msra.mxu0 0.0
    %3240 = vmatprep.subr.mxu0 0.0
    %3241 = vmatpush1.msra.mxu0 0.0
    %3242 = vmatprep.subr.mxu0 0.0
    %3243 = vmatpush1.msra.mxu0 0.0
    %3244 = vmatprep.subr.mxu0 0.0
    %3245 = vmatpush1.msra.mxu0 0.0
    %3246 = vmatprep.mubr.f32.mxu0 0.0
    %3247 = vmatmul.mubr.f32.gmra.mrb[0].mxu0 %v3180
    %v3248 = vpop.f32.mrb[0].mxu0
    %v3249 = vadd.f32 0.0, %v3248
    %v3250 = vpop.f32.mrb[0].mxu0
    %3251 = vdwg.mxu0
    %v3253 = vsel %vm1095, %v2812, 0
    %3255 = vmatprep.subr.mxu0 0.0
    %3256 = vmatpush1.msra.mxu0 %v76
    %3257 = vmatprep.subr.mxu0 0.0
    %3258 = vmatpush1.msra.mxu0 0.0
    %3259 = vmatprep.subr.mxu0 0.0
    %3260 = vmatpush1.msra.mxu0 0.0
    %3261 = vmatprep.subr.mxu0 0.0
    %3262 = vmatpush1.msra.mxu0 0.0
    %3263 = vmatprep.subr.mxu0 0.0
    %3264 = vmatpush1.msra.mxu0 0.0
    %3265 = vmatprep.subr.mxu0 0.0
    %3266 = vmatpush1.msra.mxu0 0.0
    %3267 = vmatprep.subr.mxu0 0.0
    %3268 = vmatpush1.msra.mxu0 0.0
    %3269 = vmatprep.subr.mxu0 0.0
    %3270 = vmatpush1.msra.mxu0 0.0
    %3271 = vmatprep.subr.mxu0 0.0
    %3272 = vmatpush1.msra.mxu0 0.0
    %3273 = vmatprep.subr.mxu0 0.0
    %3274 = vmatpush1.msra.mxu0 0.0
    %3275 = vmatprep.subr.mxu0 0.0
    %3276 = vmatpush1.msra.mxu0 0.0
    %3277 = vmatprep.subr.mxu0 0.0
    %3278 = vmatpush1.msra.mxu0 0.0
    %3279 = vmatprep.subr.mxu0 0.0
    %3280 = vmatpush1.msra.mxu0 0.0
    %3281 = vmatprep.subr.mxu0 0.0
    %3282 = vmatpush1.msra.mxu0 0.0
    %3283 = vmatprep.subr.mxu0 0.0
    %3284 = vmatpush1.msra.mxu0 0.0
    %3285 = vmatprep.subr.mxu0 0.0
    %3286 = vmatpush1.msra.mxu0 0.0
    %3287 = vmatprep.subr.mxu0 0.0
    %3288 = vmatpush1.msra.mxu0 0.0
    %3289 = vmatprep.subr.mxu0 0.0
    %3290 = vmatpush1.msra.mxu0 0.0
    %3291 = vmatprep.subr.mxu0 0.0
    %3292 = vmatpush1.msra.mxu0 0.0
    %3293 = vmatprep.subr.mxu0 0.0
    %3294 = vmatpush1.msra.mxu0 0.0
    %3295 = vmatprep.subr.mxu0 0.0
    %3296 = vmatpush1.msra.mxu0 0.0
    %3297 = vmatprep.subr.mxu0 0.0
    %3298 = vmatpush1.msra.mxu0 0.0
    %3299 = vmatprep.subr.mxu0 0.0
    %3300 = vmatpush1.msra.mxu0 0.0
    %3301 = vmatprep.subr.mxu0 0.0
    %3302 = vmatpush1.msra.mxu0 0.0
    %3303 = vmatprep.subr.mxu0 0.0
    %3304 = vmatpush1.msra.mxu0 0.0
    %3305 = vmatprep.subr.mxu0 0.0
    %3306 = vmatpush1.msra.mxu0 0.0
    %3307 = vmatprep.subr.mxu0 0.0
    %3308 = vmatpush1.msra.mxu0 0.0
    %3309 = vmatprep.subr.mxu0 0.0
    %3310 = vmatpush1.msra.mxu0 0.0
    %3311 = vmatprep.subr.mxu0 0.0
    %3312 = vmatpush1.msra.mxu0 0.0
    %3313 = vmatprep.subr.mxu0 0.0
    %3314 = vmatpush1.msra.mxu0 0.0
    %3315 = vmatprep.subr.mxu0 0.0
    %3316 = vmatpush1.msra.mxu0 0.0
    %3317 = vmatprep.subr.mxu0 0.0
    %3318 = vmatpush1.msra.mxu0 0.0
    %3319 = vmatprep.mubr.f32.mxu0 0.0
    %3320 = vmatmul.mubr.f32.gmra.mrb[0].mxu0 %v3253
    %v3321 = vpop.f32.mrb[0].mxu0
    %v3322 = vadd.f32 0.0, %v3321
    %v3323 = vpop.f32.mrb[0].mxu0
    %3324 = vdwg.mxu0
    %v3326 = vsel %vm1095, %v2813, 0
    %3328 = vmatprep.subr.mxu0 0.0
    %3329 = vmatpush1.msra.mxu0 %v77
    %3330 = vmatprep.subr.mxu0 0.0
    %3331 = vmatpush1.msra.mxu0 0.0
    %3332 = vmatprep.subr.mxu0 0.0
    %3333 = vmatpush1.msra.mxu0 0.0
    %3334 = vmatprep.subr.mxu0 0.0
    %3335 = vmatpush1.msra.mxu0 0.0
    %3336 = vmatprep.subr.mxu0 0.0
    %3337 = vmatpush1.msra.mxu0 0.0
    %3338 = vmatprep.subr.mxu0 0.0
    %3339 = vmatpush1.msra.mxu0 0.0
    %3340 = vmatprep.subr.mxu0 0.0
    %3341 = vmatpush1.msra.mxu0 0.0
    %3342 = vmatprep.subr.mxu0 0.0
    %3343 = vmatpush1.msra.mxu0 0.0
    %3344 = vmatprep.subr.mxu0 0.0
    %3345 = vmatpush1.msra.mxu0 0.0
    %3346 = vmatprep.subr.mxu0 0.0
    %3347 = vmatpush1.msra.mxu0 0.0
    %3348 = vmatprep.subr.mxu0 0.0
    %3349 = vmatpush1.msra.mxu0 0.0
    %3350 = vmatprep.subr.mxu0 0.0
    %3351 = vmatpush1.msra.mxu0 0.0
    %3352 = vmatprep.subr.mxu0 0.0
    %3353 = vmatpush1.msra.mxu0 0.0
    %3354 = vmatprep.subr.mxu0 0.0
    %3355 = vmatpush1.msra.mxu0 0.0
    %3356 = vmatprep.subr.mxu0 0.0
    %3357 = vmatpush1.msra.mxu0 0.0
    %3358 = vmatprep.subr.mxu0 0.0
    %3359 = vmatpush1.msra.mxu0 0.0
    %3360 = vmatprep.subr.mxu0 0.0
    %3361 = vmatpush1.msra.mxu0 0.0
    %3362 = vmatprep.subr.mxu0 0.0
    %3363 = vmatpush1.msra.mxu0 0.0
    %3364 = vmatprep.subr.mxu0 0.0
    %3365 = vmatpush1.msra.mxu0 0.0
    %3366 = vmatprep.subr.mxu0 0.0
    %3367 = vmatpush1.msra.mxu0 0.0
    %3368 = vmatprep.subr.mxu0 0.0
    %3369 = vmatpush1.msra.mxu0 0.0
    %3370 = vmatprep.subr.mxu0 0.0
    %3371 = vmatpush1.msra.mxu0 0.0
    %3372 = vmatprep.subr.mxu0 0.0
    %3373 = vmatpush1.msra.mxu0 0.0
    %3374 = vmatprep.subr.mxu0 0.0
    %3375 = vmatpush1.msra.mxu0 0.0
    %3376 = vmatprep.subr.mxu0 0.0
    %3377 = vmatpush1.msra.mxu0 0.0
    %3378 = vmatprep.subr.mxu0 0.0
    %3379 = vmatpush1.msra.mxu0 0.0
    %3380 = vmatprep.subr.mxu0 0.0
    %3381 = vmatpush1.msra.mxu0 0.0
    %3382 = vmatprep.subr.mxu0 0.0
    %3383 = vmatpush1.msra.mxu0 0.0
    %3384 = vmatprep.subr.mxu0 0.0
    %3385 = vmatpush1.msra.mxu0 0.0
    %3386 = vmatprep.subr.mxu0 0.0
    %3387 = vmatpush1.msra.mxu0 0.0
    %3388 = vmatprep.subr.mxu0 0.0
    %3389 = vmatpush1.msra.mxu0 0.0
    %3390 = vmatprep.subr.mxu0 0.0
    %3391 = vmatpush1.msra.mxu0 0.0
    %3392 = vmatprep.mubr.f32.mxu0 0.0
    %3393 = vmatmul.mubr.f32.gmra.mrb[0].mxu0 %v3326
    %v3394 = vpop.f32.mrb[0].mxu0
    %v3395 = vadd.f32 0.0, %v3394
    %v3396 = vpop.f32.mrb[0].mxu0
    %3397 = vdwg.mxu0
    %v3398 = vcombine.low %v2884, %v3030
    %v3400 = vunpack.c.l.s4 1983009808
    %v3401 = vunpack.c.0.s8 %v3400
    %v3402 = vlaneseq
    %v3403 = vshrl.u32 %v3402, 7
    %v3404 = vsub.s32 %v3401, %v3403
    %v3405 = vrot.slane %v3398, %v3404
    %v3406 = vcombine.low %v2957, %v3103
    %v3408 = vunpack.c.l.s4 1983009808
    %v3409 = vunpack.c.0.s8 %v3408
    %v3410 = vlaneseq
    %v3411 = vshrl.u32 %v3410, 7
    %v3412 = vsub.s32 %v3409, %v3411
    %v3413 = vrot.slane %v3406, %v3412
    %v3414 = vcombine.low %v3176, %v3322
    %v3416 = vunpack.c.l.s4 1983009808
    %v3417 = vunpack.c.0.s8 %v3416
    %v3418 = vlaneseq
    %v3419 = vshrl.u32 %v3418, 7
    %v3420 = vsub.s32 %v3417, %v3419
    %v3421 = vrot.slane %v3414, %v3420
    %v3422 = vcombine.low %v3249, %v3395
    %v3424 = vunpack.c.l.s4 1983009808
    %v3425 = vunpack.c.0.s8 %v3424
    %v3426 = vlaneseq
    %v3427 = vshrl.u32 %v3426, 7
    %v3428 = vsub.s32 %v3425, %v3427
    %v3429 = vrot.slane %v3422, %v3428
    %v3430 = vcombine.low %v3405, %v3413
    %v3432 = vunpack.c.l.s4 1934713408
    %v3433 = vunpack.c.0.s8 %v3432
    %v3434 = vlaneseq
    %v3435 = vshrl.u32 %v3434, 7
    %v3436 = vsub.s32 %v3433, %v3435
    %v3437 = vrot.slane %v3430, %v3436
    %v3438 = vcombine.low %v3421, %v3429
    %v3440 = vunpack.c.l.s4 1934713408
    %v3441 = vunpack.c.0.s8 %v3440
    %v3442 = vlaneseq
    %v3443 = vshrl.u32 %v3442, 7
    %v3444 = vsub.s32 %v3441, %v3443
    %v3445 = vrot.slane %v3438, %v3444
    %v3446 = vcombine.low %v3437, %v3445
    %v3447 = vcombine.high %v3437, %v3445
    %3449 = vrot.lane.b32.xlu0 %v3447, 16
    %v3450 = vpop.permute.xlu0 %3449
    %v3452 = vsel %vm268, %v3446, %v3450
    %v3454 = vsel %vm123, %v3452, 0
    %3456 = vmatprep.subr.mxu0 0.0
    %3457 = vmatpush1.msra.mxu0 %v103
    %3458 = vmatprep.subr.mxu0 0.0
    %3459 = vmatpush1.msra.mxu0 %v104
    %3460 = vmatprep.subr.mxu0 0.0
    %3461 = vmatpush1.msra.mxu0 %v105
    %3462 = vmatprep.subr.mxu0 0.0
    %3463 = vmatpush1.msra.mxu0 %v106
    %3464 = vmatprep.subr.mxu0 0.0
    %3465 = vmatpush1.msra.mxu0 0.0
    %3466 = vmatprep.subr.mxu0 0.0
    %3467 = vmatpush1.msra.mxu0 0.0
    %3468 = vmatprep.subr.mxu0 0.0
    %3469 = vmatpush1.msra.mxu0 0.0
    %3470 = vmatprep.subr.mxu0 0.0
    %3471 = vmatpush1.msra.mxu0 0.0
    %3472 = vmatprep.subr.mxu0 0.0
    %3473 = vmatpush1.msra.mxu0 0.0
    %3474 = vmatprep.subr.mxu0 0.0
    %3475 = vmatpush1.msra.mxu0 0.0
    %3476 = vmatprep.subr.mxu0 0.0
    %3477 = vmatpush1.msra.mxu0 0.0
    %3478 = vmatprep.subr.mxu0 0.0
    %3479 = vmatpush1.msra.mxu0 0.0
    %3480 = vmatprep.subr.mxu0 0.0
    %3481 = vmatpush1.msra.mxu0 0.0
    %3482 = vmatprep.subr.mxu0 0.0
    %3483 = vmatpush1.msra.mxu0 0.0
    %3484 = vmatprep.subr.mxu0 0.0
    %3485 = vmatpush1.msra.mxu0 0.0
    %3486 = vmatprep.subr.mxu0 0.0
    %3487 = vmatpush1.msra.mxu0 0.0
    %3488 = vmatprep.subr.mxu0 0.0
    %3489 = vmatpush1.msra.mxu0 0.0
    %3490 = vmatprep.subr.mxu0 0.0
    %3491 = vmatpush1.msra.mxu0 0.0
    %3492 = vmatprep.subr.mxu0 0.0
    %3493 = vmatpush1.msra.mxu0 0.0
    %3494 = vmatprep.subr.mxu0 0.0
    %3495 = vmatpush1.msra.mxu0 0.0
    %3496 = vmatprep.subr.mxu0 0.0
    %3497 = vmatpush1.msra.mxu0 0.0
    %3498 = vmatprep.subr.mxu0 0.0
    %3499 = vmatpush1.msra.mxu0 0.0
    %3500 = vmatprep.subr.mxu0 0.0
    %3501 = vmatpush1.msra.mxu0 0.0
    %3502 = vmatprep.subr.mxu0 0.0
    %3503 = vmatpush1.msra.mxu0 0.0
    %3504 = vmatprep.subr.mxu0 0.0
    %3505 = vmatpush1.msra.mxu0 0.0
    %3506 = vmatprep.subr.mxu0 0.0
    %3507 = vmatpush1.msra.mxu0 0.0
    %3508 = vmatprep.subr.mxu0 0.0
    %3509 = vmatpush1.msra.mxu0 0.0
    %3510 = vmatprep.subr.mxu0 0.0
    %3511 = vmatpush1.msra.mxu0 0.0
    %3512 = vmatprep.subr.mxu0 0.0
    %3513 = vmatpush1.msra.mxu0 0.0
    %3514 = vmatprep.subr.mxu0 0.0
    %3515 = vmatpush1.msra.mxu0 0.0
    %3516 = vmatprep.subr.mxu0 0.0
    %3517 = vmatpush1.msra.mxu0 0.0
    %3518 = vmatprep.subr.mxu0 0.0
    %3519 = vmatpush1.msra.mxu0 0.0
    %3520 = vmatprep.mubr.f32.mxu0 0.0
    %3521 = vmatmul.mubr.f32.gmra.mrb[0].mxu0 %v3454
    %v3522 = vpop.f32.mrb[0].mxu0
    %v3523 = vadd.f32 %v1739, %v3522
    %v3524 = vpop.f32.mrb[0].mxu0
    %3525 = vdwg.mxu0
    %v3526 = vtanh.pop %v3523
    %v3528 = vsel %vm268, %v3526, 0
    %3530 = vmatprep.subr.mxu0 0.0
    %3531 = vmatpush1.msra.mxu0 %v108
    %3532 = vmatprep.subr.mxu0 0.0
    %3533 = vmatpush1.msra.mxu0 %v109
    %3534 = vmatprep.subr.mxu0 0.0
    %3535 = vmatpush1.msra.mxu0 0.0
    %3536 = vmatprep.subr.mxu0 0.0
    %3537 = vmatpush1.msra.mxu0 0.0
    %3538 = vmatprep.subr.mxu0 0.0
    %3539 = vmatpush1.msra.mxu0 0.0
    %3540 = vmatprep.subr.mxu0 0.0
    %3541 = vmatpush1.msra.mxu0 0.0
    %3542 = vmatprep.subr.mxu0 0.0
    %3543 = vmatpush1.msra.mxu0 0.0
    %3544 = vmatprep.subr.mxu0 0.0
    %3545 = vmatpush1.msra.mxu0 0.0
    %3546 = vmatprep.subr.mxu0 0.0
    %3547 = vmatpush1.msra.mxu0 0.0
    %3548 = vmatprep.subr.mxu0 0.0
    %3549 = vmatpush1.msra.mxu0 0.0
    %3550 = vmatprep.subr.mxu0 0.0
    %3551 = vmatpush1.msra.mxu0 0.0
    %3552 = vmatprep.subr.mxu0 0.0
    %3553 = vmatpush1.msra.mxu0 0.0
    %3554 = vmatprep.subr.mxu0 0.0
    %3555 = vmatpush1.msra.mxu0 0.0
    %3556 = vmatprep.subr.mxu0 0.0
    %3557 = vmatpush1.msra.mxu0 0.0
    %3558 = vmatprep.subr.mxu0 0.0
    %3559 = vmatpush1.msra.mxu0 0.0
    %3560 = vmatprep.subr.mxu0 0.0
    %3561 = vmatpush1.msra.mxu0 0.0
    %3562 = vmatprep.subr.mxu0 0.0
    %3563 = vmatpush1.msra.mxu0 0.0
    %3564 = vmatprep.subr.mxu0 0.0
    %3565 = vmatpush1.msra.mxu0 0.0
    %3566 = vmatprep.subr.mxu0 0.0
    %3567 = vmatpush1.msra.mxu0 0.0
    %3568 = vmatprep.subr.mxu0 0.0
    %3569 = vmatpush1.msra.mxu0 0.0
    %3570 = vmatprep.subr.mxu0 0.0
    %3571 = vmatpush1.msra.mxu0 0.0
    %3572 = vmatprep.subr.mxu0 0.0
    %3573 = vmatpush1.msra.mxu0 0.0
    %3574 = vmatprep.subr.mxu0 0.0
    %3575 = vmatpush1.msra.mxu0 0.0
    %3576 = vmatprep.subr.mxu0 0.0
    %3577 = vmatpush1.msra.mxu0 0.0
    %3578 = vmatprep.subr.mxu0 0.0
    %3579 = vmatpush1.msra.mxu0 0.0
    %3580 = vmatprep.subr.mxu0 0.0
    %3581 = vmatpush1.msra.mxu0 0.0
    %3582 = vmatprep.subr.mxu0 0.0
    %3583 = vmatpush1.msra.mxu0 0.0
    %3584 = vmatprep.subr.mxu0 0.0
    %3585 = vmatpush1.msra.mxu0 0.0
    %3586 = vmatprep.subr.mxu0 0.0
    %3587 = vmatpush1.msra.mxu0 0.0
    %3588 = vmatprep.subr.mxu0 0.0
    %3589 = vmatpush1.msra.mxu0 0.0
    %3590 = vmatprep.subr.mxu0 0.0
    %3591 = vmatpush1.msra.mxu0 0.0
    %3592 = vmatprep.subr.mxu0 0.0
    %3593 = vmatpush1.msra.mxu0 0.0
    %3594 = vmatprep.mubr.f32.mxu0 0.0
    %3595 = vmatmul.mubr.f32.gmra.mrb[0].mxu0 %v3528
    %v3596 = vpop.f32.mrb[0].mxu0
    %v3597 = vadd.f32 %v1988, %v3596
    %v3598 = vpop.f32.mrb[0].mxu0
    %3599 = vdwg.mxu0
    %v3600 = vxor.u32 %v3597, 2147483648
    %v3601 = vmul.f32 %v3600, 1.442695
    %v3602 = vpow.pop %v3601
    %v3603 = vadd.f32 %v3602, 1.0
    %v3604 = vrcp.pop %v3603
    %v3605 = vmul.f32 1.0, %v3604
    %v3606 = vtanh.pop %v3597
    %v3607 = vmul.f32 %v3605, %v1909
    %3609 = vrot.lane.b32.xlu0 %v3606, 64
    %v3610 = vpop.permute.xlu0 %3609
    %v3612 = vmul.f32 %v3605, %v3610
    %3614 = vrot.lane.b32.xlu0 %v3612, 32
    %v3615 = vpop.permute.xlu0 %3614
    %v3617 = vadd.f32 %v3607, %v3615
    %v3618 = vtanh.pop %v3617
    %3620 = vrot.lane.b32.xlu0 %v3618, 64
    %v3621 = vpop.permute.xlu0 %3620
    %v3623 = vmul.f32 %v3605, %v3621
    %3625 = vrot.lane.b32.xlu0 %v3623, 32
    %v3626 = vpop.permute.xlu0 %3625
    %v3627 = vsel %vm123, %v3626, 0
    %3629 = vmatprep.subr.mxu0 %v95
    %3630 = vmatpush1.msra.mxu0 %v94
    %3631 = vmatprep.subr.mxu0 %v97
    %3632 = vmatpush1.msra.mxu0 %v96
    %3633 = vmatprep.subr.mxu0 %v99
    %3634 = vmatpush1.msra.mxu0 %v98
    %3635 = vmatprep.subr.mxu0 %v101
    %3636 = vmatpush1.msra.mxu0 %v100
    %3637 = vmatprep.subr.mxu0 0.0
    %3638 = vmatpush1.msra.mxu0 0.0
    %3639 = vmatprep.subr.mxu0 0.0
    %3640 = vmatpush1.msra.mxu0 0.0
    %3641 = vmatprep.subr.mxu0 0.0
    %3642 = vmatpush1.msra.mxu0 0.0
    %3643 = vmatprep.subr.mxu0 0.0
    %3644 = vmatpush1.msra.mxu0 0.0
    %3645 = vmatprep.subr.mxu0 0.0
    %3646 = vmatpush1.msra.mxu0 0.0
    %3647 = vmatprep.subr.mxu0 0.0
    %3648 = vmatpush1.msra.mxu0 0.0
    %3649 = vmatprep.subr.mxu0 0.0
    %3650 = vmatpush1.msra.mxu0 0.0
    %3651 = vmatprep.subr.mxu0 0.0
    %3652 = vmatpush1.msra.mxu0 0.0
    %3653 = vmatprep.subr.mxu0 0.0
    %3654 = vmatpush1.msra.mxu0 0.0
    %3655 = vmatprep.subr.mxu0 0.0
    %3656 = vmatpush1.msra.mxu0 0.0
    %3657 = vmatprep.subr.mxu0 0.0
    %3658 = vmatpush1.msra.mxu0 0.0
    %3659 = vmatprep.subr.mxu0 0.0
    %3660 = vmatpush1.msra.mxu0 0.0
    %3661 = vmatprep.subr.mxu0 0.0
    %3662 = vmatpush1.msra.mxu0 0.0
    %3663 = vmatprep.subr.mxu0 0.0
    %3664 = vmatpush1.msra.mxu0 0.0
    %3665 = vmatprep.subr.mxu0 0.0
    %3666 = vmatpush1.msra.mxu0 0.0
    %3667 = vmatprep.subr.mxu0 0.0
    %3668 = vmatpush1.msra.mxu0 0.0
    %3669 = vmatprep.subr.mxu0 0.0
    %3670 = vmatpush1.msra.mxu0 0.0
    %3671 = vmatprep.subr.mxu0 0.0
    %3672 = vmatpush1.msra.mxu0 0.0
    %3673 = vmatprep.subr.mxu0 0.0
    %3674 = vmatpush1.msra.mxu0 0.0
    %3675 = vmatprep.subr.mxu0 0.0
    %3676 = vmatpush1.msra.mxu0 0.0
    %3677 = vmatprep.subr.mxu0 0.0
    %3678 = vmatpush1.msra.mxu0 0.0
    %3679 = vmatprep.subr.mxu0 0.0
    %3680 = vmatpush1.msra.mxu0 0.0
    %3681 = vmatprep.subr.mxu0 0.0
    %3682 = vmatpush1.msra.mxu0 0.0
    %3683 = vmatprep.subr.mxu0 0.0
    %3684 = vmatpush1.msra.mxu0 0.0
    %3685 = vmatprep.subr.mxu0 0.0
    %3686 = vmatpush1.msra.mxu0 0.0
    %3687 = vmatprep.subr.mxu0 0.0
    %3688 = vmatpush1.msra.mxu0 0.0
    %3689 = vmatprep.subr.mxu0 0.0
    %3690 = vmatpush1.msra.mxu0 0.0
    %3691 = vmatprep.subr.mxu0 0.0
    %3692 = vmatpush1.msra.mxu0 0.0
    %3693 = vmatprep.mubr.f32.mxu0 0.0
    %3694 = vmatmul.mubr.f32.gmra.mrb[0].mxu0 %v3627
    %v3695 = vpop.f32.mrb[0].mxu0
    %v3696 = vadd.f32 %v116, %v3695
    %v3697 = vpop.f32.mrb[0].mxu0
    %v3698 = vadd.f32 %v120, %v3697
    %3699 = vdwg.mxu0
    %3701 = vrot.lane.b32.xlu0 %v3698, 112
    %v3702 = vpop.permute.xlu0 %3701
    %v3704 = vcombine.high %v3698, 0.0
    %v3706 = vunpack.c.l.s4 1983009808
    %v3707 = vunpack.c.0.s8 %v3706
    %v3708 = vlaneseq
    %v3709 = vshrl.u32 %v3708, 7
    %v3710 = vsub.s32 %v3707, %v3709
    %v3711 = vrot.slane %v3698, %v3710
    %v3713 = vunpack.c.l.s4 1983009808
    %v3714 = vunpack.c.0.s8 %v3713
    %v3715 = vlaneseq
    %v3716 = vshrl.u32 %v3715, 7
    %v3717 = vsub.s32 %v3714, %v3716
    %v3718 = vrot.slane %v3704, %v3717
    %v3719 = vcombine.high %v3702, 0.0
    %v3721 = vunpack.c.l.s4 1983009808
    %v3722 = vunpack.c.0.s8 %v3721
    %v3723 = vlaneseq
    %v3724 = vshrl.u32 %v3723, 7
    %v3725 = vsub.s32 %v3722, %v3724
    %v3726 = vrot.slane %v3702, %v3725
    %v3728 = vunpack.c.l.s4 1983009808
    %v3729 = vunpack.c.0.s8 %v3728
    %v3730 = vlaneseq
    %v3731 = vshrl.u32 %v3730, 7
    %v3732 = vsub.s32 %v3729, %v3731
    %v3733 = vrot.slane %v3719, %v3732
    %v3734 = vcombine.low %v3711, %v3726
    %v3735 = vcombine.high %v3711, %v3726
    %v3737 = vunpack.c.l.s4 1934713408
    %v3738 = vunpack.c.0.s8 %v3737
    %v3739 = vlaneseq
    %v3740 = vshrl.u32 %v3739, 7
    %v3741 = vsub.s32 %v3738, %v3740
    %v3742 = vrot.slane %v3734, %v3741
    %v3744 = vunpack.c.l.s4 1934713408
    %v3745 = vunpack.c.0.s8 %v3744
    %v3746 = vlaneseq
    %v3747 = vshrl.u32 %v3746, 7
    %v3748 = vsub.s32 %v3745, %v3747
    %v3749 = vrot.slane %v3735, %v3748
    %v3750 = vcombine.low %v3718, %v3733
    %v3751 = vcombine.high %v3718, %v3733
    %v3753 = vunpack.c.l.s4 1934713408
    %v3754 = vunpack.c.0.s8 %v3753
    %v3755 = vlaneseq
    %v3756 = vshrl.u32 %v3755, 7
    %v3757 = vsub.s32 %v3754, %v3756
    %v3758 = vrot.slane %v3750, %v3757
    %v3760 = vunpack.c.l.s4 1934713408
    %v3761 = vunpack.c.0.s8 %v3760
    %v3762 = vlaneseq
    %v3763 = vshrl.u32 %v3762, 7
    %v3764 = vsub.s32 %v3761, %v3763
    %v3765 = vrot.slane %v3751, %v3764
    %v3766 = vcombine.high %v3742, 0.0
    %v3767 = vcombine.high %v3749, 0.0
    %v3768 = vcombine.high %v3758, 0.0
    %v3769 = vcombine.high %v3765, 0.0
    %v3771 = vsel %vm268, %v3742, 0
    %3773 = vmatprep.subr.mxu0 0.0
    %3774 = vmatpush1.xpose.msra.mxu0 %v273
    %3775 = vmatprep.subr.mxu0 0.0
    %3776 = vmatpush1.xpose.msra.mxu0 0.0
    %3777 = vmatprep.subr.mxu0 0.0
    %3778 = vmatpush1.xpose.msra.mxu0 0.0
    %3779 = vmatprep.subr.mxu0 0.0
    %3780 = vmatpush1.xpose.msra.mxu0 0.0
    %3781 = vmatprep.subr.mxu0 0.0
    %3782 = vmatpush1.xpose.msra.mxu0 0.0
    %3783 = vmatprep.subr.mxu0 0.0
    %3784 = vmatpush1.xpose.msra.mxu0 0.0
    %3785 = vmatprep.subr.mxu0 0.0
    %3786 = vmatpush1.xpose.msra.mxu0 0.0
    %3787 = vmatprep.subr.mxu0 0.0
    %3788 = vmatpush1.xpose.msra.mxu0 0.0
    %3789 = vmatprep.subr.mxu0 0.0
    %3790 = vmatpush1.xpose.msra.mxu0 0.0
    %3791 = vmatprep.subr.mxu0 0.0
    %3792 = vmatpush1.xpose.msra.mxu0 0.0
    %3793 = vmatprep.subr.mxu0 0.0
    %3794 = vmatpush1.xpose.msra.mxu0 0.0
    %3795 = vmatprep.subr.mxu0 0.0
    %3796 = vmatpush1.xpose.msra.mxu0 0.0
    %3797 = vmatprep.subr.mxu0 0.0
    %3798 = vmatpush1.xpose.msra.mxu0 0.0
    %3799 = vmatprep.subr.mxu0 0.0
    %3800 = vmatpush1.xpose.msra.mxu0 0.0
    %3801 = vmatprep.subr.mxu0 0.0
    %3802 = vmatpush1.xpose.msra.mxu0 0.0
    %3803 = vmatprep.subr.mxu0 0.0
    %3804 = vmatpush1.xpose.msra.mxu0 0.0
    %3805 = vmatprep.subr.mxu0 0.0
    %3806 = vmatpush1.xpose.msra.mxu0 0.0
    %3807 = vmatprep.subr.mxu0 0.0
    %3808 = vmatpush1.xpose.msra.mxu0 0.0
    %3809 = vmatprep.subr.mxu0 0.0
    %3810 = vmatpush1.xpose.msra.mxu0 0.0
    %3811 = vmatprep.subr.mxu0 0.0
    %3812 = vmatpush1.xpose.msra.mxu0 0.0
    %3813 = vmatprep.subr.mxu0 0.0
    %3814 = vmatpush1.xpose.msra.mxu0 0.0
    %3815 = vmatprep.subr.mxu0 0.0
    %3816 = vmatpush1.xpose.msra.mxu0 0.0
    %3817 = vmatprep.subr.mxu0 0.0
    %3818 = vmatpush1.xpose.msra.mxu0 0.0
    %3819 = vmatprep.subr.mxu0 0.0
    %3820 = vmatpush1.xpose.msra.mxu0 0.0
    %3821 = vmatprep.subr.mxu0 0.0
    %3822 = vmatpush1.xpose.msra.mxu0 0.0
    %3823 = vmatprep.subr.mxu0 0.0
    %3824 = vmatpush1.xpose.msra.mxu0 0.0
    %3825 = vmatprep.subr.mxu0 0.0
    %3826 = vmatpush1.xpose.msra.mxu0 0.0
    %3827 = vmatprep.subr.mxu0 0.0
    %3828 = vmatpush1.xpose.msra.mxu0 0.0
    %3829 = vmatprep.subr.mxu0 0.0
    %3830 = vmatpush1.xpose.msra.mxu0 0.0
    %3831 = vmatprep.subr.mxu0 0.0
    %3832 = vmatpush1.xpose.msra.mxu0 0.0
    %3833 = vmatprep.subr.mxu0 0.0
    %3834 = vmatpush1.xpose.msra.mxu0 0.0
    %3835 = vmatprep.subr.mxu0 0.0
    %3836 = vmatpush1.xpose.msra.mxu0 0.0
    %3837 = vmatprep.mubr.f32.mxu0 0.0
    %3838 = vmatmul.mubr.f32.gmra.mrb[0].mxu0 %v3771
    %v3839 = vpop.f32.mrb[0].mxu0
    %v3840 = vadd.f32 0.0, %v3839
    %v3841 = vpop.f32.mrb[0].mxu0
    %3842 = vdwg.mxu0
    %v3844 = vsel %vm268, %v3766, 0
    %3846 = vmatprep.subr.mxu0 0.0
    %3847 = vmatpush1.xpose.msra.mxu0 %v349
    %3848 = vmatprep.subr.mxu0 0.0
    %3849 = vmatpush1.xpose.msra.mxu0 0.0
    %3850 = vmatprep.subr.mxu0 0.0
    %3851 = vmatpush1.xpose.msra.mxu0 0.0
    %3852 = vmatprep.subr.mxu0 0.0
    %3853 = vmatpush1.xpose.msra.mxu0 0.0
    %3854 = vmatprep.subr.mxu0 0.0
    %3855 = vmatpush1.xpose.msra.mxu0 0.0
    %3856 = vmatprep.subr.mxu0 0.0
    %3857 = vmatpush1.xpose.msra.mxu0 0.0
    %3858 = vmatprep.subr.mxu0 0.0
    %3859 = vmatpush1.xpose.msra.mxu0 0.0
    %3860 = vmatprep.subr.mxu0 0.0
    %3861 = vmatpush1.xpose.msra.mxu0 0.0
    %3862 = vmatprep.subr.mxu0 0.0
    %3863 = vmatpush1.xpose.msra.mxu0 0.0
    %3864 = vmatprep.subr.mxu0 0.0
    %3865 = vmatpush1.xpose.msra.mxu0 0.0
    %3866 = vmatprep.subr.mxu0 0.0
    %3867 = vmatpush1.xpose.msra.mxu0 0.0
    %3868 = vmatprep.subr.mxu0 0.0
    %3869 = vmatpush1.xpose.msra.mxu0 0.0
    %3870 = vmatprep.subr.mxu0 0.0
    %3871 = vmatpush1.xpose.msra.mxu0 0.0
    %3872 = vmatprep.subr.mxu0 0.0
    %3873 = vmatpush1.xpose.msra.mxu0 0.0
    %3874 = vmatprep.subr.mxu0 0.0
    %3875 = vmatpush1.xpose.msra.mxu0 0.0
    %3876 = vmatprep.subr.mxu0 0.0
    %3877 = vmatpush1.xpose.msra.mxu0 0.0
    %3878 = vmatprep.subr.mxu0 0.0
    %3879 = vmatpush1.xpose.msra.mxu0 0.0
    %3880 = vmatprep.subr.mxu0 0.0
    %3881 = vmatpush1.xpose.msra.mxu0 0.0
    %3882 = vmatprep.subr.mxu0 0.0
    %3883 = vmatpush1.xpose.msra.mxu0 0.0
    %3884 = vmatprep.subr.mxu0 0.0
    %3885 = vmatpush1.xpose.msra.mxu0 0.0
    %3886 = vmatprep.subr.mxu0 0.0
    %3887 = vmatpush1.xpose.msra.mxu0 0.0
    %3888 = vmatprep.subr.mxu0 0.0
    %3889 = vmatpush1.xpose.msra.mxu0 0.0
    %3890 = vmatprep.subr.mxu0 0.0
    %3891 = vmatpush1.xpose.msra.mxu0 0.0
    %3892 = vmatprep.subr.mxu0 0.0
    %3893 = vmatpush1.xpose.msra.mxu0 0.0
    %3894 = vmatprep.subr.mxu0 0.0
    %3895 = vmatpush1.xpose.msra.mxu0 0.0
    %3896 = vmatprep.subr.mxu0 0.0
    %3897 = vmatpush1.xpose.msra.mxu0 0.0
    %3898 = vmatprep.subr.mxu0 0.0
    %3899 = vmatpush1.xpose.msra.mxu0 0.0
    %3900 = vmatprep.subr.mxu0 0.0
    %3901 = vmatpush1.xpose.msra.mxu0 0.0
    %3902 = vmatprep.subr.mxu0 0.0
    %3903 = vmatpush1.xpose.msra.mxu0 0.0
    %3904 = vmatprep.subr.mxu0 0.0
    %3905 = vmatpush1.xpose.msra.mxu0 0.0
    %3906 = vmatprep.subr.mxu0 0.0
    %3907 = vmatpush1.xpose.msra.mxu0 0.0
    %3908 = vmatprep.subr.mxu0 0.0
    %3909 = vmatpush1.xpose.msra.mxu0 0.0
    %3910 = vmatprep.mubr.f32.mxu0 0.0
    %3911 = vmatmul.mubr.f32.gmra.mrb[0].mxu0 %v3844
    %v3912 = vpop.f32.mrb[0].mxu0
    %v3913 = vadd.f32 0.0, %v3912
    %v3914 = vpop.f32.mrb[0].mxu0
    %3915 = vdwg.mxu0
    %v3917 = vsel %vm268, %v3749, 0
    %3919 = vmatprep.subr.mxu0 0.0
    %3920 = vmatpush1.xpose.msra.mxu0 %v425
    %3921 = vmatprep.subr.mxu0 0.0
    %3922 = vmatpush1.xpose.msra.mxu0 0.0
    %3923 = vmatprep.subr.mxu0 0.0
    %3924 = vmatpush1.xpose.msra.mxu0 0.0
    %3925 = vmatprep.subr.mxu0 0.0
    %3926 = vmatpush1.xpose.msra.mxu0 0.0
    %3927 = vmatprep.subr.mxu0 0.0
    %3928 = vmatpush1.xpose.msra.mxu0 0.0
    %3929 = vmatprep.subr.mxu0 0.0
    %3930 = vmatpush1.xpose.msra.mxu0 0.0
    %3931 = vmatprep.subr.mxu0 0.0
    %3932 = vmatpush1.xpose.msra.mxu0 0.0
    %3933 = vmatprep.subr.mxu0 0.0
    %3934 = vmatpush1.xpose.msra.mxu0 0.0
    %3935 = vmatprep.subr.mxu0 0.0
    %3936 = vmatpush1.xpose.msra.mxu0 0.0
    %3937 = vmatprep.subr.mxu0 0.0
    %3938 = vmatpush1.xpose.msra.mxu0 0.0
    %3939 = vmatprep.subr.mxu0 0.0
    %3940 = vmatpush1.xpose.msra.mxu0 0.0
    %3941 = vmatprep.subr.mxu0 0.0
    %3942 = vmatpush1.xpose.msra.mxu0 0.0
    %3943 = vmatprep.subr.mxu0 0.0
    %3944 = vmatpush1.xpose.msra.mxu0 0.0
    %3945 = vmatprep.subr.mxu0 0.0
    %3946 = vmatpush1.xpose.msra.mxu0 0.0
    %3947 = vmatprep.subr.mxu0 0.0
    %3948 = vmatpush1.xpose.msra.mxu0 0.0
    %3949 = vmatprep.subr.mxu0 0.0
    %3950 = vmatpush1.xpose.msra.mxu0 0.0
    %3951 = vmatprep.subr.mxu0 0.0
    %3952 = vmatpush1.xpose.msra.mxu0 0.0
    %3953 = vmatprep.subr.mxu0 0.0
    %3954 = vmatpush1.xpose.msra.mxu0 0.0
    %3955 = vmatprep.subr.mxu0 0.0
    %3956 = vmatpush1.xpose.msra.mxu0 0.0
    %3957 = vmatprep.subr.mxu0 0.0
    %3958 = vmatpush1.xpose.msra.mxu0 0.0
    %3959 = vmatprep.subr.mxu0 0.0
    %3960 = vmatpush1.xpose.msra.mxu0 0.0
    %3961 = vmatprep.subr.mxu0 0.0
    %3962 = vmatpush1.xpose.msra.mxu0 0.0
    %3963 = vmatprep.subr.mxu0 0.0
    %3964 = vmatpush1.xpose.msra.mxu0 0.0
    %3965 = vmatprep.subr.mxu0 0.0
    %3966 = vmatpush1.xpose.msra.mxu0 0.0
    %3967 = vmatprep.subr.mxu0 0.0
    %3968 = vmatpush1.xpose.msra.mxu0 0.0
    %3969 = vmatprep.subr.mxu0 0.0
    %3970 = vmatpush1.xpose.msra.mxu0 0.0
    %3971 = vmatprep.subr.mxu0 0.0
    %3972 = vmatpush1.xpose.msra.mxu0 0.0
    %3973 = vmatprep.subr.mxu0 0.0
    %3974 = vmatpush1.xpose.msra.mxu0 0.0
    %3975 = vmatprep.subr.mxu0 0.0
    %3976 = vmatpush1.xpose.msra.mxu0 0.0
    %3977 = vmatprep.subr.mxu0 0.0
    %3978 = vmatpush1.xpose.msra.mxu0 0.0
    %3979 = vmatprep.subr.mxu0 0.0
    %3980 = vmatpush1.xpose.msra.mxu0 0.0
    %3981 = vmatprep.subr.mxu0 0.0
    %3982 = vmatpush1.xpose.msra.mxu0 0.0
    %3983 = vmatprep.mubr.f32.mxu0 0.0
    %3984 = vmatmul.mubr.f32.gmra.mrb[0].mxu0 %v3917
    %v3985 = vpop.f32.mrb[0].mxu0
    %v3986 = vadd.f32 0.0, %v3985
    %v3987 = vpop.f32.mrb[0].mxu0
    %3988 = vdwg.mxu0
    %v3990 = vsel %vm268, %v3767, 0
    %3992 = vmatprep.subr.mxu0 0.0
    %3993 = vmatpush1.xpose.msra.mxu0 %v501
    %3994 = vmatprep.subr.mxu0 0.0
    %3995 = vmatpush1.xpose.msra.mxu0 0.0
    %3996 = vmatprep.subr.mxu0 0.0
    %3997 = vmatpush1.xpose.msra.mxu0 0.0
    %3998 = vmatprep.subr.mxu0 0.0
    %3999 = vmatpush1.xpose.msra.mxu0 0.0
    %4000 = vmatprep.subr.mxu0 0.0
    %4001 = vmatpush1.xpose.msra.mxu0 0.0
    %4002 = vmatprep.subr.mxu0 0.0
    %4003 = vmatpush1.xpose.msra.mxu0 0.0
    %4004 = vmatprep.subr.mxu0 0.0
    %4005 = vmatpush1.xpose.msra.mxu0 0.0
    %4006 = vmatprep.subr.mxu0 0.0
    %4007 = vmatpush1.xpose.msra.mxu0 0.0
    %4008 = vmatprep.subr.mxu0 0.0
    %4009 = vmatpush1.xpose.msra.mxu0 0.0
    %4010 = vmatprep.subr.mxu0 0.0
    %4011 = vmatpush1.xpose.msra.mxu0 0.0
    %4012 = vmatprep.subr.mxu0 0.0
    %4013 = vmatpush1.xpose.msra.mxu0 0.0
    %4014 = vmatprep.subr.mxu0 0.0
    %4015 = vmatpush1.xpose.msra.mxu0 0.0
    %4016 = vmatprep.subr.mxu0 0.0
    %4017 = vmatpush1.xpose.msra.mxu0 0.0
    %4018 = vmatprep.subr.mxu0 0.0
    %4019 = vmatpush1.xpose.msra.mxu0 0.0
    %4020 = vmatprep.subr.mxu0 0.0
    %4021 = vmatpush1.xpose.msra.mxu0 0.0
    %4022 = vmatprep.subr.mxu0 0.0
    %4023 = vmatpush1.xpose.msra.mxu0 0.0
    %4024 = vmatprep.subr.mxu0 0.0
    %4025 = vmatpush1.xpose.msra.mxu0 0.0
    %4026 = vmatprep.subr.mxu0 0.0
    %4027 = vmatpush1.xpose.msra.mxu0 0.0
    %4028 = vmatprep.subr.mxu0 0.0
    %4029 = vmatpush1.xpose.msra.mxu0 0.0
    %4030 = vmatprep.subr.mxu0 0.0
    %4031 = vmatpush1.xpose.msra.mxu0 0.0
    %4032 = vmatprep.subr.mxu0 0.0
    %4033 = vmatpush1.xpose.msra.mxu0 0.0
    %4034 = vmatprep.subr.mxu0 0.0
    %4035 = vmatpush1.xpose.msra.mxu0 0.0
    %4036 = vmatprep.subr.mxu0 0.0
    %4037 = vmatpush1.xpose.msra.mxu0 0.0
    %4038 = vmatprep.subr.mxu0 0.0
    %4039 = vmatpush1.xpose.msra.mxu0 0.0
    %4040 = vmatprep.subr.mxu0 0.0
    %4041 = vmatpush1.xpose.msra.mxu0 0.0
    %4042 = vmatprep.subr.mxu0 0.0
    %4043 = vmatpush1.xpose.msra.mxu0 0.0
    %4044 = vmatprep.subr.mxu0 0.0
    %4045 = vmatpush1.xpose.msra.mxu0 0.0
    %4046 = vmatprep.subr.mxu0 0.0
    %4047 = vmatpush1.xpose.msra.mxu0 0.0
    %4048 = vmatprep.subr.mxu0 0.0
    %4049 = vmatpush1.xpose.msra.mxu0 0.0
    %4050 = vmatprep.subr.mxu0 0.0
    %4051 = vmatpush1.xpose.msra.mxu0 0.0
    %4052 = vmatprep.subr.mxu0 0.0
    %4053 = vmatpush1.xpose.msra.mxu0 0.0
    %4054 = vmatprep.subr.mxu0 0.0
    %4055 = vmatpush1.xpose.msra.mxu0 0.0
    %4056 = vmatprep.mubr.f32.mxu0 0.0
    %4057 = vmatmul.mubr.f32.gmra.mrb[0].mxu0 %v3990
    %v4058 = vpop.f32.mrb[0].mxu0
    %v4059 = vadd.f32 0.0, %v4058
    %v4060 = vpop.f32.mrb[0].mxu0
    %4061 = vdwg.mxu0
    %v4063 = vsel %vm268, %v3758, 0
    %4065 = vmatprep.subr.mxu0 0.0
    %4066 = vmatpush1.xpose.msra.mxu0 %v577
    %4067 = vmatprep.subr.mxu0 0.0
    %4068 = vmatpush1.xpose.msra.mxu0 0.0
    %4069 = vmatprep.subr.mxu0 0.0
    %4070 = vmatpush1.xpose.msra.mxu0 0.0
    %4071 = vmatprep.subr.mxu0 0.0
    %4072 = vmatpush1.xpose.msra.mxu0 0.0
    %4073 = vmatprep.subr.mxu0 0.0
    %4074 = vmatpush1.xpose.msra.mxu0 0.0
    %4075 = vmatprep.subr.mxu0 0.0
    %4076 = vmatpush1.xpose.msra.mxu0 0.0
    %4077 = vmatprep.subr.mxu0 0.0
    %4078 = vmatpush1.xpose.msra.mxu0 0.0
    %4079 = vmatprep.subr.mxu0 0.0
    %4080 = vmatpush1.xpose.msra.mxu0 0.0
    %4081 = vmatprep.subr.mxu0 0.0
    %4082 = vmatpush1.xpose.msra.mxu0 0.0
    %4083 = vmatprep.subr.mxu0 0.0
    %4084 = vmatpush1.xpose.msra.mxu0 0.0
    %4085 = vmatprep.subr.mxu0 0.0
    %4086 = vmatpush1.xpose.msra.mxu0 0.0
    %4087 = vmatprep.subr.mxu0 0.0
    %4088 = vmatpush1.xpose.msra.mxu0 0.0
    %4089 = vmatprep.subr.mxu0 0.0
    %4090 = vmatpush1.xpose.msra.mxu0 0.0
    %4091 = vmatprep.subr.mxu0 0.0
    %4092 = vmatpush1.xpose.msra.mxu0 0.0
    %4093 = vmatprep.subr.mxu0 0.0
    %4094 = vmatpush1.xpose.msra.mxu0 0.0
    %4095 = vmatprep.subr.mxu0 0.0
    %4096 = vmatpush1.xpose.msra.mxu0 0.0
    %4097 = vmatprep.subr.mxu0 0.0
    %4098 = vmatpush1.xpose.msra.mxu0 0.0
    %4099 = vmatprep.subr.mxu0 0.0
    %4100 = vmatpush1.xpose.msra.mxu0 0.0
    %4101 = vmatprep.subr.mxu0 0.0
    %4102 = vmatpush1.xpose.msra.mxu0 0.0
    %4103 = vmatprep.subr.mxu0 0.0
    %4104 = vmatpush1.xpose.msra.mxu0 0.0
    %4105 = vmatprep.subr.mxu0 0.0
    %4106 = vmatpush1.xpose.msra.mxu0 0.0
    %4107 = vmatprep.subr.mxu0 0.0
    %4108 = vmatpush1.xpose.msra.mxu0 0.0
    %4109 = vmatprep.subr.mxu0 0.0
    %4110 = vmatpush1.xpose.msra.mxu0 0.0
    %4111 = vmatprep.subr.mxu0 0.0
    %4112 = vmatpush1.xpose.msra.mxu0 0.0
    %4113 = vmatprep.subr.mxu0 0.0
    %4114 = vmatpush1.xpose.msra.mxu0 0.0
    %4115 = vmatprep.subr.mxu0 0.0
    %4116 = vmatpush1.xpose.msra.mxu0 0.0
    %4117 = vmatprep.subr.mxu0 0.0
    %4118 = vmatpush1.xpose.msra.mxu0 0.0
    %4119 = vmatprep.subr.mxu0 0.0
    %4120 = vmatpush1.xpose.msra.mxu0 0.0
    %4121 = vmatprep.subr.mxu0 0.0
    %4122 = vmatpush1.xpose.msra.mxu0 0.0
    %4123 = vmatprep.subr.mxu0 0.0
    %4124 = vmatpush1.xpose.msra.mxu0 0.0
    %4125 = vmatprep.subr.mxu0 0.0
    %4126 = vmatpush1.xpose.msra.mxu0 0.0
    %4127 = vmatprep.subr.mxu0 0.0
    %4128 = vmatpush1.xpose.msra.mxu0 0.0
    %4129 = vmatprep.mubr.f32.mxu0 0.0
    %4130 = vmatmul.mubr.f32.gmra.mrb[0].mxu0 %v4063
    %v4131 = vpop.f32.mrb[0].mxu0
    %v4132 = vadd.f32 0.0, %v4131
    %v4133 = vpop.f32.mrb[0].mxu0
    %4134 = vdwg.mxu0
    %v4136 = vsel %vm268, %v3768, 0
    %4138 = vmatprep.subr.mxu0 0.0
    %4139 = vmatpush1.xpose.msra.mxu0 %v653
    %4140 = vmatprep.subr.mxu0 0.0
    %4141 = vmatpush1.xpose.msra.mxu0 0.0
    %4142 = vmatprep.subr.mxu0 0.0
    %4143 = vmatpush1.xpose.msra.mxu0 0.0
    %4144 = vmatprep.subr.mxu0 0.0
    %4145 = vmatpush1.xpose.msra.mxu0 0.0
    %4146 = vmatprep.subr.mxu0 0.0
    %4147 = vmatpush1.xpose.msra.mxu0 0.0
    %4148 = vmatprep.subr.mxu0 0.0
    %4149 = vmatpush1.xpose.msra.mxu0 0.0
    %4150 = vmatprep.subr.mxu0 0.0
    %4151 = vmatpush1.xpose.msra.mxu0 0.0
    %4152 = vmatprep.subr.mxu0 0.0
    %4153 = vmatpush1.xpose.msra.mxu0 0.0
    %4154 = vmatprep.subr.mxu0 0.0
    %4155 = vmatpush1.xpose.msra.mxu0 0.0
    %4156 = vmatprep.subr.mxu0 0.0
    %4157 = vmatpush1.xpose.msra.mxu0 0.0
    %4158 = vmatprep.subr.mxu0 0.0
    %4159 = vmatpush1.xpose.msra.mxu0 0.0
    %4160 = vmatprep.subr.mxu0 0.0
    %4161 = vmatpush1.xpose.msra.mxu0 0.0
    %4162 = vmatprep.subr.mxu0 0.0
    %4163 = vmatpush1.xpose.msra.mxu0 0.0
    %4164 = vmatprep.subr.mxu0 0.0
    %4165 = vmatpush1.xpose.msra.mxu0 0.0
    %4166 = vmatprep.subr.mxu0 0.0
    %4167 = vmatpush1.xpose.msra.mxu0 0.0
    %4168 = vmatprep.subr.mxu0 0.0
    %4169 = vmatpush1.xpose.msra.mxu0 0.0
    %4170 = vmatprep.subr.mxu0 0.0
    %4171 = vmatpush1.xpose.msra.mxu0 0.0
    %4172 = vmatprep.subr.mxu0 0.0
    %4173 = vmatpush1.xpose.msra.mxu0 0.0
    %4174 = vmatprep.subr.mxu0 0.0
    %4175 = vmatpush1.xpose.msra.mxu0 0.0
    %4176 = vmatprep.subr.mxu0 0.0
    %4177 = vmatpush1.xpose.msra.mxu0 0.0
    %4178 = vmatprep.subr.mxu0 0.0
    %4179 = vmatpush1.xpose.msra.mxu0 0.0
    %4180 = vmatprep.subr.mxu0 0.0
    %4181 = vmatpush1.xpose.msra.mxu0 0.0
    %4182 = vmatprep.subr.mxu0 0.0
    %4183 = vmatpush1.xpose.msra.mxu0 0.0
    %4184 = vmatprep.subr.mxu0 0.0
    %4185 = vmatpush1.xpose.msra.mxu0 0.0
    %4186 = vmatprep.subr.mxu0 0.0
    %4187 = vmatpush1.xpose.msra.mxu0 0.0
    %4188 = vmatprep.subr.mxu0 0.0
    %4189 = vmatpush1.xpose.msra.mxu0 0.0
    %4190 = vmatprep.subr.mxu0 0.0
    %4191 = vmatpush1.xpose.msra.mxu0 0.0
    %4192 = vmatprep.subr.mxu0 0.0
    %4193 = vmatpush1.xpose.msra.mxu0 0.0
    %4194 = vmatprep.subr.mxu0 0.0
    %4195 = vmatpush1.xpose.msra.mxu0 0.0
    %4196 = vmatprep.subr.mxu0 0.0
    %4197 = vmatpush1.xpose.msra.mxu0 0.0
    %4198 = vmatprep.subr.mxu0 0.0
    %4199 = vmatpush1.xpose.msra.mxu0 0.0
    %4200 = vmatprep.subr.mxu0 0.0
    %4201 = vmatpush1.xpose.msra.mxu0 0.0
    %4202 = vmatprep.mubr.f32.mxu0 0.0
    %4203 = vmatmul.mubr.f32.gmra.mrb[0].mxu0 %v4136
    %v4204 = vpop.f32.mrb[0].mxu0
    %v4205 = vadd.f32 0.0, %v4204
    %v4206 = vpop.f32.mrb[0].mxu0
    %4207 = vdwg.mxu0
    %v4209 = vsel %vm268, %v3765, 0
    %4211 = vmatprep.subr.mxu0 0.0
    %4212 = vmatpush1.xpose.msra.mxu0 %v729
    %4213 = vmatprep.subr.mxu0 0.0
    %4214 = vmatpush1.xpose.msra.mxu0 0.0
    %4215 = vmatprep.subr.mxu0 0.0
    %4216 = vmatpush1.xpose.msra.mxu0 0.0
    %4217 = vmatprep.subr.mxu0 0.0
    %4218 = vmatpush1.xpose.msra.mxu0 0.0
    %4219 = vmatprep.subr.mxu0 0.0
    %4220 = vmatpush1.xpose.msra.mxu0 0.0
    %4221 = vmatprep.subr.mxu0 0.0
    %4222 = vmatpush1.xpose.msra.mxu0 0.0
    %4223 = vmatprep.subr.mxu0 0.0
    %4224 = vmatpush1.xpose.msra.mxu0 0.0
    %4225 = vmatprep.subr.mxu0 0.0
    %4226 = vmatpush1.xpose.msra.mxu0 0.0
    %4227 = vmatprep.subr.mxu0 0.0
    %4228 = vmatpush1.xpose.msra.mxu0 0.0
    %4229 = vmatprep.subr.mxu0 0.0
    %4230 = vmatpush1.xpose.msra.mxu0 0.0
    %4231 = vmatprep.subr.mxu0 0.0
    %4232 = vmatpush1.xpose.msra.mxu0 0.0
    %4233 = vmatprep.subr.mxu0 0.0
    %4234 = vmatpush1.xpose.msra.mxu0 0.0
    %4235 = vmatprep.subr.mxu0 0.0
    %4236 = vmatpush1.xpose.msra.mxu0 0.0
    %4237 = vmatprep.subr.mxu0 0.0
    %4238 = vmatpush1.xpose.msra.mxu0 0.0
    %4239 = vmatprep.subr.mxu0 0.0
    %4240 = vmatpush1.xpose.msra.mxu0 0.0
    %4241 = vmatprep.subr.mxu0 0.0
    %4242 = vmatpush1.xpose.msra.mxu0 0.0
    %4243 = vmatprep.subr.mxu0 0.0
    %4244 = vmatpush1.xpose.msra.mxu0 0.0
    %4245 = vmatprep.subr.mxu0 0.0
    %4246 = vmatpush1.xpose.msra.mxu0 0.0
    %4247 = vmatprep.subr.mxu0 0.0
    %4248 = vmatpush1.xpose.msra.mxu0 0.0
    %4249 = vmatprep.subr.mxu0 0.0
    %4250 = vmatpush1.xpose.msra.mxu0 0.0
    %4251 = vmatprep.subr.mxu0 0.0
    %4252 = vmatpush1.xpose.msra.mxu0 0.0
    %4253 = vmatprep.subr.mxu0 0.0
    %4254 = vmatpush1.xpose.msra.mxu0 0.0
    %4255 = vmatprep.subr.mxu0 0.0
    %4256 = vmatpush1.xpose.msra.mxu0 0.0
    %4257 = vmatprep.subr.mxu0 0.0
    %4258 = vmatpush1.xpose.msra.mxu0 0.0
    %4259 = vmatprep.subr.mxu0 0.0
    %4260 = vmatpush1.xpose.msra.mxu0 0.0
    %4261 = vmatprep.subr.mxu0 0.0
    %4262 = vmatpush1.xpose.msra.mxu0 0.0
    %4263 = vmatprep.subr.mxu0 0.0
    %4264 = vmatpush1.xpose.msra.mxu0 0.0
    %4265 = vmatprep.subr.mxu0 0.0
    %4266 = vmatpush1.xpose.msra.mxu0 0.0
    %4267 = vmatprep.subr.mxu0 0.0
    %4268 = vmatpush1.xpose.msra.mxu0 0.0
    %4269 = vmatprep.subr.mxu0 0.0
    %4270 = vmatpush1.xpose.msra.mxu0 0.0
    %4271 = vmatprep.subr.mxu0 0.0
    %4272 = vmatpush1.xpose.msra.mxu0 0.0
    %4273 = vmatprep.subr.mxu0 0.0
    %4274 = vmatpush1.xpose.msra.mxu0 0.0
    %4275 = vmatprep.mubr.f32.mxu0 0.0
    %4276 = vmatmul.mubr.f32.gmra.mrb[0].mxu0 %v4209
    %v4277 = vpop.f32.mrb[0].mxu0
    %v4278 = vadd.f32 0.0, %v4277
    %v4279 = vpop.f32.mrb[0].mxu0
    %4280 = vdwg.mxu0
    %v4282 = vsel %vm268, %v3769, 0
    %4284 = vmatprep.subr.mxu0 0.0
    %4285 = vmatpush1.xpose.msra.mxu0 %v805
    %4286 = vmatprep.subr.mxu0 0.0
    %4287 = vmatpush1.xpose.msra.mxu0 0.0
    %4288 = vmatprep.subr.mxu0 0.0
    %4289 = vmatpush1.xpose.msra.mxu0 0.0
    %4290 = vmatprep.subr.mxu0 0.0
    %4291 = vmatpush1.xpose.msra.mxu0 0.0
    %4292 = vmatprep.subr.mxu0 0.0
    %4293 = vmatpush1.xpose.msra.mxu0 0.0
    %4294 = vmatprep.subr.mxu0 0.0
    %4295 = vmatpush1.xpose.msra.mxu0 0.0
    %4296 = vmatprep.subr.mxu0 0.0
    %4297 = vmatpush1.xpose.msra.mxu0 0.0
    %4298 = vmatprep.subr.mxu0 0.0
    %4299 = vmatpush1.xpose.msra.mxu0 0.0
    %4300 = vmatprep.subr.mxu0 0.0
    %4301 = vmatpush1.xpose.msra.mxu0 0.0
    %4302 = vmatprep.subr.mxu0 0.0
    %4303 = vmatpush1.xpose.msra.mxu0 0.0
    %4304 = vmatprep.subr.mxu0 0.0
    %4305 = vmatpush1.xpose.msra.mxu0 0.0
    %4306 = vmatprep.subr.mxu0 0.0
    %4307 = vmatpush1.xpose.msra.mxu0 0.0
    %4308 = vmatprep.subr.mxu0 0.0
    %4309 = vmatpush1.xpose.msra.mxu0 0.0
    %4310 = vmatprep.subr.mxu0 0.0
    %4311 = vmatpush1.xpose.msra.mxu0 0.0
    %4312 = vmatprep.subr.mxu0 0.0
    %4313 = vmatpush1.xpose.msra.mxu0 0.0
    %4314 = vmatprep.subr.mxu0 0.0
    %4315 = vmatpush1.xpose.msra.mxu0 0.0
    %4316 = vmatprep.subr.mxu0 0.0
    %4317 = vmatpush1.xpose.msra.mxu0 0.0
    %4318 = vmatprep.subr.mxu0 0.0
    %4319 = vmatpush1.xpose.msra.mxu0 0.0
    %4320 = vmatprep.subr.mxu0 0.0
    %4321 = vmatpush1.xpose.msra.mxu0 0.0
    %4322 = vmatprep.subr.mxu0 0.0
    %4323 = vmatpush1.xpose.msra.mxu0 0.0
    %4324 = vmatprep.subr.mxu0 0.0
    %4325 = vmatpush1.xpose.msra.mxu0 0.0
    %4326 = vmatprep.subr.mxu0 0.0
    %4327 = vmatpush1.xpose.msra.mxu0 0.0
    %4328 = vmatprep.subr.mxu0 0.0
    %4329 = vmatpush1.xpose.msra.mxu0 0.0
    %4330 = vmatprep.subr.mxu0 0.0
    %4331 = vmatpush1.xpose.msra.mxu0 0.0
    %4332 = vmatprep.subr.mxu0 0.0
    %4333 = vmatpush1.xpose.msra.mxu0 0.0
    %4334 = vmatprep.subr.mxu0 0.0
    %4335 = vmatpush1.xpose.msra.mxu0 0.0
    %4336 = vmatprep.subr.mxu0 0.0
    %4337 = vmatpush1.xpose.msra.mxu0 0.0
    %4338 = vmatprep.subr.mxu0 0.0
    %4339 = vmatpush1.xpose.msra.mxu0 0.0
    %4340 = vmatprep.subr.mxu0 0.0
    %4341 = vmatpush1.xpose.msra.mxu0 0.0
    %4342 = vmatprep.subr.mxu0 0.0
    %4343 = vmatpush1.xpose.msra.mxu0 0.0
    %4344 = vmatprep.subr.mxu0 0.0
    %4345 = vmatpush1.xpose.msra.mxu0 0.0
    %4346 = vmatprep.subr.mxu0 0.0
    %4347 = vmatpush1.xpose.msra.mxu0 0.0
    %4348 = vmatprep.mubr.f32.mxu0 0.0
    %4349 = vmatmul.mubr.f32.gmra.mrb[0].mxu0 %v4282
    %v4350 = vpop.f32.mrb[0].mxu0
    %v4351 = vadd.f32 0.0, %v4350
    %v4352 = vpop.f32.mrb[0].mxu0
    %4353 = vdwg.mxu0
    %v4354 = vmul.f32 %v3742, %v3742
    %v4355 = vmul.f32 %v3766, %v3766
    %v4356 = vmul.f32 %v3749, %v3749
    %v4357 = vmul.f32 %v3767, %v3767
    %v4358 = vmul.f32 %v3758, %v3758
    %v4359 = vmul.f32 %v3768, %v3768
    %v4360 = vmul.f32 %v3765, %v3765
    %v4361 = vmul.f32 %v3769, %v3769
    %v4362 = vsel %vm885, %v4354, 0.0
    %4363 = vadd.xlane.f32.xlu0 %v4362
    %v4364 = vpop.xlane.xlu0 %4363
    %v4365 = vsel %vm885, %v4355, 0.0
    %4366 = vadd.xlane.f32.xlu0 %v4365
    %v4367 = vpop.xlane.xlu0 %4366
    %v4368 = vsel %vm885, %v4356, 0.0
    %4369 = vadd.xlane.f32.xlu0 %v4368
    %v4370 = vpop.xlane.xlu0 %4369
    %v4371 = vsel %vm885, %v4357, 0.0
    %4372 = vadd.xlane.f32.xlu0 %v4371
    %v4373 = vpop.xlane.xlu0 %4372
    %v4374 = vsel %vm885, %v4358, 0.0
    %4375 = vadd.xlane.f32.xlu0 %v4374
    %v4376 = vpop.xlane.xlu0 %4375
    %v4377 = vsel %vm885, %v4359, 0.0
    %4378 = vadd.xlane.f32.xlu0 %v4377
    %v4379 = vpop.xlane.xlu0 %4378
    %v4380 = vsel %vm885, %v4360, 0.0
    %4381 = vadd.xlane.f32.xlu0 %v4380
    %v4382 = vpop.xlane.xlu0 %4381
    %v4383 = vsel %vm885, %v4361, 0.0
    %4384 = vadd.xlane.f32.xlu0 %v4383
    %v4385 = vpop.xlane.xlu0 %4384
    %v4386 = vrsqrt.pop %v4364
    %v4387 = vmul.f32 %v4364, %v4386
    %vm4388 = vcmp.eq.f32.partialorder %v4364, inf
    %v4389 = vsel %vm4388, %v4364, %v4387
    %vm4390 = vcmp.eq.f32.partialorder %v4364, 0.0
    %v4391 = vand.u32 %v4364, 2147483648
    %v4392 = vsel %vm4390, %v4391, %v4389
    %v4393 = vrsqrt.pop %v4367
    %v4394 = vmul.f32 %v4367, %v4393
    %vm4395 = vcmp.eq.f32.partialorder %v4367, inf
    %v4396 = vsel %vm4395, %v4367, %v4394
    %vm4397 = vcmp.eq.f32.partialorder %v4367, 0.0
    %v4398 = vand.u32 %v4367, 2147483648
    %v4399 = vsel %vm4397, %v4398, %v4396
    %v4400 = vrsqrt.pop %v4370
    %v4401 = vmul.f32 %v4370, %v4400
    %vm4402 = vcmp.eq.f32.partialorder %v4370, inf
    %v4403 = vsel %vm4402, %v4370, %v4401
    %vm4404 = vcmp.eq.f32.partialorder %v4370, 0.0
    %v4405 = vand.u32 %v4370, 2147483648
    %v4406 = vsel %vm4404, %v4405, %v4403
    %v4407 = vrsqrt.pop %v4373
    %v4408 = vmul.f32 %v4373, %v4407
    %vm4409 = vcmp.eq.f32.partialorder %v4373, inf
    %v4410 = vsel %vm4409, %v4373, %v4408
    %vm4411 = vcmp.eq.f32.partialorder %v4373, 0.0
    %v4412 = vand.u32 %v4373, 2147483648
    %v4413 = vsel %vm4411, %v4412, %v4410
    %v4414 = vrsqrt.pop %v4376
    %v4415 = vmul.f32 %v4376, %v4414
    %vm4416 = vcmp.eq.f32.partialorder %v4376, inf
    %v4417 = vsel %vm4416, %v4376, %v4415
    %vm4418 = vcmp.eq.f32.partialorder %v4376, 0.0
    %v4419 = vand.u32 %v4376, 2147483648
    %v4420 = vsel %vm4418, %v4419, %v4417
    %v4421 = vrsqrt.pop %v4379
    %v4422 = vmul.f32 %v4379, %v4421
    %vm4423 = vcmp.eq.f32.partialorder %v4379, inf
    %v4424 = vsel %vm4423, %v4379, %v4422
    %vm4425 = vcmp.eq.f32.partialorder %v4379, 0.0
    %v4426 = vand.u32 %v4379, 2147483648
    %v4427 = vsel %vm4425, %v4426, %v4424
    %v4428 = vrsqrt.pop %v4382
    %v4429 = vmul.f32 %v4382, %v4428
    %vm4430 = vcmp.eq.f32.partialorder %v4382, inf
    %v4431 = vsel %vm4430, %v4382, %v4429
    %vm4432 = vcmp.eq.f32.partialorder %v4382, 0.0
    %v4433 = vand.u32 %v4382, 2147483648
    %v4434 = vsel %vm4432, %v4433, %v4431
    %v4435 = vrsqrt.pop %v4385
    %v4436 = vmul.f32 %v4385, %v4435
    %vm4437 = vcmp.eq.f32.partialorder %v4385, inf
    %v4438 = vsel %vm4437, %v4385, %v4436
    %vm4439 = vcmp.eq.f32.partialorder %v4385, 0.0
    %v4440 = vand.u32 %v4385, 2147483648
    %v4441 = vsel %vm4439, %v4440, %v4438
    %v4442 = vadd.f32 %v4392, %v977
    %v4443 = vadd.f32 %v4399, %v981
    %v4444 = vadd.f32 %v4406, %v985
    %v4445 = vadd.f32 %v4413, %v989
    %v4446 = vadd.f32 %v4420, %v993
    %v4447 = vadd.f32 %v4427, %v997
    %v4448 = vadd.f32 %v4434, %v1001
    %v4449 = vadd.f32 %v4441, %v1005
    %v4450 = vrcp.pop %v4442
    %v4451 = vmul.f32 %v3840, %v4450
    %v4452 = vrcp.pop %v4443
    %v4453 = vmul.f32 %v3913, %v4452
    %v4454 = vrcp.pop %v4444
    %v4455 = vmul.f32 %v3986, %v4454
    %v4456 = vrcp.pop %v4445
    %v4457 = vmul.f32 %v4059, %v4456
    %v4458 = vrcp.pop %v4446
    %v4459 = vmul.f32 %v4132, %v4458
    %v4460 = vrcp.pop %v4447
    %v4461 = vmul.f32 %v4205, %v4460
    %v4462 = vrcp.pop %v4448
    %v4463 = vmul.f32 %v4278, %v4462
    %v4464 = vrcp.pop %v4449
    %v4465 = vmul.f32 %v4351, %v4464
    %v4466 = vmul.f32 %v4451, %v4451
    %v4467 = vmul.f32 %v4453, %v4453
    %v4468 = vmul.f32 %v4455, %v4455
    %v4469 = vmul.f32 %v4457, %v4457
    %v4470 = vmul.f32 %v4459, %v4459
    %v4471 = vmul.f32 %v4461, %v4461
    %v4472 = vmul.f32 %v4463, %v4463
    %v4473 = vmul.f32 %v4465, %v4465
    %v4474 = vsel %vm1046, %v4466, 0.0
    %4475 = vadd.xlane.f32.xlu0 %v4474
    %v4476 = vpop.xlane.xlu0 %4475
    %v4477 = vsel %vm1046, %v4467, 0.0
    %4478 = vadd.xlane.f32.xlu0 %v4477
    %v4479 = vpop.xlane.xlu0 %4478
    %v4480 = vsel %vm1046, %v4468, 0.0
    %4481 = vadd.xlane.f32.xlu0 %v4480
    %v4482 = vpop.xlane.xlu0 %4481
    %v4483 = vsel %vm1046, %v4469, 0.0
    %4484 = vadd.xlane.f32.xlu0 %v4483
    %v4485 = vpop.xlane.xlu0 %4484
    %v4486 = vsel %vm1046, %v4470, 0.0
    %4487 = vadd.xlane.f32.xlu0 %v4486
    %v4488 = vpop.xlane.xlu0 %4487
    %v4489 = vsel %vm1046, %v4471, 0.0
    %4490 = vadd.xlane.f32.xlu0 %v4489
    %v4491 = vpop.xlane.xlu0 %4490
    %v4492 = vsel %vm1046, %v4472, 0.0
    %4493 = vadd.xlane.f32.xlu0 %v4492
    %v4494 = vpop.xlane.xlu0 %4493
    %v4495 = vsel %vm1046, %v4473, 0.0
    %4496 = vadd.xlane.f32.xlu0 %v4495
    %v4497 = vpop.xlane.xlu0 %4496
    %v4498 = vmax.f32 %v4476, 1e-24
    %v4499 = vmax.f32 %v4479, 1e-24
    %v4500 = vmax.f32 %v4482, 1e-24
    %v4501 = vmax.f32 %v4485, 1e-24
    %v4502 = vmax.f32 %v4488, 1e-24
    %v4503 = vmax.f32 %v4491, 1e-24
    %v4504 = vmax.f32 %v4494, 1e-24
    %v4505 = vmax.f32 %v4497, 1e-24
    %v4506 = vrsqrt.pop %v4498
    %v4507 = vrsqrt.pop %v4499
    %v4508 = vrsqrt.pop %v4500
    %v4509 = vrsqrt.pop %v4501
    %v4510 = vrsqrt.pop %v4502
    %v4511 = vrsqrt.pop %v4503
    %v4512 = vrsqrt.pop %v4504
    %v4513 = vrsqrt.pop %v4505
    %v4514 = vmul.f32 %v4451, %v4506
    %v4515 = vmul.f32 %v4453, %v4507
    %v4516 = vmul.f32 %v4455, %v4508
    %v4517 = vmul.f32 %v4457, %v4509
    %v4518 = vmul.f32 %v4459, %v4510
    %v4519 = vmul.f32 %v4461, %v4511
    %v4520 = vmul.f32 %v4463, %v4512
    %v4521 = vmul.f32 %v4465, %v4513
    %v4523 = vsel %vm1095, %v4514, 0
    %4525 = vmatprep.subr.mxu0 0.0
    %4526 = vmatpush1.msra.mxu0 %v70
    %4527 = vmatprep.subr.mxu0 0.0
    %4528 = vmatpush1.msra.mxu0 0.0
    %4529 = vmatprep.subr.mxu0 0.0
    %4530 = vmatpush1.msra.mxu0 0.0
    %4531 = vmatprep.subr.mxu0 0.0
    %4532 = vmatpush1.msra.mxu0 0.0
    %4533 = vmatprep.subr.mxu0 0.0
    %4534 = vmatpush1.msra.mxu0 0.0
    %4535 = vmatprep.subr.mxu0 0.0
    %4536 = vmatpush1.msra.mxu0 0.0
    %4537 = vmatprep.subr.mxu0 0.0
    %4538 = vmatpush1.msra.mxu0 0.0
    %4539 = vmatprep.subr.mxu0 0.0
    %4540 = vmatpush1.msra.mxu0 0.0
    %4541 = vmatprep.subr.mxu0 0.0
    %4542 = vmatpush1.msra.mxu0 0.0
    %4543 = vmatprep.subr.mxu0 0.0
    %4544 = vmatpush1.msra.mxu0 0.0
    %4545 = vmatprep.subr.mxu0 0.0
    %4546 = vmatpush1.msra.mxu0 0.0
    %4547 = vmatprep.subr.mxu0 0.0
    %4548 = vmatpush1.msra.mxu0 0.0
    %4549 = vmatprep.subr.mxu0 0.0
    %4550 = vmatpush1.msra.mxu0 0.0
    %4551 = vmatprep.subr.mxu0 0.0
    %4552 = vmatpush1.msra.mxu0 0.0
    %4553 = vmatprep.subr.mxu0 0.0
    %4554 = vmatpush1.msra.mxu0 0.0
    %4555 = vmatprep.subr.mxu0 0.0
    %4556 = vmatpush1.msra.mxu0 0.0
    %4557 = vmatprep.subr.mxu0 0.0
    %4558 = vmatpush1.msra.mxu0 0.0
    %4559 = vmatprep.subr.mxu0 0.0
    %4560 = vmatpush1.msra.mxu0 0.0
    %4561 = vmatprep.subr.mxu0 0.0
    %4562 = vmatpush1.msra.mxu0 0.0
    %4563 = vmatprep.subr.mxu0 0.0
    %4564 = vmatpush1.msra.mxu0 0.0
    %4565 = vmatprep.subr.mxu0 0.0
    %4566 = vmatpush1.msra.mxu0 0.0
    %4567 = vmatprep.subr.mxu0 0.0
    %4568 = vmatpush1.msra.mxu0 0.0
    %4569 = vmatprep.subr.mxu0 0.0
    %4570 = vmatpush1.msra.mxu0 0.0
    %4571 = vmatprep.subr.mxu0 0.0
    %4572 = vmatpush1.msra.mxu0 0.0
    %4573 = vmatprep.subr.mxu0 0.0
    %4574 = vmatpush1.msra.mxu0 0.0
    %4575 = vmatprep.subr.mxu0 0.0
    %4576 = vmatpush1.msra.mxu0 0.0
    %4577 = vmatprep.subr.mxu0 0.0
    %4578 = vmatpush1.msra.mxu0 0.0
    %4579 = vmatprep.subr.mxu0 0.0
    %4580 = vmatpush1.msra.mxu0 0.0
    %4581 = vmatprep.subr.mxu0 0.0
    %4582 = vmatpush1.msra.mxu0 0.0
    %4583 = vmatprep.subr.mxu0 0.0
    %4584 = vmatpush1.msra.mxu0 0.0
    %4585 = vmatprep.subr.mxu0 0.0
    %4586 = vmatpush1.msra.mxu0 0.0
    %4587 = vmatprep.subr.mxu0 0.0
    %4588 = vmatpush1.msra.mxu0 0.0
    %4589 = vmatprep.mubr.f32.mxu0 0.0
    %4590 = vmatmul.mubr.f32.gmra.mrb[0].mxu0 %v4523
    %v4591 = vpop.f32.mrb[0].mxu0
    %v4592 = vadd.f32 0.0, %v4591
    %v4593 = vpop.f32.mrb[0].mxu0
    %4594 = vdwg.mxu0
    %v4596 = vsel %vm1095, %v4515, 0
    %4598 = vmatprep.subr.mxu0 0.0
    %4599 = vmatpush1.msra.mxu0 %v71
    %4600 = vmatprep.subr.mxu0 0.0
    %4601 = vmatpush1.msra.mxu0 0.0
    %4602 = vmatprep.subr.mxu0 0.0
    %4603 = vmatpush1.msra.mxu0 0.0
    %4604 = vmatprep.subr.mxu0 0.0
    %4605 = vmatpush1.msra.mxu0 0.0
    %4606 = vmatprep.subr.mxu0 0.0
    %4607 = vmatpush1.msra.mxu0 0.0
    %4608 = vmatprep.subr.mxu0 0.0
    %4609 = vmatpush1.msra.mxu0 0.0
    %4610 = vmatprep.subr.mxu0 0.0
    %4611 = vmatpush1.msra.mxu0 0.0
    %4612 = vmatprep.subr.mxu0 0.0
    %4613 = vmatpush1.msra.mxu0 0.0
    %4614 = vmatprep.subr.mxu0 0.0
    %4615 = vmatpush1.msra.mxu0 0.0
    %4616 = vmatprep.subr.mxu0 0.0
    %4617 = vmatpush1.msra.mxu0 0.0
    %4618 = vmatprep.subr.mxu0 0.0
    %4619 = vmatpush1.msra.mxu0 0.0
    %4620 = vmatprep.subr.mxu0 0.0
    %4621 = vmatpush1.msra.mxu0 0.0
    %4622 = vmatprep.subr.mxu0 0.0
    %4623 = vmatpush1.msra.mxu0 0.0
    %4624 = vmatprep.subr.mxu0 0.0
    %4625 = vmatpush1.msra.mxu0 0.0
    %4626 = vmatprep.subr.mxu0 0.0
    %4627 = vmatpush1.msra.mxu0 0.0
    %4628 = vmatprep.subr.mxu0 0.0
    %4629 = vmatpush1.msra.mxu0 0.0
    %4630 = vmatprep.subr.mxu0 0.0
    %4631 = vmatpush1.msra.mxu0 0.0
    %4632 = vmatprep.subr.mxu0 0.0
    %4633 = vmatpush1.msra.mxu0 0.0
    %4634 = vmatprep.subr.mxu0 0.0
    %4635 = vmatpush1.msra.mxu0 0.0
    %4636 = vmatprep.subr.mxu0 0.0
    %4637 = vmatpush1.msra.mxu0 0.0
    %4638 = vmatprep.subr.mxu0 0.0
    %4639 = vmatpush1.msra.mxu0 0.0
    %4640 = vmatprep.subr.mxu0 0.0
    %4641 = vmatpush1.msra.mxu0 0.0
    %4642 = vmatprep.subr.mxu0 0.0
    %4643 = vmatpush1.msra.mxu0 0.0
    %4644 = vmatprep.subr.mxu0 0.0
    %4645 = vmatpush1.msra.mxu0 0.0
    %4646 = vmatprep.subr.mxu0 0.0
    %4647 = vmatpush1.msra.mxu0 0.0
    %4648 = vmatprep.subr.mxu0 0.0
    %4649 = vmatpush1.msra.mxu0 0.0
    %4650 = vmatprep.subr.mxu0 0.0
    %4651 = vmatpush1.msra.mxu0 0.0
    %4652 = vmatprep.subr.mxu0 0.0
    %4653 = vmatpush1.msra.mxu0 0.0
    %4654 = vmatprep.subr.mxu0 0.0
    %4655 = vmatpush1.msra.mxu0 0.0
    %4656 = vmatprep.subr.mxu0 0.0
    %4657 = vmatpush1.msra.mxu0 0.0
    %4658 = vmatprep.subr.mxu0 0.0
    %4659 = vmatpush1.msra.mxu0 0.0
    %4660 = vmatprep.subr.mxu0 0.0
    %4661 = vmatpush1.msra.mxu0 0.0
    %4662 = vmatprep.mubr.f32.mxu0 0.0
    %4663 = vmatmul.mubr.f32.gmra.mrb[0].mxu0 %v4596
    %v4664 = vpop.f32.mrb[0].mxu0
    %v4665 = vadd.f32 0.0, %v4664
    %v4666 = vpop.f32.mrb[0].mxu0
    %4667 = vdwg.mxu0
    %v4669 = vsel %vm1095, %v4516, 0
    %4671 = vmatprep.subr.mxu0 0.0
    %4672 = vmatpush1.msra.mxu0 %v72
    %4673 = vmatprep.subr.mxu0 0.0
    %4674 = vmatpush1.msra.mxu0 0.0
    %4675 = vmatprep.subr.mxu0 0.0
    %4676 = vmatpush1.msra.mxu0 0.0
    %4677 = vmatprep.subr.mxu0 0.0
    %4678 = vmatpush1.msra.mxu0 0.0
    %4679 = vmatprep.subr.mxu0 0.0
    %4680 = vmatpush1.msra.mxu0 0.0
    %4681 = vmatprep.subr.mxu0 0.0
    %4682 = vmatpush1.msra.mxu0 0.0
    %4683 = vmatprep.subr.mxu0 0.0
    %4684 = vmatpush1.msra.mxu0 0.0
    %4685 = vmatprep.subr.mxu0 0.0
    %4686 = vmatpush1.msra.mxu0 0.0
    %4687 = vmatprep.subr.mxu0 0.0
    %4688 = vmatpush1.msra.mxu0 0.0
    %4689 = vmatprep.subr.mxu0 0.0
    %4690 = vmatpush1.msra.mxu0 0.0
    %4691 = vmatprep.subr.mxu0 0.0
    %4692 = vmatpush1.msra.mxu0 0.0
    %4693 = vmatprep.subr.mxu0 0.0
    %4694 = vmatpush1.msra.mxu0 0.0
    %4695 = vmatprep.subr.mxu0 0.0
    %4696 = vmatpush1.msra.mxu0 0.0
    %4697 = vmatprep.subr.mxu0 0.0
    %4698 = vmatpush1.msra.mxu0 0.0
    %4699 = vmatprep.subr.mxu0 0.0
    %4700 = vmatpush1.msra.mxu0 0.0
    %4701 = vmatprep.subr.mxu0 0.0
    %4702 = vmatpush1.msra.mxu0 0.0
    %4703 = vmatprep.subr.mxu0 0.0
    %4704 = vmatpush1.msra.mxu0 0.0
    %4705 = vmatprep.subr.mxu0 0.0
    %4706 = vmatpush1.msra.mxu0 0.0
    %4707 = vmatprep.subr.mxu0 0.0
    %4708 = vmatpush1.msra.mxu0 0.0
    %4709 = vmatprep.subr.mxu0 0.0
    %4710 = vmatpush1.msra.mxu0 0.0
    %4711 = vmatprep.subr.mxu0 0.0
    %4712 = vmatpush1.msra.mxu0 0.0
    %4713 = vmatprep.subr.mxu0 0.0
    %4714 = vmatpush1.msra.mxu0 0.0
    %4715 = vmatprep.subr.mxu0 0.0
    %4716 = vmatpush1.msra.mxu0 0.0
    %4717 = vmatprep.subr.mxu0 0.0
    %4718 = vmatpush1.msra.mxu0 0.0
    %4719 = vmatprep.subr.mxu0 0.0
    %4720 = vmatpush1.msra.mxu0 0.0
    %4721 = vmatprep.subr.mxu0 0.0
    %4722 = vmatpush1.msra.mxu0 0.0
    %4723 = vmatprep.subr.mxu0 0.0
    %4724 = vmatpush1.msra.mxu0 0.0
    %4725 = vmatprep.subr.mxu0 0.0
    %4726 = vmatpush1.msra.mxu0 0.0
    %4727 = vmatprep.subr.mxu0 0.0
    %4728 = vmatpush1.msra.mxu0 0.0
    %4729 = vmatprep.subr.mxu0 0.0
    %4730 = vmatpush1.msra.mxu0 0.0
    %4731 = vmatprep.subr.mxu0 0.0
    %4732 = vmatpush1.msra.mxu0 0.0
    %4733 = vmatprep.subr.mxu0 0.0
    %4734 = vmatpush1.msra.mxu0 0.0
    %4735 = vmatprep.mubr.f32.mxu0 0.0
    %4736 = vmatmul.mubr.f32.gmra.mrb[0].mxu0 %v4669
    %v4737 = vpop.f32.mrb[0].mxu0
    %v4738 = vadd.f32 0.0, %v4737
    %v4739 = vpop.f32.mrb[0].mxu0
    %4740 = vdwg.mxu0
    %v4742 = vsel %vm1095, %v4517, 0
    %4744 = vmatprep.subr.mxu0 0.0
    %4745 = vmatpush1.msra.mxu0 %v73
    %4746 = vmatprep.subr.mxu0 0.0
    %4747 = vmatpush1.msra.mxu0 0.0
    %4748 = vmatprep.subr.mxu0 0.0
    %4749 = vmatpush1.msra.mxu0 0.0
    %4750 = vmatprep.subr.mxu0 0.0
    %4751 = vmatpush1.msra.mxu0 0.0
    %4752 = vmatprep.subr.mxu0 0.0
    %4753 = vmatpush1.msra.mxu0 0.0
    %4754 = vmatprep.subr.mxu0 0.0
    %4755 = vmatpush1.msra.mxu0 0.0
    %4756 = vmatprep.subr.mxu0 0.0
    %4757 = vmatpush1.msra.mxu0 0.0
    %4758 = vmatprep.subr.mxu0 0.0
    %4759 = vmatpush1.msra.mxu0 0.0
    %4760 = vmatprep.subr.mxu0 0.0
    %4761 = vmatpush1.msra.mxu0 0.0
    %4762 = vmatprep.subr.mxu0 0.0
    %4763 = vmatpush1.msra.mxu0 0.0
    %4764 = vmatprep.subr.mxu0 0.0
    %4765 = vmatpush1.msra.mxu0 0.0
    %4766 = vmatprep.subr.mxu0 0.0
    %4767 = vmatpush1.msra.mxu0 0.0
    %4768 = vmatprep.subr.mxu0 0.0
    %4769 = vmatpush1.msra.mxu0 0.0
    %4770 = vmatprep.subr.mxu0 0.0
    %4771 = vmatpush1.msra.mxu0 0.0
    %4772 = vmatprep.subr.mxu0 0.0
    %4773 = vmatpush1.msra.mxu0 0.0
    %4774 = vmatprep.subr.mxu0 0.0
    %4775 = vmatpush1.msra.mxu0 0.0
    %4776 = vmatprep.subr.mxu0 0.0
    %4777 = vmatpush1.msra.mxu0 0.0
    %4778 = vmatprep.subr.mxu0 0.0
    %4779 = vmatpush1.msra.mxu0 0.0
    %4780 = vmatprep.subr.mxu0 0.0
    %4781 = vmatpush1.msra.mxu0 0.0
    %4782 = vmatprep.subr.mxu0 0.0
    %4783 = vmatpush1.msra.mxu0 0.0
    %4784 = vmatprep.subr.mxu0 0.0
    %4785 = vmatpush1.msra.mxu0 0.0
    %4786 = vmatprep.subr.mxu0 0.0
    %4787 = vmatpush1.msra.mxu0 0.0
    %4788 = vmatprep.subr.mxu0 0.0
    %4789 = vmatpush1.msra.mxu0 0.0
    %4790 = vmatprep.subr.mxu0 0.0
    %4791 = vmatpush1.msra.mxu0 0.0
    %4792 = vmatprep.subr.mxu0 0.0
    %4793 = vmatpush1.msra.mxu0 0.0
    %4794 = vmatprep.subr.mxu0 0.0
    %4795 = vmatpush1.msra.mxu0 0.0
    %4796 = vmatprep.subr.mxu0 0.0
    %4797 = vmatpush1.msra.mxu0 0.0
    %4798 = vmatprep.subr.mxu0 0.0
    %4799 = vmatpush1.msra.mxu0 0.0
    %4800 = vmatprep.subr.mxu0 0.0
    %4801 = vmatpush1.msra.mxu0 0.0
    %4802 = vmatprep.subr.mxu0 0.0
    %4803 = vmatpush1.msra.mxu0 0.0
    %4804 = vmatprep.subr.mxu0 0.0
    %4805 = vmatpush1.msra.mxu0 0.0
    %4806 = vmatprep.subr.mxu0 0.0
    %4807 = vmatpush1.msra.mxu0 0.0
    %4808 = vmatprep.mubr.f32.mxu0 0.0
    %4809 = vmatmul.mubr.f32.gmra.mrb[0].mxu0 %v4742
    %v4810 = vpop.f32.mrb[0].mxu0
    %v4811 = vadd.f32 0.0, %v4810
    %v4812 = vpop.f32.mrb[0].mxu0
    %4813 = vdwg.mxu0
    %v4815 = vsel %vm1095, %v4518, 0
    %4817 = vmatprep.subr.mxu0 0.0
    %4818 = vmatpush1.msra.mxu0 %v74
    %4819 = vmatprep.subr.mxu0 0.0
    %4820 = vmatpush1.msra.mxu0 0.0
    %4821 = vmatprep.subr.mxu0 0.0
    %4822 = vmatpush1.msra.mxu0 0.0
    %4823 = vmatprep.subr.mxu0 0.0
    %4824 = vmatpush1.msra.mxu0 0.0
    %4825 = vmatprep.subr.mxu0 0.0
    %4826 = vmatpush1.msra.mxu0 0.0
    %4827 = vmatprep.subr.mxu0 0.0
    %4828 = vmatpush1.msra.mxu0 0.0
    %4829 = vmatprep.subr.mxu0 0.0
    %4830 = vmatpush1.msra.mxu0 0.0
    %4831 = vmatprep.subr.mxu0 0.0
    %4832 = vmatpush1.msra.mxu0 0.0
    %4833 = vmatprep.subr.mxu0 0.0
    %4834 = vmatpush1.msra.mxu0 0.0
    %4835 = vmatprep.subr.mxu0 0.0
    %4836 = vmatpush1.msra.mxu0 0.0
    %4837 = vmatprep.subr.mxu0 0.0
    %4838 = vmatpush1.msra.mxu0 0.0
    %4839 = vmatprep.subr.mxu0 0.0
    %4840 = vmatpush1.msra.mxu0 0.0
    %4841 = vmatprep.subr.mxu0 0.0
    %4842 = vmatpush1.msra.mxu0 0.0
    %4843 = vmatprep.subr.mxu0 0.0
    %4844 = vmatpush1.msra.mxu0 0.0
    %4845 = vmatprep.subr.mxu0 0.0
    %4846 = vmatpush1.msra.mxu0 0.0
    %4847 = vmatprep.subr.mxu0 0.0
    %4848 = vmatpush1.msra.mxu0 0.0
    %4849 = vmatprep.subr.mxu0 0.0
    %4850 = vmatpush1.msra.mxu0 0.0
    %4851 = vmatprep.subr.mxu0 0.0
    %4852 = vmatpush1.msra.mxu0 0.0
    %4853 = vmatprep.subr.mxu0 0.0
    %4854 = vmatpush1.msra.mxu0 0.0
    %4855 = vmatprep.subr.mxu0 0.0
    %4856 = vmatpush1.msra.mxu0 0.0
    %4857 = vmatprep.subr.mxu0 0.0
    %4858 = vmatpush1.msra.mxu0 0.0
    %4859 = vmatprep.subr.mxu0 0.0
    %4860 = vmatpush1.msra.mxu0 0.0
    %4861 = vmatprep.subr.mxu0 0.0
    %4862 = vmatpush1.msra.mxu0 0.0
    %4863 = vmatprep.subr.mxu0 0.0
    %4864 = vmatpush1.msra.mxu0 0.0
    %4865 = vmatprep.subr.mxu0 0.0
    %4866 = vmatpush1.msra.mxu0 0.0
    %4867 = vmatprep.subr.mxu0 0.0
    %4868 = vmatpush1.msra.mxu0 0.0
    %4869 = vmatprep.subr.mxu0 0.0
    %4870 = vmatpush1.msra.mxu0 0.0
    %4871 = vmatprep.subr.mxu0 0.0
    %4872 = vmatpush1.msra.mxu0 0.0
    %4873 = vmatprep.subr.mxu0 0.0
    %4874 = vmatpush1.msra.mxu0 0.0
    %4875 = vmatprep.subr.mxu0 0.0
    %4876 = vmatpush1.msra.mxu0 0.0
    %4877 = vmatprep.subr.mxu0 0.0
    %4878 = vmatpush1.msra.mxu0 0.0
    %4879 = vmatprep.subr.mxu0 0.0
    %4880 = vmatpush1.msra.mxu0 0.0
    %4881 = vmatprep.mubr.f32.mxu0 0.0
    %4882 = vmatmul.mubr.f32.gmra.mrb[0].mxu0 %v4815
    %v4883 = vpop.f32.mrb[0].mxu0
    %v4884 = vadd.f32 0.0, %v4883
    %v4885 = vpop.f32.mrb[0].mxu0
    %4886 = vdwg.mxu0
    %v4888 = vsel %vm1095, %v4519, 0
    %4890 = vmatprep.subr.mxu0 0.0
    %4891 = vmatpush1.msra.mxu0 %v75
    %4892 = vmatprep.subr.mxu0 0.0
    %4893 = vmatpush1.msra.mxu0 0.0
    %4894 = vmatprep.subr.mxu0 0.0
    %4895 = vmatpush1.msra.mxu0 0.0
    %4896 = vmatprep.subr.mxu0 0.0
    %4897 = vmatpush1.msra.mxu0 0.0
    %4898 = vmatprep.subr.mxu0 0.0
    %4899 = vmatpush1.msra.mxu0 0.0
    %4900 = vmatprep.subr.mxu0 0.0
    %4901 = vmatpush1.msra.mxu0 0.0
    %4902 = vmatprep.subr.mxu0 0.0
    %4903 = vmatpush1.msra.mxu0 0.0
    %4904 = vmatprep.subr.mxu0 0.0
    %4905 = vmatpush1.msra.mxu0 0.0
    %4906 = vmatprep.subr.mxu0 0.0
    %4907 = vmatpush1.msra.mxu0 0.0
    %4908 = vmatprep.subr.mxu0 0.0
    %4909 = vmatpush1.msra.mxu0 0.0
    %4910 = vmatprep.subr.mxu0 0.0
    %4911 = vmatpush1.msra.mxu0 0.0
    %4912 = vmatprep.subr.mxu0 0.0
    %4913 = vmatpush1.msra.mxu0 0.0
    %4914 = vmatprep.subr.mxu0 0.0
    %4915 = vmatpush1.msra.mxu0 0.0
    %4916 = vmatprep.subr.mxu0 0.0
    %4917 = vmatpush1.msra.mxu0 0.0
    %4918 = vmatprep.subr.mxu0 0.0
    %4919 = vmatpush1.msra.mxu0 0.0
    %4920 = vmatprep.subr.mxu0 0.0
    %4921 = vmatpush1.msra.mxu0 0.0
    %4922 = vmatprep.subr.mxu0 0.0
    %4923 = vmatpush1.msra.mxu0 0.0
    %4924 = vmatprep.subr.mxu0 0.0
    %4925 = vmatpush1.msra.mxu0 0.0
    %4926 = vmatprep.subr.mxu0 0.0
    %4927 = vmatpush1.msra.mxu0 0.0
    %4928 = vmatprep.subr.mxu0 0.0
    %4929 = vmatpush1.msra.mxu0 0.0
    %4930 = vmatprep.subr.mxu0 0.0
    %4931 = vmatpush1.msra.mxu0 0.0
    %4932 = vmatprep.subr.mxu0 0.0
    %4933 = vmatpush1.msra.mxu0 0.0
    %4934 = vmatprep.subr.mxu0 0.0
    %4935 = vmatpush1.msra.mxu0 0.0
    %4936 = vmatprep.subr.mxu0 0.0
    %4937 = vmatpush1.msra.mxu0 0.0
    %4938 = vmatprep.subr.mxu0 0.0
    %4939 = vmatpush1.msra.mxu0 0.0
    %4940 = vmatprep.subr.mxu0 0.0
    %4941 = vmatpush1.msra.mxu0 0.0
    %4942 = vmatprep.subr.mxu0 0.0
    %4943 = vmatpush1.msra.mxu0 0.0
    %4944 = vmatprep.subr.mxu0 0.0
    %4945 = vmatpush1.msra.mxu0 0.0
    %4946 = vmatprep.subr.mxu0 0.0
    %4947 = vmatpush1.msra.mxu0 0.0
    %4948 = vmatprep.subr.mxu0 0.0
    %4949 = vmatpush1.msra.mxu0 0.0
    %4950 = vmatprep.subr.mxu0 0.0
    %4951 = vmatpush1.msra.mxu0 0.0
    %4952 = vmatprep.subr.mxu0 0.0
    %4953 = vmatpush1.msra.mxu0 0.0
    %4954 = vmatprep.mubr.f32.mxu0 0.0
    %4955 = vmatmul.mubr.f32.gmra.mrb[0].mxu0 %v4888
    %v4956 = vpop.f32.mrb[0].mxu0
    %v4957 = vadd.f32 0.0, %v4956
    %v4958 = vpop.f32.mrb[0].mxu0
    %4959 = vdwg.mxu0
    %v4961 = vsel %vm1095, %v4520, 0
    %4963 = vmatprep.subr.mxu0 0.0
    %4964 = vmatpush1.msra.mxu0 %v76
    %4965 = vmatprep.subr.mxu0 0.0
    %4966 = vmatpush1.msra.mxu0 0.0
    %4967 = vmatprep.subr.mxu0 0.0
    %4968 = vmatpush1.msra.mxu0 0.0
    %4969 = vmatprep.subr.mxu0 0.0
    %4970 = vmatpush1.msra.mxu0 0.0
    %4971 = vmatprep.subr.mxu0 0.0
    %4972 = vmatpush1.msra.mxu0 0.0
    %4973 = vmatprep.subr.mxu0 0.0
    %4974 = vmatpush1.msra.mxu0 0.0
    %4975 = vmatprep.subr.mxu0 0.0
    %4976 = vmatpush1.msra.mxu0 0.0
    %4977 = vmatprep.subr.mxu0 0.0
    %4978 = vmatpush1.msra.mxu0 0.0
    %4979 = vmatprep.subr.mxu0 0.0
    %4980 = vmatpush1.msra.mxu0 0.0
    %4981 = vmatprep.subr.mxu0 0.0
    %4982 = vmatpush1.msra.mxu0 0.0
    %4983 = vmatprep.subr.mxu0 0.0
    %4984 = vmatpush1.msra.mxu0 0.0
    %4985 = vmatprep.subr.mxu0 0.0
    %4986 = vmatpush1.msra.mxu0 0.0
    %4987 = vmatprep.subr.mxu0 0.0
    %4988 = vmatpush1.msra.mxu0 0.0
    %4989 = vmatprep.subr.mxu0 0.0
    %4990 = vmatpush1.msra.mxu0 0.0
    %4991 = vmatprep.subr.mxu0 0.0
    %4992 = vmatpush1.msra.mxu0 0.0
    %4993 = vmatprep.subr.mxu0 0.0
    %4994 = vmatpush1.msra.mxu0 0.0
    %4995 = vmatprep.subr.mxu0 0.0
    %4996 = vmatpush1.msra.mxu0 0.0
    %4997 = vmatprep.subr.mxu0 0.0
    %4998 = vmatpush1.msra.mxu0 0.0
    %4999 = vmatprep.subr.mxu0 0.0
    %5000 = vmatpush1.msra.mxu0 0.0
    %5001 = vmatprep.subr.mxu0 0.0
    %5002 = vmatpush1.msra.mxu0 0.0
    %5003 = vmatprep.subr.mxu0 0.0
    %5004 = vmatpush1.msra.mxu0 0.0
    %5005 = vmatprep.subr.mxu0 0.0
    %5006 = vmatpush1.msra.mxu0 0.0
    %5007 = vmatprep.subr.mxu0 0.0
    %5008 = vmatpush1.msra.mxu0 0.0
    %5009 = vmatprep.subr.mxu0 0.0
    %5010 = vmatpush1.msra.mxu0 0.0
    %5011 = vmatprep.subr.mxu0 0.0
    %5012 = vmatpush1.msra.mxu0 0.0
    %5013 = vmatprep.subr.mxu0 0.0
    %5014 = vmatpush1.msra.mxu0 0.0
    %5015 = vmatprep.subr.mxu0 0.0
    %5016 = vmatpush1.msra.mxu0 0.0
    %5017 = vmatprep.subr.mxu0 0.0
    %5018 = vmatpush1.msra.mxu0 0.0
    %5019 = vmatprep.subr.mxu0 0.0
    %5020 = vmatpush1.msra.mxu0 0.0
    %5021 = vmatprep.subr.mxu0 0.0
    %5022 = vmatpush1.msra.mxu0 0.0
    %5023 = vmatprep.subr.mxu0 0.0
    %5024 = vmatpush1.msra.mxu0 0.0
    %5025 = vmatprep.subr.mxu0 0.0
    %5026 = vmatpush1.msra.mxu0 0.0
    %5027 = vmatprep.mubr.f32.mxu0 0.0
    %5028 = vmatmul.mubr.f32.gmra.mrb[0].mxu0 %v4961
    %v5029 = vpop.f32.mrb[0].mxu0
    %v5030 = vadd.f32 0.0, %v5029
    %v5031 = vpop.f32.mrb[0].mxu0
    %5032 = vdwg.mxu0
    %v5034 = vsel %vm1095, %v4521, 0
    %5036 = vmatprep.subr.mxu0 0.0
    %5037 = vmatpush1.msra.mxu0 %v77
    %5038 = vmatprep.subr.mxu0 0.0
    %5039 = vmatpush1.msra.mxu0 0.0
    %5040 = vmatprep.subr.mxu0 0.0
    %5041 = vmatpush1.msra.mxu0 0.0
    %5042 = vmatprep.subr.mxu0 0.0
    %5043 = vmatpush1.msra.mxu0 0.0
    %5044 = vmatprep.subr.mxu0 0.0
    %5045 = vmatpush1.msra.mxu0 0.0
    %5046 = vmatprep.subr.mxu0 0.0
    %5047 = vmatpush1.msra.mxu0 0.0
    %5048 = vmatprep.subr.mxu0 0.0
    %5049 = vmatpush1.msra.mxu0 0.0
    %5050 = vmatprep.subr.mxu0 0.0
    %5051 = vmatpush1.msra.mxu0 0.0
    %5052 = vmatprep.subr.mxu0 0.0
    %5053 = vmatpush1.msra.mxu0 0.0
    %5054 = vmatprep.subr.mxu0 0.0
    %5055 = vmatpush1.msra.mxu0 0.0
    %5056 = vmatprep.subr.mxu0 0.0
    %5057 = vmatpush1.msra.mxu0 0.0
    %5058 = vmatprep.subr.mxu0 0.0
    %5059 = vmatpush1.msra.mxu0 0.0
    %5060 = vmatprep.subr.mxu0 0.0
    %5061 = vmatpush1.msra.mxu0 0.0
    %5062 = vmatprep.subr.mxu0 0.0
    %5063 = vmatpush1.msra.mxu0 0.0
    %5064 = vmatprep.subr.mxu0 0.0
    %5065 = vmatpush1.msra.mxu0 0.0
    %5066 = vmatprep.subr.mxu0 0.0
    %5067 = vmatpush1.msra.mxu0 0.0
    %5068 = vmatprep.subr.mxu0 0.0
    %5069 = vmatpush1.msra.mxu0 0.0
    %5070 = vmatprep.subr.mxu0 0.0
    %5071 = vmatpush1.msra.mxu0 0.0
    %5072 = vmatprep.subr.mxu0 0.0
    %5073 = vmatpush1.msra.mxu0 0.0
    %5074 = vmatprep.subr.mxu0 0.0
    %5075 = vmatpush1.msra.mxu0 0.0
    %5076 = vmatprep.subr.mxu0 0.0
    %5077 = vmatpush1.msra.mxu0 0.0
    %5078 = vmatprep.subr.mxu0 0.0
    %5079 = vmatpush1.msra.mxu0 0.0
    %5080 = vmatprep.subr.mxu0 0.0
    %5081 = vmatpush1.msra.mxu0 0.0
    %5082 = vmatprep.subr.mxu0 0.0
    %5083 = vmatpush1.msra.mxu0 0.0
    %5084 = vmatprep.subr.mxu0 0.0
    %5085 = vmatpush1.msra.mxu0 0.0
    %5086 = vmatprep.subr.mxu0 0.0
    %5087 = vmatpush1.msra.mxu0 0.0
    %5088 = vmatprep.subr.mxu0 0.0
    %5089 = vmatpush1.msra.mxu0 0.0
    %5090 = vmatprep.subr.mxu0 0.0
    %5091 = vmatpush1.msra.mxu0 0.0
    %5092 = vmatprep.subr.mxu0 0.0
    %5093 = vmatpush1.msra.mxu0 0.0
    %5094 = vmatprep.subr.mxu0 0.0
    %5095 = vmatpush1.msra.mxu0 0.0
    %5096 = vmatprep.subr.mxu0 0.0
    %5097 = vmatpush1.msra.mxu0 0.0
    %5098 = vmatprep.subr.mxu0 0.0
    %5099 = vmatpush1.msra.mxu0 0.0
    %5100 = vmatprep.mubr.f32.mxu0 0.0
    %5101 = vmatmul.mubr.f32.gmra.mrb[0].mxu0 %v5034
    %v5102 = vpop.f32.mrb[0].mxu0
    %v5103 = vadd.f32 0.0, %v5102
    %v5104 = vpop.f32.mrb[0].mxu0
    %5105 = vdwg.mxu0
    %v5106 = vcombine.low %v4592, %v4738
    %v5108 = vunpack.c.l.s4 1983009808
    %v5109 = vunpack.c.0.s8 %v5108
    %v5110 = vlaneseq
    %v5111 = vshrl.u32 %v5110, 7
    %v5112 = vsub.s32 %v5109, %v5111
    %v5113 = vrot.slane %v5106, %v5112
    %v5114 = vcombine.low %v4665, %v4811
    %v5116 = vunpack.c.l.s4 1983009808
    %v5117 = vunpack.c.0.s8 %v5116
    %v5118 = vlaneseq
    %v5119 = vshrl.u32 %v5118, 7
    %v5120 = vsub.s32 %v5117, %v5119
    %v5121 = vrot.slane %v5114, %v5120
    %v5122 = vcombine.low %v4884, %v5030
    %v5124 = vunpack.c.l.s4 1983009808
    %v5125 = vunpack.c.0.s8 %v5124
    %v5126 = vlaneseq
    %v5127 = vshrl.u32 %v5126, 7
    %v5128 = vsub.s32 %v5125, %v5127
    %v5129 = vrot.slane %v5122, %v5128
    %v5130 = vcombine.low %v4957, %v5103
    %v5132 = vunpack.c.l.s4 1983009808
    %v5133 = vunpack.c.0.s8 %v5132
    %v5134 = vlaneseq
    %v5135 = vshrl.u32 %v5134, 7
    %v5136 = vsub.s32 %v5133, %v5135
    %v5137 = vrot.slane %v5130, %v5136
    %v5138 = vcombine.low %v5113, %v5121
    %v5140 = vunpack.c.l.s4 1934713408
    %v5141 = vunpack.c.0.s8 %v5140
    %v5142 = vlaneseq
    %v5143 = vshrl.u32 %v5142, 7
    %v5144 = vsub.s32 %v5141, %v5143
    %v5145 = vrot.slane %v5138, %v5144
    %v5146 = vcombine.low %v5129, %v5137
    %v5148 = vunpack.c.l.s4 1934713408
    %v5149 = vunpack.c.0.s8 %v5148
    %v5150 = vlaneseq
    %v5151 = vshrl.u32 %v5150, 7
    %v5152 = vsub.s32 %v5149, %v5151
    %v5153 = vrot.slane %v5146, %v5152
    %v5154 = vcombine.low %v5145, %v5153
    %v5155 = vcombine.high %v5145, %v5153
    %5157 = vrot.lane.b32.xlu0 %v5155, 16
    %v5158 = vpop.permute.xlu0 %5157
    %v5160 = vsel %vm268, %v5154, %v5158
    %v5162 = vsel %vm123, %v5160, 0
    %5164 = vmatprep.subr.mxu0 0.0
    %5165 = vmatpush1.msra.mxu0 %v103
    %5166 = vmatprep.subr.mxu0 0.0
    %5167 = vmatpush1.msra.mxu0 %v104
    %5168 = vmatprep.subr.mxu0 0.0
    %5169 = vmatpush1.msra.mxu0 %v105
    %5170 = vmatprep.subr.mxu0 0.0
    %5171 = vmatpush1.msra.mxu0 %v106
    %5172 = vmatprep.subr.mxu0 0.0
    %5173 = vmatpush1.msra.mxu0 0.0
    %5174 = vmatprep.subr.mxu0 0.0
    %5175 = vmatpush1.msra.mxu0 0.0
    %5176 = vmatprep.subr.mxu0 0.0
    %5177 = vmatpush1.msra.mxu0 0.0
    %5178 = vmatprep.subr.mxu0 0.0
    %5179 = vmatpush1.msra.mxu0 0.0
    %5180 = vmatprep.subr.mxu0 0.0
    %5181 = vmatpush1.msra.mxu0 0.0
    %5182 = vmatprep.subr.mxu0 0.0
    %5183 = vmatpush1.msra.mxu0 0.0
    %5184 = vmatprep.subr.mxu0 0.0
    %5185 = vmatpush1.msra.mxu0 0.0
    %5186 = vmatprep.subr.mxu0 0.0
    %5187 = vmatpush1.msra.mxu0 0.0
    %5188 = vmatprep.subr.mxu0 0.0
    %5189 = vmatpush1.msra.mxu0 0.0
    %5190 = vmatprep.subr.mxu0 0.0
    %5191 = vmatpush1.msra.mxu0 0.0
    %5192 = vmatprep.subr.mxu0 0.0
    %5193 = vmatpush1.msra.mxu0 0.0
    %5194 = vmatprep.subr.mxu0 0.0
    %5195 = vmatpush1.msra.mxu0 0.0
    %5196 = vmatprep.subr.mxu0 0.0
    %5197 = vmatpush1.msra.mxu0 0.0
    %5198 = vmatprep.subr.mxu0 0.0
    %5199 = vmatpush1.msra.mxu0 0.0
    %5200 = vmatprep.subr.mxu0 0.0
    %5201 = vmatpush1.msra.mxu0 0.0
    %5202 = vmatprep.subr.mxu0 0.0
    %5203 = vmatpush1.msra.mxu0 0.0
    %5204 = vmatprep.subr.mxu0 0.0
    %5205 = vmatpush1.msra.mxu0 0.0
    %5206 = vmatprep.subr.mxu0 0.0
    %5207 = vmatpush1.msra.mxu0 0.0
    %5208 = vmatprep.subr.mxu0 0.0
    %5209 = vmatpush1.msra.mxu0 0.0
    %5210 = vmatprep.subr.mxu0 0.0
    %5211 = vmatpush1.msra.mxu0 0.0
    %5212 = vmatprep.subr.mxu0 0.0
    %5213 = vmatpush1.msra.mxu0 0.0
    %5214 = vmatprep.subr.mxu0 0.0
    %5215 = vmatpush1.msra.mxu0 0.0
    %5216 = vmatprep.subr.mxu0 0.0
    %5217 = vmatpush1.msra.mxu0 0.0
    %5218 = vmatprep.subr.mxu0 0.0
    %5219 = vmatpush1.msra.mxu0 0.0
    %5220 = vmatprep.subr.mxu0 0.0
    %5221 = vmatpush1.msra.mxu0 0.0
    %5222 = vmatprep.subr.mxu0 0.0
    %5223 = vmatpush1.msra.mxu0 0.0
    %5224 = vmatprep.subr.mxu0 0.0
    %5225 = vmatpush1.msra.mxu0 0.0
    %5226 = vmatprep.subr.mxu0 0.0
    %5227 = vmatpush1.msra.mxu0 0.0
    %5228 = vmatprep.mubr.f32.mxu0 0.0
    %5229 = vmatmul.mubr.f32.gmra.mrb[0].mxu0 %v5162
    %v5230 = vpop.f32.mrb[0].mxu0
    %v5231 = vadd.f32 %v1739, %v5230
    %v5232 = vpop.f32.mrb[0].mxu0
    %5233 = vdwg.mxu0
    %v5234 = vtanh.pop %v5231
    %v5236 = vsel %vm268, %v5234, 0
    %5238 = vmatprep.subr.mxu0 0.0
    %5239 = vmatpush1.msra.mxu0 %v108
    %5240 = vmatprep.subr.mxu0 0.0
    %5241 = vmatpush1.msra.mxu0 %v109
    %5242 = vmatprep.subr.mxu0 0.0
    %5243 = vmatpush1.msra.mxu0 0.0
    %5244 = vmatprep.subr.mxu0 0.0
    %5245 = vmatpush1.msra.mxu0 0.0
    %5246 = vmatprep.subr.mxu0 0.0
    %5247 = vmatpush1.msra.mxu0 0.0
    %5248 = vmatprep.subr.mxu0 0.0
    %5249 = vmatpush1.msra.mxu0 0.0
    %5250 = vmatprep.subr.mxu0 0.0
    %5251 = vmatpush1.msra.mxu0 0.0
    %5252 = vmatprep.subr.mxu0 0.0
    %5253 = vmatpush1.msra.mxu0 0.0
    %5254 = vmatprep.subr.mxu0 0.0
    %5255 = vmatpush1.msra.mxu0 0.0
    %5256 = vmatprep.subr.mxu0 0.0
    %5257 = vmatpush1.msra.mxu0 0.0
    %5258 = vmatprep.subr.mxu0 0.0
    %5259 = vmatpush1.msra.mxu0 0.0
    %5260 = vmatprep.subr.mxu0 0.0
    %5261 = vmatpush1.msra.mxu0 0.0
    %5262 = vmatprep.subr.mxu0 0.0
    %5263 = vmatpush1.msra.mxu0 0.0
    %5264 = vmatprep.subr.mxu0 0.0
    %5265 = vmatpush1.msra.mxu0 0.0
    %5266 = vmatprep.subr.mxu0 0.0
    %5267 = vmatpush1.msra.mxu0 0.0
    %5268 = vmatprep.subr.mxu0 0.0
    %5269 = vmatpush1.msra.mxu0 0.0
    %5270 = vmatprep.subr.mxu0 0.0
    %5271 = vmatpush1.msra.mxu0 0.0
    %5272 = vmatprep.subr.mxu0 0.0
    %5273 = vmatpush1.msra.mxu0 0.0
    %5274 = vmatprep.subr.mxu0 0.0
    %5275 = vmatpush1.msra.mxu0 0.0
    %5276 = vmatprep.subr.mxu0 0.0
    %5277 = vmatpush1.msra.mxu0 0.0
    %5278 = vmatprep.subr.mxu0 0.0
    %5279 = vmatpush1.msra.mxu0 0.0
    %5280 = vmatprep.subr.mxu0 0.0
    %5281 = vmatpush1.msra.mxu0 0.0
    %5282 = vmatprep.subr.mxu0 0.0
    %5283 = vmatpush1.msra.mxu0 0.0
    %5284 = vmatprep.subr.mxu0 0.0
    %5285 = vmatpush1.msra.mxu0 0.0
    %5286 = vmatprep.subr.mxu0 0.0
    %5287 = vmatpush1.msra.mxu0 0.0
    %5288 = vmatprep.subr.mxu0 0.0
    %5289 = vmatpush1.msra.mxu0 0.0
    %5290 = vmatprep.subr.mxu0 0.0
    %5291 = vmatpush1.msra.mxu0 0.0
    %5292 = vmatprep.subr.mxu0 0.0
    %5293 = vmatpush1.msra.mxu0 0.0
    %5294 = vmatprep.subr.mxu0 0.0
    %5295 = vmatpush1.msra.mxu0 0.0
    %5296 = vmatprep.subr.mxu0 0.0
    %5297 = vmatpush1.msra.mxu0 0.0
    %5298 = vmatprep.subr.mxu0 0.0
    %5299 = vmatpush1.msra.mxu0 0.0
    %5300 = vmatprep.subr.mxu0 0.0
    %5301 = vmatpush1.msra.mxu0 0.0
    %5302 = vmatprep.mubr.f32.mxu0 0.0
    %5303 = vmatmul.mubr.f32.gmra.mrb[0].mxu0 %v5236
    %v5304 = vpop.f32.mrb[0].mxu0
    %v5305 = vadd.f32 %v3696, %v5304
    %v5306 = vpop.f32.mrb[0].mxu0
    %5307 = vdwg.mxu0
    %v5308 = vxor.u32 %v5305, 2147483648
    %v5309 = vmul.f32 %v5308, 1.442695
    %v5310 = vpow.pop %v5309
    %v5311 = vadd.f32 %v5310, 1.0
    %v5312 = vrcp.pop %v5311
    %v5313 = vmul.f32 1.0, %v5312
    %v5314 = vtanh.pop %v5305
    %v5315 = vmul.f32 %v5313, %v3617
    %5317 = vrot.lane.b32.xlu0 %v5314, 64
    %v5318 = vpop.permute.xlu0 %5317
    %v5320 = vmul.f32 %v5313, %v5318
    %5322 = vrot.lane.b32.xlu0 %v5320, 32
    %v5323 = vpop.permute.xlu0 %5322
    %v5325 = vadd.f32 %v5315, %v5323
    %v5326 = vtanh.pop %v5325
    %5328 = vrot.lane.b32.xlu0 %v5326, 64
    %v5329 = vpop.permute.xlu0 %5328
    %v5331 = vmul.f32 %v5313, %v5329
    %5333 = vrot.lane.b32.xlu0 %v5331, 32
    %v5334 = vpop.permute.xlu0 %5333
    %v5335 = vsel %vm123, %v5334, 0
    %5337 = vmatprep.subr.mxu0 %v95
    %5338 = vmatpush1.msra.mxu0 %v94
    %5339 = vmatprep.subr.mxu0 %v97
    %5340 = vmatpush1.msra.mxu0 %v96
    %5341 = vmatprep.subr.mxu0 %v99
    %5342 = vmatpush1.msra.mxu0 %v98
    %5343 = vmatprep.subr.mxu0 %v101
    %5344 = vmatpush1.msra.mxu0 %v100
    %5345 = vmatprep.subr.mxu0 0.0
    %5346 = vmatpush1.msra.mxu0 0.0
    %5347 = vmatprep.subr.mxu0 0.0
    %5348 = vmatpush1.msra.mxu0 0.0
    %5349 = vmatprep.subr.mxu0 0.0
    %5350 = vmatpush1.msra.mxu0 0.0
    %5351 = vmatprep.subr.mxu0 0.0
    %5352 = vmatpush1.msra.mxu0 0.0
    %5353 = vmatprep.subr.mxu0 0.0
    %5354 = vmatpush1.msra.mxu0 0.0
    %5355 = vmatprep.subr.mxu0 0.0
    %5356 = vmatpush1.msra.mxu0 0.0
    %5357 = vmatprep.subr.mxu0 0.0
    %5358 = vmatpush1.msra.mxu0 0.0
    %5359 = vmatprep.subr.mxu0 0.0
    %5360 = vmatpush1.msra.mxu0 0.0
    %5361 = vmatprep.subr.mxu0 0.0
    %5362 = vmatpush1.msra.mxu0 0.0
    %5363 = vmatprep.subr.mxu0 0.0
    %5364 = vmatpush1.msra.mxu0 0.0
    %5365 = vmatprep.subr.mxu0 0.0
    %5366 = vmatpush1.msra.mxu0 0.0
    %5367 = vmatprep.subr.mxu0 0.0
    %5368 = vmatpush1.msra.mxu0 0.0
    %5369 = vmatprep.subr.mxu0 0.0
    %5370 = vmatpush1.msra.mxu0 0.0
    %5371 = vmatprep.subr.mxu0 0.0
    %5372 = vmatpush1.msra.mxu0 0.0
    %5373 = vmatprep.subr.mxu0 0.0
    %5374 = vmatpush1.msra.mxu0 0.0
    %5375 = vmatprep.subr.mxu0 0.0
    %5376 = vmatpush1.msra.mxu0 0.0
    %5377 = vmatprep.subr.mxu0 0.0
    %5378 = vmatpush1.msra.mxu0 0.0
    %5379 = vmatprep.subr.mxu0 0.0
    %5380 = vmatpush1.msra.mxu0 0.0
    %5381 = vmatprep.subr.mxu0 0.0
    %5382 = vmatpush1.msra.mxu0 0.0
    %5383 = vmatprep.subr.mxu0 0.0
    %5384 = vmatpush1.msra.mxu0 0.0
    %5385 = vmatprep.subr.mxu0 0.0
    %5386 = vmatpush1.msra.mxu0 0.0
    %5387 = vmatprep.subr.mxu0 0.0
    %5388 = vmatpush1.msra.mxu0 0.0
    %5389 = vmatprep.subr.mxu0 0.0
    %5390 = vmatpush1.msra.mxu0 0.0
    %5391 = vmatprep.subr.mxu0 0.0
    %5392 = vmatpush1.msra.mxu0 0.0
    %5393 = vmatprep.subr.mxu0 0.0
    %5394 = vmatpush1.msra.mxu0 0.0
    %5395 = vmatprep.subr.mxu0 0.0
    %5396 = vmatpush1.msra.mxu0 0.0
    %5397 = vmatprep.subr.mxu0 0.0
    %5398 = vmatpush1.msra.mxu0 0.0
    %5399 = vmatprep.subr.mxu0 0.0
    %5400 = vmatpush1.msra.mxu0 0.0
    %5401 = vmatprep.mubr.f32.mxu0 0.0
    %5402 = vmatmul.mubr.f32.gmra.mrb[0].mxu0 %v5335
    %v5403 = vpop.f32.mrb[0].mxu0
    %v5404 = vadd.f32 %v116, %v5403
    %v5405 = vpop.f32.mrb[0].mxu0
    %v5406 = vadd.f32 %v120, %v5405
    %5407 = vdwg.mxu0
    %5409 = vrot.lane.b32.xlu0 %v5406, 112
    %v5410 = vpop.permute.xlu0 %5409
    %v5412 = vcombine.high %v5406, 0.0
    %v5414 = vunpack.c.l.s4 1983009808
    %v5415 = vunpack.c.0.s8 %v5414
    %v5416 = vlaneseq
    %v5417 = vshrl.u32 %v5416, 7
    %v5418 = vsub.s32 %v5415, %v5417
    %v5419 = vrot.slane %v5406, %v5418
    %v5421 = vunpack.c.l.s4 1983009808
    %v5422 = vunpack.c.0.s8 %v5421
    %v5423 = vlaneseq
    %v5424 = vshrl.u32 %v5423, 7
    %v5425 = vsub.s32 %v5422, %v5424
    %v5426 = vrot.slane %v5412, %v5425
    %v5427 = vcombine.high %v5410, 0.0
    %v5429 = vunpack.c.l.s4 1983009808
    %v5430 = vunpack.c.0.s8 %v5429
    %v5431 = vlaneseq
    %v5432 = vshrl.u32 %v5431, 7
    %v5433 = vsub.s32 %v5430, %v5432
    %v5434 = vrot.slane %v5410, %v5433
    %v5436 = vunpack.c.l.s4 1983009808
    %v5437 = vunpack.c.0.s8 %v5436
    %v5438 = vlaneseq
    %v5439 = vshrl.u32 %v5438, 7
    %v5440 = vsub.s32 %v5437, %v5439
    %v5441 = vrot.slane %v5427, %v5440
    %v5442 = vcombine.low %v5419, %v5434
    %v5443 = vcombine.high %v5419, %v5434
    %v5445 = vunpack.c.l.s4 1934713408
    %v5446 = vunpack.c.0.s8 %v5445
    %v5447 = vlaneseq
    %v5448 = vshrl.u32 %v5447, 7
    %v5449 = vsub.s32 %v5446, %v5448
    %v5450 = vrot.slane %v5442, %v5449
    %v5452 = vunpack.c.l.s4 1934713408
    %v5453 = vunpack.c.0.s8 %v5452
    %v5454 = vlaneseq
    %v5455 = vshrl.u32 %v5454, 7
    %v5456 = vsub.s32 %v5453, %v5455
    %v5457 = vrot.slane %v5443, %v5456
    %v5458 = vcombine.low %v5426, %v5441
    %v5459 = vcombine.high %v5426, %v5441
    %v5461 = vunpack.c.l.s4 1934713408
    %v5462 = vunpack.c.0.s8 %v5461
    %v5463 = vlaneseq
    %v5464 = vshrl.u32 %v5463, 7
    %v5465 = vsub.s32 %v5462, %v5464
    %v5466 = vrot.slane %v5458, %v5465
    %v5468 = vunpack.c.l.s4 1934713408
    %v5469 = vunpack.c.0.s8 %v5468
    %v5470 = vlaneseq
    %v5471 = vshrl.u32 %v5470, 7
    %v5472 = vsub.s32 %v5469, %v5471
    %v5473 = vrot.slane %v5459, %v5472
    %v5474 = vcombine.high %v5450, 0.0
    %v5475 = vcombine.high %v5457, 0.0
    %v5476 = vcombine.high %v5466, 0.0
    %v5477 = vcombine.high %v5473, 0.0
    %v5479 = vsel %vm268, %v5450, 0
    %5481 = vmatprep.subr.mxu0 0.0
    %5482 = vmatpush1.xpose.msra.mxu0 %v273
    %5483 = vmatprep.subr.mxu0 0.0
    %5484 = vmatpush1.xpose.msra.mxu0 0.0
    %5485 = vmatprep.subr.mxu0 0.0
    %5486 = vmatpush1.xpose.msra.mxu0 0.0
    %5487 = vmatprep.subr.mxu0 0.0
    %5488 = vmatpush1.xpose.msra.mxu0 0.0
    %5489 = vmatprep.subr.mxu0 0.0
    %5490 = vmatpush1.xpose.msra.mxu0 0.0
    %5491 = vmatprep.subr.mxu0 0.0
    %5492 = vmatpush1.xpose.msra.mxu0 0.0
    %5493 = vmatprep.subr.mxu0 0.0
    %5494 = vmatpush1.xpose.msra.mxu0 0.0
    %5495 = vmatprep.subr.mxu0 0.0
    %5496 = vmatpush1.xpose.msra.mxu0 0.0
    %5497 = vmatprep.subr.mxu0 0.0
    %5498 = vmatpush1.xpose.msra.mxu0 0.0
    %5499 = vmatprep.subr.mxu0 0.0
    %5500 = vmatpush1.xpose.msra.mxu0 0.0
    %5501 = vmatprep.subr.mxu0 0.0
    %5502 = vmatpush1.xpose.msra.mxu0 0.0
    %5503 = vmatprep.subr.mxu0 0.0
    %5504 = vmatpush1.xpose.msra.mxu0 0.0
    %5505 = vmatprep.subr.mxu0 0.0
    %5506 = vmatpush1.xpose.msra.mxu0 0.0
    %5507 = vmatprep.subr.mxu0 0.0
    %5508 = vmatpush1.xpose.msra.mxu0 0.0
    %5509 = vmatprep.subr.mxu0 0.0
    %5510 = vmatpush1.xpose.msra.mxu0 0.0
    %5511 = vmatprep.subr.mxu0 0.0
    %5512 = vmatpush1.xpose.msra.mxu0 0.0
    %5513 = vmatprep.subr.mxu0 0.0
    %5514 = vmatpush1.xpose.msra.mxu0 0.0
    %5515 = vmatprep.subr.mxu0 0.0
    %5516 = vmatpush1.xpose.msra.mxu0 0.0
    %5517 = vmatprep.subr.mxu0 0.0
    %5518 = vmatpush1.xpose.msra.mxu0 0.0
    %5519 = vmatprep.subr.mxu0 0.0
    %5520 = vmatpush1.xpose.msra.mxu0 0.0
    %5521 = vmatprep.subr.mxu0 0.0
    %5522 = vmatpush1.xpose.msra.mxu0 0.0
    %5523 = vmatprep.subr.mxu0 0.0
    %5524 = vmatpush1.xpose.msra.mxu0 0.0
    %5525 = vmatprep.subr.mxu0 0.0
    %5526 = vmatpush1.xpose.msra.mxu0 0.0
    %5527 = vmatprep.subr.mxu0 0.0
    %5528 = vmatpush1.xpose.msra.mxu0 0.0
    %5529 = vmatprep.subr.mxu0 0.0
    %5530 = vmatpush1.xpose.msra.mxu0 0.0
    %5531 = vmatprep.subr.mxu0 0.0
    %5532 = vmatpush1.xpose.msra.mxu0 0.0
    %5533 = vmatprep.subr.mxu0 0.0
    %5534 = vmatpush1.xpose.msra.mxu0 0.0
    %5535 = vmatprep.subr.mxu0 0.0
    %5536 = vmatpush1.xpose.msra.mxu0 0.0
    %5537 = vmatprep.subr.mxu0 0.0
    %5538 = vmatpush1.xpose.msra.mxu0 0.0
    %5539 = vmatprep.subr.mxu0 0.0
    %5540 = vmatpush1.xpose.msra.mxu0 0.0
    %5541 = vmatprep.subr.mxu0 0.0
    %5542 = vmatpush1.xpose.msra.mxu0 0.0
    %5543 = vmatprep.subr.mxu0 0.0
    %5544 = vmatpush1.xpose.msra.mxu0 0.0
    %5545 = vmatprep.mubr.f32.mxu0 0.0
    %5546 = vmatmul.mubr.f32.gmra.mrb[0].mxu0 %v5479
    %v5547 = vpop.f32.mrb[0].mxu0
    %v5548 = vadd.f32 0.0, %v5547
    %v5549 = vpop.f32.mrb[0].mxu0
    %5550 = vdwg.mxu0
    %v5552 = vsel %vm268, %v5474, 0
    %5554 = vmatprep.subr.mxu0 0.0
    %5555 = vmatpush1.xpose.msra.mxu0 %v349
    %5556 = vmatprep.subr.mxu0 0.0
    %5557 = vmatpush1.xpose.msra.mxu0 0.0
    %5558 = vmatprep.subr.mxu0 0.0
    %5559 = vmatpush1.xpose.msra.mxu0 0.0
    %5560 = vmatprep.subr.mxu0 0.0
    %5561 = vmatpush1.xpose.msra.mxu0 0.0
    %5562 = vmatprep.subr.mxu0 0.0
    %5563 = vmatpush1.xpose.msra.mxu0 0.0
    %5564 = vmatprep.subr.mxu0 0.0
    %5565 = vmatpush1.xpose.msra.mxu0 0.0
    %5566 = vmatprep.subr.mxu0 0.0
    %5567 = vmatpush1.xpose.msra.mxu0 0.0
    %5568 = vmatprep.subr.mxu0 0.0
    %5569 = vmatpush1.xpose.msra.mxu0 0.0
    %5570 = vmatprep.subr.mxu0 0.0
    %5571 = vmatpush1.xpose.msra.mxu0 0.0
    %5572 = vmatprep.subr.mxu0 0.0
    %5573 = vmatpush1.xpose.msra.mxu0 0.0
    %5574 = vmatprep.subr.mxu0 0.0
    %5575 = vmatpush1.xpose.msra.mxu0 0.0
    %5576 = vmatprep.subr.mxu0 0.0
    %5577 = vmatpush1.xpose.msra.mxu0 0.0
    %5578 = vmatprep.subr.mxu0 0.0
    %5579 = vmatpush1.xpose.msra.mxu0 0.0
    %5580 = vmatprep.subr.mxu0 0.0
    %5581 = vmatpush1.xpose.msra.mxu0 0.0
    %5582 = vmatprep.subr.mxu0 0.0
    %5583 = vmatpush1.xpose.msra.mxu0 0.0
    %5584 = vmatprep.subr.mxu0 0.0
    %5585 = vmatpush1.xpose.msra.mxu0 0.0
    %5586 = vmatprep.subr.mxu0 0.0
    %5587 = vmatpush1.xpose.msra.mxu0 0.0
    %5588 = vmatprep.subr.mxu0 0.0
    %5589 = vmatpush1.xpose.msra.mxu0 0.0
    %5590 = vmatprep.subr.mxu0 0.0
    %5591 = vmatpush1.xpose.msra.mxu0 0.0
    %5592 = vmatprep.subr.mxu0 0.0
    %5593 = vmatpush1.xpose.msra.mxu0 0.0
    %5594 = vmatprep.subr.mxu0 0.0
    %5595 = vmatpush1.xpose.msra.mxu0 0.0
    %5596 = vmatprep.subr.mxu0 0.0
    %5597 = vmatpush1.xpose.msra.mxu0 0.0
    %5598 = vmatprep.subr.mxu0 0.0
    %5599 = vmatpush1.xpose.msra.mxu0 0.0
    %5600 = vmatprep.subr.mxu0 0.0
    %5601 = vmatpush1.xpose.msra.mxu0 0.0
    %5602 = vmatprep.subr.mxu0 0.0
    %5603 = vmatpush1.xpose.msra.mxu0 0.0
    %5604 = vmatprep.subr.mxu0 0.0
    %5605 = vmatpush1.xpose.msra.mxu0 0.0
    %5606 = vmatprep.subr.mxu0 0.0
    %5607 = vmatpush1.xpose.msra.mxu0 0.0
    %5608 = vmatprep.subr.mxu0 0.0
    %5609 = vmatpush1.xpose.msra.mxu0 0.0
    %5610 = vmatprep.subr.mxu0 0.0
    %5611 = vmatpush1.xpose.msra.mxu0 0.0
    %5612 = vmatprep.subr.mxu0 0.0
    %5613 = vmatpush1.xpose.msra.mxu0 0.0
    %5614 = vmatprep.subr.mxu0 0.0
    %5615 = vmatpush1.xpose.msra.mxu0 0.0
    %5616 = vmatprep.subr.mxu0 0.0
    %5617 = vmatpush1.xpose.msra.mxu0 0.0
    %5618 = vmatprep.mubr.f32.mxu0 0.0
    %5619 = vmatmul.mubr.f32.gmra.mrb[0].mxu0 %v5552
    %v5620 = vpop.f32.mrb[0].mxu0
    %v5621 = vadd.f32 0.0, %v5620
    %v5622 = vpop.f32.mrb[0].mxu0
    %5623 = vdwg.mxu0
    %v5625 = vsel %vm268, %v5457, 0
    %5627 = vmatprep.subr.mxu0 0.0
    %5628 = vmatpush1.xpose.msra.mxu0 %v425
    %5629 = vmatprep.subr.mxu0 0.0
    %5630 = vmatpush1.xpose.msra.mxu0 0.0
    %5631 = vmatprep.subr.mxu0 0.0
    %5632 = vmatpush1.xpose.msra.mxu0 0.0
    %5633 = vmatprep.subr.mxu0 0.0
    %5634 = vmatpush1.xpose.msra.mxu0 0.0
    %5635 = vmatprep.subr.mxu0 0.0
    %5636 = vmatpush1.xpose.msra.mxu0 0.0
    %5637 = vmatprep.subr.mxu0 0.0
    %5638 = vmatpush1.xpose.msra.mxu0 0.0
    %5639 = vmatprep.subr.mxu0 0.0
    %5640 = vmatpush1.xpose.msra.mxu0 0.0
    %5641 = vmatprep.subr.mxu0 0.0
    %5642 = vmatpush1.xpose.msra.mxu0 0.0
    %5643 = vmatprep.subr.mxu0 0.0
    %5644 = vmatpush1.xpose.msra.mxu0 0.0
    %5645 = vmatprep.subr.mxu0 0.0
    %5646 = vmatpush1.xpose.msra.mxu0 0.0
    %5647 = vmatprep.subr.mxu0 0.0
    %5648 = vmatpush1.xpose.msra.mxu0 0.0
    %5649 = vmatprep.subr.mxu0 0.0
    %5650 = vmatpush1.xpose.msra.mxu0 0.0
    %5651 = vmatprep.subr.mxu0 0.0
    %5652 = vmatpush1.xpose.msra.mxu0 0.0
    %5653 = vmatprep.subr.mxu0 0.0
    %5654 = vmatpush1.xpose.msra.mxu0 0.0
    %5655 = vmatprep.subr.mxu0 0.0
    %5656 = vmatpush1.xpose.msra.mxu0 0.0
    %5657 = vmatprep.subr.mxu0 0.0
    %5658 = vmatpush1.xpose.msra.mxu0 0.0
    %5659 = vmatprep.subr.mxu0 0.0
    %5660 = vmatpush1.xpose.msra.mxu0 0.0
    %5661 = vmatprep.subr.mxu0 0.0
    %5662 = vmatpush1.xpose.msra.mxu0 0.0
    %5663 = vmatprep.subr.mxu0 0.0
    %5664 = vmatpush1.xpose.msra.mxu0 0.0
    %5665 = vmatprep.subr.mxu0 0.0
    %5666 = vmatpush1.xpose.msra.mxu0 0.0
    %5667 = vmatprep.subr.mxu0 0.0
    %5668 = vmatpush1.xpose.msra.mxu0 0.0
    %5669 = vmatprep.subr.mxu0 0.0
    %5670 = vmatpush1.xpose.msra.mxu0 0.0
    %5671 = vmatprep.subr.mxu0 0.0
    %5672 = vmatpush1.xpose.msra.mxu0 0.0
    %5673 = vmatprep.subr.mxu0 0.0
    %5674 = vmatpush1.xpose.msra.mxu0 0.0
    %5675 = vmatprep.subr.mxu0 0.0
    %5676 = vmatpush1.xpose.msra.mxu0 0.0
    %5677 = vmatprep.subr.mxu0 0.0
    %5678 = vmatpush1.xpose.msra.mxu0 0.0
    %5679 = vmatprep.subr.mxu0 0.0
    %5680 = vmatpush1.xpose.msra.mxu0 0.0
    %5681 = vmatprep.subr.mxu0 0.0
    %5682 = vmatpush1.xpose.msra.mxu0 0.0
    %5683 = vmatprep.subr.mxu0 0.0
    %5684 = vmatpush1.xpose.msra.mxu0 0.0
    %5685 = vmatprep.subr.mxu0 0.0
    %5686 = vmatpush1.xpose.msra.mxu0 0.0
    %5687 = vmatprep.subr.mxu0 0.0
    %5688 = vmatpush1.xpose.msra.mxu0 0.0
    %5689 = vmatprep.subr.mxu0 0.0
    %5690 = vmatpush1.xpose.msra.mxu0 0.0
    %5691 = vmatprep.mubr.f32.mxu0 0.0
    %5692 = vmatmul.mubr.f32.gmra.mrb[0].mxu0 %v5625
    %v5693 = vpop.f32.mrb[0].mxu0
    %v5694 = vadd.f32 0.0, %v5693
    %v5695 = vpop.f32.mrb[0].mxu0
    %5696 = vdwg.mxu0
    %v5698 = vsel %vm268, %v5475, 0
    %5700 = vmatprep.subr.mxu0 0.0
    %5701 = vmatpush1.xpose.msra.mxu0 %v501
    %5702 = vmatprep.subr.mxu0 0.0
    %5703 = vmatpush1.xpose.msra.mxu0 0.0
    %5704 = vmatprep.subr.mxu0 0.0
    %5705 = vmatpush1.xpose.msra.mxu0 0.0
    %5706 = vmatprep.subr.mxu0 0.0
    %5707 = vmatpush1.xpose.msra.mxu0 0.0
    %5708 = vmatprep.subr.mxu0 0.0
    %5709 = vmatpush1.xpose.msra.mxu0 0.0
    %5710 = vmatprep.subr.mxu0 0.0
    %5711 = vmatpush1.xpose.msra.mxu0 0.0
    %5712 = vmatprep.subr.mxu0 0.0
    %5713 = vmatpush1.xpose.msra.mxu0 0.0
    %5714 = vmatprep.subr.mxu0 0.0
    %5715 = vmatpush1.xpose.msra.mxu0 0.0
    %5716 = vmatprep.subr.mxu0 0.0
    %5717 = vmatpush1.xpose.msra.mxu0 0.0
    %5718 = vmatprep.subr.mxu0 0.0
    %5719 = vmatpush1.xpose.msra.mxu0 0.0
    %5720 = vmatprep.subr.mxu0 0.0
    %5721 = vmatpush1.xpose.msra.mxu0 0.0
    %5722 = vmatprep.subr.mxu0 0.0
    %5723 = vmatpush1.xpose.msra.mxu0 0.0
    %5724 = vmatprep.subr.mxu0 0.0
    %5725 = vmatpush1.xpose.msra.mxu0 0.0
    %5726 = vmatprep.subr.mxu0 0.0
    %5727 = vmatpush1.xpose.msra.mxu0 0.0
    %5728 = vmatprep.subr.mxu0 0.0
    %5729 = vmatpush1.xpose.msra.mxu0 0.0
    %5730 = vmatprep.subr.mxu0 0.0
    %5731 = vmatpush1.xpose.msra.mxu0 0.0
    %5732 = vmatprep.subr.mxu0 0.0
    %5733 = vmatpush1.xpose.msra.mxu0 0.0
    %5734 = vmatprep.subr.mxu0 0.0
    %5735 = vmatpush1.xpose.msra.mxu0 0.0
    %5736 = vmatprep.subr.mxu0 0.0
    %5737 = vmatpush1.xpose.msra.mxu0 0.0
    %5738 = vmatprep.subr.mxu0 0.0
    %5739 = vmatpush1.xpose.msra.mxu0 0.0
    %5740 = vmatprep.subr.mxu0 0.0
    %5741 = vmatpush1.xpose.msra.mxu0 0.0
    %5742 = vmatprep.subr.mxu0 0.0
    %5743 = vmatpush1.xpose.msra.mxu0 0.0
    %5744 = vmatprep.subr.mxu0 0.0
    %5745 = vmatpush1.xpose.msra.mxu0 0.0
    %5746 = vmatprep.subr.mxu0 0.0
    %5747 = vmatpush1.xpose.msra.mxu0 0.0
    %5748 = vmatprep.subr.mxu0 0.0
    %5749 = vmatpush1.xpose.msra.mxu0 0.0
    %5750 = vmatprep.subr.mxu0 0.0
    %5751 = vmatpush1.xpose.msra.mxu0 0.0
    %5752 = vmatprep.subr.mxu0 0.0
    %5753 = vmatpush1.xpose.msra.mxu0 0.0
    %5754 = vmatprep.subr.mxu0 0.0
    %5755 = vmatpush1.xpose.msra.mxu0 0.0
    %5756 = vmatprep.subr.mxu0 0.0
    %5757 = vmatpush1.xpose.msra.mxu0 0.0
    %5758 = vmatprep.subr.mxu0 0.0
    %5759 = vmatpush1.xpose.msra.mxu0 0.0
    %5760 = vmatprep.subr.mxu0 0.0
    %5761 = vmatpush1.xpose.msra.mxu0 0.0
    %5762 = vmatprep.subr.mxu0 0.0
    %5763 = vmatpush1.xpose.msra.mxu0 0.0
    %5764 = vmatprep.mubr.f32.mxu0 0.0
    %5765 = vmatmul.mubr.f32.gmra.mrb[0].mxu0 %v5698
    %v5766 = vpop.f32.mrb[0].mxu0
    %v5767 = vadd.f32 0.0, %v5766
    %v5768 = vpop.f32.mrb[0].mxu0
    %5769 = vdwg.mxu0
    %v5771 = vsel %vm268, %v5466, 0
    %5773 = vmatprep.subr.mxu0 0.0
    %5774 = vmatpush1.xpose.msra.mxu0 %v577
    %5775 = vmatprep.subr.mxu0 0.0
    %5776 = vmatpush1.xpose.msra.mxu0 0.0
    %5777 = vmatprep.subr.mxu0 0.0
    %5778 = vmatpush1.xpose.msra.mxu0 0.0
    %5779 = vmatprep.subr.mxu0 0.0
    %5780 = vmatpush1.xpose.msra.mxu0 0.0
    %5781 = vmatprep.subr.mxu0 0.0
    %5782 = vmatpush1.xpose.msra.mxu0 0.0
    %5783 = vmatprep.subr.mxu0 0.0
    %5784 = vmatpush1.xpose.msra.mxu0 0.0
    %5785 = vmatprep.subr.mxu0 0.0
    %5786 = vmatpush1.xpose.msra.mxu0 0.0
    %5787 = vmatprep.subr.mxu0 0.0
    %5788 = vmatpush1.xpose.msra.mxu0 0.0
    %5789 = vmatprep.subr.mxu0 0.0
    %5790 = vmatpush1.xpose.msra.mxu0 0.0
    %5791 = vmatprep.subr.mxu0 0.0
    %5792 = vmatpush1.xpose.msra.mxu0 0.0
    %5793 = vmatprep.subr.mxu0 0.0
    %5794 = vmatpush1.xpose.msra.mxu0 0.0
    %5795 = vmatprep.subr.mxu0 0.0
    %5796 = vmatpush1.xpose.msra.mxu0 0.0
    %5797 = vmatprep.subr.mxu0 0.0
    %5798 = vmatpush1.xpose.msra.mxu0 0.0
    %5799 = vmatprep.subr.mxu0 0.0
    %5800 = vmatpush1.xpose.msra.mxu0 0.0
    %5801 = vmatprep.subr.mxu0 0.0
    %5802 = vmatpush1.xpose.msra.mxu0 0.0
    %5803 = vmatprep.subr.mxu0 0.0
    %5804 = vmatpush1.xpose.msra.mxu0 0.0
    %5805 = vmatprep.subr.mxu0 0.0
    %5806 = vmatpush1.xpose.msra.mxu0 0.0
    %5807 = vmatprep.subr.mxu0 0.0
    %5808 = vmatpush1.xpose.msra.mxu0 0.0
    %5809 = vmatprep.subr.mxu0 0.0
    %5810 = vmatpush1.xpose.msra.mxu0 0.0
    %5811 = vmatprep.subr.mxu0 0.0
    %5812 = vmatpush1.xpose.msra.mxu0 0.0
    %5813 = vmatprep.subr.mxu0 0.0
    %5814 = vmatpush1.xpose.msra.mxu0 0.0
    %5815 = vmatprep.subr.mxu0 0.0
    %5816 = vmatpush1.xpose.msra.mxu0 0.0
    %5817 = vmatprep.subr.mxu0 0.0
    %5818 = vmatpush1.xpose.msra.mxu0 0.0
    %5819 = vmatprep.subr.mxu0 0.0
    %5820 = vmatpush1.xpose.msra.mxu0 0.0
    %5821 = vmatprep.subr.mxu0 0.0
    %5822 = vmatpush1.xpose.msra.mxu0 0.0
    %5823 = vmatprep.subr.mxu0 0.0
    %5824 = vmatpush1.xpose.msra.mxu0 0.0
    %5825 = vmatprep.subr.mxu0 0.0
    %5826 = vmatpush1.xpose.msra.mxu0 0.0
    %5827 = vmatprep.subr.mxu0 0.0
    %5828 = vmatpush1.xpose.msra.mxu0 0.0
    %5829 = vmatprep.subr.mxu0 0.0
    %5830 = vmatpush1.xpose.msra.mxu0 0.0
    %5831 = vmatprep.subr.mxu0 0.0
    %5832 = vmatpush1.xpose.msra.mxu0 0.0
    %5833 = vmatprep.subr.mxu0 0.0
    %5834 = vmatpush1.xpose.msra.mxu0 0.0
    %5835 = vmatprep.subr.mxu0 0.0
    %5836 = vmatpush1.xpose.msra.mxu0 0.0
    %5837 = vmatprep.mubr.f32.mxu0 0.0
    %5838 = vmatmul.mubr.f32.gmra.mrb[0].mxu0 %v5771
    %v5839 = vpop.f32.mrb[0].mxu0
    %v5840 = vadd.f32 0.0, %v5839
    %v5841 = vpop.f32.mrb[0].mxu0
    %5842 = vdwg.mxu0
    %v5844 = vsel %vm268, %v5476, 0
    %5846 = vmatprep.subr.mxu0 0.0
    %5847 = vmatpush1.xpose.msra.mxu0 %v653
    %5848 = vmatprep.subr.mxu0 0.0
    %5849 = vmatpush1.xpose.msra.mxu0 0.0
    %5850 = vmatprep.subr.mxu0 0.0
    %5851 = vmatpush1.xpose.msra.mxu0 0.0
    %5852 = vmatprep.subr.mxu0 0.0
    %5853 = vmatpush1.xpose.msra.mxu0 0.0
    %5854 = vmatprep.subr.mxu0 0.0
    %5855 = vmatpush1.xpose.msra.mxu0 0.0
    %5856 = vmatprep.subr.mxu0 0.0
    %5857 = vmatpush1.xpose.msra.mxu0 0.0
    %5858 = vmatprep.subr.mxu0 0.0
    %5859 = vmatpush1.xpose.msra.mxu0 0.0
    %5860 = vmatprep.subr.mxu0 0.0
    %5861 = vmatpush1.xpose.msra.mxu0 0.0
    %5862 = vmatprep.subr.mxu0 0.0
    %5863 = vmatpush1.xpose.msra.mxu0 0.0
    %5864 = vmatprep.subr.mxu0 0.0
    %5865 = vmatpush1.xpose.msra.mxu0 0.0
    %5866 = vmatprep.subr.mxu0 0.0
    %5867 = vmatpush1.xpose.msra.mxu0 0.0
    %5868 = vmatprep.subr.mxu0 0.0
    %5869 = vmatpush1.xpose.msra.mxu0 0.0
    %5870 = vmatprep.subr.mxu0 0.0
    %5871 = vmatpush1.xpose.msra.mxu0 0.0
    %5872 = vmatprep.subr.mxu0 0.0
    %5873 = vmatpush1.xpose.msra.mxu0 0.0
    %5874 = vmatprep.subr.mxu0 0.0
    %5875 = vmatpush1.xpose.msra.mxu0 0.0
    %5876 = vmatprep.subr.mxu0 0.0
    %5877 = vmatpush1.xpose.msra.mxu0 0.0
    %5878 = vmatprep.subr.mxu0 0.0
    %5879 = vmatpush1.xpose.msra.mxu0 0.0
    %5880 = vmatprep.subr.mxu0 0.0
    %5881 = vmatpush1.xpose.msra.mxu0 0.0
    %5882 = vmatprep.subr.mxu0 0.0
    %5883 = vmatpush1.xpose.msra.mxu0 0.0
    %5884 = vmatprep.subr.mxu0 0.0
    %5885 = vmatpush1.xpose.msra.mxu0 0.0
    %5886 = vmatprep.subr.mxu0 0.0
    %5887 = vmatpush1.xpose.msra.mxu0 0.0
    %5888 = vmatprep.subr.mxu0 0.0
    %5889 = vmatpush1.xpose.msra.mxu0 0.0
    %5890 = vmatprep.subr.mxu0 0.0
    %5891 = vmatpush1.xpose.msra.mxu0 0.0
    %5892 = vmatprep.subr.mxu0 0.0
    %5893 = vmatpush1.xpose.msra.mxu0 0.0
    %5894 = vmatprep.subr.mxu0 0.0
    %5895 = vmatpush1.xpose.msra.mxu0 0.0
    %5896 = vmatprep.subr.mxu0 0.0
    %5897 = vmatpush1.xpose.msra.mxu0 0.0
    %5898 = vmatprep.subr.mxu0 0.0
    %5899 = vmatpush1.xpose.msra.mxu0 0.0
    %5900 = vmatprep.subr.mxu0 0.0
    %5901 = vmatpush1.xpose.msra.mxu0 0.0
    %5902 = vmatprep.subr.mxu0 0.0
    %5903 = vmatpush1.xpose.msra.mxu0 0.0
    %5904 = vmatprep.subr.mxu0 0.0
    %5905 = vmatpush1.xpose.msra.mxu0 0.0
    %5906 = vmatprep.subr.mxu0 0.0
    %5907 = vmatpush1.xpose.msra.mxu0 0.0
    %5908 = vmatprep.subr.mxu0 0.0
    %5909 = vmatpush1.xpose.msra.mxu0 0.0
    %5910 = vmatprep.mubr.f32.mxu0 0.0
    %5911 = vmatmul.mubr.f32.gmra.mrb[0].mxu0 %v5844
    %v5912 = vpop.f32.mrb[0].mxu0
    %v5913 = vadd.f32 0.0, %v5912
    %v5914 = vpop.f32.mrb[0].mxu0
    %5915 = vdwg.mxu0
    %v5917 = vsel %vm268, %v5473, 0
    %5919 = vmatprep.subr.mxu0 0.0
    %5920 = vmatpush1.xpose.msra.mxu0 %v729
    %5921 = vmatprep.subr.mxu0 0.0
    %5922 = vmatpush1.xpose.msra.mxu0 0.0
    %5923 = vmatprep.subr.mxu0 0.0
    %5924 = vmatpush1.xpose.msra.mxu0 0.0
    %5925 = vmatprep.subr.mxu0 0.0
    %5926 = vmatpush1.xpose.msra.mxu0 0.0
    %5927 = vmatprep.subr.mxu0 0.0
    %5928 = vmatpush1.xpose.msra.mxu0 0.0
    %5929 = vmatprep.subr.mxu0 0.0
    %5930 = vmatpush1.xpose.msra.mxu0 0.0
    %5931 = vmatprep.subr.mxu0 0.0
    %5932 = vmatpush1.xpose.msra.mxu0 0.0
    %5933 = vmatprep.subr.mxu0 0.0
    %5934 = vmatpush1.xpose.msra.mxu0 0.0
    %5935 = vmatprep.subr.mxu0 0.0
    %5936 = vmatpush1.xpose.msra.mxu0 0.0
    %5937 = vmatprep.subr.mxu0 0.0
    %5938 = vmatpush1.xpose.msra.mxu0 0.0
    %5939 = vmatprep.subr.mxu0 0.0
    %5940 = vmatpush1.xpose.msra.mxu0 0.0
    %5941 = vmatprep.subr.mxu0 0.0
    %5942 = vmatpush1.xpose.msra.mxu0 0.0
    %5943 = vmatprep.subr.mxu0 0.0
    %5944 = vmatpush1.xpose.msra.mxu0 0.0
    %5945 = vmatprep.subr.mxu0 0.0
    %5946 = vmatpush1.xpose.msra.mxu0 0.0
    %5947 = vmatprep.subr.mxu0 0.0
    %5948 = vmatpush1.xpose.msra.mxu0 0.0
    %5949 = vmatprep.subr.mxu0 0.0
    %5950 = vmatpush1.xpose.msra.mxu0 0.0
    %5951 = vmatprep.subr.mxu0 0.0
    %5952 = vmatpush1.xpose.msra.mxu0 0.0
    %5953 = vmatprep.subr.mxu0 0.0
    %5954 = vmatpush1.xpose.msra.mxu0 0.0
    %5955 = vmatprep.subr.mxu0 0.0
    %5956 = vmatpush1.xpose.msra.mxu0 0.0
    %5957 = vmatprep.subr.mxu0 0.0
    %5958 = vmatpush1.xpose.msra.mxu0 0.0
    %5959 = vmatprep.subr.mxu0 0.0
    %5960 = vmatpush1.xpose.msra.mxu0 0.0
    %5961 = vmatprep.subr.mxu0 0.0
    %5962 = vmatpush1.xpose.msra.mxu0 0.0
    %5963 = vmatprep.subr.mxu0 0.0
    %5964 = vmatpush1.xpose.msra.mxu0 0.0
    %5965 = vmatprep.subr.mxu0 0.0
    %5966 = vmatpush1.xpose.msra.mxu0 0.0
    %5967 = vmatprep.subr.mxu0 0.0
    %5968 = vmatpush1.xpose.msra.mxu0 0.0
    %5969 = vmatprep.subr.mxu0 0.0
    %5970 = vmatpush1.xpose.msra.mxu0 0.0
    %5971 = vmatprep.subr.mxu0 0.0
    %5972 = vmatpush1.xpose.msra.mxu0 0.0
    %5973 = vmatprep.subr.mxu0 0.0
    %5974 = vmatpush1.xpose.msra.mxu0 0.0
    %5975 = vmatprep.subr.mxu0 0.0
    %5976 = vmatpush1.xpose.msra.mxu0 0.0
    %5977 = vmatprep.subr.mxu0 0.0
    %5978 = vmatpush1.xpose.msra.mxu0 0.0
    %5979 = vmatprep.subr.mxu0 0.0
    %5980 = vmatpush1.xpose.msra.mxu0 0.0
    %5981 = vmatprep.subr.mxu0 0.0
    %5982 = vmatpush1.xpose.msra.mxu0 0.0
    %5983 = vmatprep.mubr.f32.mxu0 0.0
    %5984 = vmatmul.mubr.f32.gmra.mrb[0].mxu0 %v5917
    %v5985 = vpop.f32.mrb[0].mxu0
    %v5986 = vadd.f32 0.0, %v5985
    %v5987 = vpop.f32.mrb[0].mxu0
    %5988 = vdwg.mxu0
    %v5990 = vsel %vm268, %v5477, 0
    %5992 = vmatprep.subr.mxu0 0.0
    %5993 = vmatpush1.xpose.msra.mxu0 %v805
    %5994 = vmatprep.subr.mxu0 0.0
    %5995 = vmatpush1.xpose.msra.mxu0 0.0
    %5996 = vmatprep.subr.mxu0 0.0
    %5997 = vmatpush1.xpose.msra.mxu0 0.0
    %5998 = vmatprep.subr.mxu0 0.0
    %5999 = vmatpush1.xpose.msra.mxu0 0.0
    %6000 = vmatprep.subr.mxu0 0.0
    %6001 = vmatpush1.xpose.msra.mxu0 0.0
    %6002 = vmatprep.subr.mxu0 0.0
    %6003 = vmatpush1.xpose.msra.mxu0 0.0
    %6004 = vmatprep.subr.mxu0 0.0
    %6005 = vmatpush1.xpose.msra.mxu0 0.0
    %6006 = vmatprep.subr.mxu0 0.0
    %6007 = vmatpush1.xpose.msra.mxu0 0.0
    %6008 = vmatprep.subr.mxu0 0.0
    %6009 = vmatpush1.xpose.msra.mxu0 0.0
    %6010 = vmatprep.subr.mxu0 0.0
    %6011 = vmatpush1.xpose.msra.mxu0 0.0
    %6012 = vmatprep.subr.mxu0 0.0
    %6013 = vmatpush1.xpose.msra.mxu0 0.0
    %6014 = vmatprep.subr.mxu0 0.0
    %6015 = vmatpush1.xpose.msra.mxu0 0.0
    %6016 = vmatprep.subr.mxu0 0.0
    %6017 = vmatpush1.xpose.msra.mxu0 0.0
    %6018 = vmatprep.subr.mxu0 0.0
    %6019 = vmatpush1.xpose.msra.mxu0 0.0
    %6020 = vmatprep.subr.mxu0 0.0
    %6021 = vmatpush1.xpose.msra.mxu0 0.0
    %6022 = vmatprep.subr.mxu0 0.0
    %6023 = vmatpush1.xpose.msra.mxu0 0.0
    %6024 = vmatprep.subr.mxu0 0.0
    %6025 = vmatpush1.xpose.msra.mxu0 0.0
    %6026 = vmatprep.subr.mxu0 0.0
    %6027 = vmatpush1.xpose.msra.mxu0 0.0
    %6028 = vmatprep.subr.mxu0 0.0
    %6029 = vmatpush1.xpose.msra.mxu0 0.0
    %6030 = vmatprep.subr.mxu0 0.0
    %6031 = vmatpush1.xpose.msra.mxu0 0.0
    %6032 = vmatprep.subr.mxu0 0.0
    %6033 = vmatpush1.xpose.msra.mxu0 0.0
    %6034 = vmatprep.subr.mxu0 0.0
    %6035 = vmatpush1.xpose.msra.mxu0 0.0
    %6036 = vmatprep.subr.mxu0 0.0
    %6037 = vmatpush1.xpose.msra.mxu0 0.0
    %6038 = vmatprep.subr.mxu0 0.0
    %6039 = vmatpush1.xpose.msra.mxu0 0.0
    %6040 = vmatprep.subr.mxu0 0.0
    %6041 = vmatpush1.xpose.msra.mxu0 0.0
    %6042 = vmatprep.subr.mxu0 0.0
    %6043 = vmatpush1.xpose.msra.mxu0 0.0
    %6044 = vmatprep.subr.mxu0 0.0
    %6045 = vmatpush1.xpose.msra.mxu0 0.0
    %6046 = vmatprep.subr.mxu0 0.0
    %6047 = vmatpush1.xpose.msra.mxu0 0.0
    %6048 = vmatprep.subr.mxu0 0.0
    %6049 = vmatpush1.xpose.msra.mxu0 0.0
    %6050 = vmatprep.subr.mxu0 0.0
    %6051 = vmatpush1.xpose.msra.mxu0 0.0
    %6052 = vmatprep.subr.mxu0 0.0
    %6053 = vmatpush1.xpose.msra.mxu0 0.0
    %6054 = vmatprep.subr.mxu0 0.0
    %6055 = vmatpush1.xpose.msra.mxu0 0.0
    %6056 = vmatprep.mubr.f32.mxu0 0.0
    %6057 = vmatmul.mubr.f32.gmra.mrb[0].mxu0 %v5990
    %v6058 = vpop.f32.mrb[0].mxu0
    %v6059 = vadd.f32 0.0, %v6058
    %v6060 = vpop.f32.mrb[0].mxu0
    %6061 = vdwg.mxu0
    %v6062 = vmul.f32 %v5450, %v5450
    %v6063 = vmul.f32 %v5474, %v5474
    %v6064 = vmul.f32 %v5457, %v5457
    %v6065 = vmul.f32 %v5475, %v5475
    %v6066 = vmul.f32 %v5466, %v5466
    %v6067 = vmul.f32 %v5476, %v5476
    %v6068 = vmul.f32 %v5473, %v5473
    %v6069 = vmul.f32 %v5477, %v5477
    %v6070 = vsel %vm885, %v6062, 0.0
    %6071 = vadd.xlane.f32.xlu0 %v6070
    %v6072 = vpop.xlane.xlu0 %6071
    %v6073 = vsel %vm885, %v6063, 0.0
    %6074 = vadd.xlane.f32.xlu0 %v6073
    %v6075 = vpop.xlane.xlu0 %6074
    %v6076 = vsel %vm885, %v6064, 0.0
    %6077 = vadd.xlane.f32.xlu0 %v6076
    %v6078 = vpop.xlane.xlu0 %6077
    %v6079 = vsel %vm885, %v6065, 0.0
    %6080 = vadd.xlane.f32.xlu0 %v6079
    %v6081 = vpop.xlane.xlu0 %6080
    %v6082 = vsel %vm885, %v6066, 0.0
    %6083 = vadd.xlane.f32.xlu0 %v6082
    %v6084 = vpop.xlane.xlu0 %6083
    %v6085 = vsel %vm885, %v6067, 0.0
    %6086 = vadd.xlane.f32.xlu0 %v6085
    %v6087 = vpop.xlane.xlu0 %6086
    %v6088 = vsel %vm885, %v6068, 0.0
    %6089 = vadd.xlane.f32.xlu0 %v6088
    %v6090 = vpop.xlane.xlu0 %6089
    %v6091 = vsel %vm885, %v6069, 0.0
    %6092 = vadd.xlane.f32.xlu0 %v6091
    %v6093 = vpop.xlane.xlu0 %6092
    %v6094 = vrsqrt.pop %v6072
    %v6095 = vmul.f32 %v6072, %v6094
    %vm6096 = vcmp.eq.f32.partialorder %v6072, inf
    %v6097 = vsel %vm6096, %v6072, %v6095
    %vm6098 = vcmp.eq.f32.partialorder %v6072, 0.0
    %v6099 = vand.u32 %v6072, 2147483648
    %v6100 = vsel %vm6098, %v6099, %v6097
    %v6101 = vrsqrt.pop %v6075
    %v6102 = vmul.f32 %v6075, %v6101
    %vm6103 = vcmp.eq.f32.partialorder %v6075, inf
    %v6104 = vsel %vm6103, %v6075, %v6102
    %vm6105 = vcmp.eq.f32.partialorder %v6075, 0.0
    %v6106 = vand.u32 %v6075, 2147483648
    %v6107 = vsel %vm6105, %v6106, %v6104
    %v6108 = vrsqrt.pop %v6078
    %v6109 = vmul.f32 %v6078, %v6108
    %vm6110 = vcmp.eq.f32.partialorder %v6078, inf
    %v6111 = vsel %vm6110, %v6078, %v6109
    %vm6112 = vcmp.eq.f32.partialorder %v6078, 0.0
    %v6113 = vand.u32 %v6078, 2147483648
    %v6114 = vsel %vm6112, %v6113, %v6111
    %v6115 = vrsqrt.pop %v6081
    %v6116 = vmul.f32 %v6081, %v6115
    %vm6117 = vcmp.eq.f32.partialorder %v6081, inf
    %v6118 = vsel %vm6117, %v6081, %v6116
    %vm6119 = vcmp.eq.f32.partialorder %v6081, 0.0
    %v6120 = vand.u32 %v6081, 2147483648
    %v6121 = vsel %vm6119, %v6120, %v6118
    %v6122 = vrsqrt.pop %v6084
    %v6123 = vmul.f32 %v6084, %v6122
    %vm6124 = vcmp.eq.f32.partialorder %v6084, inf
    %v6125 = vsel %vm6124, %v6084, %v6123
    %vm6126 = vcmp.eq.f32.partialorder %v6084, 0.0
    %v6127 = vand.u32 %v6084, 2147483648
    %v6128 = vsel %vm6126, %v6127, %v6125
    %v6129 = vrsqrt.pop %v6087
    %v6130 = vmul.f32 %v6087, %v6129
    %vm6131 = vcmp.eq.f32.partialorder %v6087, inf
    %v6132 = vsel %vm6131, %v6087, %v6130
    %vm6133 = vcmp.eq.f32.partialorder %v6087, 0.0
    %v6134 = vand.u32 %v6087, 2147483648
    %v6135 = vsel %vm6133, %v6134, %v6132
    %v6136 = vrsqrt.pop %v6090
    %v6137 = vmul.f32 %v6090, %v6136
    %vm6138 = vcmp.eq.f32.partialorder %v6090, inf
    %v6139 = vsel %vm6138, %v6090, %v6137
    %vm6140 = vcmp.eq.f32.partialorder %v6090, 0.0
    %v6141 = vand.u32 %v6090, 2147483648
    %v6142 = vsel %vm6140, %v6141, %v6139
    %v6143 = vrsqrt.pop %v6093
    %v6144 = vmul.f32 %v6093, %v6143
    %vm6145 = vcmp.eq.f32.partialorder %v6093, inf
    %v6146 = vsel %vm6145, %v6093, %v6144
    %vm6147 = vcmp.eq.f32.partialorder %v6093, 0.0
    %v6148 = vand.u32 %v6093, 2147483648
    %v6149 = vsel %vm6147, %v6148, %v6146
    %v6150 = vadd.f32 %v6100, %v977
    %v6151 = vadd.f32 %v6107, %v981
    %v6152 = vadd.f32 %v6114, %v985
    %v6153 = vadd.f32 %v6121, %v989
    %v6154 = vadd.f32 %v6128, %v993
    %v6155 = vadd.f32 %v6135, %v997
    %v6156 = vadd.f32 %v6142, %v1001
    %v6157 = vadd.f32 %v6149, %v1005
    %v6158 = vrcp.pop %v6150
    %v6159 = vmul.f32 %v5548, %v6158
    %v6160 = vrcp.pop %v6151
    %v6161 = vmul.f32 %v5621, %v6160
    %v6162 = vrcp.pop %v6152
    %v6163 = vmul.f32 %v5694, %v6162
    %v6164 = vrcp.pop %v6153
    %v6165 = vmul.f32 %v5767, %v6164
    %v6166 = vrcp.pop %v6154
    %v6167 = vmul.f32 %v5840, %v6166
    %v6168 = vrcp.pop %v6155
    %v6169 = vmul.f32 %v5913, %v6168
    %v6170 = vrcp.pop %v6156
    %v6171 = vmul.f32 %v5986, %v6170
    %v6172 = vrcp.pop %v6157
    %v6173 = vmul.f32 %v6059, %v6172
    %v6174 = vmul.f32 %v6159, %v6159
    %v6175 = vmul.f32 %v6161, %v6161
    %v6176 = vmul.f32 %v6163, %v6163
    %v6177 = vmul.f32 %v6165, %v6165
    %v6178 = vmul.f32 %v6167, %v6167
    %v6179 = vmul.f32 %v6169, %v6169
    %v6180 = vmul.f32 %v6171, %v6171
    %v6181 = vmul.f32 %v6173, %v6173
    %v6182 = vsel %vm1046, %v6174, 0.0
    %6183 = vadd.xlane.f32.xlu0 %v6182
    %v6184 = vpop.xlane.xlu0 %6183
    %v6185 = vsel %vm1046, %v6175, 0.0
    %6186 = vadd.xlane.f32.xlu0 %v6185
    %v6187 = vpop.xlane.xlu0 %6186
    %v6188 = vsel %vm1046, %v6176, 0.0
    %6189 = vadd.xlane.f32.xlu0 %v6188
    %v6190 = vpop.xlane.xlu0 %6189
    %v6191 = vsel %vm1046, %v6177, 0.0
    %6192 = vadd.xlane.f32.xlu0 %v6191
    %v6193 = vpop.xlane.xlu0 %6192
    %v6194 = vsel %vm1046, %v6178, 0.0
    %6195 = vadd.xlane.f32.xlu0 %v6194
    %v6196 = vpop.xlane.xlu0 %6195
    %v6197 = vsel %vm1046, %v6179, 0.0
    %6198 = vadd.xlane.f32.xlu0 %v6197
    %v6199 = vpop.xlane.xlu0 %6198
    %v6200 = vsel %vm1046, %v6180, 0.0
    %6201 = vadd.xlane.f32.xlu0 %v6200
    %v6202 = vpop.xlane.xlu0 %6201
    %v6203 = vsel %vm1046, %v6181, 0.0
    %6204 = vadd.xlane.f32.xlu0 %v6203
    %v6205 = vpop.xlane.xlu0 %6204
    %v6206 = vmax.f32 %v6184, 1e-24
    %v6207 = vmax.f32 %v6187, 1e-24
    %v6208 = vmax.f32 %v6190, 1e-24
    %v6209 = vmax.f32 %v6193, 1e-24
    %v6210 = vmax.f32 %v6196, 1e-24
    %v6211 = vmax.f32 %v6199, 1e-24
    %v6212 = vmax.f32 %v6202, 1e-24
    %v6213 = vmax.f32 %v6205, 1e-24
    %v6214 = vrsqrt.pop %v6206
    %v6215 = vrsqrt.pop %v6207
    %v6216 = vrsqrt.pop %v6208
    %v6217 = vrsqrt.pop %v6209
    %v6218 = vrsqrt.pop %v6210
    %v6219 = vrsqrt.pop %v6211
    %v6220 = vrsqrt.pop %v6212
    %v6221 = vrsqrt.pop %v6213
    %v6222 = vmul.f32 %v6159, %v6214
    %v6223 = vmul.f32 %v6161, %v6215
    %v6224 = vmul.f32 %v6163, %v6216
    %v6225 = vmul.f32 %v6165, %v6217
    %v6226 = vmul.f32 %v6167, %v6218
    %v6227 = vmul.f32 %v6169, %v6219
    %v6228 = vmul.f32 %v6171, %v6220
    %v6229 = vmul.f32 %v6173, %v6221
    %v6231 = vsel %vm1095, %v6222, 0
    %6233 = vmatprep.subr.mxu0 0.0
    %6234 = vmatpush1.msra.mxu0 %v70
    %6235 = vmatprep.subr.mxu0 0.0
    %6236 = vmatpush1.msra.mxu0 0.0
    %6237 = vmatprep.subr.mxu0 0.0
    %6238 = vmatpush1.msra.mxu0 0.0
    %6239 = vmatprep.subr.mxu0 0.0
    %6240 = vmatpush1.msra.mxu0 0.0
    %6241 = vmatprep.subr.mxu0 0.0
    %6242 = vmatpush1.msra.mxu0 0.0
    %6243 = vmatprep.subr.mxu0 0.0
    %6244 = vmatpush1.msra.mxu0 0.0
    %6245 = vmatprep.subr.mxu0 0.0
    %6246 = vmatpush1.msra.mxu0 0.0
    %6247 = vmatprep.subr.mxu0 0.0
    %6248 = vmatpush1.msra.mxu0 0.0
    %6249 = vmatprep.subr.mxu0 0.0
    %6250 = vmatpush1.msra.mxu0 0.0
    %6251 = vmatprep.subr.mxu0 0.0
    %6252 = vmatpush1.msra.mxu0 0.0
    %6253 = vmatprep.subr.mxu0 0.0
    %6254 = vmatpush1.msra.mxu0 0.0
    %6255 = vmatprep.subr.mxu0 0.0
    %6256 = vmatpush1.msra.mxu0 0.0
    %6257 = vmatprep.subr.mxu0 0.0
    %6258 = vmatpush1.msra.mxu0 0.0
    %6259 = vmatprep.subr.mxu0 0.0
    %6260 = vmatpush1.msra.mxu0 0.0
    %6261 = vmatprep.subr.mxu0 0.0
    %6262 = vmatpush1.msra.mxu0 0.0
    %6263 = vmatprep.subr.mxu0 0.0
    %6264 = vmatpush1.msra.mxu0 0.0
    %6265 = vmatprep.subr.mxu0 0.0
    %6266 = vmatpush1.msra.mxu0 0.0
    %6267 = vmatprep.subr.mxu0 0.0
    %6268 = vmatpush1.msra.mxu0 0.0
    %6269 = vmatprep.subr.mxu0 0.0
    %6270 = vmatpush1.msra.mxu0 0.0
    %6271 = vmatprep.subr.mxu0 0.0
    %6272 = vmatpush1.msra.mxu0 0.0
    %6273 = vmatprep.subr.mxu0 0.0
    %6274 = vmatpush1.msra.mxu0 0.0
    %6275 = vmatprep.subr.mxu0 0.0
    %6276 = vmatpush1.msra.mxu0 0.0
    %6277 = vmatprep.subr.mxu0 0.0
    %6278 = vmatpush1.msra.mxu0 0.0
    %6279 = vmatprep.subr.mxu0 0.0
    %6280 = vmatpush1.msra.mxu0 0.0
    %6281 = vmatprep.subr.mxu0 0.0
    %6282 = vmatpush1.msra.mxu0 0.0
    %6283 = vmatprep.subr.mxu0 0.0
    %6284 = vmatpush1.msra.mxu0 0.0
    %6285 = vmatprep.subr.mxu0 0.0
    %6286 = vmatpush1.msra.mxu0 0.0
    %6287 = vmatprep.subr.mxu0 0.0
    %6288 = vmatpush1.msra.mxu0 0.0
    %6289 = vmatprep.subr.mxu0 0.0
    %6290 = vmatpush1.msra.mxu0 0.0
    %6291 = vmatprep.subr.mxu0 0.0
    %6292 = vmatpush1.msra.mxu0 0.0
    %6293 = vmatprep.subr.mxu0 0.0
    %6294 = vmatpush1.msra.mxu0 0.0
    %6295 = vmatprep.subr.mxu0 0.0
    %6296 = vmatpush1.msra.mxu0 0.0
    %6297 = vmatprep.mubr.f32.mxu0 0.0
    %6298 = vmatmul.mubr.f32.gmra.mrb[0].mxu0 %v6231
    %v6299 = vpop.f32.mrb[0].mxu0
    %v6300 = vadd.f32 0.0, %v6299
    %v6301 = vpop.f32.mrb[0].mxu0
    %6302 = vdwg.mxu0
    %v6304 = vsel %vm1095, %v6223, 0
    %6306 = vmatprep.subr.mxu0 0.0
    %6307 = vmatpush1.msra.mxu0 %v71
    %6308 = vmatprep.subr.mxu0 0.0
    %6309 = vmatpush1.msra.mxu0 0.0
    %6310 = vmatprep.subr.mxu0 0.0
    %6311 = vmatpush1.msra.mxu0 0.0
    %6312 = vmatprep.subr.mxu0 0.0
    %6313 = vmatpush1.msra.mxu0 0.0
    %6314 = vmatprep.subr.mxu0 0.0
    %6315 = vmatpush1.msra.mxu0 0.0
    %6316 = vmatprep.subr.mxu0 0.0
    %6317 = vmatpush1.msra.mxu0 0.0
    %6318 = vmatprep.subr.mxu0 0.0
    %6319 = vmatpush1.msra.mxu0 0.0
    %6320 = vmatprep.subr.mxu0 0.0
    %6321 = vmatpush1.msra.mxu0 0.0
    %6322 = vmatprep.subr.mxu0 0.0
    %6323 = vmatpush1.msra.mxu0 0.0
    %6324 = vmatprep.subr.mxu0 0.0
    %6325 = vmatpush1.msra.mxu0 0.0
    %6326 = vmatprep.subr.mxu0 0.0
    %6327 = vmatpush1.msra.mxu0 0.0
    %6328 = vmatprep.subr.mxu0 0.0
    %6329 = vmatpush1.msra.mxu0 0.0
    %6330 = vmatprep.subr.mxu0 0.0
    %6331 = vmatpush1.msra.mxu0 0.0
    %6332 = vmatprep.subr.mxu0 0.0
    %6333 = vmatpush1.msra.mxu0 0.0
    %6334 = vmatprep.subr.mxu0 0.0
    %6335 = vmatpush1.msra.mxu0 0.0
    %6336 = vmatprep.subr.mxu0 0.0
    %6337 = vmatpush1.msra.mxu0 0.0
    %6338 = vmatprep.subr.mxu0 0.0
    %6339 = vmatpush1.msra.mxu0 0.0
    %6340 = vmatprep.subr.mxu0 0.0
    %6341 = vmatpush1.msra.mxu0 0.0
    %6342 = vmatprep.subr.mxu0 0.0
    %6343 = vmatpush1.msra.mxu0 0.0
    %6344 = vmatprep.subr.mxu0 0.0
    %6345 = vmatpush1.msra.mxu0 0.0
    %6346 = vmatprep.subr.mxu0 0.0
    %6347 = vmatpush1.msra.mxu0 0.0
    %6348 = vmatprep.subr.mxu0 0.0
    %6349 = vmatpush1.msra.mxu0 0.0
    %6350 = vmatprep.subr.mxu0 0.0
    %6351 = vmatpush1.msra.mxu0 0.0
    %6352 = vmatprep.subr.mxu0 0.0
    %6353 = vmatpush1.msra.mxu0 0.0
    %6354 = vmatprep.subr.mxu0 0.0
    %6355 = vmatpush1.msra.mxu0 0.0
    %6356 = vmatprep.subr.mxu0 0.0
    %6357 = vmatpush1.msra.mxu0 0.0
    %6358 = vmatprep.subr.mxu0 0.0
    %6359 = vmatpush1.msra.mxu0 0.0
    %6360 = vmatprep.subr.mxu0 0.0
    %6361 = vmatpush1.msra.mxu0 0.0
    %6362 = vmatprep.subr.mxu0 0.0
    %6363 = vmatpush1.msra.mxu0 0.0
    %6364 = vmatprep.subr.mxu0 0.0
    %6365 = vmatpush1.msra.mxu0 0.0
    %6366 = vmatprep.subr.mxu0 0.0
    %6367 = vmatpush1.msra.mxu0 0.0
    %6368 = vmatprep.subr.mxu0 0.0
    %6369 = vmatpush1.msra.mxu0 0.0
    %6370 = vmatprep.mubr.f32.mxu0 0.0
    %6371 = vmatmul.mubr.f32.gmra.mrb[0].mxu0 %v6304
    %v6372 = vpop.f32.mrb[0].mxu0
    %v6373 = vadd.f32 0.0, %v6372
    %v6374 = vpop.f32.mrb[0].mxu0
    %6375 = vdwg.mxu0
    %v6377 = vsel %vm1095, %v6224, 0
    %6379 = vmatprep.subr.mxu0 0.0
    %6380 = vmatpush1.msra.mxu0 %v72
    %6381 = vmatprep.subr.mxu0 0.0
    %6382 = vmatpush1.msra.mxu0 0.0
    %6383 = vmatprep.subr.mxu0 0.0
    %6384 = vmatpush1.msra.mxu0 0.0
    %6385 = vmatprep.subr.mxu0 0.0
    %6386 = vmatpush1.msra.mxu0 0.0
    %6387 = vmatprep.subr.mxu0 0.0
    %6388 = vmatpush1.msra.mxu0 0.0
    %6389 = vmatprep.subr.mxu0 0.0
    %6390 = vmatpush1.msra.mxu0 0.0
    %6391 = vmatprep.subr.mxu0 0.0
    %6392 = vmatpush1.msra.mxu0 0.0
    %6393 = vmatprep.subr.mxu0 0.0
    %6394 = vmatpush1.msra.mxu0 0.0
    %6395 = vmatprep.subr.mxu0 0.0
    %6396 = vmatpush1.msra.mxu0 0.0
    %6397 = vmatprep.subr.mxu0 0.0
    %6398 = vmatpush1.msra.mxu0 0.0
    %6399 = vmatprep.subr.mxu0 0.0
    %6400 = vmatpush1.msra.mxu0 0.0
    %6401 = vmatprep.subr.mxu0 0.0
    %6402 = vmatpush1.msra.mxu0 0.0
    %6403 = vmatprep.subr.mxu0 0.0
    %6404 = vmatpush1.msra.mxu0 0.0
    %6405 = vmatprep.subr.mxu0 0.0
    %6406 = vmatpush1.msra.mxu0 0.0
    %6407 = vmatprep.subr.mxu0 0.0
    %6408 = vmatpush1.msra.mxu0 0.0
    %6409 = vmatprep.subr.mxu0 0.0
    %6410 = vmatpush1.msra.mxu0 0.0
    %6411 = vmatprep.subr.mxu0 0.0
    %6412 = vmatpush1.msra.mxu0 0.0
    %6413 = vmatprep.subr.mxu0 0.0
    %6414 = vmatpush1.msra.mxu0 0.0
    %6415 = vmatprep.subr.mxu0 0.0
    %6416 = vmatpush1.msra.mxu0 0.0
    %6417 = vmatprep.subr.mxu0 0.0
    %6418 = vmatpush1.msra.mxu0 0.0
    %6419 = vmatprep.subr.mxu0 0.0
    %6420 = vmatpush1.msra.mxu0 0.0
    %6421 = vmatprep.subr.mxu0 0.0
    %6422 = vmatpush1.msra.mxu0 0.0
    %6423 = vmatprep.subr.mxu0 0.0
    %6424 = vmatpush1.msra.mxu0 0.0
    %6425 = vmatprep.subr.mxu0 0.0
    %6426 = vmatpush1.msra.mxu0 0.0
    %6427 = vmatprep.subr.mxu0 0.0
    %6428 = vmatpush1.msra.mxu0 0.0
    %6429 = vmatprep.subr.mxu0 0.0
    %6430 = vmatpush1.msra.mxu0 0.0
    %6431 = vmatprep.subr.mxu0 0.0
    %6432 = vmatpush1.msra.mxu0 0.0
    %6433 = vmatprep.subr.mxu0 0.0
    %6434 = vmatpush1.msra.mxu0 0.0
    %6435 = vmatprep.subr.mxu0 0.0
    %6436 = vmatpush1.msra.mxu0 0.0
    %6437 = vmatprep.subr.mxu0 0.0
    %6438 = vmatpush1.msra.mxu0 0.0
    %6439 = vmatprep.subr.mxu0 0.0
    %6440 = vmatpush1.msra.mxu0 0.0
    %6441 = vmatprep.subr.mxu0 0.0
    %6442 = vmatpush1.msra.mxu0 0.0
    %6443 = vmatprep.mubr.f32.mxu0 0.0
    %6444 = vmatmul.mubr.f32.gmra.mrb[0].mxu0 %v6377
    %v6445 = vpop.f32.mrb[0].mxu0
    %v6446 = vadd.f32 0.0, %v6445
    %v6447 = vpop.f32.mrb[0].mxu0
    %6448 = vdwg.mxu0
    %v6450 = vsel %vm1095, %v6225, 0
    %6452 = vmatprep.subr.mxu0 0.0
    %6453 = vmatpush1.msra.mxu0 %v73
    %6454 = vmatprep.subr.mxu0 0.0
    %6455 = vmatpush1.msra.mxu0 0.0
    %6456 = vmatprep.subr.mxu0 0.0
    %6457 = vmatpush1.msra.mxu0 0.0
    %6458 = vmatprep.subr.mxu0 0.0
    %6459 = vmatpush1.msra.mxu0 0.0
    %6460 = vmatprep.subr.mxu0 0.0
    %6461 = vmatpush1.msra.mxu0 0.0
    %6462 = vmatprep.subr.mxu0 0.0
    %6463 = vmatpush1.msra.mxu0 0.0
    %6464 = vmatprep.subr.mxu0 0.0
    %6465 = vmatpush1.msra.mxu0 0.0
    %6466 = vmatprep.subr.mxu0 0.0
    %6467 = vmatpush1.msra.mxu0 0.0
    %6468 = vmatprep.subr.mxu0 0.0
    %6469 = vmatpush1.msra.mxu0 0.0
    %6470 = vmatprep.subr.mxu0 0.0
    %6471 = vmatpush1.msra.mxu0 0.0
    %6472 = vmatprep.subr.mxu0 0.0
    %6473 = vmatpush1.msra.mxu0 0.0
    %6474 = vmatprep.subr.mxu0 0.0
    %6475 = vmatpush1.msra.mxu0 0.0
    %6476 = vmatprep.subr.mxu0 0.0
    %6477 = vmatpush1.msra.mxu0 0.0
    %6478 = vmatprep.subr.mxu0 0.0
    %6479 = vmatpush1.msra.mxu0 0.0
    %6480 = vmatprep.subr.mxu0 0.0
    %6481 = vmatpush1.msra.mxu0 0.0
    %6482 = vmatprep.subr.mxu0 0.0
    %6483 = vmatpush1.msra.mxu0 0.0
    %6484 = vmatprep.subr.mxu0 0.0
    %6485 = vmatpush1.msra.mxu0 0.0
    %6486 = vmatprep.subr.mxu0 0.0
    %6487 = vmatpush1.msra.mxu0 0.0
    %6488 = vmatprep.subr.mxu0 0.0
    %6489 = vmatpush1.msra.mxu0 0.0
    %6490 = vmatprep.subr.mxu0 0.0
    %6491 = vmatpush1.msra.mxu0 0.0
    %6492 = vmatprep.subr.mxu0 0.0
    %6493 = vmatpush1.msra.mxu0 0.0
    %6494 = vmatprep.subr.mxu0 0.0
    %6495 = vmatpush1.msra.mxu0 0.0
    %6496 = vmatprep.subr.mxu0 0.0
    %6497 = vmatpush1.msra.mxu0 0.0
    %6498 = vmatprep.subr.mxu0 0.0
    %6499 = vmatpush1.msra.mxu0 0.0
    %6500 = vmatprep.subr.mxu0 0.0
    %6501 = vmatpush1.msra.mxu0 0.0
    %6502 = vmatprep.subr.mxu0 0.0
    %6503 = vmatpush1.msra.mxu0 0.0
    %6504 = vmatprep.subr.mxu0 0.0
    %6505 = vmatpush1.msra.mxu0 0.0
    %6506 = vmatprep.subr.mxu0 0.0
    %6507 = vmatpush1.msra.mxu0 0.0
    %6508 = vmatprep.subr.mxu0 0.0
    %6509 = vmatpush1.msra.mxu0 0.0
    %6510 = vmatprep.subr.mxu0 0.0
    %6511 = vmatpush1.msra.mxu0 0.0
    %6512 = vmatprep.subr.mxu0 0.0
    %6513 = vmatpush1.msra.mxu0 0.0
    %6514 = vmatprep.subr.mxu0 0.0
    %6515 = vmatpush1.msra.mxu0 0.0
    %6516 = vmatprep.mubr.f32.mxu0 0.0
    %6517 = vmatmul.mubr.f32.gmra.mrb[0].mxu0 %v6450
    %v6518 = vpop.f32.mrb[0].mxu0
    %v6519 = vadd.f32 0.0, %v6518
    %v6520 = vpop.f32.mrb[0].mxu0
    %6521 = vdwg.mxu0
    %v6523 = vsel %vm1095, %v6226, 0
    %6525 = vmatprep.subr.mxu0 0.0
    %6526 = vmatpush1.msra.mxu0 %v74
    %6527 = vmatprep.subr.mxu0 0.0
    %6528 = vmatpush1.msra.mxu0 0.0
    %6529 = vmatprep.subr.mxu0 0.0
    %6530 = vmatpush1.msra.mxu0 0.0
    %6531 = vmatprep.subr.mxu0 0.0
    %6532 = vmatpush1.msra.mxu0 0.0
    %6533 = vmatprep.subr.mxu0 0.0
    %6534 = vmatpush1.msra.mxu0 0.0
    %6535 = vmatprep.subr.mxu0 0.0
    %6536 = vmatpush1.msra.mxu0 0.0
    %6537 = vmatprep.subr.mxu0 0.0
    %6538 = vmatpush1.msra.mxu0 0.0
    %6539 = vmatprep.subr.mxu0 0.0
    %6540 = vmatpush1.msra.mxu0 0.0
    %6541 = vmatprep.subr.mxu0 0.0
    %6542 = vmatpush1.msra.mxu0 0.0
    %6543 = vmatprep.subr.mxu0 0.0
    %6544 = vmatpush1.msra.mxu0 0.0
    %6545 = vmatprep.subr.mxu0 0.0
    %6546 = vmatpush1.msra.mxu0 0.0
    %6547 = vmatprep.subr.mxu0 0.0
    %6548 = vmatpush1.msra.mxu0 0.0
    %6549 = vmatprep.subr.mxu0 0.0
    %6550 = vmatpush1.msra.mxu0 0.0
    %6551 = vmatprep.subr.mxu0 0.0
    %6552 = vmatpush1.msra.mxu0 0.0
    %6553 = vmatprep.subr.mxu0 0.0
    %6554 = vmatpush1.msra.mxu0 0.0
    %6555 = vmatprep.subr.mxu0 0.0
    %6556 = vmatpush1.msra.mxu0 0.0
    %6557 = vmatprep.subr.mxu0 0.0
    %6558 = vmatpush1.msra.mxu0 0.0
    %6559 = vmatprep.subr.mxu0 0.0
    %6560 = vmatpush1.msra.mxu0 0.0
    %6561 = vmatprep.subr.mxu0 0.0
    %6562 = vmatpush1.msra.mxu0 0.0
    %6563 = vmatprep.subr.mxu0 0.0
    %6564 = vmatpush1.msra.mxu0 0.0
    %6565 = vmatprep.subr.mxu0 0.0
    %6566 = vmatpush1.msra.mxu0 0.0
    %6567 = vmatprep.subr.mxu0 0.0
    %6568 = vmatpush1.msra.mxu0 0.0
    %6569 = vmatprep.subr.mxu0 0.0
    %6570 = vmatpush1.msra.mxu0 0.0
    %6571 = vmatprep.subr.mxu0 0.0
    %6572 = vmatpush1.msra.mxu0 0.0
    %6573 = vmatprep.subr.mxu0 0.0
    %6574 = vmatpush1.msra.mxu0 0.0
    %6575 = vmatprep.subr.mxu0 0.0
    %6576 = vmatpush1.msra.mxu0 0.0
    %6577 = vmatprep.subr.mxu0 0.0
    %6578 = vmatpush1.msra.mxu0 0.0
    %6579 = vmatprep.subr.mxu0 0.0
    %6580 = vmatpush1.msra.mxu0 0.0
    %6581 = vmatprep.subr.mxu0 0.0
    %6582 = vmatpush1.msra.mxu0 0.0
    %6583 = vmatprep.subr.mxu0 0.0
    %6584 = vmatpush1.msra.mxu0 0.0
    %6585 = vmatprep.subr.mxu0 0.0
    %6586 = vmatpush1.msra.mxu0 0.0
    %6587 = vmatprep.subr.mxu0 0.0
    %6588 = vmatpush1.msra.mxu0 0.0
    %6589 = vmatprep.mubr.f32.mxu0 0.0
    %6590 = vmatmul.mubr.f32.gmra.mrb[0].mxu0 %v6523
    %v6591 = vpop.f32.mrb[0].mxu0
    %v6592 = vadd.f32 0.0, %v6591
    %v6593 = vpop.f32.mrb[0].mxu0
    %6594 = vdwg.mxu0
    %v6596 = vsel %vm1095, %v6227, 0
    %6598 = vmatprep.subr.mxu0 0.0
    %6599 = vmatpush1.msra.mxu0 %v75
    %6600 = vmatprep.subr.mxu0 0.0
    %6601 = vmatpush1.msra.mxu0 0.0
    %6602 = vmatprep.subr.mxu0 0.0
    %6603 = vmatpush1.msra.mxu0 0.0
    %6604 = vmatprep.subr.mxu0 0.0
    %6605 = vmatpush1.msra.mxu0 0.0
    %6606 = vmatprep.subr.mxu0 0.0
    %6607 = vmatpush1.msra.mxu0 0.0
    %6608 = vmatprep.subr.mxu0 0.0
    %6609 = vmatpush1.msra.mxu0 0.0
    %6610 = vmatprep.subr.mxu0 0.0
    %6611 = vmatpush1.msra.mxu0 0.0
    %6612 = vmatprep.subr.mxu0 0.0
    %6613 = vmatpush1.msra.mxu0 0.0
    %6614 = vmatprep.subr.mxu0 0.0
    %6615 = vmatpush1.msra.mxu0 0.0
    %6616 = vmatprep.subr.mxu0 0.0
    %6617 = vmatpush1.msra.mxu0 0.0
    %6618 = vmatprep.subr.mxu0 0.0
    %6619 = vmatpush1.msra.mxu0 0.0
    %6620 = vmatprep.subr.mxu0 0.0
    %6621 = vmatpush1.msra.mxu0 0.0
    %6622 = vmatprep.subr.mxu0 0.0
    %6623 = vmatpush1.msra.mxu0 0.0
    %6624 = vmatprep.subr.mxu0 0.0
    %6625 = vmatpush1.msra.mxu0 0.0
    %6626 = vmatprep.subr.mxu0 0.0
    %6627 = vmatpush1.msra.mxu0 0.0
    %6628 = vmatprep.subr.mxu0 0.0
    %6629 = vmatpush1.msra.mxu0 0.0
    %6630 = vmatprep.subr.mxu0 0.0
    %6631 = vmatpush1.msra.mxu0 0.0
    %6632 = vmatprep.subr.mxu0 0.0
    %6633 = vmatpush1.msra.mxu0 0.0
    %6634 = vmatprep.subr.mxu0 0.0
    %6635 = vmatpush1.msra.mxu0 0.0
    %6636 = vmatprep.subr.mxu0 0.0
    %6637 = vmatpush1.msra.mxu0 0.0
    %6638 = vmatprep.subr.mxu0 0.0
    %6639 = vmatpush1.msra.mxu0 0.0
    %6640 = vmatprep.subr.mxu0 0.0
    %6641 = vmatpush1.msra.mxu0 0.0
    %6642 = vmatprep.subr.mxu0 0.0
    %6643 = vmatpush1.msra.mxu0 0.0
    %6644 = vmatprep.subr.mxu0 0.0
    %6645 = vmatpush1.msra.mxu0 0.0
    %6646 = vmatprep.subr.mxu0 0.0
    %6647 = vmatpush1.msra.mxu0 0.0
    %6648 = vmatprep.subr.mxu0 0.0
    %6649 = vmatpush1.msra.mxu0 0.0
    %6650 = vmatprep.subr.mxu0 0.0
    %6651 = vmatpush1.msra.mxu0 0.0
    %6652 = vmatprep.subr.mxu0 0.0
    %6653 = vmatpush1.msra.mxu0 0.0
    %6654 = vmatprep.subr.mxu0 0.0
    %6655 = vmatpush1.msra.mxu0 0.0
    %6656 = vmatprep.subr.mxu0 0.0
    %6657 = vmatpush1.msra.mxu0 0.0
    %6658 = vmatprep.subr.mxu0 0.0
    %6659 = vmatpush1.msra.mxu0 0.0
    %6660 = vmatprep.subr.mxu0 0.0
    %6661 = vmatpush1.msra.mxu0 0.0
    %6662 = vmatprep.mubr.f32.mxu0 0.0
    %6663 = vmatmul.mubr.f32.gmra.mrb[0].mxu0 %v6596
    %v6664 = vpop.f32.mrb[0].mxu0
    %v6665 = vadd.f32 0.0, %v6664
    %v6666 = vpop.f32.mrb[0].mxu0
    %6667 = vdwg.mxu0
    %v6669 = vsel %vm1095, %v6228, 0
    %6671 = vmatprep.subr.mxu0 0.0
    %6672 = vmatpush1.msra.mxu0 %v76
    %6673 = vmatprep.subr.mxu0 0.0
    %6674 = vmatpush1.msra.mxu0 0.0
    %6675 = vmatprep.subr.mxu0 0.0
    %6676 = vmatpush1.msra.mxu0 0.0
    %6677 = vmatprep.subr.mxu0 0.0
    %6678 = vmatpush1.msra.mxu0 0.0
    %6679 = vmatprep.subr.mxu0 0.0
    %6680 = vmatpush1.msra.mxu0 0.0
    %6681 = vmatprep.subr.mxu0 0.0
    %6682 = vmatpush1.msra.mxu0 0.0
    %6683 = vmatprep.subr.mxu0 0.0
    %6684 = vmatpush1.msra.mxu0 0.0
    %6685 = vmatprep.subr.mxu0 0.0
    %6686 = vmatpush1.msra.mxu0 0.0
    %6687 = vmatprep.subr.mxu0 0.0
    %6688 = vmatpush1.msra.mxu0 0.0
    %6689 = vmatprep.subr.mxu0 0.0
    %6690 = vmatpush1.msra.mxu0 0.0
    %6691 = vmatprep.subr.mxu0 0.0
    %6692 = vmatpush1.msra.mxu0 0.0
    %6693 = vmatprep.subr.mxu0 0.0
    %6694 = vmatpush1.msra.mxu0 0.0
    %6695 = vmatprep.subr.mxu0 0.0
    %6696 = vmatpush1.msra.mxu0 0.0
    %6697 = vmatprep.subr.mxu0 0.0
    %6698 = vmatpush1.msra.mxu0 0.0
    %6699 = vmatprep.subr.mxu0 0.0
    %6700 = vmatpush1.msra.mxu0 0.0
    %6701 = vmatprep.subr.mxu0 0.0
    %6702 = vmatpush1.msra.mxu0 0.0
    %6703 = vmatprep.subr.mxu0 0.0
    %6704 = vmatpush1.msra.mxu0 0.0
    %6705 = vmatprep.subr.mxu0 0.0
    %6706 = vmatpush1.msra.mxu0 0.0
    %6707 = vmatprep.subr.mxu0 0.0
    %6708 = vmatpush1.msra.mxu0 0.0
    %6709 = vmatprep.subr.mxu0 0.0
    %6710 = vmatpush1.msra.mxu0 0.0
    %6711 = vmatprep.subr.mxu0 0.0
    %6712 = vmatpush1.msra.mxu0 0.0
    %6713 = vmatprep.subr.mxu0 0.0
    %6714 = vmatpush1.msra.mxu0 0.0
    %6715 = vmatprep.subr.mxu0 0.0
    %6716 = vmatpush1.msra.mxu0 0.0
    %6717 = vmatprep.subr.mxu0 0.0
    %6718 = vmatpush1.msra.mxu0 0.0
    %6719 = vmatprep.subr.mxu0 0.0
    %6720 = vmatpush1.msra.mxu0 0.0
    %6721 = vmatprep.subr.mxu0 0.0
    %6722 = vmatpush1.msra.mxu0 0.0
    %6723 = vmatprep.subr.mxu0 0.0
    %6724 = vmatpush1.msra.mxu0 0.0
    %6725 = vmatprep.subr.mxu0 0.0
    %6726 = vmatpush1.msra.mxu0 0.0
    %6727 = vmatprep.subr.mxu0 0.0
    %6728 = vmatpush1.msra.mxu0 0.0
    %6729 = vmatprep.subr.mxu0 0.0
    %6730 = vmatpush1.msra.mxu0 0.0
    %6731 = vmatprep.subr.mxu0 0.0
    %6732 = vmatpush1.msra.mxu0 0.0
    %6733 = vmatprep.subr.mxu0 0.0
    %6734 = vmatpush1.msra.mxu0 0.0
    %6735 = vmatprep.mubr.f32.mxu0 0.0
    %6736 = vmatmul.mubr.f32.gmra.mrb[0].mxu0 %v6669
    %v6737 = vpop.f32.mrb[0].mxu0
    %v6738 = vadd.f32 0.0, %v6737
    %v6739 = vpop.f32.mrb[0].mxu0
    %6740 = vdwg.mxu0
    %v6742 = vsel %vm1095, %v6229, 0
    %6744 = vmatprep.subr.mxu0 0.0
    %6745 = vmatpush1.msra.mxu0 %v77
    %6746 = vmatprep.subr.mxu0 0.0
    %6747 = vmatpush1.msra.mxu0 0.0
    %6748 = vmatprep.subr.mxu0 0.0
    %6749 = vmatpush1.msra.mxu0 0.0
    %6750 = vmatprep.subr.mxu0 0.0
    %6751 = vmatpush1.msra.mxu0 0.0
    %6752 = vmatprep.subr.mxu0 0.0
    %6753 = vmatpush1.msra.mxu0 0.0
    %6754 = vmatprep.subr.mxu0 0.0
    %6755 = vmatpush1.msra.mxu0 0.0
    %6756 = vmatprep.subr.mxu0 0.0
    %6757 = vmatpush1.msra.mxu0 0.0
    %6758 = vmatprep.subr.mxu0 0.0
    %6759 = vmatpush1.msra.mxu0 0.0
    %6760 = vmatprep.subr.mxu0 0.0
    %6761 = vmatpush1.msra.mxu0 0.0
    %6762 = vmatprep.subr.mxu0 0.0
    %6763 = vmatpush1.msra.mxu0 0.0
    %6764 = vmatprep.subr.mxu0 0.0
    %6765 = vmatpush1.msra.mxu0 0.0
    %6766 = vmatprep.subr.mxu0 0.0
    %6767 = vmatpush1.msra.mxu0 0.0
    %6768 = vmatprep.subr.mxu0 0.0
    %6769 = vmatpush1.msra.mxu0 0.0
    %6770 = vmatprep.subr.mxu0 0.0
    %6771 = vmatpush1.msra.mxu0 0.0
    %6772 = vmatprep.subr.mxu0 0.0
    %6773 = vmatpush1.msra.mxu0 0.0
    %6774 = vmatprep.subr.mxu0 0.0
    %6775 = vmatpush1.msra.mxu0 0.0
    %6776 = vmatprep.subr.mxu0 0.0
    %6777 = vmatpush1.msra.mxu0 0.0
    %6778 = vmatprep.subr.mxu0 0.0
    %6779 = vmatpush1.msra.mxu0 0.0
    %6780 = vmatprep.subr.mxu0 0.0
    %6781 = vmatpush1.msra.mxu0 0.0
    %6782 = vmatprep.subr.mxu0 0.0
    %6783 = vmatpush1.msra.mxu0 0.0
    %6784 = vmatprep.subr.mxu0 0.0
    %6785 = vmatpush1.msra.mxu0 0.0
    %6786 = vmatprep.subr.mxu0 0.0
    %6787 = vmatpush1.msra.mxu0 0.0
    %6788 = vmatprep.subr.mxu0 0.0
    %6789 = vmatpush1.msra.mxu0 0.0
    %6790 = vmatprep.subr.mxu0 0.0
    %6791 = vmatpush1.msra.mxu0 0.0
    %6792 = vmatprep.subr.mxu0 0.0
    %6793 = vmatpush1.msra.mxu0 0.0
    %6794 = vmatprep.subr.mxu0 0.0
    %6795 = vmatpush1.msra.mxu0 0.0
    %6796 = vmatprep.subr.mxu0 0.0
    %6797 = vmatpush1.msra.mxu0 0.0
    %6798 = vmatprep.subr.mxu0 0.0
    %6799 = vmatpush1.msra.mxu0 0.0
    %6800 = vmatprep.subr.mxu0 0.0
    %6801 = vmatpush1.msra.mxu0 0.0
    %6802 = vmatprep.subr.mxu0 0.0
    %6803 = vmatpush1.msra.mxu0 0.0
    %6804 = vmatprep.subr.mxu0 0.0
    %6805 = vmatpush1.msra.mxu0 0.0
    %6806 = vmatprep.subr.mxu0 0.0
    %6807 = vmatpush1.msra.mxu0 0.0
    %6808 = vmatprep.mubr.f32.mxu0 0.0
    %6809 = vmatmul.mubr.f32.gmra.mrb[0].mxu0 %v6742
    %v6810 = vpop.f32.mrb[0].mxu0
    %v6811 = vadd.f32 0.0, %v6810
    %v6812 = vpop.f32.mrb[0].mxu0
    %6813 = vdwg.mxu0
    %v6814 = vcombine.low %v6300, %v6446
    %v6816 = vunpack.c.l.s4 1983009808
    %v6817 = vunpack.c.0.s8 %v6816
    %v6818 = vlaneseq
    %v6819 = vshrl.u32 %v6818, 7
    %v6820 = vsub.s32 %v6817, %v6819
    %v6821 = vrot.slane %v6814, %v6820
    %v6822 = vcombine.low %v6373, %v6519
    %v6824 = vunpack.c.l.s4 1983009808
    %v6825 = vunpack.c.0.s8 %v6824
    %v6826 = vlaneseq
    %v6827 = vshrl.u32 %v6826, 7
    %v6828 = vsub.s32 %v6825, %v6827
    %v6829 = vrot.slane %v6822, %v6828
    %v6830 = vcombine.low %v6592, %v6738
    %v6832 = vunpack.c.l.s4 1983009808
    %v6833 = vunpack.c.0.s8 %v6832
    %v6834 = vlaneseq
    %v6835 = vshrl.u32 %v6834, 7
    %v6836 = vsub.s32 %v6833, %v6835
    %v6837 = vrot.slane %v6830, %v6836
    %v6838 = vcombine.low %v6665, %v6811
    %v6840 = vunpack.c.l.s4 1983009808
    %v6841 = vunpack.c.0.s8 %v6840
    %v6842 = vlaneseq
    %v6843 = vshrl.u32 %v6842, 7
    %v6844 = vsub.s32 %v6841, %v6843
    %v6845 = vrot.slane %v6838, %v6844
    %v6846 = vcombine.low %v6821, %v6829
    %v6848 = vunpack.c.l.s4 1934713408
    %v6849 = vunpack.c.0.s8 %v6848
    %v6850 = vlaneseq
    %v6851 = vshrl.u32 %v6850, 7
    %v6852 = vsub.s32 %v6849, %v6851
    %v6853 = vrot.slane %v6846, %v6852
    %v6854 = vcombine.low %v6837, %v6845
    %v6856 = vunpack.c.l.s4 1934713408
    %v6857 = vunpack.c.0.s8 %v6856
    %v6858 = vlaneseq
    %v6859 = vshrl.u32 %v6858, 7
    %v6860 = vsub.s32 %v6857, %v6859
    %v6861 = vrot.slane %v6854, %v6860
    %v6862 = vcombine.low %v6853, %v6861
    %v6863 = vcombine.high %v6853, %v6861
    %6865 = vrot.lane.b32.xlu0 %v6863, 16
    %v6866 = vpop.permute.xlu0 %6865
    %v6868 = vsel %vm268, %v6862, %v6866
    %v6870 = vsel %vm123, %v6868, 0
    %6872 = vmatprep.subr.mxu0 0.0
    %6873 = vmatpush1.msra.mxu0 %v103
    %6874 = vmatprep.subr.mxu0 0.0
    %6875 = vmatpush1.msra.mxu0 %v104
    %6876 = vmatprep.subr.mxu0 0.0
    %6877 = vmatpush1.msra.mxu0 %v105
    %6878 = vmatprep.subr.mxu0 0.0
    %6879 = vmatpush1.msra.mxu0 %v106
    %6880 = vmatprep.subr.mxu0 0.0
    %6881 = vmatpush1.msra.mxu0 0.0
    %6882 = vmatprep.subr.mxu0 0.0
    %6883 = vmatpush1.msra.mxu0 0.0
    %6884 = vmatprep.subr.mxu0 0.0
    %6885 = vmatpush1.msra.mxu0 0.0
    %6886 = vmatprep.subr.mxu0 0.0
    %6887 = vmatpush1.msra.mxu0 0.0
    %6888 = vmatprep.subr.mxu0 0.0
    %6889 = vmatpush1.msra.mxu0 0.0
    %6890 = vmatprep.subr.mxu0 0.0
    %6891 = vmatpush1.msra.mxu0 0.0
    %6892 = vmatprep.subr.mxu0 0.0
    %6893 = vmatpush1.msra.mxu0 0.0
    %6894 = vmatprep.subr.mxu0 0.0
    %6895 = vmatpush1.msra.mxu0 0.0
    %6896 = vmatprep.subr.mxu0 0.0
    %6897 = vmatpush1.msra.mxu0 0.0
    %6898 = vmatprep.subr.mxu0 0.0
    %6899 = vmatpush1.msra.mxu0 0.0
    %6900 = vmatprep.subr.mxu0 0.0
    %6901 = vmatpush1.msra.mxu0 0.0
    %6902 = vmatprep.subr.mxu0 0.0
    %6903 = vmatpush1.msra.mxu0 0.0
    %6904 = vmatprep.subr.mxu0 0.0
    %6905 = vmatpush1.msra.mxu0 0.0
    %6906 = vmatprep.subr.mxu0 0.0
    %6907 = vmatpush1.msra.mxu0 0.0
    %6908 = vmatprep.subr.mxu0 0.0
    %6909 = vmatpush1.msra.mxu0 0.0
    %6910 = vmatprep.subr.mxu0 0.0
    %6911 = vmatpush1.msra.mxu0 0.0
    %6912 = vmatprep.subr.mxu0 0.0
    %6913 = vmatpush1.msra.mxu0 0.0
    %6914 = vmatprep.subr.mxu0 0.0
    %6915 = vmatpush1.msra.mxu0 0.0
    %6916 = vmatprep.subr.mxu0 0.0
    %6917 = vmatpush1.msra.mxu0 0.0
    %6918 = vmatprep.subr.mxu0 0.0
    %6919 = vmatpush1.msra.mxu0 0.0
    %6920 = vmatprep.subr.mxu0 0.0
    %6921 = vmatpush1.msra.mxu0 0.0
    %6922 = vmatprep.subr.mxu0 0.0
    %6923 = vmatpush1.msra.mxu0 0.0
    %6924 = vmatprep.subr.mxu0 0.0
    %6925 = vmatpush1.msra.mxu0 0.0
    %6926 = vmatprep.subr.mxu0 0.0
    %6927 = vmatpush1.msra.mxu0 0.0
    %6928 = vmatprep.subr.mxu0 0.0
    %6929 = vmatpush1.msra.mxu0 0.0
    %6930 = vmatprep.subr.mxu0 0.0
    %6931 = vmatpush1.msra.mxu0 0.0
    %6932 = vmatprep.subr.mxu0 0.0
    %6933 = vmatpush1.msra.mxu0 0.0
    %6934 = vmatprep.subr.mxu0 0.0
    %6935 = vmatpush1.msra.mxu0 0.0
    %6936 = vmatprep.mubr.f32.mxu0 0.0
    %6937 = vmatmul.mubr.f32.gmra.mrb[0].mxu0 %v6870
    %v6938 = vpop.f32.mrb[0].mxu0
    %v6939 = vadd.f32 %v1739, %v6938
    %v6940 = vpop.f32.mrb[0].mxu0
    %6941 = vdwg.mxu0
    %v6942 = vtanh.pop %v6939
    %v6944 = vsel %vm268, %v6942, 0
    %6946 = vmatprep.subr.mxu0 0.0
    %6947 = vmatpush1.msra.mxu0 %v108
    %6948 = vmatprep.subr.mxu0 0.0
    %6949 = vmatpush1.msra.mxu0 %v109
    %6950 = vmatprep.subr.mxu0 0.0
    %6951 = vmatpush1.msra.mxu0 0.0
    %6952 = vmatprep.subr.mxu0 0.0
    %6953 = vmatpush1.msra.mxu0 0.0
    %6954 = vmatprep.subr.mxu0 0.0
    %6955 = vmatpush1.msra.mxu0 0.0
    %6956 = vmatprep.subr.mxu0 0.0
    %6957 = vmatpush1.msra.mxu0 0.0
    %6958 = vmatprep.subr.mxu0 0.0
    %6959 = vmatpush1.msra.mxu0 0.0
    %6960 = vmatprep.subr.mxu0 0.0
    %6961 = vmatpush1.msra.mxu0 0.0
    %6962 = vmatprep.subr.mxu0 0.0
    %6963 = vmatpush1.msra.mxu0 0.0
    %6964 = vmatprep.subr.mxu0 0.0
    %6965 = vmatpush1.msra.mxu0 0.0
    %6966 = vmatprep.subr.mxu0 0.0
    %6967 = vmatpush1.msra.mxu0 0.0
    %6968 = vmatprep.subr.mxu0 0.0
    %6969 = vmatpush1.msra.mxu0 0.0
    %6970 = vmatprep.subr.mxu0 0.0
    %6971 = vmatpush1.msra.mxu0 0.0
    %6972 = vmatprep.subr.mxu0 0.0
    %6973 = vmatpush1.msra.mxu0 0.0
    %6974 = vmatprep.subr.mxu0 0.0
    %6975 = vmatpush1.msra.mxu0 0.0
    %6976 = vmatprep.subr.mxu0 0.0
    %6977 = vmatpush1.msra.mxu0 0.0
    %6978 = vmatprep.subr.mxu0 0.0
    %6979 = vmatpush1.msra.mxu0 0.0
    %6980 = vmatprep.subr.mxu0 0.0
    %6981 = vmatpush1.msra.mxu0 0.0
    %6982 = vmatprep.subr.mxu0 0.0
    %6983 = vmatpush1.msra.mxu0 0.0
    %6984 = vmatprep.subr.mxu0 0.0
    %6985 = vmatpush1.msra.mxu0 0.0
    %6986 = vmatprep.subr.mxu0 0.0
    %6987 = vmatpush1.msra.mxu0 0.0
    %6988 = vmatprep.subr.mxu0 0.0
    %6989 = vmatpush1.msra.mxu0 0.0
    %6990 = vmatprep.subr.mxu0 0.0
    %6991 = vmatpush1.msra.mxu0 0.0
    %6992 = vmatprep.subr.mxu0 0.0
    %6993 = vmatpush1.msra.mxu0 0.0
    %6994 = vmatprep.subr.mxu0 0.0
    %6995 = vmatpush1.msra.mxu0 0.0
    %6996 = vmatprep.subr.mxu0 0.0
    %6997 = vmatpush1.msra.mxu0 0.0
    %6998 = vmatprep.subr.mxu0 0.0
    %6999 = vmatpush1.msra.mxu0 0.0
    %7000 = vmatprep.subr.mxu0 0.0
    %7001 = vmatpush1.msra.mxu0 0.0
    %7002 = vmatprep.subr.mxu0 0.0
    %7003 = vmatpush1.msra.mxu0 0.0
    %7004 = vmatprep.subr.mxu0 0.0
    %7005 = vmatpush1.msra.mxu0 0.0
    %7006 = vmatprep.subr.mxu0 0.0
    %7007 = vmatpush1.msra.mxu0 0.0
    %7008 = vmatprep.subr.mxu0 0.0
    %7009 = vmatpush1.msra.mxu0 0.0
    %7010 = vmatprep.mubr.f32.mxu0 0.0
    %7011 = vmatmul.mubr.f32.gmra.mrb[0].mxu0 %v6944
    %v7012 = vpop.f32.mrb[0].mxu0
    %v7013 = vadd.f32 %v5404, %v7012
    %v7014 = vpop.f32.mrb[0].mxu0
    %7015 = vdwg.mxu0
    %v7016 = vxor.u32 %v7013, 2147483648
    %v7017 = vmul.f32 %v7016, 1.442695
    %v7018 = vpow.pop %v7017
    %v7019 = vadd.f32 %v7018, 1.0
    %v7020 = vrcp.pop %v7019
    %v7021 = vmul.f32 1.0, %v7020
    %v7022 = vtanh.pop %v7013
    %v7023 = vmul.f32 %v7021, %v5325
    %7025 = vrot.lane.b32.xlu0 %v7022, 64
    %v7026 = vpop.permute.xlu0 %7025
    %v7028 = vmul.f32 %v7021, %v7026
    %7030 = vrot.lane.b32.xlu0 %v7028, 32
    %v7031 = vpop.permute.xlu0 %7030
    %v7033 = vadd.f32 %v7023, %v7031
    %v7034 = vtanh.pop %v7033
    %7036 = vrot.lane.b32.xlu0 %v7034, 64
    %v7037 = vpop.permute.xlu0 %7036
    %v7039 = vmul.f32 %v7021, %v7037
    %7041 = vrot.lane.b32.xlu0 %v3623, 64
    %v7042 = vpop.permute.xlu0 %7041
    %7044 = vrot.lane.b32.xlu0 %v5331, 96
    %v7045 = vpop.permute.xlu0 %7044
    %v7047 = vsel %vm123, %v1918, %v7042
    %vm7048 = vcmask 523264
    %v7049 = vsel %vm7048, %v7047, %v7045
    %vm7050 = vcmask 785408
    %v7051 = vsel %vm7050, %v7049, %v7039
    %7052 = vst [vmem:[#allocation9] sm:$0xff] %v7051
    %7054 = vrot.lane.b32.xlu0 %v7039, 32
    %v7055 = vpop.permute.xlu0 %7054
    %7057 = vst.msk [vmem:[#allocation2] sm:$0xff] %vm123, %v7055
    %7059 = vrot.lane.b32.xlu0 %v7033, 96
    %v7060 = vpop.permute.xlu0 %7059
    %7062 = vst.msk [vmem:[#allocation3] sm:$0xff] %vm123, %v7060
    // Predicated region
    $region50: #{tpu_custom_call.1} parent=1 // pred_check
      _
    $region51: #{tpu_custom_call.1} parent=1 // pred_check_branch
      %7064 = sbr.rel (0) target = $region53
    $region52: #{tpu_custom_call.1} parent=1 // pred_region
      %s7066 = ssub.s32 128, 128
      %7067 = vsyncadd [#allocation6], %s7066
      %s7069 = sshll.u32 [#allocation9], 4
      %s7070 = int_to_ptr.vmem [resolvable:$true] %s7069
      %7072 = dma.vmem_to_hbm [thread:$0]  %s7070, 128, %s9, [#allocation6]
    $region53: #{tpu_custom_call.1} parent=1 // pred_fallthru
      _
    // Predicated region
    $region54: #{tpu_custom_call.1} parent=1 // pred_check
      _
    $region55: #{tpu_custom_call.1} parent=1 // pred_check_branch
      %7074 = sbr.rel (0) target = $region57
    $region56: #{tpu_custom_call.1} parent=1 // pred_region
      %7075 = dma.done [#allocation6], 128
    $region57: #{tpu_custom_call.1} parent=1 // pred_fallthru
      _
    %7076 = vsyncpa [#allocation5], 1
    %7077 = vsyncpa [#allocation8], 1
    %7078 = vsyncpa [#allocation6], 1

</llo_original>
